<compile_context>
chip_gen: v7x
topology: tpu7x:2x2x1
jax: 0.10.0
libtpu: 0.0.40
codegen_flags: <defaults>
</compile_context>

<pallas_src>
import math
import functools

import jax
import jax.numpy as jnp
from jax import lax
from jax.experimental import pallas as pl
from jax.experimental.pallas import tpu as pltpu


# ----------------------------------------------------------------------------
# helpers
# ----------------------------------------------------------------------------
_VMEM_LIMIT = 32 * 1024 * 1024      # safe on v5e / v6e / v7x (64 MiB phys min)


def _round_up(x, m):
    return (x + m - 1) // m * m


def _pick_tile(dim_padded, prefer=512):
    """Largest of (prefer, 256, 128) dividing dim_padded (a multiple of 128)."""
    for t in (prefer, 256, 128):
        if dim_padded % t == 0:
            return t
    return dim_padded


def _pick_m_tile(M):
    """M tile: prefer 512/256 (fills 256^2 MXU, minimizes weight re-streaming)."""
    for t in (512, 256, 128):
        if M % t == 0:
            return t
    for t in (512, 256, 128):
        if M >= t:
            return t
    return _round_up(M, 16)


# ----------------------------------------------------------------------------
# Pallas kernel: tiled matmul + bias (+ optional fused activation)
#   bf16 operands on the MXU, f32 accumulation in VMEM scratch.
# ----------------------------------------------------------------------------
def _matmul_bias_kernel(x_ref, w_ref, b_ref, o_ref, acc_ref, *, activation):
    k = pl.program_id(2)

    @pl.when(k == 0)
    def _():
        acc_ref[...] = jnp.zeros(acc_ref.shape, jnp.float32)

    acc_ref[...] += jnp.dot(x_ref[...], w_ref[...],
                            preferred_element_type=jnp.float32)

    @pl.when(k == pl.num_programs(2) - 1)
    def _():
        r = acc_ref[...] + b_ref[...]
        if activation is not None:
            r = activation(r)
        o_ref[...] = r.astype(o_ref.dtype)


def linear(x, lp, activation=None, out_dtype=jnp.float32):
    """y = act(x @ W + b).  lp holds pre-padded bf16 W and unpadded f32 b."""
    *lead, K = x.shape
    Kp, Np = lp["w"].shape
    b = lp["b"]
    N = b.shape[0]                           # static (plain array shape)

    x2 = x.reshape(-1, K)
    M = x2.shape[0]
    TM = _pick_m_tile(M)
    Mp = _round_up(M, TM)
    TK = _pick_tile(Kp, 512)
    TN = _pick_tile(Np, 512)

    xp = jnp.pad(x2.astype(jnp.bfloat16), ((0, Mp - M), (0, Kp - K)))
    bp = jnp.pad(b.astype(jnp.float32), (0, Np - N))[None, :]

    kernel = functools.partial(_matmul_bias_kernel, activation=activation)

    out = pl.pallas_call(
        kernel,
        out_shape=jax.ShapeDtypeStruct((Mp, Np), out_dtype),
        grid=(Mp // TM, Np // TN, Kp // TK),
        in_specs=[
            pl.BlockSpec((TM, TK), lambda i, j, k: (i, k)),
            pl.BlockSpec((TK, TN), lambda i, j, k: (k, j)),
            pl.BlockSpec((1, TN), lambda i, j, k: (0, j)),
        ],
        out_specs=pl.BlockSpec((TM, TN), lambda i, j, k: (i, j)),
        scratch_shapes=[pltpu.VMEM((TM, TN), jnp.float32)],
        compiler_params=pltpu.CompilerParams(
            dimension_semantics=("parallel", "parallel", "arbitrary"),
            vmem_limit_bytes=_VMEM_LIMIT,
        ),
    )(xp, lp["w"], bp)
    return out[:M, :N].reshape(*lead, N)


def dense_small(x, w, b):
    """Tiny matmuls (M == batch): keep in XLA, no 128-row padding."""
    return jnp.dot(x, w) + b


# ----------------------------------------------------------------------------
# Pallas kernel: flash-attention (online softmax), bf16 output in (B, L, H*Dp)
# ----------------------------------------------------------------------------
def _flash_attn_kernel(q_ref, k_ref, v_ref, o_ref, m_ref, l_ref, acc_ref,
                       *, scale, n_kv_pad):
    kv = pl.program_id(3)

    @pl.when(kv == 0)
    def _():
        m_ref[...] = jnp.full(m_ref.shape, -1e30, jnp.float32)
        l_ref[...] = jnp.zeros(l_ref.shape, jnp.float32)
        acc_ref[...] = jnp.zeros(acc_ref.shape, jnp.float32)

    q = q_ref[0, 0]                               # (TQ, Dp)  bf16
    k = k_ref[0, 0]                               # (TKV, Dp) bf16
    v = v_ref[0, 0]                               # (TKV, Dp) bf16

    # bf16 MXU matmul, f32 accumulation; softmax math in f32 (v5e safe).
    s = lax.dot_general(q, k, (((1,), (1,)), ((), ())),
                        preferred_element_type=jnp.float32) * scale

    m_prev = m_ref[...]
    m_new = jnp.maximum(m_prev, jnp.max(s, axis=-1, keepdims=True))
    alpha = jnp.exp(m_prev - m_new)
    p = jnp.exp(s - m_new)
    l_ref[...] = alpha * l_ref[...] + jnp.sum(p, axis=-1, keepdims=True)
    acc_ref[...] = alpha * acc_ref[...] + jnp.dot(
        p.astype(v.dtype), v, preferred_element_type=jnp.float32)
    m_ref[...] = m_new

    @pl.when(kv == pl.num_programs(3) - 1)
    def _():
        l = l_ref[...]
        if n_kv_pad > 0:
            # Padded K rows are zero => their scores are exactly 0, so each
            # contributes exp(-m_final) to l (V rows are zero => acc unchanged).
            # Subtract that once here instead of masking every kv tile.
            l = l - float(n_kv_pad) * jnp.exp(-m_ref[...])
        o_ref[0] = (acc_ref[...] *
                    pl.reciprocal(l, approx=True)).astype(o_ref.dtype)


def attention_pallas(q, k, v):
    """Scaled-dot-product attention.  q,k,v: (B,H,L,D) -> bf16 (B, L, H*D)."""
    B, H, L, D = q.shape
    Dp = _round_up(D, 128)
    # TODO(synk): pack multiple small heads into one 128-lane block when D<128.
    TQ = min(128, _round_up(L, 16))
    TKV = min(512, _round_up(L, 16))
    Lq = _round_up(L, TQ)
    Lk = _round_up(L, TKV)

    def pad_bhld(x, Lp):
        return jnp.pad(x.astype(jnp.bfloat16),
                       ((0, 0), (0, 0), (0, Lp - L), (0, Dp - D)))

    qf = pad_bhld(q, Lq)
    kf = pad_bhld(k, Lk)
    vf = pad_bhld(v, Lk)

    kernel = functools.partial(_flash_attn_kernel,
                               scale=1.0 / math.sqrt(D), n_kv_pad=Lk - L)

    out = pl.pallas_call(
        kernel,
        out_shape=jax.ShapeDtypeStruct((B, Lq, H * Dp), jnp.bfloat16),
        grid=(B, H, Lq // TQ, Lk // TKV),
        in_specs=[
            pl.BlockSpec((1, 1, TQ, Dp), lambda b, h, qi, kv: (b, h, qi, 0)),
            pl.BlockSpec((1, 1, TKV, Dp), lambda b, h, qi, kv: (b, h, kv, 0)),
            pl.BlockSpec((1, 1, TKV, Dp), lambda b, h, qi, kv: (b, h, kv, 0)),
        ],
        # write straight into the (B, Lq, H*Dp) slab at (batch, q_tile, head)
        out_specs=pl.BlockSpec((1, TQ, Dp), lambda b, h, qi, kv: (b, qi, h)),
        scratch_shapes=[
            pltpu.VMEM((TQ, 1), jnp.float32),      # running max
            pltpu.VMEM((TQ, 1), jnp.float32),      # running denom
            pltpu.VMEM((TQ, Dp), jnp.float32),     # accumulator
        ],
        compiler_params=pltpu.CompilerParams(
            dimension_semantics=("parallel", "parallel", "parallel",
                                 "arbitrary"),
            vmem_limit_bytes=_VMEM_LIMIT,
        ),
    )(qf, kf, vf)

    out = out[:, :L]
    if Dp != D:    # toy head_dim < 128: strip per-head padding columns
        out = out.reshape(B, L, H, Dp)[..., :D].reshape(B, L, H * D)
    return out


# ----------------------------------------------------------------------------
# Plain-JAX glue (positional embedding, norms, activations)
# ----------------------------------------------------------------------------
def silu(x):
    return x * jax.nn.sigmoid(x)


def gelu_tanh(x):
    return jax.nn.gelu(x, approximate=True)


def layer_norm(x, eps=1e-6):
    x = x.astype(jnp.float32)
    mean = jnp.mean(x, axis=-1, keepdims=True)
    var = jnp.mean((x - mean) ** 2, axis=-1, keepdims=True)
    return (x - mean) * lax.rsqrt(var + eps)


def rms_norm(x, scale, eps=1e-6):
    xf = x.astype(jnp.float32)
    rrms = lax.rsqrt(jnp.mean(xf * xf, axis=-1, keepdims=True) + eps)
    return xf * rrms * scale


def timestep_embedding(t, dim, max_period=10000, time_factor=1000.0):
    t = time_factor * t.astype(jnp.float32)
    half = dim // 2
    freqs = jnp.exp(-math.log(max_period) *
                    jnp.arange(half, dtype=jnp.float32) / half)
    args = t[:, None] * freqs[None]
    return jnp.concatenate([jnp.cos(args), jnp.sin(args)], axis=-1)


def rope(pos, dim, theta):
    scale = jnp.arange(0, dim, 2, dtype=jnp.float32) / dim
    omega = 1.0 / (float(theta) ** scale)
    out = jnp.einsum("bn,d->bnd", pos.astype(jnp.float32), omega)
    out = jnp.stack([jnp.cos(out), -jnp.sin(out), jnp.sin(out), jnp.cos(out)],
                    axis=-1)
    return out.reshape(*out.shape[:-1], 2, 2)          # (B, L, dim//2, 2, 2)


def embed_nd(ids, axes_dim, theta):
    n_axes = ids.shape[-1]
    emb = jnp.concatenate(
        [rope(ids[..., i], axes_dim[i], theta) for i in range(n_axes)], axis=-3)
    return emb[:, None]                                # (B, 1, L, pe//2, 2, 2)


def apply_rope(xq, xk, freqs_cis):
    B, H, L, D = xq.shape
    xq_ = xq.astype(jnp.float32).reshape(B, H, L, D // 2, 1, 2)
    xk_ = xk.astype(jnp.float32).reshape(B, H, L, D // 2, 1, 2)
    xq_out = freqs_cis[..., 0] * xq_[..., 0] + freqs_cis[..., 1] * xq_[..., 1]
    xk_out = freqs_cis[..., 0] * xk_[..., 0] + freqs_cis[..., 1] * xk_[..., 1]
    return xq_out.reshape(B, H, L, D), xk_out.reshape(B, H, L, D)


def attention(q, k, v, pe):
    q, k = apply_rope(q, k, pe)
    return attention_pallas(q, k, v)


def split_qkv(qkv, num_heads):
    B, L, C3 = qkv.shape
    head_dim = C3 // (3 * num_heads)
    qkv = qkv.reshape(B, L, 3, num_heads, head_dim)
    qkv = jnp.transpose(qkv, (2, 0, 3, 1, 4))          # (3, B, H, L, D)
    return qkv[0], qkv[1], qkv[2]


# ----------------------------------------------------------------------------
# Flux sub-modules (functional)
# ----------------------------------------------------------------------------
def mlp_embedder(x, p):
    h = dense_small(x, p["in_w"], p["in_b"])
    return dense_small(silu(h), p["out_w"], p["out_b"])


def modulation(vec, p, double):
    out = dense_small(silu(vec), p["w"], p["b"])[:, None, :]
    chunks = jnp.split(out, 6 if double else 3, axis=-1)
    mod1 = dict(shift=chunks[0], scale=chunks[1], gate=chunks[2])
    mod2 = dict(shift=chunks[3], scale=chunks[4], gate=chunks[5]) if double else None
    return mod1, mod2


def double_stream_block(img, txt, vec, pe, p, num_heads):
    Lt = txt.shape[1]
    img_mod1, img_mod2 = modulation(vec, p["img_mod"], double=True)
    txt_mod1, txt_mod2 = modulation(vec, p["txt_mod"], double=True)

    img_m = (1.0 + img_mod1["scale"]) * layer_norm(img) + img_mod1["shift"]
    img_qkv = linear(img_m, p["img_qkv"], out_dtype=jnp.bfloat16)
    img_q, img_k, img_v = split_qkv(img_qkv, num_heads)
    img_q = rms_norm(img_q, p["img_qnorm"])
    img_k = rms_norm(img_k, p["img_knorm"])

    txt_m = (1.0 + txt_mod1["scale"]) * layer_norm(txt) + txt_mod1["shift"]
    txt_qkv = linear(txt_m, p["txt_qkv"], out_dtype=jnp.bfloat16)
    txt_q, txt_k, txt_v = split_qkv(txt_qkv, num_heads)
    txt_q = rms_norm(txt_q, p["txt_qnorm"])
    txt_k = rms_norm(txt_k, p["txt_knorm"])

    q = jnp.concatenate([txt_q, img_q], axis=2)
    k = jnp.concatenate([txt_k, img_k], axis=2)
    v = jnp.concatenate([txt_v, img_v], axis=2)

    attn = attention(q, k, v, pe)                       # bf16 (B, L, H*D)
    txt_attn, img_attn = attn[:, :Lt], attn[:, Lt:]

    img = img + img_mod1["gate"] * linear(img_attn, p["img_proj"])
    img_mlp_in = (1.0 + img_mod2["scale"]) * layer_norm(img) + img_mod2["shift"]
    img_h = linear(img_mlp_in, p["img_mlp0"],
                   activation=gelu_tanh, out_dtype=jnp.bfloat16)
    img = img + img_mod2["gate"] * linear(img_h, p["img_mlp2"])

    txt = txt + txt_mod1["gate"] * linear(txt_attn, p["txt_proj"])
    txt_mlp_in = (1.0 + txt_mod2["scale"]) * layer_norm(txt) + txt_mod2["shift"]
    txt_h = linear(txt_mlp_in, p["txt_mlp0"],
                   activation=gelu_tanh, out_dtype=jnp.bfloat16)
    txt = txt + txt_mod2["gate"] * linear(txt_h, p["txt_mlp2"])
    return img, txt


def single_stream_block(x, vec, pe, p, num_heads, hidden_size, mlp_hidden):
    mod, _ = modulation(vec, p["mod"], double=False)
    x_mod = (1.0 + mod["scale"]) * layer_norm(x) + mod["shift"]
    lin1 = linear(x_mod, p["lin1"], out_dtype=jnp.bfloat16)
    qkv, mlp = lin1[..., :3 * hidden_size], lin1[..., 3 * hidden_size:]
    q, k, v = split_qkv(qkv, num_heads)
    q = rms_norm(q, p["qnorm"])
    k = rms_norm(k, p["knorm"])
    attn = attention(q, k, v, pe)                       # bf16
    # bf16 concat (both halves already bf16) feeding the lin2 matmul
    out = linear(jnp.concatenate([attn, gelu_tanh(mlp)], axis=2), p["lin2"])
    return x + mod["gate"] * out


def last_layer(x, vec, p):
    mod = dense_small(silu(vec), p["ada_w"], p["ada_b"])
    shift, scale = jnp.split(mod, 2, axis=1)
    x = (1.0 + scale[:, None, :]) * layer_norm(x) + shift[:, None, :]
    return linear(x, p["lin"])


# ----------------------------------------------------------------------------
# Full Flux forward
# ----------------------------------------------------------------------------
def flux_forward(params, x, img_ids, txt, txt_ids, t, y, *, cfg):
    if x.ndim != 3 or txt.ndim != 3:
        raise ValueError("Input img and txt tensors must have 3 dimensions.")
    num_heads = cfg["num_heads"]
    hidden = cfg["hidden_size"]
    mlp_hidden = int(hidden * cfg["mlp_ratio"])

    img = linear(x, params["img_in"])
    vec = mlp_embedder(timestep_embedding(t, 256), params["time_in"])
    vec = vec + mlp_embedder(y, params["vector_in"])
    txt_h = linear(txt, params["txt_in"])

    ids = jnp.concatenate([txt_ids, img_ids], axis=1)
    pe = embed_nd(ids, cfg["axes_dim"], cfg["theta"])

    for blk in params["double_blocks"]:
        img, txt_h = double_stream_block(img, txt_h, vec, pe, blk, num_heads)

    x_cat = jnp.concatenate([txt_h, img], axis=1)
    for blk in params["single_blocks"]:
        x_cat = single_stream_block(x_cat, vec, pe, blk, num_heads, hidden,
                                    mlp_hidden)
    img = x_cat[:, txt_h.shape[1]:, ...]

    return last_layer(img, vec, params["final_layer"])


# ----------------------------------------------------------------------------
# Deterministic parameter construction (weights pre-padded + pre-cast to bf16;
# biases kept UNPADDED so output widths stay static under jit)
# ----------------------------------------------------------------------------
def _small_dense(key, fan_in, fan_out, std=0.02):
    kw, kb = jax.random.split(key)
    w = jax.random.normal(kw, (fan_in, fan_out), jnp.float32) * std
    b = jax.random.normal(kb, (fan_out,), jnp.float32) * std
    return w, b


def _pallas_dense(key, fan_in, fan_out, std=0.02, zero_bias=False):
    kw, kb = jax.random.split(key)
    w = jax.random.normal(kw, (fan_in, fan_out), jnp.float32) * std
    if zero_bias:
        b = jnp.zeros((fan_out,), jnp.float32)
    else:
        b = jax.random.normal(kb, (fan_out,), jnp.float32) * std
    Kp = _round_up(fan_in, 128)
    Np = _round_up(fan_out, 128)
    wp = jnp.pad(w.astype(jnp.bfloat16), ((0, Kp - fan_in), (0, Np - fan_out)))
    return dict(w=wp, b=b)      # b unpadded -> N = b.shape[0] is static


def init_flux_params(key, cfg):
    hidden = cfg["hidden_size"]
    heads = cfg["num_heads"]
    head_dim = hidden // heads
    mlp_hidden = int(hidden * cfg["mlp_ratio"])
    keys = iter(jax.random.split(key, 512))

    p = {}
    p["img_in"] = _pallas_dense(next(keys), cfg["in_channels"], hidden)
    p["txt_in"] = _pallas_dense(next(keys), cfg["context_in_dim"], hidden)

    def mlp_emb(in_dim):
        iw, ib = _small_dense(next(keys), in_dim, hidden)
        ow, ob = _small_dense(next(keys), hidden, hidden)
        return dict(in_w=iw, in_b=ib, out_w=ow, out_b=ob)

    p["time_in"] = mlp_emb(256)
    p["vector_in"] = mlp_emb(cfg["vec_in_dim"])

    def double_block():
        blk = {}
        for pre in ("img", "txt"):
            mw, mb = _small_dense(next(keys), hidden, 6 * hidden)
            blk[f"{pre}_mod"] = dict(w=mw, b=mb)
            blk[f"{pre}_qkv"] = _pallas_dense(next(keys), hidden, 3 * hidden,
                                              zero_bias=not cfg["qkv_bias"])
            blk[f"{pre}_qnorm"] = jnp.ones((head_dim,), jnp.float32)
            blk[f"{pre}_knorm"] = jnp.ones((head_dim,), jnp.float32)
            blk[f"{pre}_proj"] = _pallas_dense(next(keys), hidden, hidden)
            blk[f"{pre}_mlp0"] = _pallas_dense(next(keys), hidden, mlp_hidden)
            blk[f"{pre}_mlp2"] = _pallas_dense(next(keys), mlp_hidden, hidden)
        return blk

    def single_block():
        blk = {}
        mw, mb = _small_dense(next(keys), hidden, 3 * hidden)
        blk["mod"] = dict(w=mw, b=mb)
        blk["lin1"] = _pallas_dense(next(keys), hidden, 3 * hidden + mlp_hidden)
        blk["lin2"] = _pallas_dense(next(keys), hidden + mlp_hidden, hidden)
        blk["qnorm"] = jnp.ones((head_dim,), jnp.float32)
        blk["knorm"] = jnp.ones((head_dim,), jnp.float32)
        return blk

    p["double_blocks"] = [double_block() for _ in range(cfg["depth"])]
    p["single_blocks"] = [single_block()
                          for _ in range(cfg["depth_single_blocks"])]

    aw, ab = _small_dense(next(keys), hidden, 2 * hidden)
    p["final_layer"] = dict(
        ada_w=aw, ada_b=ab,
        lin=_pallas_dense(next(keys), hidden, 1 * 1 * cfg["in_channels"]))
    return p


# ----------------------------------------------------------------------------
# Main
# ----------------------------------------------------------------------------
if __name__ == "__main__":
    cfg = dict(
        in_channels=16,
        vec_in_dim=32,
        context_in_dim=32,
        hidden_size=128,
        mlp_ratio=4.0,
        num_heads=4,
        depth=1,
        depth_single_blocks=1,
        axes_dim=[8, 12, 12],      # sum == hidden_size // num_heads == 32
        theta=10_000,
        qkv_bias=True,
        guidance_embed=False,       # TODO(synk): guidance embedding branch not exercised
    )

    B, L_img, L_txt = 2, 24, 8

    key = jax.random.PRNGKey(0)
    k_par, k_x, k_txt, k_t, k_y, k_iid, k_tid = jax.random.split(key, 7)

    params = init_flux_params(k_par, cfg)

    x = jax.random.normal(k_x, (B, L_img, cfg["in_channels"]), jnp.float32)
    txt = jax.random.normal(k_txt, (B, L_txt, cfg["context_in_dim"]), jnp.float32)
    t = jax.random.uniform(k_t, (B,), jnp.float32)
    y = jax.random.normal(k_y, (B, cfg["vec_in_dim"]), jnp.float32)
    img_ids = jax.random.randint(k_iid, (B, L_img, 3), 0, 16).astype(jnp.float32)
    txt_ids = jnp.zeros((B, L_txt, 3), jnp.float32)

    fwd = jax.jit(functools.partial(flux_forward, cfg=cfg))
    out = fwd(params, x, img_ids, txt, txt_ids, t, y)
    out = jax.block_until_ready(out)

    assert out.shape == (B, L_img, cfg["in_channels"]), out.shape
    assert bool(jnp.all(jnp.isfinite(out)))
    print("KERNEL_OK")
</pallas_src>

<mosaic_0001>
module attributes {stable_mosaic.version = 11 : i64} {
  func.func @_matmul_bias_kernel(%arg0: i32, %arg1: i32, %arg2: i32, %arg3: memref<48x128xbf16, #tpu.memory_space<vmem>>, %arg4: memref<128x128xbf16, #tpu.memory_space<vmem>>, %arg5: memref<1x128xf32, #tpu.memory_space<vmem>>, %arg6: memref<48x128xf32, #tpu.memory_space<vmem>>, %arg7: memref<48x128xf32, #tpu.memory_space<vmem>>) attributes {dimension_semantics = [#tpu.dimension_semantics<parallel>, #tpu.dimension_semantics<parallel>, #tpu.dimension_semantics<arbitrary>], iteration_bounds = array<i64: 1, 1, 1>, scalar_prefetch = 0 : i64, scratch_operands = 1 : i64, tpu.core_type = #tpu.core_type<tc>, window_params = [{transform_indices = @transform_0, window_bounds = array<i64: 48, 128>}, {transform_indices = @transform_1, window_bounds = array<i64: 128, 128>}, {transform_indices = @transform_2, window_bounds = array<i64: 1, 128>}, {transform_indices = @transform_3, window_bounds = array<i64: 48, 128>}]} {
    %c0_i32 = arith.constant 0 : i32
    %0 = arith.cmpi eq, %arg2, %c0_i32 : i32
    %1 = arith.extui %0 : i1 to i32
    %c0_i32_0 = arith.constant 0 : i32
    %2 = arith.cmpi ne, %1, %c0_i32_0 : i32
    scf.if %2 {
      %cst_10 = arith.constant 0.000000e+00 : f32
      %12 = vector.broadcast %cst_10 : f32 to vector<48x128xf32>
      %c0_11 = arith.constant 0 : index
      %c0_12 = arith.constant 0 : index
      %13 = vector.load %arg7[%c0_11, %c0_12] : memref<48x128xf32, #tpu.memory_space<vmem>>, vector<48x128xf32>
      tpu.vector_store %arg7[%c0_11, %c0_12], %12 {strides = array<i32>} : memref<48x128xf32, #tpu.memory_space<vmem>>, vector<48x128xf32>,
    } else {
    }
    %c0 = arith.constant 0 : index
    %c0_1 = arith.constant 0 : index
    %3 = vector.load %arg7[%c0, %c0_1] : memref<48x128xf32, #tpu.memory_space<vmem>>, vector<48x128xf32>
    %c0_2 = arith.constant 0 : index
    %c0_3 = arith.constant 0 : index
    %4 = vector.load %arg3[%c0_2, %c0_3] : memref<48x128xbf16, #tpu.memory_space<vmem>>, vector<48x128xbf16>
    %c0_4 = arith.constant 0 : index
    %c0_5 = arith.constant 0 : index
    %5 = vector.load %arg4[%c0_4, %c0_5] : memref<128x128xbf16, #tpu.memory_space<vmem>>, vector<128x128xbf16>
    %cst = arith.constant dense<0.000000e+00> : vector<48x128xf32>
    %6 = tpu.matmul %4, %5, %cst {dimension_numbers = #tpu.dot_dimension_numbers<[1], [0], [0], [1], [0, 0, 1, 1], [], []>} : vector<48x128xbf16>, vector<128x128xbf16>, vector<48x128xf32> -> vector<48x128xf32>
    %7 = arith.addf %3, %6 : vector<48x128xf32>
    %c0_6 = arith.constant 0 : index
    %c0_7 = arith.constant 0 : index
    %8 = vector.load %arg7[%c0_6, %c0_7] : memref<48x128xf32, #tpu.memory_space<vmem>>, vector<48x128xf32>
    tpu.vector_store %arg7[%c0_6, %c0_7], %7 {strides = array<i32>} : memref<48x128xf32, #tpu.memory_space<vmem>>, vector<48x128xf32>,
    %c0_i32_8 = arith.constant 0 : i32
    %9 = arith.cmpi eq, %arg2, %c0_i32_8 : i32
    %10 = arith.extui %9 : i1 to i32
    %c0_i32_9 = arith.constant 0 : i32
    %11 = arith.cmpi ne, %10, %c0_i32_9 : i32
    scf.if %11 {
      %c0_10 = arith.constant 0 : index
      %c0_11 = arith.constant 0 : index
      %12 = vector.load %arg7[%c0_10, %c0_11] : memref<48x128xf32, #tpu.memory_space<vmem>>, vector<48x128xf32>
      %c0_12 = arith.constant 0 : index
      %c0_13 = arith.constant 0 : index
      %13 = vector.load %arg5[%c0_12, %c0_13] : memref<1x128xf32, #tpu.memory_space<vmem>>, vector<1x128xf32>
      %14 = vector.broadcast %13 : vector<1x128xf32> to vector<48x128xf32>
      %15 = arith.addf %12, %14 : vector<48x128xf32>
      %c0_14 = arith.constant 0 : index
      %c0_15 = arith.constant 0 : index
      %16 = vector.load %arg6[%c0_14, %c0_15] : memref<48x128xf32, #tpu.memory_space<vmem>>, vector<48x128xf32>
      tpu.vector_store %arg6[%c0_14, %c0_15], %15 {strides = array<i32>} : memref<48x128xf32, #tpu.memory_space<vmem>>, vector<48x128xf32>,
    } else {
    }
    return
  }
  func.func @transform_0(%arg0: i32, %arg1: i32, %arg2: i32) -> (i32, i32) {
    %c0_i32 = arith.constant 0 : i32
    return %arg0, %arg2 : i32, i32
  }
  func.func @transform_1(%arg0: i32, %arg1: i32, %arg2: i32) -> (i32, i32) {
    %c0_i32 = arith.constant 0 : i32
    return %arg2, %arg1 : i32, i32
  }
  func.func @transform_2(%arg0: i32, %arg1: i32, %arg2: i32) -> (i32, i32) {
    %c0_i32 = arith.constant 0 : i32
    %c0_i32_0 = arith.constant 0 : i32
    return %c0_i32, %arg1 : i32, i32
  }
  func.func @transform_3(%arg0: i32, %arg1: i32, %arg2: i32) -> (i32, i32) {
    %c0_i32 = arith.constant 0 : i32
    return %arg0, %arg1 : i32, i32
  }
}

module attributes {stable_mosaic.version = 11 : i64} {
  func.func @_matmul_bias_kernel(%arg0: i32, %arg1: i32, %arg2: i32, %arg3: memref<48x128xbf16, #tpu.memory_space<vmem>>, %arg4: memref<128x128xbf16, #tpu.memory_space<vmem>>, %arg5: memref<1x128xf32, #tpu.memory_space<vmem>>, %arg6: memref<48x128xbf16, #tpu.memory_space<vmem>>, %arg7: memref<48x128xf32, #tpu.memory_space<vmem>>) attributes {dimension_semantics = [#tpu.dimension_semantics<parallel>, #tpu.dimension_semantics<parallel>, #tpu.dimension_semantics<arbitrary>], iteration_bounds = array<i64: 1, 3, 1>, scalar_prefetch = 0 : i64, scratch_operands = 1 : i64, tpu.core_type = #tpu.core_type<tc>, window_params = [{transform_indices = @transform_0, window_bounds = array<i64: 48, 128>}, {transform_indices = @transform_1, window_bounds = array<i64: 128, 128>}, {transform_indices = @transform_2, window_bounds = array<i64: 1, 128>}, {transform_indices = @transform_3, window_bounds = array<i64: 48, 128>}]} {
    %c0_i32 = arith.constant 0 : i32
    %0 = arith.cmpi eq, %arg2, %c0_i32 : i32
    %1 = arith.extui %0 : i1 to i32
    %c0_i32_0 = arith.constant 0 : i32
    %2 = arith.cmpi ne, %1, %c0_i32_0 : i32
    scf.if %2 {
      %cst_10 = arith.constant 0.000000e+00 : f32
      %12 = vector.broadcast %cst_10 : f32 to vector<48x128xf32>
      %c0_11 = arith.constant 0 : index
      %c0_12 = arith.constant 0 : index
      %13 = vector.load %arg7[%c0_11, %c0_12] : memref<48x128xf32, #tpu.memory_space<vmem>>, vector<48x128xf32>
      tpu.vector_store %arg7[%c0_11, %c0_12], %12 {strides = array<i32>} : memref<48x128xf32, #tpu.memory_space<vmem>>, vector<48x128xf32>,
    } else {
    }
    %c0 = arith.constant 0 : index
    %c0_1 = arith.constant 0 : index
    %3 = vector.load %arg7[%c0, %c0_1] : memref<48x128xf32, #tpu.memory_space<vmem>>, vector<48x128xf32>
    %c0_2 = arith.constant 0 : index
    %c0_3 = arith.constant 0 : index
    %4 = vector.load %arg3[%c0_2, %c0_3] : memref<48x128xbf16, #tpu.memory_space<vmem>>, vector<48x128xbf16>
    %c0_4 = arith.constant 0 : index
    %c0_5 = arith.constant 0 : index
    %5 = vector.load %arg4[%c0_4, %c0_5] : memref<128x128xbf16, #tpu.memory_space<vmem>>, vector<128x128xbf16>
    %cst = arith.constant dense<0.000000e+00> : vector<48x128xf32>
    %6 = tpu.matmul %4, %5, %cst {dimension_numbers = #tpu.dot_dimension_numbers<[1], [0], [0], [1], [0, 0, 1, 1], [], []>} : vector<48x128xbf16>, vector<128x128xbf16>, vector<48x128xf32> -> vector<48x128xf32>
    %7 = arith.addf %3, %6 : vector<48x128xf32>
    %c0_6 = arith.constant 0 : index
    %c0_7 = arith.constant 0 : index
    %8 = vector.load %arg7[%c0_6, %c0_7] : memref<48x128xf32, #tpu.memory_space<vmem>>, vector<48x128xf32>
    tpu.vector_store %arg7[%c0_6, %c0_7], %7 {strides = array<i32>} : memref<48x128xf32, #tpu.memory_space<vmem>>, vector<48x128xf32>,
    %c0_i32_8 = arith.constant 0 : i32
    %9 = arith.cmpi eq, %arg2, %c0_i32_8 : i32
    %10 = arith.extui %9 : i1 to i32
    %c0_i32_9 = arith.constant 0 : i32
    %11 = arith.cmpi ne, %10, %c0_i32_9 : i32
    scf.if %11 {
      %c0_10 = arith.constant 0 : index
      %c0_11 = arith.constant 0 : index
      %12 = vector.load %arg7[%c0_10, %c0_11] : memref<48x128xf32, #tpu.memory_space<vmem>>, vector<48x128xf32>
      %c0_12 = arith.constant 0 : index
      %c0_13 = arith.constant 0 : index
      %13 = vector.load %arg5[%c0_12, %c0_13] : memref<1x128xf32, #tpu.memory_space<vmem>>, vector<1x128xf32>
      %14 = vector.broadcast %13 : vector<1x128xf32> to vector<48x128xf32>
      %15 = arith.addf %12, %14 : vector<48x128xf32>
      %16 = arith.truncf %15 : vector<48x128xf32> to vector<48x128xbf16>
      %c0_14 = arith.constant 0 : index
      %c0_15 = arith.constant 0 : index
      %17 = vector.load %arg6[%c0_14, %c0_15] : memref<48x128xbf16, #tpu.memory_space<vmem>>, vector<48x128xbf16>
      tpu.vector_store %arg6[%c0_14, %c0_15], %16 {strides = array<i32>} : memref<48x128xbf16, #tpu.memory_space<vmem>>, vector<48x128xbf16>,
    } else {
    }
    return
  }
  func.func @transform_0(%arg0: i32, %arg1: i32, %arg2: i32) -> (i32, i32) {
    %c0_i32 = arith.constant 0 : i32
    return %arg0, %arg2 : i32, i32
  }
  func.func @transform_1(%arg0: i32, %arg1: i32, %arg2: i32) -> (i32, i32) {
    %c0_i32 = arith.constant 0 : i32
    return %arg2, %arg1 : i32, i32
  }
  func.func @transform_2(%arg0: i32, %arg1: i32, %arg2: i32) -> (i32, i32) {
    %c0_i32 = arith.constant 0 : i32
    %c0_i32_0 = arith.constant 0 : i32
    return %c0_i32, %arg1 : i32, i32
  }
  func.func @transform_3(%arg0: i32, %arg1: i32, %arg2: i32) -> (i32, i32) {
    %c0_i32 = arith.constant 0 : i32
    return %arg0, %arg1 : i32, i32
  }
}

module attributes {stable_mosaic.version = 11 : i64} {
  func.func @_matmul_bias_kernel(%arg0: i32, %arg1: i32, %arg2: i32, %arg3: memref<16x128xbf16, #tpu.memory_space<vmem>>, %arg4: memref<128x128xbf16, #tpu.memory_space<vmem>>, %arg5: memref<1x128xf32, #tpu.memory_space<vmem>>, %arg6: memref<16x128xf32, #tpu.memory_space<vmem>>, %arg7: memref<16x128xf32, #tpu.memory_space<vmem>>) attributes {dimension_semantics = [#tpu.dimension_semantics<parallel>, #tpu.dimension_semantics<parallel>, #tpu.dimension_semantics<arbitrary>], iteration_bounds = array<i64: 1, 1, 1>, scalar_prefetch = 0 : i64, scratch_operands = 1 : i64, tpu.core_type = #tpu.core_type<tc>, window_params = [{transform_indices = @transform_0, window_bounds = array<i64: 16, 128>}, {transform_indices = @transform_1, window_bounds = array<i64: 128, 128>}, {transform_indices = @transform_2, window_bounds = array<i64: 1, 128>}, {transform_indices = @transform_3, window_bounds = array<i64: 16, 128>}]} {
    %c0_i32 = arith.constant 0 : i32
    %0 = arith.cmpi eq, %arg2, %c0_i32 : i32
    %1 = arith.extui %0 : i1 to i32
    %c0_i32_0 = arith.constant 0 : i32
    %2 = arith.cmpi ne, %1, %c0_i32_0 : i32
    scf.if %2 {
      %cst_10 = arith.constant 0.000000e+00 : f32
      %12 = vector.broadcast %cst_10 : f32 to vector<16x128xf32>
      %c0_11 = arith.constant 0 : index
      %c0_12 = arith.constant 0 : index
      %13 = vector.load %arg7[%c0_11, %c0_12] : memref<16x128xf32, #tpu.memory_space<vmem>>, vector<16x128xf32>
      tpu.vector_store %arg7[%c0_11, %c0_12], %12 {strides = array<i32>} : memref<16x128xf32, #tpu.memory_space<vmem>>, vector<16x128xf32>,
    } else {
    }
    %c0 = arith.constant 0 : index
    %c0_1 = arith.constant 0 : index
    %3 = vector.load %arg7[%c0, %c0_1] : memref<16x128xf32, #tpu.memory_space<vmem>>, vector<16x128xf32>
    %c0_2 = arith.constant 0 : index
    %c0_3 = arith.constant 0 : index
    %4 = vector.load %arg3[%c0_2, %c0_3] : memref<16x128xbf16, #tpu.memory_space<vmem>>, vector<16x128xbf16>
    %c0_4 = arith.constant 0 : index
    %c0_5 = arith.constant 0 : index
    %5 = vector.load %arg4[%c0_4, %c0_5] : memref<128x128xbf16, #tpu.memory_space<vmem>>, vector<128x128xbf16>
    %cst = arith.constant dense<0.000000e+00> : vector<16x128xf32>
    %6 = tpu.matmul %4, %5, %cst {dimension_numbers = #tpu.dot_dimension_numbers<[1], [0], [0], [1], [0, 0, 1, 1], [], []>} : vector<16x128xbf16>, vector<128x128xbf16>, vector<16x128xf32> -> vector<16x128xf32>
    %7 = arith.addf %3, %6 : vector<16x128xf32>
    %c0_6 = arith.constant 0 : index
    %c0_7 = arith.constant 0 : index
    %8 = vector.load %arg7[%c0_6, %c0_7] : memref<16x128xf32, #tpu.memory_space<vmem>>, vector<16x128xf32>
    tpu.vector_store %arg7[%c0_6, %c0_7], %7 {strides = array<i32>} : memref<16x128xf32, #tpu.memory_space<vmem>>, vector<16x128xf32>,
    %c0_i32_8 = arith.constant 0 : i32
    %9 = arith.cmpi eq, %arg2, %c0_i32_8 : i32
    %10 = arith.extui %9 : i1 to i32
    %c0_i32_9 = arith.constant 0 : i32
    %11 = arith.cmpi ne, %10, %c0_i32_9 : i32
    scf.if %11 {
      %c0_10 = arith.constant 0 : index
      %c0_11 = arith.constant 0 : index
      %12 = vector.load %arg7[%c0_10, %c0_11] : memref<16x128xf32, #tpu.memory_space<vmem>>, vector<16x128xf32>
      %c0_12 = arith.constant 0 : index
      %c0_13 = arith.constant 0 : index
      %13 = vector.load %arg5[%c0_12, %c0_13] : memref<1x128xf32, #tpu.memory_space<vmem>>, vector<1x128xf32>
      %14 = vector.broadcast %13 : vector<1x128xf32> to vector<16x128xf32>
      %15 = arith.addf %12, %14 : vector<16x128xf32>
      %c0_14 = arith.constant 0 : index
      %c0_15 = arith.constant 0 : index
      %16 = vector.load %arg6[%c0_14, %c0_15] : memref<16x128xf32, #tpu.memory_space<vmem>>, vector<16x128xf32>
      tpu.vector_store %arg6[%c0_14, %c0_15], %15 {strides = array<i32>} : memref<16x128xf32, #tpu.memory_space<vmem>>, vector<16x128xf32>,
    } else {
    }
    return
  }
  func.func @transform_0(%arg0: i32, %arg1: i32, %arg2: i32) -> (i32, i32) {
    %c0_i32 = arith.constant 0 : i32
    return %arg0, %arg2 : i32, i32
  }
  func.func @transform_1(%arg0: i32, %arg1: i32, %arg2: i32) -> (i32, i32) {
    %c0_i32 = arith.constant 0 : i32
    return %arg2, %arg1 : i32, i32
  }
  func.func @transform_2(%arg0: i32, %arg1: i32, %arg2: i32) -> (i32, i32) {
    %c0_i32 = arith.constant 0 : i32
    %c0_i32_0 = arith.constant 0 : i32
    return %c0_i32, %arg1 : i32, i32
  }
  func.func @transform_3(%arg0: i32, %arg1: i32, %arg2: i32) -> (i32, i32) {
    %c0_i32 = arith.constant 0 : i32
    return %arg0, %arg1 : i32, i32
  }
}

module attributes {stable_mosaic.version = 11 : i64} {
  func.func @_matmul_bias_kernel(%arg0: i32, %arg1: i32, %arg2: i32, %arg3: memref<16x128xbf16, #tpu.memory_space<vmem>>, %arg4: memref<128x128xbf16, #tpu.memory_space<vmem>>, %arg5: memref<1x128xf32, #tpu.memory_space<vmem>>, %arg6: memref<16x128xbf16, #tpu.memory_space<vmem>>, %arg7: memref<16x128xf32, #tpu.memory_space<vmem>>) attributes {dimension_semantics = [#tpu.dimension_semantics<parallel>, #tpu.dimension_semantics<parallel>, #tpu.dimension_semantics<arbitrary>], iteration_bounds = array<i64: 1, 3, 1>, scalar_prefetch = 0 : i64, scratch_operands = 1 : i64, tpu.core_type = #tpu.core_type<tc>, window_params = [{transform_indices = @transform_0, window_bounds = array<i64: 16, 128>}, {transform_indices = @transform_1, window_bounds = array<i64: 128, 128>}, {transform_indices = @transform_2, window_bounds = array<i64: 1, 128>}, {transform_indices = @transform_3, window_bounds = array<i64: 16, 128>}]} {
    %c0_i32 = arith.constant 0 : i32
    %0 = arith.cmpi eq, %arg2, %c0_i32 : i32
    %1 = arith.extui %0 : i1 to i32
    %c0_i32_0 = arith.constant 0 : i32
    %2 = arith.cmpi ne, %1, %c0_i32_0 : i32
    scf.if %2 {
      %cst_10 = arith.constant 0.000000e+00 : f32
      %12 = vector.broadcast %cst_10 : f32 to vector<16x128xf32>
      %c0_11 = arith.constant 0 : index
      %c0_12 = arith.constant 0 : index
      %13 = vector.load %arg7[%c0_11, %c0_12] : memref<16x128xf32, #tpu.memory_space<vmem>>, vector<16x128xf32>
      tpu.vector_store %arg7[%c0_11, %c0_12], %12 {strides = array<i32>} : memref<16x128xf32, #tpu.memory_space<vmem>>, vector<16x128xf32>,
    } else {
    }
    %c0 = arith.constant 0 : index
    %c0_1 = arith.constant 0 : index
    %3 = vector.load %arg7[%c0, %c0_1] : memref<16x128xf32, #tpu.memory_space<vmem>>, vector<16x128xf32>
    %c0_2 = arith.constant 0 : index
    %c0_3 = arith.constant 0 : index
    %4 = vector.load %arg3[%c0_2, %c0_3] : memref<16x128xbf16, #tpu.memory_space<vmem>>, vector<16x128xbf16>
    %c0_4 = arith.constant 0 : index
    %c0_5 = arith.constant 0 : index
    %5 = vector.load %arg4[%c0_4, %c0_5] : memref<128x128xbf16, #tpu.memory_space<vmem>>, vector<128x128xbf16>
    %cst = arith.constant dense<0.000000e+00> : vector<16x128xf32>
    %6 = tpu.matmul %4, %5, %cst {dimension_numbers = #tpu.dot_dimension_numbers<[1], [0], [0], [1], [0, 0, 1, 1], [], []>} : vector<16x128xbf16>, vector<128x128xbf16>, vector<16x128xf32> -> vector<16x128xf32>
    %7 = arith.addf %3, %6 : vector<16x128xf32>
    %c0_6 = arith.constant 0 : index
    %c0_7 = arith.constant 0 : index
    %8 = vector.load %arg7[%c0_6, %c0_7] : memref<16x128xf32, #tpu.memory_space<vmem>>, vector<16x128xf32>
    tpu.vector_store %arg7[%c0_6, %c0_7], %7 {strides = array<i32>} : memref<16x128xf32, #tpu.memory_space<vmem>>, vector<16x128xf32>,
    %c0_i32_8 = arith.constant 0 : i32
    %9 = arith.cmpi eq, %arg2, %c0_i32_8 : i32
    %10 = arith.extui %9 : i1 to i32
    %c0_i32_9 = arith.constant 0 : i32
    %11 = arith.cmpi ne, %10, %c0_i32_9 : i32
    scf.if %11 {
      %c0_10 = arith.constant 0 : index
      %c0_11 = arith.constant 0 : index
      %12 = vector.load %arg7[%c0_10, %c0_11] : memref<16x128xf32, #tpu.memory_space<vmem>>, vector<16x128xf32>
      %c0_12 = arith.constant 0 : index
      %c0_13 = arith.constant 0 : index
      %13 = vector.load %arg5[%c0_12, %c0_13] : memref<1x128xf32, #tpu.memory_space<vmem>>, vector<1x128xf32>
      %14 = vector.broadcast %13 : vector<1x128xf32> to vector<16x128xf32>
      %15 = arith.addf %12, %14 : vector<16x128xf32>
      %16 = arith.truncf %15 : vector<16x128xf32> to vector<16x128xbf16>
      %c0_14 = arith.constant 0 : index
      %c0_15 = arith.constant 0 : index
      %17 = vector.load %arg6[%c0_14, %c0_15] : memref<16x128xbf16, #tpu.memory_space<vmem>>, vector<16x128xbf16>
      tpu.vector_store %arg6[%c0_14, %c0_15], %16 {strides = array<i32>} : memref<16x128xbf16, #tpu.memory_space<vmem>>, vector<16x128xbf16>,
    } else {
    }
    return
  }
  func.func @transform_0(%arg0: i32, %arg1: i32, %arg2: i32) -> (i32, i32) {
    %c0_i32 = arith.constant 0 : i32
    return %arg0, %arg2 : i32, i32
  }
  func.func @transform_1(%arg0: i32, %arg1: i32, %arg2: i32) -> (i32, i32) {
    %c0_i32 = arith.constant 0 : i32
    return %arg2, %arg1 : i32, i32
  }
  func.func @transform_2(%arg0: i32, %arg1: i32, %arg2: i32) -> (i32, i32) {
    %c0_i32 = arith.constant 0 : i32
    %c0_i32_0 = arith.constant 0 : i32
    return %c0_i32, %arg1 : i32, i32
  }
  func.func @transform_3(%arg0: i32, %arg1: i32, %arg2: i32) -> (i32, i32) {
    %c0_i32 = arith.constant 0 : i32
    return %arg0, %arg1 : i32, i32
  }
}

module attributes {stable_mosaic.version = 11 : i64} {
  func.func @_flash_attn_kernel(%arg0: i32, %arg1: i32, %arg2: i32, %arg3: i32, %arg4: memref<1x1x32x128xbf16, #tpu.memory_space<vmem>>, %arg5: memref<1x1x32x128xbf16, #tpu.memory_space<vmem>>, %arg6: memref<1x1x32x128xbf16, #tpu.memory_space<vmem>>, %arg7: memref<1x32x128xbf16, #tpu.memory_space<vmem>>, %arg8: memref<32x1xf32, #tpu.memory_space<vmem>>, %arg9: memref<32x1xf32, #tpu.memory_space<vmem>>, %arg10: memref<32x128xf32, #tpu.memory_space<vmem>>) attributes {dimension_semantics = [#tpu.dimension_semantics<parallel>, #tpu.dimension_semantics<parallel>, #tpu.dimension_semantics<parallel>, #tpu.dimension_semantics<arbitrary>], iteration_bounds = array<i64: 2, 4, 1, 1>, scalar_prefetch = 0 : i64, scratch_operands = 3 : i64, tpu.core_type = #tpu.core_type<tc>, window_params = [{transform_indices = @transform_0, window_bounds = array<i64: 1, 1, 32, 128>}, {transform_indices = @transform_1, window_bounds = array<i64: 1, 1, 32, 128>}, {transform_indices = @transform_2, window_bounds = array<i64: 1, 1, 32, 128>}, {transform_indices = @transform_3, window_bounds = array<i64: 1, 32, 128>}]} {
    %c0_i32 = arith.constant 0 : i32
    %0 = arith.cmpi eq, %arg3, %c0_i32 : i32
    %1 = arith.extui %0 : i1 to i32
    %c0_i32_0 = arith.constant 0 : i32
    %2 = arith.cmpi ne, %1, %c0_i32_0 : i32
    scf.if %2 {
      %cst_30 = arith.constant -1.000000e+30 : f32
      %38 = vector.broadcast %cst_30 : f32 to vector<32x1xf32>
      %c0_31 = arith.constant 0 : index
      %c0_32 = arith.constant 0 : index
      %39 = vector.load %arg8[%c0_31, %c0_32] : memref<32x1xf32, #tpu.memory_space<vmem>>, vector<32x1xf32>
      tpu.vector_store %arg8[%c0_31, %c0_32], %38 {strides = array<i32>} : memref<32x1xf32, #tpu.memory_space<vmem>>, vector<32x1xf32>,
      %cst_33 = arith.constant 0.000000e+00 : f32
      %40 = vector.broadcast %cst_33 : f32 to vector<32x1xf32>
      %c0_34 = arith.constant 0 : index
      %c0_35 = arith.constant 0 : index
      %41 = vector.load %arg9[%c0_34, %c0_35] : memref<32x1xf32, #tpu.memory_space<vmem>>, vector<32x1xf32>
      tpu.vector_store %arg9[%c0_34, %c0_35], %40 {strides = array<i32>} : memref<32x1xf32, #tpu.memory_space<vmem>>, vector<32x1xf32>,
      %cst_36 = arith.constant 0.000000e+00 : f32
      %42 = vector.broadcast %cst_36 : f32 to vector<32x128xf32>
      %c0_37 = arith.constant 0 : index
      %c0_38 = arith.constant 0 : index
      %43 = vector.load %arg10[%c0_37, %c0_38] : memref<32x128xf32, #tpu.memory_space<vmem>>, vector<32x128xf32>
      tpu.vector_store %arg10[%c0_37, %c0_38], %42 {strides = array<i32>} : memref<32x128xf32, #tpu.memory_space<vmem>>, vector<32x128xf32>,
    } else {
    }
    %c0 = arith.constant 0 : index
    %c0_1 = arith.constant 0 : index
    %c0_2 = arith.constant 0 : index
    %c0_3 = arith.constant 0 : index
    %3 = vector.load %arg4[%c0, %c0_1, %c0_2, %c0_3] : memref<1x1x32x128xbf16, #tpu.memory_space<vmem>>, vector<1x1x32x128xbf16>
    %4 = vector.shape_cast %3 : vector<1x1x32x128xbf16> to vector<32x128xbf16>
    %c0_4 = arith.constant 0 : index
    %c0_5 = arith.constant 0 : index
    %c0_6 = arith.constant 0 : index
    %c0_7 = arith.constant 0 : index
    %5 = vector.load %arg5[%c0_4, %c0_5, %c0_6, %c0_7] : memref<1x1x32x128xbf16, #tpu.memory_space<vmem>>, vector<1x1x32x128xbf16>
    %6 = vector.shape_cast %5 : vector<1x1x32x128xbf16> to vector<32x128xbf16>
    %c0_8 = arith.constant 0 : index
    %c0_9 = arith.constant 0 : index
    %c0_10 = arith.constant 0 : index
    %c0_11 = arith.constant 0 : index
    %7 = vector.load %arg6[%c0_8, %c0_9, %c0_10, %c0_11] : memref<1x1x32x128xbf16, #tpu.memory_space<vmem>>, vector<1x1x32x128xbf16>
    %8 = vector.shape_cast %7 : vector<1x1x32x128xbf16> to vector<32x128xbf16>
    %cst = arith.constant dense<0.000000e+00> : vector<32x32xf32>
    %9 = tpu.matmul %4, %6, %cst {dimension_numbers = #tpu.dot_dimension_numbers<[1], [1], [0], [0], [0, 0, 1, 0], [], []>} : vector<32x128xbf16>, vector<32x128xbf16>, vector<32x32xf32> -> vector<32x32xf32>
    %cst_12 = arith.constant 0.176776692 : f32
    %10 = vector.broadcast %cst_12 : f32 to vector<32x32xf32>
    %11 = arith.mulf %9, %10 : vector<32x32xf32>
    %c0_13 = arith.constant 0 : index
    %c0_14 = arith.constant 0 : index
    %12 = vector.load %arg8[%c0_13, %c0_14] : memref<32x1xf32, #tpu.memory_space<vmem>>, vector<32x1xf32>
    %cst_15 = arith.constant dense<0xFF800000> : vector<32xf32>
    %13 = vector.multi_reduction <maximumf>, %11, %cst_15 [1] : vector<32x32xf32> to vector<32xf32>
    %14 = vector.shape_cast %13 : vector<32xf32> to vector<32x1xf32>
    %15 = arith.maximumf %12, %14 : vector<32x1xf32>
    %16 = arith.subf %12, %15 : vector<32x1xf32>
    %17 = math.exp %16 : vector<32x1xf32>
    %18 = vector.broadcast %15 : vector<32x1xf32> to vector<32x32xf32>
    %19 = arith.subf %11, %18 : vector<32x32xf32>
    %20 = math.exp %19 : vector<32x32xf32>
    %c0_16 = arith.constant 0 : index
    %c0_17 = arith.constant 0 : index
    %21 = vector.load %arg9[%c0_16, %c0_17] : memref<32x1xf32, #tpu.memory_space<vmem>>, vector<32x1xf32>
    %22 = arith.mulf %17, %21 : vector<32x1xf32>
    %cst_18 = arith.constant dense<0.000000e+00> : vector<32xf32>
    %23 = vector.multi_reduction <add>, %20, %cst_18 [1] : vector<32x32xf32> to vector<32xf32>
    %24 = vector.shape_cast %23 : vector<32xf32> to vector<32x1xf32>
    %25 = arith.addf %22, %24 : vector<32x1xf32>
    %c0_19 = arith.constant 0 : index
    %c0_20 = arith.constant 0 : index
    %26 = vector.load %arg9[%c0_19, %c0_20] : memref<32x1xf32, #tpu.memory_space<vmem>>, vector<32x1xf32>
    tpu.vector_store %arg9[%c0_19, %c0_20], %25 {strides = array<i32>} : memref<32x1xf32, #tpu.memory_space<vmem>>, vector<32x1xf32>,
    %c0_21 = arith.constant 0 : index
    %c0_22 = arith.constant 0 : index
    %27 = vector.load %arg10[%c0_21, %c0_22] : memref<32x128xf32, #tpu.memory_space<vmem>>, vector<32x128xf32>
    %28 = vector.broadcast %17 : vector<32x1xf32> to vector<32x128xf32>
    %29 = arith.mulf %28, %27 : vector<32x128xf32>
    %30 = arith.truncf %20 : vector<32x32xf32> to vector<32x32xbf16>
    %cst_23 = arith.constant dense<0.000000e+00> : vector<32x128xf32>
    %31 = tpu.matmul %30, %8, %cst_23 {dimension_numbers = #tpu.dot_dimension_numbers<[1], [0], [0], [1], [0, 0, 1, 1], [], []>} : vector<32x32xbf16>, vector<32x128xbf16>, vector<32x128xf32> -> vector<32x128xf32>
    %32 = arith.addf %29, %31 : vector<32x128xf32>
    %c0_24 = arith.constant 0 : index
    %c0_25 = arith.constant 0 : index
    %33 = vector.load %arg10[%c0_24, %c0_25] : memref<32x128xf32, #tpu.memory_space<vmem>>, vector<32x128xf32>
    tpu.vector_store %arg10[%c0_24, %c0_25], %32 {strides = array<i32>} : memref<32x128xf32, #tpu.memory_space<vmem>>, vector<32x128xf32>,
    %c0_26 = arith.constant 0 : index
    %c0_27 = arith.constant 0 : index
    %34 = vector.load %arg8[%c0_26, %c0_27] : memref<32x1xf32, #tpu.memory_space<vmem>>, vector<32x1xf32>
    tpu.vector_store %arg8[%c0_26, %c0_27], %15 {strides = array<i32>} : memref<32x1xf32, #tpu.memory_space<vmem>>, vector<32x1xf32>,
    %c0_i32_28 = arith.constant 0 : i32
    %35 = arith.cmpi eq, %arg3, %c0_i32_28 : i32
    %36 = arith.extui %35 : i1 to i32
    %c0_i32_29 = arith.constant 0 : i32
    %37 = arith.cmpi ne, %36, %c0_i32_29 : i32
    scf.if %37 {
      %c0_30 = arith.constant 0 : index
      %c0_31 = arith.constant 0 : index
      %38 = vector.load %arg9[%c0_30, %c0_31] : memref<32x1xf32, #tpu.memory_space<vmem>>, vector<32x1xf32>
      %c0_32 = arith.constant 0 : index
      %c0_33 = arith.constant 0 : index
      %39 = vector.load %arg10[%c0_32, %c0_33] : memref<32x128xf32, #tpu.memory_space<vmem>>, vector<32x128xf32>
      %40 = tpu.reciprocal %38 {approx = true} : vector<32x1xf32> -> vector<32x1xf32>
      %41 = vector.broadcast %40 : vector<32x1xf32> to vector<32x128xf32>
      %42 = arith.mulf %39, %41 : vector<32x128xf32>
      %43 = arith.truncf %42 : vector<32x128xf32> to vector<32x128xbf16>
      %c0_34 = arith.constant 0 : index
      %c0_35 = arith.constant 0 : index
      %c0_36 = arith.constant 0 : index
      %44 = vector.load %arg7[%c0_34, %c0_35, %c0_36] : memref<1x32x128xbf16, #tpu.memory_space<vmem>>, vector<1x32x128xbf16>
      %45 = vector.shape_cast %44 : vector<1x32x128xbf16> to vector<32x128xbf16>
      %46 = vector.shape_cast %43 : vector<32x128xbf16> to vector<1x32x128xbf16>
      tpu.vector_store %arg7[%c0_34, %c0_35, %c0_36], %46 {strides = array<i32>} : memref<1x32x128xbf16, #tpu.memory_space<vmem>>, vector<1x32x128xbf16>,
    } else {
    }
    return
  }
  func.func @transform_0(%arg0: i32, %arg1: i32, %arg2: i32, %arg3: i32) -> (i32, i32, i32, i32) {
    %c0_i32 = arith.constant 0 : i32
    %c0_i32_0 = arith.constant 0 : i32
    return %arg0, %arg1, %arg2, %c0_i32 : i32, i32, i32, i32
  }
  func.func @transform_1(%arg0: i32, %arg1: i32, %arg2: i32, %arg3: i32) -> (i32, i32, i32, i32) {
    %c0_i32 = arith.constant 0 : i32
    %c0_i32_0 = arith.constant 0 : i32
    return %arg0, %arg1, %arg3, %c0_i32 : i32, i32, i32, i32
  }
  func.func @transform_2(%arg0: i32, %arg1: i32, %arg2: i32, %arg3: i32) -> (i32, i32, i32, i32) {
    %c0_i32 = arith.constant 0 : i32
    %c0_i32_0 = arith.constant 0 : i32
    return %arg0, %arg1, %arg3, %c0_i32 : i32, i32, i32, i32
  }
  func.func @transform_3(%arg0: i32, %arg1: i32, %arg2: i32, %arg3: i32) -> (i32, i32, i32) {
    %c0_i32 = arith.constant 0 : i32
    return %arg0, %arg2, %arg1 : i32, i32, i32
  }
}

module attributes {stable_mosaic.version = 11 : i64} {
  func.func @_matmul_bias_kernel(%arg0: i32, %arg1: i32, %arg2: i32, %arg3: memref<16x512xbf16, #tpu.memory_space<vmem>>, %arg4: memref<512x128xbf16, #tpu.memory_space<vmem>>, %arg5: memref<1x128xf32, #tpu.memory_space<vmem>>, %arg6: memref<16x128xf32, #tpu.memory_space<vmem>>, %arg7: memref<16x128xf32, #tpu.memory_space<vmem>>) attributes {dimension_semantics = [#tpu.dimension_semantics<parallel>, #tpu.dimension_semantics<parallel>, #tpu.dimension_semantics<arbitrary>], iteration_bounds = array<i64: 1, 1, 1>, scalar_prefetch = 0 : i64, scratch_operands = 1 : i64, tpu.core_type = #tpu.core_type<tc>, window_params = [{transform_indices = @transform_0, window_bounds = array<i64: 16, 512>}, {transform_indices = @transform_1, window_bounds = array<i64: 512, 128>}, {transform_indices = @transform_2, window_bounds = array<i64: 1, 128>}, {transform_indices = @transform_3, window_bounds = array<i64: 16, 128>}]} {
    %c0_i32 = arith.constant 0 : i32
    %0 = arith.cmpi eq, %arg2, %c0_i32 : i32
    %1 = arith.extui %0 : i1 to i32
    %c0_i32_0 = arith.constant 0 : i32
    %2 = arith.cmpi ne, %1, %c0_i32_0 : i32
    scf.if %2 {
      %cst_10 = arith.constant 0.000000e+00 : f32
      %12 = vector.broadcast %cst_10 : f32 to vector<16x128xf32>
      %c0_11 = arith.constant 0 : index
      %c0_12 = arith.constant 0 : index
      %13 = vector.load %arg7[%c0_11, %c0_12] : memref<16x128xf32, #tpu.memory_space<vmem>>, vector<16x128xf32>
      tpu.vector_store %arg7[%c0_11, %c0_12], %12 {strides = array<i32>} : memref<16x128xf32, #tpu.memory_space<vmem>>, vector<16x128xf32>,
    } else {
    }
    %c0 = arith.constant 0 : index
    %c0_1 = arith.constant 0 : index
    %3 = vector.load %arg7[%c0, %c0_1] : memref<16x128xf32, #tpu.memory_space<vmem>>, vector<16x128xf32>
    %c0_2 = arith.constant 0 : index
    %c0_3 = arith.constant 0 : index
    %4 = vector.load %arg3[%c0_2, %c0_3] : memref<16x512xbf16, #tpu.memory_space<vmem>>, vector<16x512xbf16>
    %c0_4 = arith.constant 0 : index
    %c0_5 = arith.constant 0 : index
    %5 = vector.load %arg4[%c0_4, %c0_5] : memref<512x128xbf16, #tpu.memory_space<vmem>>, vector<512x128xbf16>
    %cst = arith.constant dense<0.000000e+00> : vector<16x128xf32>
    %6 = tpu.matmul %4, %5, %cst {dimension_numbers = #tpu.dot_dimension_numbers<[1], [0], [0], [1], [0, 0, 1, 1], [], []>} : vector<16x512xbf16>, vector<512x128xbf16>, vector<16x128xf32> -> vector<16x128xf32>
    %7 = arith.addf %3, %6 : vector<16x128xf32>
    %c0_6 = arith.constant 0 : index
    %c0_7 = arith.constant 0 : index
    %8 = vector.load %arg7[%c0_6, %c0_7] : memref<16x128xf32, #tpu.memory_space<vmem>>, vector<16x128xf32>
    tpu.vector_store %arg7[%c0_6, %c0_7], %7 {strides = array<i32>} : memref<16x128xf32, #tpu.memory_space<vmem>>, vector<16x128xf32>,
    %c0_i32_8 = arith.constant 0 : i32
    %9 = arith.cmpi eq, %arg2, %c0_i32_8 : i32
    %10 = arith.extui %9 : i1 to i32
    %c0_i32_9 = arith.constant 0 : i32
    %11 = arith.cmpi ne, %10, %c0_i32_9 : i32
    scf.if %11 {
      %c0_10 = arith.constant 0 : index
      %c0_11 = arith.constant 0 : index
      %12 = vector.load %arg7[%c0_10, %c0_11] : memref<16x128xf32, #tpu.memory_space<vmem>>, vector<16x128xf32>
      %c0_12 = arith.constant 0 : index
      %c0_13 = arith.constant 0 : index
      %13 = vector.load %arg5[%c0_12, %c0_13] : memref<1x128xf32, #tpu.memory_space<vmem>>, vector<1x128xf32>
      %14 = vector.broadcast %13 : vector<1x128xf32> to vector<16x128xf32>
      %15 = arith.addf %12, %14 : vector<16x128xf32>
      %c0_14 = arith.constant 0 : index
      %c0_15 = arith.constant 0 : index
      %16 = vector.load %arg6[%c0_14, %c0_15] : memref<16x128xf32, #tpu.memory_space<vmem>>, vector<16x128xf32>
      tpu.vector_store %arg6[%c0_14, %c0_15], %15 {strides = array<i32>} : memref<16x128xf32, #tpu.memory_space<vmem>>, vector<16x128xf32>,
    } else {
    }
    return
  }
  func.func @transform_0(%arg0: i32, %arg1: i32, %arg2: i32) -> (i32, i32) {
    %c0_i32 = arith.constant 0 : i32
    return %arg0, %arg2 : i32, i32
  }
  func.func @transform_1(%arg0: i32, %arg1: i32, %arg2: i32) -> (i32, i32) {
    %c0_i32 = arith.constant 0 : i32
    return %arg2, %arg1 : i32, i32
  }
  func.func @transform_2(%arg0: i32, %arg1: i32, %arg2: i32) -> (i32, i32) {
    %c0_i32 = arith.constant 0 : i32
    %c0_i32_0 = arith.constant 0 : i32
    return %c0_i32, %arg1 : i32, i32
  }
  func.func @transform_3(%arg0: i32, %arg1: i32, %arg2: i32) -> (i32, i32) {
    %c0_i32 = arith.constant 0 : i32
    return %arg0, %arg1 : i32, i32
  }
}

module attributes {stable_mosaic.version = 11 : i64} {
  func.func @_matmul_bias_kernel(%arg0: i32, %arg1: i32, %arg2: i32, %arg3: memref<16x128xbf16, #tpu.memory_space<vmem>>, %arg4: memref<128x512xbf16, #tpu.memory_space<vmem>>, %arg5: memref<1x512xf32, #tpu.memory_space<vmem>>, %arg6: memref<16x512xbf16, #tpu.memory_space<vmem>>, %arg7: memref<16x512xf32, #tpu.memory_space<vmem>>) attributes {dimension_semantics = [#tpu.dimension_semantics<parallel>, #tpu.dimension_semantics<parallel>, #tpu.dimension_semantics<arbitrary>], iteration_bounds = array<i64: 1, 1, 1>, scalar_prefetch = 0 : i64, scratch_operands = 1 : i64, tpu.core_type = #tpu.core_type<tc>, window_params = [{transform_indices = @transform_0, window_bounds = array<i64: 16, 128>}, {transform_indices = @transform_1, window_bounds = array<i64: 128, 512>}, {transform_indices = @transform_2, window_bounds = array<i64: 1, 512>}, {transform_indices = @transform_3, window_bounds = array<i64: 16, 512>}]} {
    %c0_i32 = arith.constant 0 : i32
    %0 = arith.cmpi eq, %arg2, %c0_i32 : i32
    %1 = arith.extui %0 : i1 to i32
    %c0_i32_0 = arith.constant 0 : i32
    %2 = arith.cmpi ne, %1, %c0_i32_0 : i32
    scf.if %2 {
      %cst_10 = arith.constant 0.000000e+00 : f32
      %12 = vector.broadcast %cst_10 : f32 to vector<16x512xf32>
      %c0_11 = arith.constant 0 : index
      %c0_12 = arith.constant 0 : index
      %13 = vector.load %arg7[%c0_11, %c0_12] : memref<16x512xf32, #tpu.memory_space<vmem>>, vector<16x512xf32>
      tpu.vector_store %arg7[%c0_11, %c0_12], %12 {strides = array<i32>} : memref<16x512xf32, #tpu.memory_space<vmem>>, vector<16x512xf32>,
    } else {
    }
    %c0 = arith.constant 0 : index
    %c0_1 = arith.constant 0 : index
    %3 = vector.load %arg7[%c0, %c0_1] : memref<16x512xf32, #tpu.memory_space<vmem>>, vector<16x512xf32>
    %c0_2 = arith.constant 0 : index
    %c0_3 = arith.constant 0 : index
    %4 = vector.load %arg3[%c0_2, %c0_3] : memref<16x128xbf16, #tpu.memory_space<vmem>>, vector<16x128xbf16>
    %c0_4 = arith.constant 0 : index
    %c0_5 = arith.constant 0 : index
    %5 = vector.load %arg4[%c0_4, %c0_5] : memref<128x512xbf16, #tpu.memory_space<vmem>>, vector<128x512xbf16>
    %cst = arith.constant dense<0.000000e+00> : vector<16x512xf32>
    %6 = tpu.matmul %4, %5, %cst {dimension_numbers = #tpu.dot_dimension_numbers<[1], [0], [0], [1], [0, 0, 1, 1], [], []>} : vector<16x128xbf16>, vector<128x512xbf16>, vector<16x512xf32> -> vector<16x512xf32>
    %7 = arith.addf %3, %6 : vector<16x512xf32>
    %c0_6 = arith.constant 0 : index
    %c0_7 = arith.constant 0 : index
    %8 = vector.load %arg7[%c0_6, %c0_7] : memref<16x512xf32, #tpu.memory_space<vmem>>, vector<16x512xf32>
    tpu.vector_store %arg7[%c0_6, %c0_7], %7 {strides = array<i32>} : memref<16x512xf32, #tpu.memory_space<vmem>>, vector<16x512xf32>,
    %c0_i32_8 = arith.constant 0 : i32
    %9 = arith.cmpi eq, %arg2, %c0_i32_8 : i32
    %10 = arith.extui %9 : i1 to i32
    %c0_i32_9 = arith.constant 0 : i32
    %11 = arith.cmpi ne, %10, %c0_i32_9 : i32
    scf.if %11 {
      %c0_10 = arith.constant 0 : index
      %c0_11 = arith.constant 0 : index
      %12 = vector.load %arg7[%c0_10, %c0_11] : memref<16x512xf32, #tpu.memory_space<vmem>>, vector<16x512xf32>
      %c0_12 = arith.constant 0 : index
      %c0_13 = arith.constant 0 : index
      %13 = vector.load %arg5[%c0_12, %c0_13] : memref<1x512xf32, #tpu.memory_space<vmem>>, vector<1x512xf32>
      %14 = vector.broadcast %13 : vector<1x512xf32> to vector<16x512xf32>
      %15 = arith.addf %12, %14 : vector<16x512xf32>
      %16 = arith.mulf %15, %15 : vector<16x512xf32>
      %17 = arith.mulf %15, %16 : vector<16x512xf32>
      %cst_14 = arith.constant 4.471500e-02 : f32
      %18 = vector.broadcast %cst_14 : f32 to vector<16x512xf32>
      %19 = arith.mulf %18, %17 : vector<16x512xf32>
      %20 = arith.addf %15, %19 : vector<16x512xf32>
      %cst_15 = arith.constant 0.797884583 : f32
      %21 = vector.broadcast %cst_15 : f32 to vector<16x512xf32>
      %22 = arith.mulf %21, %20 : vector<16x512xf32>
      %23 = math.tanh %22 : vector<16x512xf32>
      %cst_16 = arith.constant 1.000000e+00 : f32
      %24 = vector.broadcast %cst_16 : f32 to vector<16x512xf32>
      %25 = arith.addf %24, %23 : vector<16x512xf32>
      %cst_17 = arith.constant 5.000000e-01 : f32
      %26 = vector.broadcast %cst_17 : f32 to vector<16x512xf32>
      %27 = arith.mulf %26, %25 : vector<16x512xf32>
      %28 = arith.mulf %15, %27 : vector<16x512xf32>
      %29 = arith.truncf %28 : vector<16x512xf32> to vector<16x512xbf16>
      %c0_18 = arith.constant 0 : index
      %c0_19 = arith.constant 0 : index
      %30 = vector.load %arg6[%c0_18, %c0_19] : memref<16x512xbf16, #tpu.memory_space<vmem>>, vector<16x512xbf16>
      tpu.vector_store %arg6[%c0_18, %c0_19], %29 {strides = array<i32>} : memref<16x512xbf16, #tpu.memory_space<vmem>>, vector<16x512xbf16>,
    } else {
    }
    return
  }
  func.func @transform_0(%arg0: i32, %arg1: i32, %arg2: i32) -> (i32, i32) {
    %c0_i32 = arith.constant 0 : i32
    return %arg0, %arg2 : i32, i32
  }
  func.func @transform_1(%arg0: i32, %arg1: i32, %arg2: i32) -> (i32, i32) {
    %c0_i32 = arith.constant 0 : i32
    return %arg2, %arg1 : i32, i32
  }
  func.func @transform_2(%arg0: i32, %arg1: i32, %arg2: i32) -> (i32, i32) {
    %c0_i32 = arith.constant 0 : i32
    %c0_i32_0 = arith.constant 0 : i32
    return %c0_i32, %arg1 : i32, i32
  }
  func.func @transform_3(%arg0: i32, %arg1: i32, %arg2: i32) -> (i32, i32) {
    %c0_i32 = arith.constant 0 : i32
    return %arg0, %arg1 : i32, i32
  }
}

module attributes {stable_mosaic.version = 11 : i64} {
  func.func @_matmul_bias_kernel(%arg0: i32, %arg1: i32, %arg2: i32, %arg3: memref<48x128xbf16, #tpu.memory_space<vmem>>, %arg4: memref<128x512xbf16, #tpu.memory_space<vmem>>, %arg5: memref<1x512xf32, #tpu.memory_space<vmem>>, %arg6: memref<48x512xbf16, #tpu.memory_space<vmem>>, %arg7: memref<48x512xf32, #tpu.memory_space<vmem>>) attributes {dimension_semantics = [#tpu.dimension_semantics<parallel>, #tpu.dimension_semantics<parallel>, #tpu.dimension_semantics<arbitrary>], iteration_bounds = array<i64: 1, 1, 1>, scalar_prefetch = 0 : i64, scratch_operands = 1 : i64, tpu.core_type = #tpu.core_type<tc>, window_params = [{transform_indices = @transform_0, window_bounds = array<i64: 48, 128>}, {transform_indices = @transform_1, window_bounds = array<i64: 128, 512>}, {transform_indices = @transform_2, window_bounds = array<i64: 1, 512>}, {transform_indices = @transform_3, window_bounds = array<i64: 48, 512>}]} {
    %c0_i32 = arith.constant 0 : i32
    %0 = arith.cmpi eq, %arg2, %c0_i32 : i32
    %1 = arith.extui %0 : i1 to i32
    %c0_i32_0 = arith.constant 0 : i32
    %2 = arith.cmpi ne, %1, %c0_i32_0 : i32
    scf.if %2 {
      %cst_10 = arith.constant 0.000000e+00 : f32
      %12 = vector.broadcast %cst_10 : f32 to vector<48x512xf32>
      %c0_11 = arith.constant 0 : index
      %c0_12 = arith.constant 0 : index
      %13 = vector.load %arg7[%c0_11, %c0_12] : memref<48x512xf32, #tpu.memory_space<vmem>>, vector<48x512xf32>
      tpu.vector_store %arg7[%c0_11, %c0_12], %12 {strides = array<i32>} : memref<48x512xf32, #tpu.memory_space<vmem>>, vector<48x512xf32>,
    } else {
    }
    %c0 = arith.constant 0 : index
    %c0_1 = arith.constant 0 : index
    %3 = vector.load %arg7[%c0, %c0_1] : memref<48x512xf32, #tpu.memory_space<vmem>>, vector<48x512xf32>
    %c0_2 = arith.constant 0 : index
    %c0_3 = arith.constant 0 : index
    %4 = vector.load %arg3[%c0_2, %c0_3] : memref<48x128xbf16, #tpu.memory_space<vmem>>, vector<48x128xbf16>
    %c0_4 = arith.constant 0 : index
    %c0_5 = arith.constant 0 : index
    %5 = vector.load %arg4[%c0_4, %c0_5] : memref<128x512xbf16, #tpu.memory_space<vmem>>, vector<128x512xbf16>
    %cst = arith.constant dense<0.000000e+00> : vector<48x512xf32>
    %6 = tpu.matmul %4, %5, %cst {dimension_numbers = #tpu.dot_dimension_numbers<[1], [0], [0], [1], [0, 0, 1, 1], [], []>} : vector<48x128xbf16>, vector<128x512xbf16>, vector<48x512xf32> -> vector<48x512xf32>
    %7 = arith.addf %3, %6 : vector<48x512xf32>
    %c0_6 = arith.constant 0 : index
    %c0_7 = arith.constant 0 : index
    %8 = vector.load %arg7[%c0_6, %c0_7] : memref<48x512xf32, #tpu.memory_space<vmem>>, vector<48x512xf32>
    tpu.vector_store %arg7[%c0_6, %c0_7], %7 {strides = array<i32>} : memref<48x512xf32, #tpu.memory_space<vmem>>, vector<48x512xf32>,
    %c0_i32_8 = arith.constant 0 : i32
    %9 = arith.cmpi eq, %arg2, %c0_i32_8 : i32
    %10 = arith.extui %9 : i1 to i32
    %c0_i32_9 = arith.constant 0 : i32
    %11 = arith.cmpi ne, %10, %c0_i32_9 : i32
    scf.if %11 {
      %c0_10 = arith.constant 0 : index
      %c0_11 = arith.constant 0 : index
      %12 = vector.load %arg7[%c0_10, %c0_11] : memref<48x512xf32, #tpu.memory_space<vmem>>, vector<48x512xf32>
      %c0_12 = arith.constant 0 : index
      %c0_13 = arith.constant 0 : index
      %13 = vector.load %arg5[%c0_12, %c0_13] : memref<1x512xf32, #tpu.memory_space<vmem>>, vector<1x512xf32>
      %14 = vector.broadcast %13 : vector<1x512xf32> to vector<48x512xf32>
      %15 = arith.addf %12, %14 : vector<48x512xf32>
      %16 = arith.mulf %15, %15 : vector<48x512xf32>
      %17 = arith.mulf %15, %16 : vector<48x512xf32>
      %cst_14 = arith.constant 4.471500e-02 : f32
      %18 = vector.broadcast %cst_14 : f32 to vector<48x512xf32>
      %19 = arith.mulf %18, %17 : vector<48x512xf32>
      %20 = arith.addf %15, %19 : vector<48x512xf32>
      %cst_15 = arith.constant 0.797884583 : f32
      %21 = vector.broadcast %cst_15 : f32 to vector<48x512xf32>
      %22 = arith.mulf %21, %20 : vector<48x512xf32>
      %23 = math.tanh %22 : vector<48x512xf32>
      %cst_16 = arith.constant 1.000000e+00 : f32
      %24 = vector.broadcast %cst_16 : f32 to vector<48x512xf32>
      %25 = arith.addf %24, %23 : vector<48x512xf32>
      %cst_17 = arith.constant 5.000000e-01 : f32
      %26 = vector.broadcast %cst_17 : f32 to vector<48x512xf32>
      %27 = arith.mulf %26, %25 : vector<48x512xf32>
      %28 = arith.mulf %15, %27 : vector<48x512xf32>
      %29 = arith.truncf %28 : vector<48x512xf32> to vector<48x512xbf16>
      %c0_18 = arith.constant 0 : index
      %c0_19 = arith.constant 0 : index
      %30 = vector.load %arg6[%c0_18, %c0_19] : memref<48x512xbf16, #tpu.memory_space<vmem>>, vector<48x512xbf16>
      tpu.vector_store %arg6[%c0_18, %c0_19], %29 {strides = array<i32>} : memref<48x512xbf16, #tpu.memory_space<vmem>>, vector<48x512xbf16>,
    } else {
    }
    return
  }
  func.func @transform_0(%arg0: i32, %arg1: i32, %arg2: i32) -> (i32, i32) {
    %c0_i32 = arith.constant 0 : i32
    return %arg0, %arg2 : i32, i32
  }
  func.func @transform_1(%arg0: i32, %arg1: i32, %arg2: i32) -> (i32, i32) {
    %c0_i32 = arith.constant 0 : i32
    return %arg2, %arg1 : i32, i32
  }
  func.func @transform_2(%arg0: i32, %arg1: i32, %arg2: i32) -> (i32, i32) {
    %c0_i32 = arith.constant 0 : i32
    %c0_i32_0 = arith.constant 0 : i32
    return %c0_i32, %arg1 : i32, i32
  }
  func.func @transform_3(%arg0: i32, %arg1: i32, %arg2: i32) -> (i32, i32) {
    %c0_i32 = arith.constant 0 : i32
    return %arg0, %arg1 : i32, i32
  }
}

module attributes {stable_mosaic.version = 11 : i64} {
  func.func @_matmul_bias_kernel(%arg0: i32, %arg1: i32, %arg2: i32, %arg3: memref<48x512xbf16, #tpu.memory_space<vmem>>, %arg4: memref<512x128xbf16, #tpu.memory_space<vmem>>, %arg5: memref<1x128xf32, #tpu.memory_space<vmem>>, %arg6: memref<48x128xf32, #tpu.memory_space<vmem>>, %arg7: memref<48x128xf32, #tpu.memory_space<vmem>>) attributes {dimension_semantics = [#tpu.dimension_semantics<parallel>, #tpu.dimension_semantics<parallel>, #tpu.dimension_semantics<arbitrary>], iteration_bounds = array<i64: 1, 1, 1>, scalar_prefetch = 0 : i64, scratch_operands = 1 : i64, tpu.core_type = #tpu.core_type<tc>, window_params = [{transform_indices = @transform_0, window_bounds = array<i64: 48, 512>}, {transform_indices = @transform_1, window_bounds = array<i64: 512, 128>}, {transform_indices = @transform_2, window_bounds = array<i64: 1, 128>}, {transform_indices = @transform_3, window_bounds = array<i64: 48, 128>}]} {
    %c0_i32 = arith.constant 0 : i32
    %0 = arith.cmpi eq, %arg2, %c0_i32 : i32
    %1 = arith.extui %0 : i1 to i32
    %c0_i32_0 = arith.constant 0 : i32
    %2 = arith.cmpi ne, %1, %c0_i32_0 : i32
    scf.if %2 {
      %cst_10 = arith.constant 0.000000e+00 : f32
      %12 = vector.broadcast %cst_10 : f32 to vector<48x128xf32>
      %c0_11 = arith.constant 0 : index
      %c0_12 = arith.constant 0 : index
      %13 = vector.load %arg7[%c0_11, %c0_12] : memref<48x128xf32, #tpu.memory_space<vmem>>, vector<48x128xf32>
      tpu.vector_store %arg7[%c0_11, %c0_12], %12 {strides = array<i32>} : memref<48x128xf32, #tpu.memory_space<vmem>>, vector<48x128xf32>,
    } else {
    }
    %c0 = arith.constant 0 : index
    %c0_1 = arith.constant 0 : index
    %3 = vector.load %arg7[%c0, %c0_1] : memref<48x128xf32, #tpu.memory_space<vmem>>, vector<48x128xf32>
    %c0_2 = arith.constant 0 : index
    %c0_3 = arith.constant 0 : index
    %4 = vector.load %arg3[%c0_2, %c0_3] : memref<48x512xbf16, #tpu.memory_space<vmem>>, vector<48x512xbf16>
    %c0_4 = arith.constant 0 : index
    %c0_5 = arith.constant 0 : index
    %5 = vector.load %arg4[%c0_4, %c0_5] : memref<512x128xbf16, #tpu.memory_space<vmem>>, vector<512x128xbf16>
    %cst = arith.constant dense<0.000000e+00> : vector<48x128xf32>
    %6 = tpu.matmul %4, %5, %cst {dimension_numbers = #tpu.dot_dimension_numbers<[1], [0], [0], [1], [0, 0, 1, 1], [], []>} : vector<48x512xbf16>, vector<512x128xbf16>, vector<48x128xf32> -> vector<48x128xf32>
    %7 = arith.addf %3, %6 : vector<48x128xf32>
    %c0_6 = arith.constant 0 : index
    %c0_7 = arith.constant 0 : index
    %8 = vector.load %arg7[%c0_6, %c0_7] : memref<48x128xf32, #tpu.memory_space<vmem>>, vector<48x128xf32>
    tpu.vector_store %arg7[%c0_6, %c0_7], %7 {strides = array<i32>} : memref<48x128xf32, #tpu.memory_space<vmem>>, vector<48x128xf32>,
    %c0_i32_8 = arith.constant 0 : i32
    %9 = arith.cmpi eq, %arg2, %c0_i32_8 : i32
    %10 = arith.extui %9 : i1 to i32
    %c0_i32_9 = arith.constant 0 : i32
    %11 = arith.cmpi ne, %10, %c0_i32_9 : i32
    scf.if %11 {
      %c0_10 = arith.constant 0 : index
      %c0_11 = arith.constant 0 : index
      %12 = vector.load %arg7[%c0_10, %c0_11] : memref<48x128xf32, #tpu.memory_space<vmem>>, vector<48x128xf32>
      %c0_12 = arith.constant 0 : index
      %c0_13 = arith.constant 0 : index
      %13 = vector.load %arg5[%c0_12, %c0_13] : memref<1x128xf32, #tpu.memory_space<vmem>>, vector<1x128xf32>
      %14 = vector.broadcast %13 : vector<1x128xf32> to vector<48x128xf32>
      %15 = arith.addf %12, %14 : vector<48x128xf32>
      %c0_14 = arith.constant 0 : index
      %c0_15 = arith.constant 0 : index
      %16 = vector.load %arg6[%c0_14, %c0_15] : memref<48x128xf32, #tpu.memory_space<vmem>>, vector<48x128xf32>
      tpu.vector_store %arg6[%c0_14, %c0_15], %15 {strides = array<i32>} : memref<48x128xf32, #tpu.memory_space<vmem>>, vector<48x128xf32>,
    } else {
    }
    return
  }
  func.func @transform_0(%arg0: i32, %arg1: i32, %arg2: i32) -> (i32, i32) {
    %c0_i32 = arith.constant 0 : i32
    return %arg0, %arg2 : i32, i32
  }
  func.func @transform_1(%arg0: i32, %arg1: i32, %arg2: i32) -> (i32, i32) {
    %c0_i32 = arith.constant 0 : i32
    return %arg2, %arg1 : i32, i32
  }
  func.func @transform_2(%arg0: i32, %arg1: i32, %arg2: i32) -> (i32, i32) {
    %c0_i32 = arith.constant 0 : i32
    %c0_i32_0 = arith.constant 0 : i32
    return %c0_i32, %arg1 : i32, i32
  }
  func.func @transform_3(%arg0: i32, %arg1: i32, %arg2: i32) -> (i32, i32) {
    %c0_i32 = arith.constant 0 : i32
    return %arg0, %arg1 : i32, i32
  }
}

module attributes {stable_mosaic.version = 11 : i64} {
  func.func @_matmul_bias_kernel(%arg0: i32, %arg1: i32, %arg2: i32, %arg3: memref<64x128xbf16, #tpu.memory_space<vmem>>, %arg4: memref<128x128xbf16, #tpu.memory_space<vmem>>, %arg5: memref<1x128xf32, #tpu.memory_space<vmem>>, %arg6: memref<64x128xbf16, #tpu.memory_space<vmem>>, %arg7: memref<64x128xf32, #tpu.memory_space<vmem>>) attributes {dimension_semantics = [#tpu.dimension_semantics<parallel>, #tpu.dimension_semantics<parallel>, #tpu.dimension_semantics<arbitrary>], iteration_bounds = array<i64: 1, 7, 1>, scalar_prefetch = 0 : i64, scratch_operands = 1 : i64, tpu.core_type = #tpu.core_type<tc>, window_params = [{transform_indices = @transform_0, window_bounds = array<i64: 64, 128>}, {transform_indices = @transform_1, window_bounds = array<i64: 128, 128>}, {transform_indices = @transform_2, window_bounds = array<i64: 1, 128>}, {transform_indices = @transform_3, window_bounds = array<i64: 64, 128>}]} {
    %c0_i32 = arith.constant 0 : i32
    %0 = arith.cmpi eq, %arg2, %c0_i32 : i32
    %1 = arith.extui %0 : i1 to i32
    %c0_i32_0 = arith.constant 0 : i32
    %2 = arith.cmpi ne, %1, %c0_i32_0 : i32
    scf.if %2 {
      %cst_10 = arith.constant 0.000000e+00 : f32
      %12 = vector.broadcast %cst_10 : f32 to vector<64x128xf32>
      %c0_11 = arith.constant 0 : index
      %c0_12 = arith.constant 0 : index
      %13 = vector.load %arg7[%c0_11, %c0_12] : memref<64x128xf32, #tpu.memory_space<vmem>>, vector<64x128xf32>
      tpu.vector_store %arg7[%c0_11, %c0_12], %12 {strides = array<i32>} : memref<64x128xf32, #tpu.memory_space<vmem>>, vector<64x128xf32>,
    } else {
    }
    %c0 = arith.constant 0 : index
    %c0_1 = arith.constant 0 : index
    %3 = vector.load %arg7[%c0, %c0_1] : memref<64x128xf32, #tpu.memory_space<vmem>>, vector<64x128xf32>
    %c0_2 = arith.constant 0 : index
    %c0_3 = arith.constant 0 : index
    %4 = vector.load %arg3[%c0_2, %c0_3] : memref<64x128xbf16, #tpu.memory_space<vmem>>, vector<64x128xbf16>
    %c0_4 = arith.constant 0 : index
    %c0_5 = arith.constant 0 : index
    %5 = vector.load %arg4[%c0_4, %c0_5] : memref<128x128xbf16, #tpu.memory_space<vmem>>, vector<128x128xbf16>
    %cst = arith.constant dense<0.000000e+00> : vector<64x128xf32>
    %6 = tpu.matmul %4, %5, %cst {dimension_numbers = #tpu.dot_dimension_numbers<[1], [0], [0], [1], [0, 0, 1, 1], [], []>} : vector<64x128xbf16>, vector<128x128xbf16>, vector<64x128xf32> -> vector<64x128xf32>
    %7 = arith.addf %3, %6 : vector<64x128xf32>
    %c0_6 = arith.constant 0 : index
    %c0_7 = arith.constant 0 : index
    %8 = vector.load %arg7[%c0_6, %c0_7] : memref<64x128xf32, #tpu.memory_space<vmem>>, vector<64x128xf32>
    tpu.vector_store %arg7[%c0_6, %c0_7], %7 {strides = array<i32>} : memref<64x128xf32, #tpu.memory_space<vmem>>, vector<64x128xf32>,
    %c0_i32_8 = arith.constant 0 : i32
    %9 = arith.cmpi eq, %arg2, %c0_i32_8 : i32
    %10 = arith.extui %9 : i1 to i32
    %c0_i32_9 = arith.constant 0 : i32
    %11 = arith.cmpi ne, %10, %c0_i32_9 : i32
    scf.if %11 {
      %c0_10 = arith.constant 0 : index
      %c0_11 = arith.constant 0 : index
      %12 = vector.load %arg7[%c0_10, %c0_11] : memref<64x128xf32, #tpu.memory_space<vmem>>, vector<64x128xf32>
      %c0_12 = arith.constant 0 : index
      %c0_13 = arith.constant 0 : index
      %13 = vector.load %arg5[%c0_12, %c0_13] : memref<1x128xf32, #tpu.memory_space<vmem>>, vector<1x128xf32>
      %14 = vector.broadcast %13 : vector<1x128xf32> to vector<64x128xf32>
      %15 = arith.addf %12, %14 : vector<64x128xf32>
      %16 = arith.truncf %15 : vector<64x128xf32> to vector<64x128xbf16>
      %c0_14 = arith.constant 0 : index
      %c0_15 = arith.constant 0 : index
      %17 = vector.load %arg6[%c0_14, %c0_15] : memref<64x128xbf16, #tpu.memory_space<vmem>>, vector<64x128xbf16>
      tpu.vector_store %arg6[%c0_14, %c0_15], %16 {strides = array<i32>} : memref<64x128xbf16, #tpu.memory_space<vmem>>, vector<64x128xbf16>,
    } else {
    }
    return
  }
  func.func @transform_0(%arg0: i32, %arg1: i32, %arg2: i32) -> (i32, i32) {
    %c0_i32 = arith.constant 0 : i32
    return %arg0, %arg2 : i32, i32
  }
  func.func @transform_1(%arg0: i32, %arg1: i32, %arg2: i32) -> (i32, i32) {
    %c0_i32 = arith.constant 0 : i32
    return %arg2, %arg1 : i32, i32
  }
  func.func @transform_2(%arg0: i32, %arg1: i32, %arg2: i32) -> (i32, i32) {
    %c0_i32 = arith.constant 0 : i32
    %c0_i32_0 = arith.constant 0 : i32
    return %c0_i32, %arg1 : i32, i32
  }
  func.func @transform_3(%arg0: i32, %arg1: i32, %arg2: i32) -> (i32, i32) {
    %c0_i32 = arith.constant 0 : i32
    return %arg0, %arg1 : i32, i32
  }
}

module attributes {stable_mosaic.version = 11 : i64} {
  func.func @_matmul_bias_kernel(%arg0: i32, %arg1: i32, %arg2: i32, %arg3: memref<64x128xbf16, #tpu.memory_space<vmem>>, %arg4: memref<128x128xbf16, #tpu.memory_space<vmem>>, %arg5: memref<1x128xf32, #tpu.memory_space<vmem>>, %arg6: memref<64x128xf32, #tpu.memory_space<vmem>>, %arg7: memref<64x128xf32, #tpu.memory_space<vmem>>) attributes {dimension_semantics = [#tpu.dimension_semantics<parallel>, #tpu.dimension_semantics<parallel>, #tpu.dimension_semantics<arbitrary>], iteration_bounds = array<i64: 1, 1, 5>, scalar_prefetch = 0 : i64, scratch_operands = 1 : i64, tpu.core_type = #tpu.core_type<tc>, window_params = [{transform_indices = @transform_0, window_bounds = array<i64: 64, 128>}, {transform_indices = @transform_1, window_bounds = array<i64: 128, 128>}, {transform_indices = @transform_2, window_bounds = array<i64: 1, 128>}, {transform_indices = @transform_3, window_bounds = array<i64: 64, 128>}]} {
    %c0_i32 = arith.constant 0 : i32
    %0 = arith.cmpi eq, %arg2, %c0_i32 : i32
    %1 = arith.extui %0 : i1 to i32
    %c0_i32_0 = arith.constant 0 : i32
    %2 = arith.cmpi ne, %1, %c0_i32_0 : i32
    scf.if %2 {
      %cst_9 = arith.constant 0.000000e+00 : f32
      %12 = vector.broadcast %cst_9 : f32 to vector<64x128xf32>
      %c0_10 = arith.constant 0 : index
      %c0_11 = arith.constant 0 : index
      %13 = vector.load %arg7[%c0_10, %c0_11] : memref<64x128xf32, #tpu.memory_space<vmem>>, vector<64x128xf32>
      tpu.vector_store %arg7[%c0_10, %c0_11], %12 {strides = array<i32>} : memref<64x128xf32, #tpu.memory_space<vmem>>, vector<64x128xf32>,
    } else {
    }
    %c0 = arith.constant 0 : index
    %c0_1 = arith.constant 0 : index
    %3 = vector.load %arg7[%c0, %c0_1] : memref<64x128xf32, #tpu.memory_space<vmem>>, vector<64x128xf32>
    %c0_2 = arith.constant 0 : index
    %c0_3 = arith.constant 0 : index
    %4 = vector.load %arg3[%c0_2, %c0_3] : memref<64x128xbf16, #tpu.memory_space<vmem>>, vector<64x128xbf16>
    %c0_4 = arith.constant 0 : index
    %c0_5 = arith.constant 0 : index
    %5 = vector.load %arg4[%c0_4, %c0_5] : memref<128x128xbf16, #tpu.memory_space<vmem>>, vector<128x128xbf16>
    %cst = arith.constant dense<0.000000e+00> : vector<64x128xf32>
    %6 = tpu.matmul %4, %5, %cst {dimension_numbers = #tpu.dot_dimension_numbers<[1], [0], [0], [1], [0, 0, 1, 1], [], []>} : vector<64x128xbf16>, vector<128x128xbf16>, vector<64x128xf32> -> vector<64x128xf32>
    %7 = arith.addf %3, %6 : vector<64x128xf32>
    %c0_6 = arith.constant 0 : index
    %c0_7 = arith.constant 0 : index
    %8 = vector.load %arg7[%c0_6, %c0_7] : memref<64x128xf32, #tpu.memory_space<vmem>>, vector<64x128xf32>
    tpu.vector_store %arg7[%c0_6, %c0_7], %7 {strides = array<i32>} : memref<64x128xf32, #tpu.memory_space<vmem>>, vector<64x128xf32>,
    %c4_i32 = arith.constant 4 : i32
    %9 = arith.cmpi eq, %arg2, %c4_i32 : i32
    %10 = arith.extui %9 : i1 to i32
    %c0_i32_8 = arith.constant 0 : i32
    %11 = arith.cmpi ne, %10, %c0_i32_8 : i32
    scf.if %11 {
      %c0_9 = arith.constant 0 : index
      %c0_10 = arith.constant 0 : index
      %12 = vector.load %arg7[%c0_9, %c0_10] : memref<64x128xf32, #tpu.memory_space<vmem>>, vector<64x128xf32>
      %c0_11 = arith.constant 0 : index
      %c0_12 = arith.constant 0 : index
      %13 = vector.load %arg5[%c0_11, %c0_12] : memref<1x128xf32, #tpu.memory_space<vmem>>, vector<1x128xf32>
      %14 = vector.broadcast %13 : vector<1x128xf32> to vector<64x128xf32>
      %15 = arith.addf %12, %14 : vector<64x128xf32>
      %c0_13 = arith.constant 0 : index
      %c0_14 = arith.constant 0 : index
      %16 = vector.load %arg6[%c0_13, %c0_14] : memref<64x128xf32, #tpu.memory_space<vmem>>, vector<64x128xf32>
      tpu.vector_store %arg6[%c0_13, %c0_14], %15 {strides = array<i32>} : memref<64x128xf32, #tpu.memory_space<vmem>>, vector<64x128xf32>,
    } else {
    }
    return
  }
  func.func @transform_0(%arg0: i32, %arg1: i32, %arg2: i32) -> (i32, i32) {
    %c0_i32 = arith.constant 0 : i32
    return %arg0, %arg2 : i32, i32
  }
  func.func @transform_1(%arg0: i32, %arg1: i32, %arg2: i32) -> (i32, i32) {
    %c0_i32 = arith.constant 0 : i32
    return %arg2, %arg1 : i32, i32
  }
  func.func @transform_2(%arg0: i32, %arg1: i32, %arg2: i32) -> (i32, i32) {
    %c0_i32 = arith.constant 0 : i32
    %c0_i32_0 = arith.constant 0 : i32
    return %c0_i32, %arg1 : i32, i32
  }
  func.func @transform_3(%arg0: i32, %arg1: i32, %arg2: i32) -> (i32, i32) {
    %c0_i32 = arith.constant 0 : i32
    return %arg0, %arg1 : i32, i32
  }
}

</mosaic_0001>

<llo_original>
// kernel: flux_forward.17
$region0: #{flux_forward.17}
  #allocation0 [shape = 'u32[]', space=smem, size = 0x4, offset = 0x4, fixed_abs, tag = 'smem constant byte address 0x4 - core index']
  #allocation1 [shape = 'u32[144,128]{1,0:T(1,128)}', space=vmem, size = 0x12000, scoped, tag = 'internal scratch']
  #allocation2 [shape = 'f32[48,128]{1,0:T(8,128)}', space=vmem, size = 0x6000, scoped, tag = 'scratch operand']
  %s0 = inlined_call_operand.vmem [shape: bf16[48,128], index: 0, kind: input, shape index: {}]
  %s1 = inlined_call_operand.vmem [shape: bf16[128,384], index: 1, kind: input, shape index: {}]
  %s2 = inlined_call_operand.vmem [shape: f32[1,384], index: 2, kind: input, shape index: {}]
  %s3 = inlined_call_operand.vmem [shape: bf16[48,384], index: 3, kind: output, shape index: {}]
  %s4 = sld [smem:[#allocation0]]
  $region131: #{flux_forward.17} parent=0
    _
  %s6 = ssub.s32 1, %s4
  %s7 = scalar_select 0, %s6, %s4
  $region1: #{flux_forward.17} parent=0
    #allocation3 [shape = 'u8[65536]{0}', space=vmem, size = 0x10000, scoped, tag = 'input window, operand 1']
    #allocation4 [shape = 'u8[24576]{0}', space=vmem, size = 0x6000, scoped, tag = 'output window, operand 0']
    loop: start=0, step=1, limit=5
    $region2: #{flux_forward.17} parent=1 // loop_pre_header
      _
    $region3: #{flux_forward.17} parent=1 // loop_header
      %s9 = sphi 0, %s13
      %p10 = scmp.ge.s32.totalorder %s9, 5
      %s16 = sphi 0, %s35
      %s17 = sphi 0, %s31
      %s18 = sphi 0, %s27
      %s19 = sphi 0, %s16
      %s20 = sphi 0, %s17
      %s21 = sphi 0, %s18
      %s22 = sphi 0, %s19
      %s23 = sphi 0, %s20
      %s24 = sphi 0, %s21
      %s40 = sphi 0, %s42
      %s43 = sphi 0, %s40
      %s44 = sphi 0, %s43
      %s60 = sphi 0, %s44
      %s68 = sphi 0, %s70
      %s71 = sphi 0, %s68
      %s72 = sphi 0, %s71
      %s88 = sphi 0, %s72
      %s94 = sphi 0, %s96
      %s97 = sphi 0, %s94
      %s98 = sphi 0, %s97
      %s114 = sphi 0, %s98
      %s122 = sphi 0, %s124
      %s125 = sphi 0, %s122
      %s126 = sphi 0, %s125
      %s142 = sphi 0, %s126
    $region4: #{flux_forward.17} parent=1 // loop_header_branch
      %12 = sbr.rel (%p10) target = $region8
    $region5: #{flux_forward.17} parent=1 // loop_body
      %s14 = ssub.s32 %s9, 1
      %s15 = ssub.s32 %s9, 2
      %s25 = sadd.s32 1, %s18
      %p26 = scmp.ge.s32.totalorder %s25, 1
      %s27 = scalar_select %p26, 0, %s25
      %s28 = sadd.s32 1, %s17
      %s29 = scalar_select %p26, %s28, %s17
      %p30 = scmp.ge.s32.totalorder %s29, 3
      %s31 = scalar_select %p30, 0, %s29
      %s32 = sadd.s32 1, %s16
      %s33 = scalar_select %p30, %s32, %s16
      %p34 = scmp.ge.s32.totalorder %s33, 1
      %s35 = scalar_select %p34, 0, %s33
      %s36 = ssub.s32 %s16, %s35
      %s37 = ssub.s32 %s18, %s27
      %s38 = sor.u32 %s36, %s37
      %p39 = scmp.eq.s32.totalorder %s38, 0
      %s41 = sadd.s32 %s40, 1
      %s42 = scalar_select %p39, %s40, %s41
      %p45 = pneg %p39
      %p46 = scmp.eq.s32.totalorder %s9, 2
      %p47 = por %p45, %p46
      %p48 = scmp.ne.s32.totalorder %s40, %s43
      %p49 = scmp.eq.s32.totalorder %s9, 0
      %p50 = por %p48, %p49
      %p51 = scmp.ne.s32.totalorder %s40, %s43
      %p52 = scmp.eq.s32.totalorder %s14, 2
      %p53 = por %p51, %p52
      %p54 = scmp.ne.s32.totalorder %s43, %s44
      %p55 = scmp.eq.s32.totalorder %s14, 0
      %p56 = por %p54, %p55
      %p57 = scmp.ne.s32.totalorder %s43, %s44
      %p58 = scmp.eq.s32.totalorder %s15, 2
      %p59 = por %p57, %p58
      %p61 = scmp.ne.s32.totalorder %s44, %s60
      %p62 = scmp.eq.s32.totalorder %s15, 0
      %p63 = por %p61, %p62
      %s64 = ssub.s32 %s18, %s27
      %s65 = ssub.s32 %s17, %s31
      %s66 = sor.u32 %s64, %s65
      %p67 = scmp.eq.s32.totalorder %s66, 0
      %s69 = sadd.s32 %s68, 1
      %s70 = scalar_select %p67, %s68, %s69
      %p73 = pneg %p67
      %p74 = scmp.eq.s32.totalorder %s9, 2
      %p75 = por %p73, %p74
      %p76 = scmp.ne.s32.totalorder %s68, %s71
      %p77 = scmp.eq.s32.totalorder %s9, 0
      %p78 = por %p76, %p77
      %p79 = scmp.ne.s32.totalorder %s68, %s71
      %p80 = scmp.eq.s32.totalorder %s14, 2
      %p81 = por %p79, %p80
      %p82 = scmp.ne.s32.totalorder %s71, %s72
      %p83 = scmp.eq.s32.totalorder %s14, 0
      %p84 = por %p82, %p83
      %p85 = scmp.ne.s32.totalorder %s71, %s72
      %p86 = scmp.eq.s32.totalorder %s15, 2
      %p87 = por %p85, %p86
      %p89 = scmp.ne.s32.totalorder %s72, %s88
      %p90 = scmp.eq.s32.totalorder %s15, 0
      %p91 = por %p89, %p90
      %s92 = ssub.s32 %s17, %s31
      %p93 = scmp.eq.s32.totalorder %s92, 0
      %s95 = sadd.s32 %s94, 1
      %s96 = scalar_select %p93, %s94, %s95
      %p99 = pneg %p93
      %p100 = scmp.eq.s32.totalorder %s9, 2
      %p101 = por %p99, %p100
      %p102 = scmp.ne.s32.totalorder %s94, %s97
      %p103 = scmp.eq.s32.totalorder %s9, 0
      %p104 = por %p102, %p103
      %p105 = scmp.ne.s32.totalorder %s94, %s97
      %p106 = scmp.eq.s32.totalorder %s14, 2
      %p107 = por %p105, %p106
      %p108 = scmp.ne.s32.totalorder %s97, %s98
      %p109 = scmp.eq.s32.totalorder %s14, 0
      %p110 = por %p108, %p109
      %p111 = scmp.ne.s32.totalorder %s97, %s98
      %p112 = scmp.eq.s32.totalorder %s15, 2
      %p113 = por %p111, %p112
      %p115 = scmp.ne.s32.totalorder %s98, %s114
      %p116 = scmp.eq.s32.totalorder %s15, 0
      %p117 = por %p115, %p116
      %s118 = ssub.s32 %s16, %s35
      %s119 = ssub.s32 %s17, %s31
      %s120 = sor.u32 %s118, %s119
      %p121 = scmp.eq.s32.totalorder %s120, 0
      %s123 = sadd.s32 %s122, 1
      %s124 = scalar_select %p121, %s122, %s123
      %p127 = pneg %p121
      %p128 = scmp.eq.s32.totalorder %s9, 2
      %p129 = por %p127, %p128
      %p130 = scmp.ne.s32.totalorder %s122, %s125
      %p131 = scmp.eq.s32.totalorder %s9, 0
      %p132 = por %p130, %p131
      %p133 = scmp.ne.s32.totalorder %s122, %s125
      %p134 = scmp.eq.s32.totalorder %s14, 2
      %p135 = por %p133, %p134
      %p136 = scmp.ne.s32.totalorder %s125, %s126
      %p137 = scmp.eq.s32.totalorder %s14, 0
      %p138 = por %p136, %p137
      %p139 = scmp.ne.s32.totalorder %s125, %s126
      %p140 = scmp.eq.s32.totalorder %s15, 2
      %p141 = por %p139, %p140
      %p143 = scmp.ne.s32.totalorder %s126, %s142
      %p144 = scmp.eq.s32.totalorder %s15, 0
      %p145 = por %p143, %p144
      %p146 = scmp.le.s32.totalorder 1, %s9
      %p147 = scmp.lt.s32.totalorder %s9, 4
      %p148 = pnand %p146, %p147
      %p149 = pneg %p148
      // Predicated region
      $region9: #{flux_forward.17} parent=5 // pred_check
        _
      $region10: #{flux_forward.17} parent=5 // pred_check_branch
        %151 = sbr.rel (%p148) target = $region12
      $region11: #{flux_forward.17} parent=5 // pred_region
        %s152 = ssub.s32 %s9, 1
        // Predicated region
        $region13: #{flux_forward.17} parent=11 // pred_check
          %p153 = pneg %p56
        $region14: #{flux_forward.17} parent=11 // pred_check_branch
          %155 = sbr.rel (%p153) target = $region16
        $region15: #{flux_forward.17} parent=11 // pred_region
          %s156 = smul.u32 6, %s19
          %p157 = scmp.lt.s32.totalorder %s156, 5
          %s158 = scalar_select %p157, %s156, 5
          %p159 = scmp.lt.s32.totalorder %s21, 0
          %s160 = scalar_select %p159, %s21, 0
          %s161 = sadd.s32 %s160, %s158
          %s162 = smul.addr %s161, 4
          %s163 = scalar_lea.vmem %s0, %s162
          %s164 = smul.u32 6, %s19
        $region16: #{flux_forward.17} parent=11 // pred_fallthru
          _
      $region12: #{flux_forward.17} parent=5 // pred_fallthru
        _
      %p165 = scmp.lt.s32.totalorder %s9, 3
      // Predicated region
      $region17: #{flux_forward.17} parent=5 // pred_check
        %p166 = pneg %p165
      $region18: #{flux_forward.17} parent=5 // pred_check_branch
        %168 = sbr.rel (%p166) target = $region20
      $region19: #{flux_forward.17} parent=5 // pred_region
        // Predicated region
        $region21: #{flux_forward.17} parent=19 // pred_check
          %p169 = pneg %p78
        $region22: #{flux_forward.17} parent=19 // pred_check_branch
          %171 = sbr.rel (%p169) target = $region24
        $region23: #{flux_forward.17} parent=19 // pred_region
          %s172 = sand.u32 %s68, 1
          %s173 = sand.u32 %s68, 1
          %s174 = smul.addr %s173, 64
          %s175 = scalar_lea.vmem [#allocation3], %s174
          %s176 = smul.u32 16, %s18
          %s177 = smul.addr %s176, 3
          %s178 = sadd.s32 %s17, %s177
          %s179 = smul.addr %s178, 4
          %s180 = scalar_lea.vmem %s1, %s179
          // Predicated region
          $region25: #{flux_forward.17} parent=23 // pred_check
            _
          $region26: #{flux_forward.17} parent=23 // pred_check_branch
            %182 = sbr.rel (0) target = $region28
          $region27: #{flux_forward.17} parent=23 // pred_region
            // Predicated region
            $region29: #{flux_forward.17} parent=27 // pred_check
              _
            $region30: #{flux_forward.17} parent=27 // pred_check_branch
              %184 = sbr.rel target = $region32
            $region31: #{flux_forward.17} parent=27 // pred_region
              // Predicated region
              $region44: #{flux_forward.17} parent=31 // pred_check
                _
              $region45: #{flux_forward.17} parent=31 // pred_check_branch
                %229 = sbr.rel (0) target = $region47
              $region46: #{flux_forward.17} parent=31 // pred_region
                loop: start=0, step=1, limit=1
                $region48: #{flux_forward.17} parent=46 // loop_pre_header
                  _
                $region49: #{flux_forward.17} parent=46 // loop_header
                  %s231 = sphi 0, %s235
                  %p232 = scmp.ge.s32.totalorder %s231, 1
                  %s236 = sphi %s180, %s180
                  %s237 = sphi %s175, %s175
                $region50: #{flux_forward.17} parent=46 // loop_header_branch
                  %234 = sbr.rel (%p232) target = $region54
                $region51: #{flux_forward.17} parent=46 // loop_body
                  _
                $region52: #{flux_forward.17} parent=46 // loop_footer
                  %s235 = sadd.s32 1, %s231
                $region53: #{flux_forward.17} parent=46 // loop_footer_branch
                  %230 = sbr.rel target = $region49
                $region54: #{flux_forward.17} parent=46 // loop_exit
                  _
                loop: start=0, step=1, limit=1
                $region55: #{flux_forward.17} parent=46 // loop_pre_header
                  _
                $region56: #{flux_forward.17} parent=46 // loop_header
                  %s240 = sphi 0, %s244
                  %p241 = scmp.ge.s32.totalorder %s240, 1
                  %s245 = sphi %s180, %s180
                  %s246 = sphi %s175, %s175
                $region57: #{flux_forward.17} parent=46 // loop_header_branch
                  %243 = sbr.rel (%p241) target = $region61
                $region58: #{flux_forward.17} parent=46 // loop_body
                  %v247 = vld [vmem:[%s245] sm:$0xf]
                  %248 = vst [vmem:[%s246] sm:$0xf] %v247
                  %v249 = vld [vmem:[%s245 + $0xc] sm:$0xf]
                  %250 = vst [vmem:[%s246 + $0x4] sm:$0xf] %v249
                  %v251 = vld [vmem:[%s245 + $0x18] sm:$0xf]
                  %252 = vst [vmem:[%s246 + $0x8] sm:$0xf] %v251
                  %v253 = vld [vmem:[%s245 + $0x24] sm:$0xf]
                  %254 = vst [vmem:[%s246 + $0xc] sm:$0xf] %v253
                  %v255 = vld [vmem:[%s245 + $0x30] sm:$0xf]
                  %256 = vst [vmem:[%s246 + $0x10] sm:$0xf] %v255
                  %v257 = vld [vmem:[%s245 + $0x3c] sm:$0xf]
                  %258 = vst [vmem:[%s246 + $0x14] sm:$0xf] %v257
                  %v259 = vld [vmem:[%s245 + $0x48] sm:$0xf]
                  %260 = vst [vmem:[%s246 + $0x18] sm:$0xf] %v259
                  %v261 = vld [vmem:[%s245 + $0x54] sm:$0xf]
                  %262 = vst [vmem:[%s246 + $0x1c] sm:$0xf] %v261
                  %v263 = vld [vmem:[%s245 + $0x60] sm:$0xf]
                  %264 = vst [vmem:[%s246 + $0x20] sm:$0xf] %v263
                  %v265 = vld [vmem:[%s245 + $0x6c] sm:$0xf]
                  %266 = vst [vmem:[%s246 + $0x24] sm:$0xf] %v265
                  %v267 = vld [vmem:[%s245 + $0x78] sm:$0xf]
                  %268 = vst [vmem:[%s246 + $0x28] sm:$0xf] %v267
                  %v269 = vld [vmem:[%s245 + $0x84] sm:$0xf]
                  %270 = vst [vmem:[%s246 + $0x2c] sm:$0xf] %v269
                  %v271 = vld [vmem:[%s245 + $0x90] sm:$0xf]
                  %272 = vst [vmem:[%s246 + $0x30] sm:$0xf] %v271
                  %v273 = vld [vmem:[%s245 + $0x9c] sm:$0xf]
                  %274 = vst [vmem:[%s246 + $0x34] sm:$0xf] %v273
                  %v275 = vld [vmem:[%s245 + $0xa8] sm:$0xf]
                  %276 = vst [vmem:[%s246 + $0x38] sm:$0xf] %v275
                  %v277 = vld [vmem:[%s245 + $0xb4] sm:$0xf]
                  %278 = vst [vmem:[%s246 + $0x3c] sm:$0xf] %v277
                $region59: #{flux_forward.17} parent=46 // loop_footer
                  %s244 = sadd.s32 1, %s240
                $region60: #{flux_forward.17} parent=46 // loop_footer_branch
                  %239 = sbr.rel target = $region56
                $region61: #{flux_forward.17} parent=46 // loop_exit
                  _
              $region47: #{flux_forward.17} parent=31 // pred_fallthru
                _
            $region32: #{flux_forward.17} parent=27 // pred_fallthru
              _
            // Predicated region
            $region33: #{flux_forward.17} parent=27 // pred_check
              _
            $region34: #{flux_forward.17} parent=27 // pred_check_branch
              %186 = sbr.rel (0) target = $region36
            $region35: #{flux_forward.17} parent=27 // pred_region
              loop: start=0, step=1, limit=1
              $region37: #{flux_forward.17} parent=35 // loop_pre_header
                _
              $region38: #{flux_forward.17} parent=35 // loop_header
                %s189 = sphi 0, %s193
                %p190 = scmp.ge.s32.totalorder %s189, 1
                %s194 = sphi %s180, %s180
                %s195 = sphi %s175, %s175
              $region39: #{flux_forward.17} parent=35 // loop_header_branch
                %192 = sbr.rel (%p190) target = $region43
              $region40: #{flux_forward.17} parent=35 // loop_body
                %v196 = vld [vmem:[%s194] sm:$0xf]
                %197 = vst [vmem:[%s195] sm:$0xf] %v196
                %v198 = vld [vmem:[%s194 + $0xc] sm:$0xf]
                %199 = vst [vmem:[%s195 + $0x4] sm:$0xf] %v198
                %v200 = vld [vmem:[%s194 + $0x18] sm:$0xf]
                %201 = vst [vmem:[%s195 + $0x8] sm:$0xf] %v200
                %v202 = vld [vmem:[%s194 + $0x24] sm:$0xf]
                %203 = vst [vmem:[%s195 + $0xc] sm:$0xf] %v202
                %v204 = vld [vmem:[%s194 + $0x30] sm:$0xf]
                %205 = vst [vmem:[%s195 + $0x10] sm:$0xf] %v204
                %v206 = vld [vmem:[%s194 + $0x3c] sm:$0xf]
                %207 = vst [vmem:[%s195 + $0x14] sm:$0xf] %v206
                %v208 = vld [vmem:[%s194 + $0x48] sm:$0xf]
                %209 = vst [vmem:[%s195 + $0x18] sm:$0xf] %v208
                %v210 = vld [vmem:[%s194 + $0x54] sm:$0xf]
                %211 = vst [vmem:[%s195 + $0x1c] sm:$0xf] %v210
                %v212 = vld [vmem:[%s194 + $0x60] sm:$0xf]
                %213 = vst [vmem:[%s195 + $0x20] sm:$0xf] %v212
                %v214 = vld [vmem:[%s194 + $0x6c] sm:$0xf]
                %215 = vst [vmem:[%s195 + $0x24] sm:$0xf] %v214
                %v216 = vld [vmem:[%s194 + $0x78] sm:$0xf]
                %217 = vst [vmem:[%s195 + $0x28] sm:$0xf] %v216
                %v218 = vld [vmem:[%s194 + $0x84] sm:$0xf]
                %219 = vst [vmem:[%s195 + $0x2c] sm:$0xf] %v218
                %v220 = vld [vmem:[%s194 + $0x90] sm:$0xf]
                %221 = vst [vmem:[%s195 + $0x30] sm:$0xf] %v220
                %v222 = vld [vmem:[%s194 + $0x9c] sm:$0xf]
                %223 = vst [vmem:[%s195 + $0x34] sm:$0xf] %v222
                %v224 = vld [vmem:[%s194 + $0xa8] sm:$0xf]
                %225 = vst [vmem:[%s195 + $0x38] sm:$0xf] %v224
                %v226 = vld [vmem:[%s194 + $0xb4] sm:$0xf]
                %227 = vst [vmem:[%s195 + $0x3c] sm:$0xf] %v226
              $region41: #{flux_forward.17} parent=35 // loop_footer
                %s193 = sadd.s32 1, %s189
              $region42: #{flux_forward.17} parent=35 // loop_footer_branch
                %188 = sbr.rel target = $region38
              $region43: #{flux_forward.17} parent=35 // loop_exit
                _
            $region36: #{flux_forward.17} parent=27 // pred_fallthru
              _
          $region28: #{flux_forward.17} parent=23 // pred_fallthru
            _
          %279 = vnop
        $region24: #{flux_forward.17} parent=19 // pred_fallthru
          _
        // Predicated region
        $region62: #{flux_forward.17} parent=19 // pred_check
          %p280 = pneg %p104
        $region63: #{flux_forward.17} parent=19 // pred_check_branch
          %282 = sbr.rel (%p280) target = $region65
        $region64: #{flux_forward.17} parent=19 // pred_region
          %p283 = scmp.lt.s32.totalorder %s17, 2
          %s284 = scalar_select %p283, %s17, 2
          %s285 = scalar_lea.vmem %s2, %s284
        $region65: #{flux_forward.17} parent=19 // pred_fallthru
          _
      $region20: #{flux_forward.17} parent=5 // pred_fallthru
        _
      %p286 = scmp.le.s32.totalorder 1, %s9
      %p287 = scmp.lt.s32.totalorder %s9, 4
      %p288 = pnand %p286, %p287
      %p289 = pneg %p288
      // Predicated region
      $region66: #{flux_forward.17} parent=5 // pred_check
        _
      $region67: #{flux_forward.17} parent=5 // pred_check_branch
        %291 = sbr.rel (%p288) target = $region69
      $region68: #{flux_forward.17} parent=5 // pred_region
        %s292 = ssub.s32 %s9, 1
        %s293 = sand.u32 %s71, 1
        %s294 = sand.u32 %s71, 1
        %s295 = smul.addr %s294, 64
        %s296 = scalar_lea.vmem [#allocation3], %s295
        // Predicated region
        $region70: #{flux_forward.17} parent=68 // pred_check
          %p297 = pneg %p84
        $region71: #{flux_forward.17} parent=68 // pred_check_branch
          %299 = sbr.rel (%p297) target = $region73
        $region72: #{flux_forward.17} parent=68 // pred_region
          _
        $region73: #{flux_forward.17} parent=68 // pred_fallthru
          _
        %s300 = smul.u32 6, %s19
        %p301 = scmp.lt.s32.totalorder %s300, 5
        %s302 = scalar_select %p301, %s300, 5
        %p303 = scmp.lt.s32.totalorder %s21, 0
        %s304 = scalar_select %p303, %s21, 0
        %s305 = sadd.s32 %s304, %s302
        %s306 = smul.addr %s305, 4
        %s307 = scalar_lea.vmem %s0, %s306
        %p308 = pneg %p56
        %p309 = pneg %p53
        %s310 = sand.u32 %s71, 1
        %s311 = sand.u32 %s71, 1
        %s312 = smul.addr %s311, 64
        %s313 = scalar_lea.vmem [#allocation3], %s312
        %p314 = pneg %p84
        %p315 = pneg %p81
        %p316 = scmp.lt.s32.totalorder %s20, 2
        %s317 = scalar_select %p316, %s20, 2
        %s318 = scalar_lea.vmem %s2, %s317
        %p319 = pneg %p110
        %p320 = pneg %p107
        %p321 = pneg %p138
        %p322 = pneg %p135
        %s323 = sand.u32 %s125, 1
        %s324 = sand.u32 %s125, 1
        %s325 = smul.addr %s324, 24
        %s326 = scalar_lea.vmem [#allocation4], %s325
        %s327 = smul.u32 6, %s19
        %p328 = scmp.lt.s32.totalorder %s327, 5
        %s329 = scalar_select %p328, %s327, 5
        %p330 = scmp.lt.s32.totalorder %s21, 0
        %s331 = scalar_select %p330, %s21, 0
        %s332 = sadd.s32 %s331, %s329
        %s333 = smul.addr %s332, 4
        %s334 = scalar_lea.vmem %s0, %s333
        %s335 = smul.u32 6, %s19
        %s336 = smul.u32 16, %s21
        %p337 = scmp.lt.s32.totalorder %s20, 2
        %s338 = scalar_select %p337, %s20, 2
        %s339 = scalar_lea.vmem %s2, %s338
        %s340 = smul.u32 6, %s19
        %p342 = scmp.eq.s32.totalorder %s21, 0
        // Predicated region
        $region74: #{flux_forward.17} parent=68 // pred_check
          %p343 = pneg %p342
        $region75: #{flux_forward.17} parent=68 // pred_check_branch
          %345 = sbr.rel (%p343) target = $region77
        $region76: #{flux_forward.17} parent=68 // pred_region
          %346 = vst [vmem:[#allocation2] sm:$0xff] 0.0
          %347 = vst [vmem:[#allocation2 + $0x8] sm:$0xff] 0.0
          %348 = vst [vmem:[#allocation2 + $0x10] sm:$0xff] 0.0
          %349 = vst [vmem:[#allocation2 + $0x18] sm:$0xff] 0.0
          %350 = vst [vmem:[#allocation2 + $0x20] sm:$0xff] 0.0
          %351 = vst [vmem:[#allocation2 + $0x28] sm:$0xff] 0.0
        $region77: #{flux_forward.17} parent=68 // pred_fallthru
          _
        %v352 = vld [vmem:[#allocation2] sm:$0xff]
        %v353 = vld [vmem:[#allocation2 + $0x8] sm:$0xff]
        %v354 = vld [vmem:[#allocation2 + $0x10] sm:$0xff]
        %v355 = vld [vmem:[#allocation2 + $0x18] sm:$0xff]
        %v356 = vld [vmem:[#allocation2 + $0x20] sm:$0xff]
        %v357 = vld [vmem:[#allocation2 + $0x28] sm:$0xff]
        %v358 = vld [vmem:[%s334] sm:$0xf]
        %v359 = vld [vmem:[%s334 + $0x4] sm:$0xf]
        %v360 = vld [vmem:[%s334 + $0x8] sm:$0xf]
        %v361 = vld [vmem:[%s334 + $0xc] sm:$0xf]
        %v362 = vld [vmem:[%s334 + $0x10] sm:$0xf]
        %v363 = vld [vmem:[%s334 + $0x14] sm:$0xf]
        %v364 = vld [vmem:[%s296] sm:$0xf]
        %v365 = vld [vmem:[%s296 + $0x4] sm:$0xf]
        %v366 = vld [vmem:[%s296 + $0x8] sm:$0xf]
        %v367 = vld [vmem:[%s296 + $0xc] sm:$0xf]
        %v368 = vld [vmem:[%s296 + $0x10] sm:$0xf]
        %v369 = vld [vmem:[%s296 + $0x14] sm:$0xf]
        %v370 = vld [vmem:[%s296 + $0x18] sm:$0xf]
        %v371 = vld [vmem:[%s296 + $0x1c] sm:$0xf]
        %v372 = vld [vmem:[%s296 + $0x20] sm:$0xf]
        %v373 = vld [vmem:[%s296 + $0x24] sm:$0xf]
        %v374 = vld [vmem:[%s296 + $0x28] sm:$0xf]
        %v375 = vld [vmem:[%s296 + $0x2c] sm:$0xf]
        %v376 = vld [vmem:[%s296 + $0x30] sm:$0xf]
        %v377 = vld [vmem:[%s296 + $0x34] sm:$0xf]
        %v378 = vld [vmem:[%s296 + $0x38] sm:$0xf]
        %v379 = vld [vmem:[%s296 + $0x3c] sm:$0xf]
        %v386 = vunpack.c.l.b16 %v358
        %v387 = vunpack.c.l.b16 %v359
        %v388 = vunpack.c.l.b16 %v360
        %v389 = vunpack.c.l.b16 %v361
        %v390 = vunpack.c.l.b16 %v362
        %v391 = vunpack.c.l.b16 %v363
        %v392 = vpack.c.b16 %v387, %v386
        %v393 = vpack.c.b16 %v389, %v388
        %v394 = vpack.c.b16 %v391, %v390
        %v414 = vunpack.c.l.b16 %v364
        %v415 = vunpack.c.l.b16 %v365
        %v416 = vunpack.c.l.b16 %v366
        %v417 = vunpack.c.l.b16 %v367
        %v418 = vunpack.c.l.b16 %v368
        %v419 = vunpack.c.l.b16 %v369
        %v420 = vunpack.c.l.b16 %v370
        %v421 = vunpack.c.l.b16 %v371
        %v422 = vunpack.c.l.b16 %v372
        %v423 = vunpack.c.l.b16 %v373
        %v424 = vunpack.c.l.b16 %v374
        %v425 = vunpack.c.l.b16 %v375
        %v426 = vunpack.c.l.b16 %v376
        %v427 = vunpack.c.l.b16 %v377
        %v428 = vunpack.c.l.b16 %v378
        %v429 = vunpack.c.l.b16 %v379
        %v430 = vpack.c.b16 %v415, %v414
        %v431 = vpack.c.b16 %v417, %v416
        %v432 = vpack.c.b16 %v419, %v418
        %v433 = vpack.c.b16 %v421, %v420
        %v434 = vpack.c.b16 %v423, %v422
        %v435 = vpack.c.b16 %v425, %v424
        %v436 = vpack.c.b16 %v427, %v426
        %v437 = vpack.c.b16 %v429, %v428
        %446 = vmatprep.subr.bf16.mxu0 0
        %447 = vmatpush1.bf16.msra.mxu0 %v430
        %448 = vmatprep.subr.bf16.mxu0 0
        %449 = vmatpush1.bf16.msra.mxu0 %v431
        %450 = vmatprep.subr.bf16.mxu0 0
        %451 = vmatpush1.bf16.msra.mxu0 %v432
        %452 = vmatprep.subr.bf16.mxu0 0
        %453 = vmatpush1.bf16.msra.mxu0 %v433
        %454 = vmatprep.subr.bf16.mxu0 0
        %455 = vmatpush1.bf16.msra.mxu0 %v434
        %456 = vmatprep.subr.bf16.mxu0 0
        %457 = vmatpush1.bf16.msra.mxu0 %v435
        %458 = vmatprep.subr.bf16.mxu0 0
        %459 = vmatpush1.bf16.msra.mxu0 %v436
        %460 = vmatprep.subr.bf16.mxu0 0
        %461 = vmatpush1.bf16.msra.mxu0 %v437
        %462 = vmatprep.subr.bf16.mxu0 0
        %463 = vmatpush1.bf16.msra.mxu0 0
        %464 = vmatprep.subr.bf16.mxu0 0
        %465 = vmatpush1.bf16.msra.mxu0 0
        %466 = vmatprep.subr.bf16.mxu0 0
        %467 = vmatpush1.bf16.msra.mxu0 0
        %468 = vmatprep.subr.bf16.mxu0 0
        %469 = vmatpush1.bf16.msra.mxu0 0
        %470 = vmatprep.subr.bf16.mxu0 0
        %471 = vmatpush1.bf16.msra.mxu0 0
        %472 = vmatprep.subr.bf16.mxu0 0
        %473 = vmatpush1.bf16.msra.mxu0 0
        %474 = vmatprep.subr.bf16.mxu0 0
        %475 = vmatpush1.bf16.msra.mxu0 0
        %476 = vmatprep.subr.bf16.mxu0 0
        %477 = vmatpush1.bf16.msra.mxu0 0
        %478 = vmatprep.mubr.bf16.mxu0 0
        %479 = vmatmul.mubr.bf16.gmra.mrb[0].mxu0 %v392
        %v480 = vpop.f32.mrb[0].mxu0
        %v481 = vadd.f32 0.0, %v480
        %v482 = vpop.f32.mrb[0].mxu0
        %v483 = vpop.f32.mrb[0].mxu0
        %v484 = vadd.f32 0.0, %v483
        %v485 = vpop.f32.mrb[0].mxu0
        %486 = vmatprep.mubr.bf16.mxu0 0
        %487 = vmatmul.mubr.bf16.gmra.mrb[0].mxu0 %v393
        %v488 = vpop.f32.mrb[0].mxu0
        %v489 = vadd.f32 0.0, %v488
        %v490 = vpop.f32.mrb[0].mxu0
        %v491 = vpop.f32.mrb[0].mxu0
        %v492 = vadd.f32 0.0, %v491
        %v493 = vpop.f32.mrb[0].mxu0
        %494 = vmatprep.mubr.bf16.mxu0 0
        %495 = vmatmul.mubr.bf16.gmra.mrb[0].mxu0 %v394
        %v496 = vpop.f32.mrb[0].mxu0
        %v497 = vadd.f32 0.0, %v496
        %v498 = vpop.f32.mrb[0].mxu0
        %v499 = vpop.f32.mrb[0].mxu0
        %v500 = vadd.f32 0.0, %v499
        %v501 = vpop.f32.mrb[0].mxu0
        %502 = vdwg.mxu0
        %v503 = vadd.f32 %v352, %v481
        %v504 = vadd.f32 %v353, %v484
        %v505 = vadd.f32 %v354, %v489
        %v506 = vadd.f32 %v355, %v492
        %v507 = vadd.f32 %v356, %v497
        %v508 = vadd.f32 %v357, %v500
        %509 = vst [vmem:[#allocation2] sm:$0xff] %v503
        %510 = vst [vmem:[#allocation2 + $0x8] sm:$0xff] %v504
        %511 = vst [vmem:[#allocation2 + $0x10] sm:$0xff] %v505
        %512 = vst [vmem:[#allocation2 + $0x18] sm:$0xff] %v506
        %513 = vst [vmem:[#allocation2 + $0x20] sm:$0xff] %v507
        %514 = vst [vmem:[#allocation2 + $0x28] sm:$0xff] %v508
        // Predicated region
        $region78: #{flux_forward.17} parent=68 // pred_check
          %p515 = pneg %p342
        $region79: #{flux_forward.17} parent=68 // pred_check_branch
          %517 = sbr.rel (%p515) target = $region81
        $region80: #{flux_forward.17} parent=68 // pred_region
          %v518 = vld [vmem:[#allocation2] sm:$0xff]
          %v519 = vld [vmem:[#allocation2 + $0x8] sm:$0xff]
          %v520 = vld [vmem:[#allocation2 + $0x10] sm:$0xff]
          %v521 = vld [vmem:[#allocation2 + $0x18] sm:$0xff]
          %v522 = vld [vmem:[#allocation2 + $0x20] sm:$0xff]
          %v523 = vld [vmem:[#allocation2 + $0x28] sm:$0xff]
          %v524 = vld [vmem:[%s339] sm:$0x1]
          %v526 = vlaneseq
          %v527 = vshrl.u32 %v526, 7
          %v528 = vsub.s32 0, %v527
          %v529 = vrot.slane %v524, %v528
          %v531 = vadd.f32 %v518, %v529
          %v532 = vadd.f32 %v519, %v529
          %v533 = vadd.f32 %v520, %v529
          %v534 = vadd.f32 %v521, %v529
          %v535 = vadd.f32 %v522, %v529
          %v536 = vadd.f32 %v523, %v529
          %v537 = vpack.c.bf16 %v532, %v531
          %v538 = vpack.c.bf16 %v534, %v533
          %v539 = vpack.c.bf16 %v536, %v535
          %v543 = vunpack.c.l.b16 %v537
          %v544 = vunpack.c.h.b16 %v537
          %v545 = vunpack.c.l.b16 %v538
          %v546 = vunpack.c.h.b16 %v538
          %v547 = vunpack.c.l.b16 %v539
          %v548 = vunpack.c.h.b16 %v539
          %v549 = vpack.c.b16 %v543, %v543
          %v550 = vpack.c.b16 %v544, %v544
          %v551 = vpack.c.b16 %v545, %v545
          %v552 = vpack.c.b16 %v546, %v546
          %v553 = vpack.c.b16 %v547, %v547
          %v554 = vpack.c.b16 %v548, %v548
          %561 = vst [vmem:[%s326] sm:$0xf] %v549
          %562 = vst [vmem:[%s326 + $0x4] sm:$0xf] %v550
          %563 = vst [vmem:[%s326 + $0x8] sm:$0xf] %v551
          %564 = vst [vmem:[%s326 + $0xc] sm:$0xf] %v552
          %565 = vst [vmem:[%s326 + $0x10] sm:$0xf] %v553
          %566 = vst [vmem:[%s326 + $0x14] sm:$0xf] %v554
        $region81: #{flux_forward.17} parent=68 // pred_fallthru
          _
        %s567 = sand.u32 %s125, 1
        %s568 = sand.u32 %s125, 1
        %s569 = smul.addr %s568, 24
        %s570 = scalar_lea.vmem [#allocation4], %s569
        // Predicated region
        $region82: #{flux_forward.17} parent=68 // pred_check
          %p571 = pneg %p135
        $region83: #{flux_forward.17} parent=68 // pred_check_branch
          %573 = sbr.rel (%p571) target = $region85
        $region84: #{flux_forward.17} parent=68 // pred_region
          %s574 = smul.u32 6, %s19
          %s575 = smul.addr %s574, 3
          %s576 = sadd.s32 %s20, %s575
          %s577 = smul.addr %s576, 4
          %s578 = scalar_lea.vmem %s3, %s577
          // Predicated region
          $region86: #{flux_forward.17} parent=84 // pred_check
            _
          $region87: #{flux_forward.17} parent=84 // pred_check_branch
            %580 = sbr.rel (0) target = $region89
          $region88: #{flux_forward.17} parent=84 // pred_region
            // Predicated region
            $region90: #{flux_forward.17} parent=88 // pred_check
              _
            $region91: #{flux_forward.17} parent=88 // pred_check_branch
              %582 = sbr.rel target = $region93
            $region92: #{flux_forward.17} parent=88 // pred_region
              // Predicated region
              $region105: #{flux_forward.17} parent=92 // pred_check
                _
              $region106: #{flux_forward.17} parent=92 // pred_check_branch
                %607 = sbr.rel (0) target = $region108
              $region107: #{flux_forward.17} parent=92 // pred_region
                loop: start=0, step=1, limit=1
                $region109: #{flux_forward.17} parent=107 // loop_pre_header
                  _
                $region110: #{flux_forward.17} parent=107 // loop_header
                  %s609 = sphi 0, %s613
                  %p610 = scmp.ge.s32.totalorder %s609, 1
                  %s614 = sphi %s570, %s570
                  %s615 = sphi %s578, %s578
                $region111: #{flux_forward.17} parent=107 // loop_header_branch
                  %612 = sbr.rel (%p610) target = $region115
                $region112: #{flux_forward.17} parent=107 // loop_body
                  _
                $region113: #{flux_forward.17} parent=107 // loop_footer
                  %s613 = sadd.s32 1, %s609
                $region114: #{flux_forward.17} parent=107 // loop_footer_branch
                  %608 = sbr.rel target = $region110
                $region115: #{flux_forward.17} parent=107 // loop_exit
                  _
                loop: start=0, step=1, limit=1
                $region116: #{flux_forward.17} parent=107 // loop_pre_header
                  _
                $region117: #{flux_forward.17} parent=107 // loop_header
                  %s618 = sphi 0, %s622
                  %p619 = scmp.ge.s32.totalorder %s618, 1
                  %s623 = sphi %s570, %s570
                  %s624 = sphi %s578, %s578
                $region118: #{flux_forward.17} parent=107 // loop_header_branch
                  %621 = sbr.rel (%p619) target = $region122
                $region119: #{flux_forward.17} parent=107 // loop_body
                  %v625 = vld [vmem:[%s623] sm:$0xf]
                  %626 = vst [vmem:[%s624] sm:$0xf] %v625
                  %v627 = vld [vmem:[%s623 + $0x4] sm:$0xf]
                  %628 = vst [vmem:[%s624 + $0xc] sm:$0xf] %v627
                  %v629 = vld [vmem:[%s623 + $0x8] sm:$0xf]
                  %630 = vst [vmem:[%s624 + $0x18] sm:$0xf] %v629
                  %v631 = vld [vmem:[%s623 + $0xc] sm:$0xf]
                  %632 = vst [vmem:[%s624 + $0x24] sm:$0xf] %v631
                  %v633 = vld [vmem:[%s623 + $0x10] sm:$0xf]
                  %634 = vst [vmem:[%s624 + $0x30] sm:$0xf] %v633
                  %v635 = vld [vmem:[%s623 + $0x14] sm:$0xf]
                  %636 = vst [vmem:[%s624 + $0x3c] sm:$0xf] %v635
                $region120: #{flux_forward.17} parent=107 // loop_footer
                  %s622 = sadd.s32 1, %s618
                $region121: #{flux_forward.17} parent=107 // loop_footer_branch
                  %617 = sbr.rel target = $region117
                $region122: #{flux_forward.17} parent=107 // loop_exit
                  _
              $region108: #{flux_forward.17} parent=92 // pred_fallthru
                _
            $region93: #{flux_forward.17} parent=88 // pred_fallthru
              _
            // Predicated region
            $region94: #{flux_forward.17} parent=88 // pred_check
              _
            $region95: #{flux_forward.17} parent=88 // pred_check_branch
              %584 = sbr.rel (0) target = $region97
            $region96: #{flux_forward.17} parent=88 // pred_region
              loop: start=0, step=1, limit=1
              $region98: #{flux_forward.17} parent=96 // loop_pre_header
                _
              $region99: #{flux_forward.17} parent=96 // loop_header
                %s587 = sphi 0, %s591
                %p588 = scmp.ge.s32.totalorder %s587, 1
                %s592 = sphi %s570, %s570
                %s593 = sphi %s578, %s578
              $region100: #{flux_forward.17} parent=96 // loop_header_branch
                %590 = sbr.rel (%p588) target = $region104
              $region101: #{flux_forward.17} parent=96 // loop_body
                %v594 = vld [vmem:[%s592] sm:$0xf]
                %595 = vst [vmem:[%s593] sm:$0xf] %v594
                %v596 = vld [vmem:[%s592 + $0x4] sm:$0xf]
                %597 = vst [vmem:[%s593 + $0xc] sm:$0xf] %v596
                %v598 = vld [vmem:[%s592 + $0x8] sm:$0xf]
                %599 = vst [vmem:[%s593 + $0x18] sm:$0xf] %v598
                %v600 = vld [vmem:[%s592 + $0xc] sm:$0xf]
                %601 = vst [vmem:[%s593 + $0x24] sm:$0xf] %v600
                %v602 = vld [vmem:[%s592 + $0x10] sm:$0xf]
                %603 = vst [vmem:[%s593 + $0x30] sm:$0xf] %v602
                %v604 = vld [vmem:[%s592 + $0x14] sm:$0xf]
                %605 = vst [vmem:[%s593 + $0x3c] sm:$0xf] %v604
              $region102: #{flux_forward.17} parent=96 // loop_footer
                %s591 = sadd.s32 1, %s587
              $region103: #{flux_forward.17} parent=96 // loop_footer_branch
                %586 = sbr.rel target = $region99
              $region104: #{flux_forward.17} parent=96 // loop_exit
                _
            $region97: #{flux_forward.17} parent=88 // pred_fallthru
              _
          $region89: #{flux_forward.17} parent=84 // pred_fallthru
            _
          %637 = vnop
        $region85: #{flux_forward.17} parent=68 // pred_fallthru
          _
      $region69: #{flux_forward.17} parent=5 // pred_fallthru
        _
      %p638 = scmp.le.s32.totalorder 2, %s9
      // Predicated region
      $region123: #{flux_forward.17} parent=5 // pred_check
        %p639 = pneg %p638
      $region124: #{flux_forward.17} parent=5 // pred_check_branch
        %641 = sbr.rel (%p639) target = $region126
      $region125: #{flux_forward.17} parent=5 // pred_region
        %s642 = ssub.s32 %s9, 2
        // Predicated region
        $region127: #{flux_forward.17} parent=125 // pred_check
          %p643 = pneg %p141
        $region128: #{flux_forward.17} parent=125 // pred_check_branch
          %645 = sbr.rel (%p643) target = $region130
        $region129: #{flux_forward.17} parent=125 // pred_region
          %s646 = sand.u32 %s126, 1
          %s647 = sand.u32 %s126, 1
          %s648 = smul.addr %s647, 24
          %s649 = scalar_lea.vmem [#allocation4], %s648
        $region130: #{flux_forward.17} parent=125 // pred_fallthru
          _
      $region126: #{flux_forward.17} parent=5 // pred_fallthru
        _
    $region6: #{flux_forward.17} parent=1 // loop_footer
      %s13 = sadd.s32 1, %s9
    $region7: #{flux_forward.17} parent=1 // loop_footer_branch
      %8 = sbr.rel target = $region3
    $region8: #{flux_forward.17} parent=1 // loop_exit
      _

// kernel: flux_forward.15
$region0: #{flux_forward.15}
  #allocation0 [shape = 'u32[]', space=smem, size = 0x4, offset = 0x4, fixed_abs, tag = 'smem constant byte address 0x4 - core index']
  #allocation1 [shape = 'u32[144,128]{1,0:T(1,128)}', space=vmem, size = 0x12000, scoped, tag = 'internal scratch']
  #allocation2 [shape = 'f32[48,128]{1,0:T(8,128)}', space=vmem, size = 0x6000, scoped, tag = 'scratch operand']
  %s0 = inlined_call_operand.vmem [shape: bf16[48,128], index: 0, kind: input, shape index: {}]
  %s1 = inlined_call_operand.vmem [shape: bf16[128,128], index: 1, kind: input, shape index: {}]
  %s2 = inlined_call_operand.vmem [shape: f32[1,128], index: 2, kind: input, shape index: {}]
  %s3 = inlined_call_operand.vmem [shape: f32[48,128], index: 3, kind: output, shape index: {}]
  %s4 = sld [smem:[#allocation0]]
  $region30: #{flux_forward.15} parent=0
    _
  %s6 = ssub.s32 1, %s4
  %s7 = scalar_select 0, %s6, %s4
  // Predicated region
  $region2: #{flux_forward.15} parent=0 // pred_check
    _
  $region3: #{flux_forward.15} parent=0 // pred_check_branch
    %9 = sbr.rel (0) target = $region5
  $region4: #{flux_forward.15} parent=0 // pred_region
    _
  $region5: #{flux_forward.15} parent=0 // pred_fallthru
    _
  // Predicated region
  $region6: #{flux_forward.15} parent=0 // pred_check
    _
  $region7: #{flux_forward.15} parent=0 // pred_check_branch
    %11 = sbr.rel (0) target = $region9
  $region8: #{flux_forward.15} parent=0 // pred_region
    _
  $region9: #{flux_forward.15} parent=0 // pred_fallthru
    _
  // Predicated region
  $region10: #{flux_forward.15} parent=0 // pred_check
    _
  $region11: #{flux_forward.15} parent=0 // pred_check_branch
    %13 = sbr.rel (0) target = $region13
  $region12: #{flux_forward.15} parent=0 // pred_region
    _
  $region13: #{flux_forward.15} parent=0 // pred_fallthru
    _
  %p15 = scmp.eq.s32.totalorder 0, 0
  // Predicated region
  $region14: #{flux_forward.15} parent=0 // pred_check
    %p16 = pneg %p15
  $region15: #{flux_forward.15} parent=0 // pred_check_branch
    %18 = sbr.rel (%p16) target = $region17
  $region16: #{flux_forward.15} parent=0 // pred_region
    %19 = vst [vmem:[#allocation2] sm:$0xff] 0.0
    %20 = vst [vmem:[#allocation2 + $0x8] sm:$0xff] 0.0
    %21 = vst [vmem:[#allocation2 + $0x10] sm:$0xff] 0.0
    %22 = vst [vmem:[#allocation2 + $0x18] sm:$0xff] 0.0
    %23 = vst [vmem:[#allocation2 + $0x20] sm:$0xff] 0.0
    %24 = vst [vmem:[#allocation2 + $0x28] sm:$0xff] 0.0
  $region17: #{flux_forward.15} parent=0 // pred_fallthru
    _
  %v25 = vld [vmem:[#allocation2] sm:$0xff]
  %v26 = vld [vmem:[#allocation2 + $0x8] sm:$0xff]
  %v27 = vld [vmem:[#allocation2 + $0x10] sm:$0xff]
  %v28 = vld [vmem:[#allocation2 + $0x18] sm:$0xff]
  %v29 = vld [vmem:[#allocation2 + $0x20] sm:$0xff]
  %v30 = vld [vmem:[#allocation2 + $0x28] sm:$0xff]
  %v31 = vld [vmem:[%s0] sm:$0xf]
  %v32 = vld [vmem:[%s0 + $0x4] sm:$0xf]
  %v33 = vld [vmem:[%s0 + $0x8] sm:$0xf]
  %v34 = vld [vmem:[%s0 + $0xc] sm:$0xf]
  %v35 = vld [vmem:[%s0 + $0x10] sm:$0xf]
  %v36 = vld [vmem:[%s0 + $0x14] sm:$0xf]
  %v37 = vld [vmem:[%s1] sm:$0xf]
  %v38 = vld [vmem:[%s1 + $0x4] sm:$0xf]
  %v39 = vld [vmem:[%s1 + $0x8] sm:$0xf]
  %v40 = vld [vmem:[%s1 + $0xc] sm:$0xf]
  %v41 = vld [vmem:[%s1 + $0x10] sm:$0xf]
  %v42 = vld [vmem:[%s1 + $0x14] sm:$0xf]
  %v43 = vld [vmem:[%s1 + $0x18] sm:$0xf]
  %v44 = vld [vmem:[%s1 + $0x1c] sm:$0xf]
  %v45 = vld [vmem:[%s1 + $0x20] sm:$0xf]
  %v46 = vld [vmem:[%s1 + $0x24] sm:$0xf]
  %v47 = vld [vmem:[%s1 + $0x28] sm:$0xf]
  %v48 = vld [vmem:[%s1 + $0x2c] sm:$0xf]
  %v49 = vld [vmem:[%s1 + $0x30] sm:$0xf]
  %v50 = vld [vmem:[%s1 + $0x34] sm:$0xf]
  %v51 = vld [vmem:[%s1 + $0x38] sm:$0xf]
  %v52 = vld [vmem:[%s1 + $0x3c] sm:$0xf]
  %v59 = vunpack.c.l.b16 %v31
  %v60 = vunpack.c.l.b16 %v32
  %v61 = vunpack.c.l.b16 %v33
  %v62 = vunpack.c.l.b16 %v34
  %v63 = vunpack.c.l.b16 %v35
  %v64 = vunpack.c.l.b16 %v36
  %v65 = vpack.c.b16 %v60, %v59
  %v66 = vpack.c.b16 %v62, %v61
  %v67 = vpack.c.b16 %v64, %v63
  %v87 = vunpack.c.l.b16 %v37
  %v88 = vunpack.c.l.b16 %v38
  %v89 = vunpack.c.l.b16 %v39
  %v90 = vunpack.c.l.b16 %v40
  %v91 = vunpack.c.l.b16 %v41
  %v92 = vunpack.c.l.b16 %v42
  %v93 = vunpack.c.l.b16 %v43
  %v94 = vunpack.c.l.b16 %v44
  %v95 = vunpack.c.l.b16 %v45
  %v96 = vunpack.c.l.b16 %v46
  %v97 = vunpack.c.l.b16 %v47
  %v98 = vunpack.c.l.b16 %v48
  %v99 = vunpack.c.l.b16 %v49
  %v100 = vunpack.c.l.b16 %v50
  %v101 = vunpack.c.l.b16 %v51
  %v102 = vunpack.c.l.b16 %v52
  %v103 = vpack.c.b16 %v88, %v87
  %v104 = vpack.c.b16 %v90, %v89
  %v105 = vpack.c.b16 %v92, %v91
  %v106 = vpack.c.b16 %v94, %v93
  %v107 = vpack.c.b16 %v96, %v95
  %v108 = vpack.c.b16 %v98, %v97
  %v109 = vpack.c.b16 %v100, %v99
  %v110 = vpack.c.b16 %v102, %v101
  %119 = vmatprep.subr.bf16.mxu0 0
  %120 = vmatpush1.bf16.msra.mxu0 %v103
  %121 = vmatprep.subr.bf16.mxu0 0
  %122 = vmatpush1.bf16.msra.mxu0 %v104
  %123 = vmatprep.subr.bf16.mxu0 0
  %124 = vmatpush1.bf16.msra.mxu0 %v105
  %125 = vmatprep.subr.bf16.mxu0 0
  %126 = vmatpush1.bf16.msra.mxu0 %v106
  %127 = vmatprep.subr.bf16.mxu0 0
  %128 = vmatpush1.bf16.msra.mxu0 %v107
  %129 = vmatprep.subr.bf16.mxu0 0
  %130 = vmatpush1.bf16.msra.mxu0 %v108
  %131 = vmatprep.subr.bf16.mxu0 0
  %132 = vmatpush1.bf16.msra.mxu0 %v109
  %133 = vmatprep.subr.bf16.mxu0 0
  %134 = vmatpush1.bf16.msra.mxu0 %v110
  %135 = vmatprep.subr.bf16.mxu0 0
  %136 = vmatpush1.bf16.msra.mxu0 0
  %137 = vmatprep.subr.bf16.mxu0 0
  %138 = vmatpush1.bf16.msra.mxu0 0
  %139 = vmatprep.subr.bf16.mxu0 0
  %140 = vmatpush1.bf16.msra.mxu0 0
  %141 = vmatprep.subr.bf16.mxu0 0
  %142 = vmatpush1.bf16.msra.mxu0 0
  %143 = vmatprep.subr.bf16.mxu0 0
  %144 = vmatpush1.bf16.msra.mxu0 0
  %145 = vmatprep.subr.bf16.mxu0 0
  %146 = vmatpush1.bf16.msra.mxu0 0
  %147 = vmatprep.subr.bf16.mxu0 0
  %148 = vmatpush1.bf16.msra.mxu0 0
  %149 = vmatprep.subr.bf16.mxu0 0
  %150 = vmatpush1.bf16.msra.mxu0 0
  %151 = vmatprep.mubr.bf16.mxu0 0
  %152 = vmatmul.mubr.bf16.gmra.mrb[0].mxu0 %v65
  %v153 = vpop.f32.mrb[0].mxu0
  %v154 = vadd.f32 0.0, %v153
  %v155 = vpop.f32.mrb[0].mxu0
  %v156 = vpop.f32.mrb[0].mxu0
  %v157 = vadd.f32 0.0, %v156
  %v158 = vpop.f32.mrb[0].mxu0
  %159 = vmatprep.mubr.bf16.mxu0 0
  %160 = vmatmul.mubr.bf16.gmra.mrb[0].mxu0 %v66
  %v161 = vpop.f32.mrb[0].mxu0
  %v162 = vadd.f32 0.0, %v161
  %v163 = vpop.f32.mrb[0].mxu0
  %v164 = vpop.f32.mrb[0].mxu0
  %v165 = vadd.f32 0.0, %v164
  %v166 = vpop.f32.mrb[0].mxu0
  %167 = vmatprep.mubr.bf16.mxu0 0
  %168 = vmatmul.mubr.bf16.gmra.mrb[0].mxu0 %v67
  %v169 = vpop.f32.mrb[0].mxu0
  %v170 = vadd.f32 0.0, %v169
  %v171 = vpop.f32.mrb[0].mxu0
  %v172 = vpop.f32.mrb[0].mxu0
  %v173 = vadd.f32 0.0, %v172
  %v174 = vpop.f32.mrb[0].mxu0
  %175 = vdwg.mxu0
  %v176 = vadd.f32 %v25, %v154
  %v177 = vadd.f32 %v26, %v157
  %v178 = vadd.f32 %v27, %v162
  %v179 = vadd.f32 %v28, %v165
  %v180 = vadd.f32 %v29, %v170
  %v181 = vadd.f32 %v30, %v173
  %182 = vst [vmem:[#allocation2] sm:$0xff] %v176
  %183 = vst [vmem:[#allocation2 + $0x8] sm:$0xff] %v177
  %184 = vst [vmem:[#allocation2 + $0x10] sm:$0xff] %v178
  %185 = vst [vmem:[#allocation2 + $0x18] sm:$0xff] %v179
  %186 = vst [vmem:[#allocation2 + $0x20] sm:$0xff] %v180
  %187 = vst [vmem:[#allocation2 + $0x28] sm:$0xff] %v181
  // Predicated region
  $region18: #{flux_forward.15} parent=0 // pred_check
    %p188 = pneg %p15
  $region19: #{flux_forward.15} parent=0 // pred_check_branch
    %190 = sbr.rel (%p188) target = $region21
  $region20: #{flux_forward.15} parent=0 // pred_region
    %v191 = vld [vmem:[#allocation2] sm:$0xff]
    %v192 = vld [vmem:[#allocation2 + $0x8] sm:$0xff]
    %v193 = vld [vmem:[#allocation2 + $0x10] sm:$0xff]
    %v194 = vld [vmem:[#allocation2 + $0x18] sm:$0xff]
    %v195 = vld [vmem:[#allocation2 + $0x20] sm:$0xff]
    %v196 = vld [vmem:[#allocation2 + $0x28] sm:$0xff]
    %v197 = vld [vmem:[%s2] sm:$0x1]
    %v199 = vlaneseq
    %v200 = vshrl.u32 %v199, 7
    %v201 = vsub.s32 0, %v200
    %v202 = vrot.slane %v197, %v201
    %v204 = vadd.f32 %v191, %v202
    %v205 = vadd.f32 %v192, %v202
    %v206 = vadd.f32 %v193, %v202
    %v207 = vadd.f32 %v194, %v202
    %v208 = vadd.f32 %v195, %v202
    %v209 = vadd.f32 %v196, %v202
    %210 = vst [vmem:[%s3] sm:$0xff] %v204
    %211 = vst [vmem:[%s3 + $0x8] sm:$0xff] %v205
    %212 = vst [vmem:[%s3 + $0x10] sm:$0xff] %v206
    %213 = vst [vmem:[%s3 + $0x18] sm:$0xff] %v207
    %214 = vst [vmem:[%s3 + $0x20] sm:$0xff] %v208
    %215 = vst [vmem:[%s3 + $0x28] sm:$0xff] %v209
  $region21: #{flux_forward.15} parent=0 // pred_fallthru
    _
  // Predicated region
  $region22: #{flux_forward.15} parent=0 // pred_check
    _
  $region23: #{flux_forward.15} parent=0 // pred_check_branch
    %217 = sbr.rel (0) target = $region25
  $region24: #{flux_forward.15} parent=0 // pred_region
    _
  $region25: #{flux_forward.15} parent=0 // pred_fallthru
    _
  // Predicated region
  $region26: #{flux_forward.15} parent=0 // pred_check
    _
  $region27: #{flux_forward.15} parent=0 // pred_check_branch
    %219 = sbr.rel (0) target = $region29
  $region28: #{flux_forward.15} parent=0 // pred_region
    _
  $region29: #{flux_forward.15} parent=0 // pred_fallthru
    _

// kernel: flux_forward.16
$region0: #{flux_forward.16}
  #allocation0 [shape = 'u32[]', space=smem, size = 0x4, offset = 0x4, fixed_abs, tag = 'smem constant byte address 0x4 - core index']
  #allocation1 [shape = 'u32[144,128]{1,0:T(1,128)}', space=vmem, size = 0x12000, scoped, tag = 'internal scratch']
  #allocation2 [shape = 'f32[16,128]{1,0:T(8,128)}', space=vmem, size = 0x2000, scoped, tag = 'scratch operand']
  %s0 = inlined_call_operand.vmem [shape: bf16[16,128], index: 0, kind: input, shape index: {}]
  %s1 = inlined_call_operand.vmem [shape: bf16[128,128], index: 1, kind: input, shape index: {}]
  %s2 = inlined_call_operand.vmem [shape: f32[1,128], index: 2, kind: input, shape index: {}]
  %s3 = inlined_call_operand.vmem [shape: f32[16,128], index: 3, kind: output, shape index: {}]
  %s4 = sld [smem:[#allocation0]]
  $region30: #{flux_forward.16} parent=0
    _
  %s6 = ssub.s32 1, %s4
  %s7 = scalar_select 0, %s6, %s4
  // Predicated region
  $region2: #{flux_forward.16} parent=0 // pred_check
    _
  $region3: #{flux_forward.16} parent=0 // pred_check_branch
    %9 = sbr.rel (0) target = $region5
  $region4: #{flux_forward.16} parent=0 // pred_region
    _
  $region5: #{flux_forward.16} parent=0 // pred_fallthru
    _
  // Predicated region
  $region6: #{flux_forward.16} parent=0 // pred_check
    _
  $region7: #{flux_forward.16} parent=0 // pred_check_branch
    %11 = sbr.rel (0) target = $region9
  $region8: #{flux_forward.16} parent=0 // pred_region
    _
  $region9: #{flux_forward.16} parent=0 // pred_fallthru
    _
  // Predicated region
  $region10: #{flux_forward.16} parent=0 // pred_check
    _
  $region11: #{flux_forward.16} parent=0 // pred_check_branch
    %13 = sbr.rel (0) target = $region13
  $region12: #{flux_forward.16} parent=0 // pred_region
    _
  $region13: #{flux_forward.16} parent=0 // pred_fallthru
    _
  %p15 = scmp.eq.s32.totalorder 0, 0
  // Predicated region
  $region14: #{flux_forward.16} parent=0 // pred_check
    %p16 = pneg %p15
  $region15: #{flux_forward.16} parent=0 // pred_check_branch
    %18 = sbr.rel (%p16) target = $region17
  $region16: #{flux_forward.16} parent=0 // pred_region
    %19 = vst [vmem:[#allocation2] sm:$0xff] 0.0
    %20 = vst [vmem:[#allocation2 + $0x8] sm:$0xff] 0.0
  $region17: #{flux_forward.16} parent=0 // pred_fallthru
    _
  %v21 = vld [vmem:[#allocation2] sm:$0xff]
  %v22 = vld [vmem:[#allocation2 + $0x8] sm:$0xff]
  %v23 = vld [vmem:[%s0] sm:$0xf]
  %v24 = vld [vmem:[%s0 + $0x4] sm:$0xf]
  %v25 = vld [vmem:[%s1] sm:$0xf]
  %v26 = vld [vmem:[%s1 + $0x4] sm:$0xf]
  %v27 = vld [vmem:[%s1 + $0x8] sm:$0xf]
  %v28 = vld [vmem:[%s1 + $0xc] sm:$0xf]
  %v29 = vld [vmem:[%s1 + $0x10] sm:$0xf]
  %v30 = vld [vmem:[%s1 + $0x14] sm:$0xf]
  %v31 = vld [vmem:[%s1 + $0x18] sm:$0xf]
  %v32 = vld [vmem:[%s1 + $0x1c] sm:$0xf]
  %v33 = vld [vmem:[%s1 + $0x20] sm:$0xf]
  %v34 = vld [vmem:[%s1 + $0x24] sm:$0xf]
  %v35 = vld [vmem:[%s1 + $0x28] sm:$0xf]
  %v36 = vld [vmem:[%s1 + $0x2c] sm:$0xf]
  %v37 = vld [vmem:[%s1 + $0x30] sm:$0xf]
  %v38 = vld [vmem:[%s1 + $0x34] sm:$0xf]
  %v39 = vld [vmem:[%s1 + $0x38] sm:$0xf]
  %v40 = vld [vmem:[%s1 + $0x3c] sm:$0xf]
  %v43 = vunpack.c.l.b16 %v23
  %v44 = vunpack.c.l.b16 %v24
  %v45 = vpack.c.b16 %v44, %v43
  %v63 = vunpack.c.l.b16 %v25
  %v64 = vunpack.c.l.b16 %v26
  %v65 = vunpack.c.l.b16 %v27
  %v66 = vunpack.c.l.b16 %v28
  %v67 = vunpack.c.l.b16 %v29
  %v68 = vunpack.c.l.b16 %v30
  %v69 = vunpack.c.l.b16 %v31
  %v70 = vunpack.c.l.b16 %v32
  %v71 = vunpack.c.l.b16 %v33
  %v72 = vunpack.c.l.b16 %v34
  %v73 = vunpack.c.l.b16 %v35
  %v74 = vunpack.c.l.b16 %v36
  %v75 = vunpack.c.l.b16 %v37
  %v76 = vunpack.c.l.b16 %v38
  %v77 = vunpack.c.l.b16 %v39
  %v78 = vunpack.c.l.b16 %v40
  %v79 = vpack.c.b16 %v64, %v63
  %v80 = vpack.c.b16 %v66, %v65
  %v81 = vpack.c.b16 %v68, %v67
  %v82 = vpack.c.b16 %v70, %v69
  %v83 = vpack.c.b16 %v72, %v71
  %v84 = vpack.c.b16 %v74, %v73
  %v85 = vpack.c.b16 %v76, %v75
  %v86 = vpack.c.b16 %v78, %v77
  %95 = vmatprep.subr.bf16.mxu0 0
  %96 = vmatpush1.bf16.msra.mxu0 %v79
  %97 = vmatprep.subr.bf16.mxu0 0
  %98 = vmatpush1.bf16.msra.mxu0 %v80
  %99 = vmatprep.subr.bf16.mxu0 0
  %100 = vmatpush1.bf16.msra.mxu0 %v81
  %101 = vmatprep.subr.bf16.mxu0 0
  %102 = vmatpush1.bf16.msra.mxu0 %v82
  %103 = vmatprep.subr.bf16.mxu0 0
  %104 = vmatpush1.bf16.msra.mxu0 %v83
  %105 = vmatprep.subr.bf16.mxu0 0
  %106 = vmatpush1.bf16.msra.mxu0 %v84
  %107 = vmatprep.subr.bf16.mxu0 0
  %108 = vmatpush1.bf16.msra.mxu0 %v85
  %109 = vmatprep.subr.bf16.mxu0 0
  %110 = vmatpush1.bf16.msra.mxu0 %v86
  %111 = vmatprep.subr.bf16.mxu0 0
  %112 = vmatpush1.bf16.msra.mxu0 0
  %113 = vmatprep.subr.bf16.mxu0 0
  %114 = vmatpush1.bf16.msra.mxu0 0
  %115 = vmatprep.subr.bf16.mxu0 0
  %116 = vmatpush1.bf16.msra.mxu0 0
  %117 = vmatprep.subr.bf16.mxu0 0
  %118 = vmatpush1.bf16.msra.mxu0 0
  %119 = vmatprep.subr.bf16.mxu0 0
  %120 = vmatpush1.bf16.msra.mxu0 0
  %121 = vmatprep.subr.bf16.mxu0 0
  %122 = vmatpush1.bf16.msra.mxu0 0
  %123 = vmatprep.subr.bf16.mxu0 0
  %124 = vmatpush1.bf16.msra.mxu0 0
  %125 = vmatprep.subr.bf16.mxu0 0
  %126 = vmatpush1.bf16.msra.mxu0 0
  %127 = vmatprep.mubr.bf16.mxu0 0
  %128 = vmatmul.mubr.bf16.gmra.mrb[0].mxu0 %v45
  %v129 = vpop.f32.mrb[0].mxu0
  %v130 = vadd.f32 0.0, %v129
  %v131 = vpop.f32.mrb[0].mxu0
  %v132 = vpop.f32.mrb[0].mxu0
  %v133 = vadd.f32 0.0, %v132
  %v134 = vpop.f32.mrb[0].mxu0
  %135 = vdwg.mxu0
  %v136 = vadd.f32 %v21, %v130
  %v137 = vadd.f32 %v22, %v133
  %138 = vst [vmem:[#allocation2] sm:$0xff] %v136
  %139 = vst [vmem:[#allocation2 + $0x8] sm:$0xff] %v137
  // Predicated region
  $region18: #{flux_forward.16} parent=0 // pred_check
    %p140 = pneg %p15
  $region19: #{flux_forward.16} parent=0 // pred_check_branch
    %142 = sbr.rel (%p140) target = $region21
  $region20: #{flux_forward.16} parent=0 // pred_region
    %v143 = vld [vmem:[#allocation2] sm:$0xff]
    %v144 = vld [vmem:[#allocation2 + $0x8] sm:$0xff]
    %v145 = vld [vmem:[%s2] sm:$0x1]
    %v147 = vlaneseq
    %v148 = vshrl.u32 %v147, 7
    %v149 = vsub.s32 0, %v148
    %v150 = vrot.slane %v145, %v149
    %v152 = vadd.f32 %v143, %v150
    %v153 = vadd.f32 %v144, %v150
    %154 = vst [vmem:[%s3] sm:$0xff] %v152
    %155 = vst [vmem:[%s3 + $0x8] sm:$0xff] %v153
  $region21: #{flux_forward.16} parent=0 // pred_fallthru
    _
  // Predicated region
  $region22: #{flux_forward.16} parent=0 // pred_check
    _
  $region23: #{flux_forward.16} parent=0 // pred_check_branch
    %157 = sbr.rel (0) target = $region25
  $region24: #{flux_forward.16} parent=0 // pred_region
    _
  $region25: #{flux_forward.16} parent=0 // pred_fallthru
    _
  // Predicated region
  $region26: #{flux_forward.16} parent=0 // pred_check
    _
  $region27: #{flux_forward.16} parent=0 // pred_check_branch
    %159 = sbr.rel (0) target = $region29
  $region28: #{flux_forward.16} parent=0 // pred_region
    _
  $region29: #{flux_forward.16} parent=0 // pred_fallthru
    _

// kernel: flux_forward.18
$region0: #{flux_forward.18}
  #allocation0 [shape = 'u32[]', space=smem, size = 0x4, offset = 0x4, fixed_abs, tag = 'smem constant byte address 0x4 - core index']
  #allocation1 [shape = 'u32[144,128]{1,0:T(1,128)}', space=vmem, size = 0x12000, scoped, tag = 'internal scratch']
  #allocation2 [shape = 'f32[16,128]{1,0:T(8,128)}', space=vmem, size = 0x2000, scoped, tag = 'scratch operand']
  %s0 = inlined_call_operand.vmem [shape: bf16[16,128], index: 0, kind: input, shape index: {}]
  %s1 = inlined_call_operand.vmem [shape: bf16[128,384], index: 1, kind: input, shape index: {}]
  %s2 = inlined_call_operand.vmem [shape: f32[1,384], index: 2, kind: input, shape index: {}]
  %s3 = inlined_call_operand.vmem [shape: bf16[16,384], index: 3, kind: output, shape index: {}]
  %s4 = sld [smem:[#allocation0]]
  $region131: #{flux_forward.18} parent=0
    _
  %s6 = ssub.s32 1, %s4
  %s7 = scalar_select 0, %s6, %s4
  $region1: #{flux_forward.18} parent=0
    #allocation3 [shape = 'u8[65536]{0}', space=vmem, size = 0x10000, scoped, tag = 'input window, operand 1']
    #allocation4 [shape = 'u8[8192]{0}', space=vmem, size = 0x2000, scoped, tag = 'output window, operand 0']
    loop: start=0, step=1, limit=5
    $region2: #{flux_forward.18} parent=1 // loop_pre_header
      _
    $region3: #{flux_forward.18} parent=1 // loop_header
      %s9 = sphi 0, %s13
      %p10 = scmp.ge.s32.totalorder %s9, 5
      %s16 = sphi 0, %s35
      %s17 = sphi 0, %s31
      %s18 = sphi 0, %s27
      %s19 = sphi 0, %s16
      %s20 = sphi 0, %s17
      %s21 = sphi 0, %s18
      %s22 = sphi 0, %s19
      %s23 = sphi 0, %s20
      %s24 = sphi 0, %s21
      %s40 = sphi 0, %s42
      %s43 = sphi 0, %s40
      %s44 = sphi 0, %s43
      %s60 = sphi 0, %s44
      %s68 = sphi 0, %s70
      %s71 = sphi 0, %s68
      %s72 = sphi 0, %s71
      %s88 = sphi 0, %s72
      %s94 = sphi 0, %s96
      %s97 = sphi 0, %s94
      %s98 = sphi 0, %s97
      %s114 = sphi 0, %s98
      %s122 = sphi 0, %s124
      %s125 = sphi 0, %s122
      %s126 = sphi 0, %s125
      %s142 = sphi 0, %s126
    $region4: #{flux_forward.18} parent=1 // loop_header_branch
      %12 = sbr.rel (%p10) target = $region8
    $region5: #{flux_forward.18} parent=1 // loop_body
      %s14 = ssub.s32 %s9, 1
      %s15 = ssub.s32 %s9, 2
      %s25 = sadd.s32 1, %s18
      %p26 = scmp.ge.s32.totalorder %s25, 1
      %s27 = scalar_select %p26, 0, %s25
      %s28 = sadd.s32 1, %s17
      %s29 = scalar_select %p26, %s28, %s17
      %p30 = scmp.ge.s32.totalorder %s29, 3
      %s31 = scalar_select %p30, 0, %s29
      %s32 = sadd.s32 1, %s16
      %s33 = scalar_select %p30, %s32, %s16
      %p34 = scmp.ge.s32.totalorder %s33, 1
      %s35 = scalar_select %p34, 0, %s33
      %s36 = ssub.s32 %s16, %s35
      %s37 = ssub.s32 %s18, %s27
      %s38 = sor.u32 %s36, %s37
      %p39 = scmp.eq.s32.totalorder %s38, 0
      %s41 = sadd.s32 %s40, 1
      %s42 = scalar_select %p39, %s40, %s41
      %p45 = pneg %p39
      %p46 = scmp.eq.s32.totalorder %s9, 2
      %p47 = por %p45, %p46
      %p48 = scmp.ne.s32.totalorder %s40, %s43
      %p49 = scmp.eq.s32.totalorder %s9, 0
      %p50 = por %p48, %p49
      %p51 = scmp.ne.s32.totalorder %s40, %s43
      %p52 = scmp.eq.s32.totalorder %s14, 2
      %p53 = por %p51, %p52
      %p54 = scmp.ne.s32.totalorder %s43, %s44
      %p55 = scmp.eq.s32.totalorder %s14, 0
      %p56 = por %p54, %p55
      %p57 = scmp.ne.s32.totalorder %s43, %s44
      %p58 = scmp.eq.s32.totalorder %s15, 2
      %p59 = por %p57, %p58
      %p61 = scmp.ne.s32.totalorder %s44, %s60
      %p62 = scmp.eq.s32.totalorder %s15, 0
      %p63 = por %p61, %p62
      %s64 = ssub.s32 %s18, %s27
      %s65 = ssub.s32 %s17, %s31
      %s66 = sor.u32 %s64, %s65
      %p67 = scmp.eq.s32.totalorder %s66, 0
      %s69 = sadd.s32 %s68, 1
      %s70 = scalar_select %p67, %s68, %s69
      %p73 = pneg %p67
      %p74 = scmp.eq.s32.totalorder %s9, 2
      %p75 = por %p73, %p74
      %p76 = scmp.ne.s32.totalorder %s68, %s71
      %p77 = scmp.eq.s32.totalorder %s9, 0
      %p78 = por %p76, %p77
      %p79 = scmp.ne.s32.totalorder %s68, %s71
      %p80 = scmp.eq.s32.totalorder %s14, 2
      %p81 = por %p79, %p80
      %p82 = scmp.ne.s32.totalorder %s71, %s72
      %p83 = scmp.eq.s32.totalorder %s14, 0
      %p84 = por %p82, %p83
      %p85 = scmp.ne.s32.totalorder %s71, %s72
      %p86 = scmp.eq.s32.totalorder %s15, 2
      %p87 = por %p85, %p86
      %p89 = scmp.ne.s32.totalorder %s72, %s88
      %p90 = scmp.eq.s32.totalorder %s15, 0
      %p91 = por %p89, %p90
      %s92 = ssub.s32 %s17, %s31
      %p93 = scmp.eq.s32.totalorder %s92, 0
      %s95 = sadd.s32 %s94, 1
      %s96 = scalar_select %p93, %s94, %s95
      %p99 = pneg %p93
      %p100 = scmp.eq.s32.totalorder %s9, 2
      %p101 = por %p99, %p100
      %p102 = scmp.ne.s32.totalorder %s94, %s97
      %p103 = scmp.eq.s32.totalorder %s9, 0
      %p104 = por %p102, %p103
      %p105 = scmp.ne.s32.totalorder %s94, %s97
      %p106 = scmp.eq.s32.totalorder %s14, 2
      %p107 = por %p105, %p106
      %p108 = scmp.ne.s32.totalorder %s97, %s98
      %p109 = scmp.eq.s32.totalorder %s14, 0
      %p110 = por %p108, %p109
      %p111 = scmp.ne.s32.totalorder %s97, %s98
      %p112 = scmp.eq.s32.totalorder %s15, 2
      %p113 = por %p111, %p112
      %p115 = scmp.ne.s32.totalorder %s98, %s114
      %p116 = scmp.eq.s32.totalorder %s15, 0
      %p117 = por %p115, %p116
      %s118 = ssub.s32 %s16, %s35
      %s119 = ssub.s32 %s17, %s31
      %s120 = sor.u32 %s118, %s119
      %p121 = scmp.eq.s32.totalorder %s120, 0
      %s123 = sadd.s32 %s122, 1
      %s124 = scalar_select %p121, %s122, %s123
      %p127 = pneg %p121
      %p128 = scmp.eq.s32.totalorder %s9, 2
      %p129 = por %p127, %p128
      %p130 = scmp.ne.s32.totalorder %s122, %s125
      %p131 = scmp.eq.s32.totalorder %s9, 0
      %p132 = por %p130, %p131
      %p133 = scmp.ne.s32.totalorder %s122, %s125
      %p134 = scmp.eq.s32.totalorder %s14, 2
      %p135 = por %p133, %p134
      %p136 = scmp.ne.s32.totalorder %s125, %s126
      %p137 = scmp.eq.s32.totalorder %s14, 0
      %p138 = por %p136, %p137
      %p139 = scmp.ne.s32.totalorder %s125, %s126
      %p140 = scmp.eq.s32.totalorder %s15, 2
      %p141 = por %p139, %p140
      %p143 = scmp.ne.s32.totalorder %s126, %s142
      %p144 = scmp.eq.s32.totalorder %s15, 0
      %p145 = por %p143, %p144
      %p146 = scmp.le.s32.totalorder 1, %s9
      %p147 = scmp.lt.s32.totalorder %s9, 4
      %p148 = pnand %p146, %p147
      %p149 = pneg %p148
      // Predicated region
      $region9: #{flux_forward.18} parent=5 // pred_check
        _
      $region10: #{flux_forward.18} parent=5 // pred_check_branch
        %151 = sbr.rel (%p148) target = $region12
      $region11: #{flux_forward.18} parent=5 // pred_region
        %s152 = ssub.s32 %s9, 1
        // Predicated region
        $region13: #{flux_forward.18} parent=11 // pred_check
          %p153 = pneg %p56
        $region14: #{flux_forward.18} parent=11 // pred_check_branch
          %155 = sbr.rel (%p153) target = $region16
        $region15: #{flux_forward.18} parent=11 // pred_region
          %s156 = smul.u32 2, %s19
          %p157 = scmp.lt.s32.totalorder %s156, 1
          %s158 = scalar_select %p157, %s156, 1
          %p159 = scmp.lt.s32.totalorder %s21, 0
          %s160 = scalar_select %p159, %s21, 0
          %s161 = sadd.s32 %s160, %s158
          %s162 = smul.addr %s161, 4
          %s163 = scalar_lea.vmem %s0, %s162
          %s164 = smul.u32 2, %s19
        $region16: #{flux_forward.18} parent=11 // pred_fallthru
          _
      $region12: #{flux_forward.18} parent=5 // pred_fallthru
        _
      %p165 = scmp.lt.s32.totalorder %s9, 3
      // Predicated region
      $region17: #{flux_forward.18} parent=5 // pred_check
        %p166 = pneg %p165
      $region18: #{flux_forward.18} parent=5 // pred_check_branch
        %168 = sbr.rel (%p166) target = $region20
      $region19: #{flux_forward.18} parent=5 // pred_region
        // Predicated region
        $region21: #{flux_forward.18} parent=19 // pred_check
          %p169 = pneg %p78
        $region22: #{flux_forward.18} parent=19 // pred_check_branch
          %171 = sbr.rel (%p169) target = $region24
        $region23: #{flux_forward.18} parent=19 // pred_region
          %s172 = sand.u32 %s68, 1
          %s173 = sand.u32 %s68, 1
          %s174 = smul.addr %s173, 64
          %s175 = scalar_lea.vmem [#allocation3], %s174
          %s176 = smul.u32 16, %s18
          %s177 = smul.addr %s176, 3
          %s178 = sadd.s32 %s17, %s177
          %s179 = smul.addr %s178, 4
          %s180 = scalar_lea.vmem %s1, %s179
          // Predicated region
          $region25: #{flux_forward.18} parent=23 // pred_check
            _
          $region26: #{flux_forward.18} parent=23 // pred_check_branch
            %182 = sbr.rel (0) target = $region28
          $region27: #{flux_forward.18} parent=23 // pred_region
            // Predicated region
            $region29: #{flux_forward.18} parent=27 // pred_check
              _
            $region30: #{flux_forward.18} parent=27 // pred_check_branch
              %184 = sbr.rel target = $region32
            $region31: #{flux_forward.18} parent=27 // pred_region
              // Predicated region
              $region44: #{flux_forward.18} parent=31 // pred_check
                _
              $region45: #{flux_forward.18} parent=31 // pred_check_branch
                %229 = sbr.rel (0) target = $region47
              $region46: #{flux_forward.18} parent=31 // pred_region
                loop: start=0, step=1, limit=1
                $region48: #{flux_forward.18} parent=46 // loop_pre_header
                  _
                $region49: #{flux_forward.18} parent=46 // loop_header
                  %s231 = sphi 0, %s235
                  %p232 = scmp.ge.s32.totalorder %s231, 1
                  %s236 = sphi %s180, %s180
                  %s237 = sphi %s175, %s175
                $region50: #{flux_forward.18} parent=46 // loop_header_branch
                  %234 = sbr.rel (%p232) target = $region54
                $region51: #{flux_forward.18} parent=46 // loop_body
                  _
                $region52: #{flux_forward.18} parent=46 // loop_footer
                  %s235 = sadd.s32 1, %s231
                $region53: #{flux_forward.18} parent=46 // loop_footer_branch
                  %230 = sbr.rel target = $region49
                $region54: #{flux_forward.18} parent=46 // loop_exit
                  _
                loop: start=0, step=1, limit=1
                $region55: #{flux_forward.18} parent=46 // loop_pre_header
                  _
                $region56: #{flux_forward.18} parent=46 // loop_header
                  %s240 = sphi 0, %s244
                  %p241 = scmp.ge.s32.totalorder %s240, 1
                  %s245 = sphi %s180, %s180
                  %s246 = sphi %s175, %s175
                $region57: #{flux_forward.18} parent=46 // loop_header_branch
                  %243 = sbr.rel (%p241) target = $region61
                $region58: #{flux_forward.18} parent=46 // loop_body
                  %v247 = vld [vmem:[%s245] sm:$0xf]
                  %248 = vst [vmem:[%s246] sm:$0xf] %v247
                  %v249 = vld [vmem:[%s245 + $0xc] sm:$0xf]
                  %250 = vst [vmem:[%s246 + $0x4] sm:$0xf] %v249
                  %v251 = vld [vmem:[%s245 + $0x18] sm:$0xf]
                  %252 = vst [vmem:[%s246 + $0x8] sm:$0xf] %v251
                  %v253 = vld [vmem:[%s245 + $0x24] sm:$0xf]
                  %254 = vst [vmem:[%s246 + $0xc] sm:$0xf] %v253
                  %v255 = vld [vmem:[%s245 + $0x30] sm:$0xf]
                  %256 = vst [vmem:[%s246 + $0x10] sm:$0xf] %v255
                  %v257 = vld [vmem:[%s245 + $0x3c] sm:$0xf]
                  %258 = vst [vmem:[%s246 + $0x14] sm:$0xf] %v257
                  %v259 = vld [vmem:[%s245 + $0x48] sm:$0xf]
                  %260 = vst [vmem:[%s246 + $0x18] sm:$0xf] %v259
                  %v261 = vld [vmem:[%s245 + $0x54] sm:$0xf]
                  %262 = vst [vmem:[%s246 + $0x1c] sm:$0xf] %v261
                  %v263 = vld [vmem:[%s245 + $0x60] sm:$0xf]
                  %264 = vst [vmem:[%s246 + $0x20] sm:$0xf] %v263
                  %v265 = vld [vmem:[%s245 + $0x6c] sm:$0xf]
                  %266 = vst [vmem:[%s246 + $0x24] sm:$0xf] %v265
                  %v267 = vld [vmem:[%s245 + $0x78] sm:$0xf]
                  %268 = vst [vmem:[%s246 + $0x28] sm:$0xf] %v267
                  %v269 = vld [vmem:[%s245 + $0x84] sm:$0xf]
                  %270 = vst [vmem:[%s246 + $0x2c] sm:$0xf] %v269
                  %v271 = vld [vmem:[%s245 + $0x90] sm:$0xf]
                  %272 = vst [vmem:[%s246 + $0x30] sm:$0xf] %v271
                  %v273 = vld [vmem:[%s245 + $0x9c] sm:$0xf]
                  %274 = vst [vmem:[%s246 + $0x34] sm:$0xf] %v273
                  %v275 = vld [vmem:[%s245 + $0xa8] sm:$0xf]
                  %276 = vst [vmem:[%s246 + $0x38] sm:$0xf] %v275
                  %v277 = vld [vmem:[%s245 + $0xb4] sm:$0xf]
                  %278 = vst [vmem:[%s246 + $0x3c] sm:$0xf] %v277
                $region59: #{flux_forward.18} parent=46 // loop_footer
                  %s244 = sadd.s32 1, %s240
                $region60: #{flux_forward.18} parent=46 // loop_footer_branch
                  %239 = sbr.rel target = $region56
                $region61: #{flux_forward.18} parent=46 // loop_exit
                  _
              $region47: #{flux_forward.18} parent=31 // pred_fallthru
                _
            $region32: #{flux_forward.18} parent=27 // pred_fallthru
              _
            // Predicated region
            $region33: #{flux_forward.18} parent=27 // pred_check
              _
            $region34: #{flux_forward.18} parent=27 // pred_check_branch
              %186 = sbr.rel (0) target = $region36
            $region35: #{flux_forward.18} parent=27 // pred_region
              loop: start=0, step=1, limit=1
              $region37: #{flux_forward.18} parent=35 // loop_pre_header
                _
              $region38: #{flux_forward.18} parent=35 // loop_header
                %s189 = sphi 0, %s193
                %p190 = scmp.ge.s32.totalorder %s189, 1
                %s194 = sphi %s180, %s180
                %s195 = sphi %s175, %s175
              $region39: #{flux_forward.18} parent=35 // loop_header_branch
                %192 = sbr.rel (%p190) target = $region43
              $region40: #{flux_forward.18} parent=35 // loop_body
                %v196 = vld [vmem:[%s194] sm:$0xf]
                %197 = vst [vmem:[%s195] sm:$0xf] %v196
                %v198 = vld [vmem:[%s194 + $0xc] sm:$0xf]
                %199 = vst [vmem:[%s195 + $0x4] sm:$0xf] %v198
                %v200 = vld [vmem:[%s194 + $0x18] sm:$0xf]
                %201 = vst [vmem:[%s195 + $0x8] sm:$0xf] %v200
                %v202 = vld [vmem:[%s194 + $0x24] sm:$0xf]
                %203 = vst [vmem:[%s195 + $0xc] sm:$0xf] %v202
                %v204 = vld [vmem:[%s194 + $0x30] sm:$0xf]
                %205 = vst [vmem:[%s195 + $0x10] sm:$0xf] %v204
                %v206 = vld [vmem:[%s194 + $0x3c] sm:$0xf]
                %207 = vst [vmem:[%s195 + $0x14] sm:$0xf] %v206
                %v208 = vld [vmem:[%s194 + $0x48] sm:$0xf]
                %209 = vst [vmem:[%s195 + $0x18] sm:$0xf] %v208
                %v210 = vld [vmem:[%s194 + $0x54] sm:$0xf]
                %211 = vst [vmem:[%s195 + $0x1c] sm:$0xf] %v210
                %v212 = vld [vmem:[%s194 + $0x60] sm:$0xf]
                %213 = vst [vmem:[%s195 + $0x20] sm:$0xf] %v212
                %v214 = vld [vmem:[%s194 + $0x6c] sm:$0xf]
                %215 = vst [vmem:[%s195 + $0x24] sm:$0xf] %v214
                %v216 = vld [vmem:[%s194 + $0x78] sm:$0xf]
                %217 = vst [vmem:[%s195 + $0x28] sm:$0xf] %v216
                %v218 = vld [vmem:[%s194 + $0x84] sm:$0xf]
                %219 = vst [vmem:[%s195 + $0x2c] sm:$0xf] %v218
                %v220 = vld [vmem:[%s194 + $0x90] sm:$0xf]
                %221 = vst [vmem:[%s195 + $0x30] sm:$0xf] %v220
                %v222 = vld [vmem:[%s194 + $0x9c] sm:$0xf]
                %223 = vst [vmem:[%s195 + $0x34] sm:$0xf] %v222
                %v224 = vld [vmem:[%s194 + $0xa8] sm:$0xf]
                %225 = vst [vmem:[%s195 + $0x38] sm:$0xf] %v224
                %v226 = vld [vmem:[%s194 + $0xb4] sm:$0xf]
                %227 = vst [vmem:[%s195 + $0x3c] sm:$0xf] %v226
              $region41: #{flux_forward.18} parent=35 // loop_footer
                %s193 = sadd.s32 1, %s189
              $region42: #{flux_forward.18} parent=35 // loop_footer_branch
                %188 = sbr.rel target = $region38
              $region43: #{flux_forward.18} parent=35 // loop_exit
                _
            $region36: #{flux_forward.18} parent=27 // pred_fallthru
              _
          $region28: #{flux_forward.18} parent=23 // pred_fallthru
            _
          %279 = vnop
        $region24: #{flux_forward.18} parent=19 // pred_fallthru
          _
        // Predicated region
        $region62: #{flux_forward.18} parent=19 // pred_check
          %p280 = pneg %p104
        $region63: #{flux_forward.18} parent=19 // pred_check_branch
          %282 = sbr.rel (%p280) target = $region65
        $region64: #{flux_forward.18} parent=19 // pred_region
          %p283 = scmp.lt.s32.totalorder %s17, 2
          %s284 = scalar_select %p283, %s17, 2
          %s285 = scalar_lea.vmem %s2, %s284
        $region65: #{flux_forward.18} parent=19 // pred_fallthru
          _
      $region20: #{flux_forward.18} parent=5 // pred_fallthru
        _
      %p286 = scmp.le.s32.totalorder 1, %s9
      %p287 = scmp.lt.s32.totalorder %s9, 4
      %p288 = pnand %p286, %p287
      %p289 = pneg %p288
      // Predicated region
      $region66: #{flux_forward.18} parent=5 // pred_check
        _
      $region67: #{flux_forward.18} parent=5 // pred_check_branch
        %291 = sbr.rel (%p288) target = $region69
      $region68: #{flux_forward.18} parent=5 // pred_region
        %s292 = ssub.s32 %s9, 1
        %s293 = sand.u32 %s71, 1
        %s294 = sand.u32 %s71, 1
        %s295 = smul.addr %s294, 64
        %s296 = scalar_lea.vmem [#allocation3], %s295
        // Predicated region
        $region70: #{flux_forward.18} parent=68 // pred_check
          %p297 = pneg %p84
        $region71: #{flux_forward.18} parent=68 // pred_check_branch
          %299 = sbr.rel (%p297) target = $region73
        $region72: #{flux_forward.18} parent=68 // pred_region
          _
        $region73: #{flux_forward.18} parent=68 // pred_fallthru
          _
        %s300 = smul.u32 2, %s19
        %p301 = scmp.lt.s32.totalorder %s300, 1
        %s302 = scalar_select %p301, %s300, 1
        %p303 = scmp.lt.s32.totalorder %s21, 0
        %s304 = scalar_select %p303, %s21, 0
        %s305 = sadd.s32 %s304, %s302
        %s306 = smul.addr %s305, 4
        %s307 = scalar_lea.vmem %s0, %s306
        %p308 = pneg %p56
        %p309 = pneg %p53
        %s310 = sand.u32 %s71, 1
        %s311 = sand.u32 %s71, 1
        %s312 = smul.addr %s311, 64
        %s313 = scalar_lea.vmem [#allocation3], %s312
        %p314 = pneg %p84
        %p315 = pneg %p81
        %p316 = scmp.lt.s32.totalorder %s20, 2
        %s317 = scalar_select %p316, %s20, 2
        %s318 = scalar_lea.vmem %s2, %s317
        %p319 = pneg %p110
        %p320 = pneg %p107
        %p321 = pneg %p138
        %p322 = pneg %p135
        %s323 = sand.u32 %s125, 1
        %s324 = sand.u32 %s125, 1
        %s325 = smul.addr %s324, 8
        %s326 = scalar_lea.vmem [#allocation4], %s325
        %s327 = smul.u32 2, %s19
        %p328 = scmp.lt.s32.totalorder %s327, 1
        %s329 = scalar_select %p328, %s327, 1
        %p330 = scmp.lt.s32.totalorder %s21, 0
        %s331 = scalar_select %p330, %s21, 0
        %s332 = sadd.s32 %s331, %s329
        %s333 = smul.addr %s332, 4
        %s334 = scalar_lea.vmem %s0, %s333
        %s335 = smul.u32 2, %s19
        %s336 = smul.u32 16, %s21
        %p337 = scmp.lt.s32.totalorder %s20, 2
        %s338 = scalar_select %p337, %s20, 2
        %s339 = scalar_lea.vmem %s2, %s338
        %s340 = smul.u32 2, %s19
        %p342 = scmp.eq.s32.totalorder %s21, 0
        // Predicated region
        $region74: #{flux_forward.18} parent=68 // pred_check
          %p343 = pneg %p342
        $region75: #{flux_forward.18} parent=68 // pred_check_branch
          %345 = sbr.rel (%p343) target = $region77
        $region76: #{flux_forward.18} parent=68 // pred_region
          %346 = vst [vmem:[#allocation2] sm:$0xff] 0.0
          %347 = vst [vmem:[#allocation2 + $0x8] sm:$0xff] 0.0
        $region77: #{flux_forward.18} parent=68 // pred_fallthru
          _
        %v348 = vld [vmem:[#allocation2] sm:$0xff]
        %v349 = vld [vmem:[#allocation2 + $0x8] sm:$0xff]
        %v350 = vld [vmem:[%s334] sm:$0xf]
        %v351 = vld [vmem:[%s334 + $0x4] sm:$0xf]
        %v352 = vld [vmem:[%s296] sm:$0xf]
        %v353 = vld [vmem:[%s296 + $0x4] sm:$0xf]
        %v354 = vld [vmem:[%s296 + $0x8] sm:$0xf]
        %v355 = vld [vmem:[%s296 + $0xc] sm:$0xf]
        %v356 = vld [vmem:[%s296 + $0x10] sm:$0xf]
        %v357 = vld [vmem:[%s296 + $0x14] sm:$0xf]
        %v358 = vld [vmem:[%s296 + $0x18] sm:$0xf]
        %v359 = vld [vmem:[%s296 + $0x1c] sm:$0xf]
        %v360 = vld [vmem:[%s296 + $0x20] sm:$0xf]
        %v361 = vld [vmem:[%s296 + $0x24] sm:$0xf]
        %v362 = vld [vmem:[%s296 + $0x28] sm:$0xf]
        %v363 = vld [vmem:[%s296 + $0x2c] sm:$0xf]
        %v364 = vld [vmem:[%s296 + $0x30] sm:$0xf]
        %v365 = vld [vmem:[%s296 + $0x34] sm:$0xf]
        %v366 = vld [vmem:[%s296 + $0x38] sm:$0xf]
        %v367 = vld [vmem:[%s296 + $0x3c] sm:$0xf]
        %v370 = vunpack.c.l.b16 %v350
        %v371 = vunpack.c.l.b16 %v351
        %v372 = vpack.c.b16 %v371, %v370
        %v390 = vunpack.c.l.b16 %v352
        %v391 = vunpack.c.l.b16 %v353
        %v392 = vunpack.c.l.b16 %v354
        %v393 = vunpack.c.l.b16 %v355
        %v394 = vunpack.c.l.b16 %v356
        %v395 = vunpack.c.l.b16 %v357
        %v396 = vunpack.c.l.b16 %v358
        %v397 = vunpack.c.l.b16 %v359
        %v398 = vunpack.c.l.b16 %v360
        %v399 = vunpack.c.l.b16 %v361
        %v400 = vunpack.c.l.b16 %v362
        %v401 = vunpack.c.l.b16 %v363
        %v402 = vunpack.c.l.b16 %v364
        %v403 = vunpack.c.l.b16 %v365
        %v404 = vunpack.c.l.b16 %v366
        %v405 = vunpack.c.l.b16 %v367
        %v406 = vpack.c.b16 %v391, %v390
        %v407 = vpack.c.b16 %v393, %v392
        %v408 = vpack.c.b16 %v395, %v394
        %v409 = vpack.c.b16 %v397, %v396
        %v410 = vpack.c.b16 %v399, %v398
        %v411 = vpack.c.b16 %v401, %v400
        %v412 = vpack.c.b16 %v403, %v402
        %v413 = vpack.c.b16 %v405, %v404
        %422 = vmatprep.subr.bf16.mxu0 0
        %423 = vmatpush1.bf16.msra.mxu0 %v406
        %424 = vmatprep.subr.bf16.mxu0 0
        %425 = vmatpush1.bf16.msra.mxu0 %v407
        %426 = vmatprep.subr.bf16.mxu0 0
        %427 = vmatpush1.bf16.msra.mxu0 %v408
        %428 = vmatprep.subr.bf16.mxu0 0
        %429 = vmatpush1.bf16.msra.mxu0 %v409
        %430 = vmatprep.subr.bf16.mxu0 0
        %431 = vmatpush1.bf16.msra.mxu0 %v410
        %432 = vmatprep.subr.bf16.mxu0 0
        %433 = vmatpush1.bf16.msra.mxu0 %v411
        %434 = vmatprep.subr.bf16.mxu0 0
        %435 = vmatpush1.bf16.msra.mxu0 %v412
        %436 = vmatprep.subr.bf16.mxu0 0
        %437 = vmatpush1.bf16.msra.mxu0 %v413
        %438 = vmatprep.subr.bf16.mxu0 0
        %439 = vmatpush1.bf16.msra.mxu0 0
        %440 = vmatprep.subr.bf16.mxu0 0
        %441 = vmatpush1.bf16.msra.mxu0 0
        %442 = vmatprep.subr.bf16.mxu0 0
        %443 = vmatpush1.bf16.msra.mxu0 0
        %444 = vmatprep.subr.bf16.mxu0 0
        %445 = vmatpush1.bf16.msra.mxu0 0
        %446 = vmatprep.subr.bf16.mxu0 0
        %447 = vmatpush1.bf16.msra.mxu0 0
        %448 = vmatprep.subr.bf16.mxu0 0
        %449 = vmatpush1.bf16.msra.mxu0 0
        %450 = vmatprep.subr.bf16.mxu0 0
        %451 = vmatpush1.bf16.msra.mxu0 0
        %452 = vmatprep.subr.bf16.mxu0 0
        %453 = vmatpush1.bf16.msra.mxu0 0
        %454 = vmatprep.mubr.bf16.mxu0 0
        %455 = vmatmul.mubr.bf16.gmra.mrb[0].mxu0 %v372
        %v456 = vpop.f32.mrb[0].mxu0
        %v457 = vadd.f32 0.0, %v456
        %v458 = vpop.f32.mrb[0].mxu0
        %v459 = vpop.f32.mrb[0].mxu0
        %v460 = vadd.f32 0.0, %v459
        %v461 = vpop.f32.mrb[0].mxu0
        %462 = vdwg.mxu0
        %v463 = vadd.f32 %v348, %v457
        %v464 = vadd.f32 %v349, %v460
        %465 = vst [vmem:[#allocation2] sm:$0xff] %v463
        %466 = vst [vmem:[#allocation2 + $0x8] sm:$0xff] %v464
        // Predicated region
        $region78: #{flux_forward.18} parent=68 // pred_check
          %p467 = pneg %p342
        $region79: #{flux_forward.18} parent=68 // pred_check_branch
          %469 = sbr.rel (%p467) target = $region81
        $region80: #{flux_forward.18} parent=68 // pred_region
          %v470 = vld [vmem:[#allocation2] sm:$0xff]
          %v471 = vld [vmem:[#allocation2 + $0x8] sm:$0xff]
          %v472 = vld [vmem:[%s339] sm:$0x1]
          %v474 = vlaneseq
          %v475 = vshrl.u32 %v474, 7
          %v476 = vsub.s32 0, %v475
          %v477 = vrot.slane %v472, %v476
          %v479 = vadd.f32 %v470, %v477
          %v480 = vadd.f32 %v471, %v477
          %v481 = vpack.c.bf16 %v480, %v479
          %v483 = vunpack.c.l.b16 %v481
          %v484 = vunpack.c.h.b16 %v481
          %v485 = vpack.c.b16 %v483, %v483
          %v486 = vpack.c.b16 %v484, %v484
          %489 = vst [vmem:[%s326] sm:$0xf] %v485
          %490 = vst [vmem:[%s326 + $0x4] sm:$0xf] %v486
        $region81: #{flux_forward.18} parent=68 // pred_fallthru
          _
        %s491 = sand.u32 %s125, 1
        %s492 = sand.u32 %s125, 1
        %s493 = smul.addr %s492, 8
        %s494 = scalar_lea.vmem [#allocation4], %s493
        // Predicated region
        $region82: #{flux_forward.18} parent=68 // pred_check
          %p495 = pneg %p135
        $region83: #{flux_forward.18} parent=68 // pred_check_branch
          %497 = sbr.rel (%p495) target = $region85
        $region84: #{flux_forward.18} parent=68 // pred_region
          %s498 = smul.u32 2, %s19
          %s499 = smul.addr %s498, 3
          %s500 = sadd.s32 %s20, %s499
          %s501 = smul.addr %s500, 4
          %s502 = scalar_lea.vmem %s3, %s501
          // Predicated region
          $region86: #{flux_forward.18} parent=84 // pred_check
            _
          $region87: #{flux_forward.18} parent=84 // pred_check_branch
            %504 = sbr.rel (0) target = $region89
          $region88: #{flux_forward.18} parent=84 // pred_region
            // Predicated region
            $region90: #{flux_forward.18} parent=88 // pred_check
              _
            $region91: #{flux_forward.18} parent=88 // pred_check_branch
              %506 = sbr.rel target = $region93
            $region92: #{flux_forward.18} parent=88 // pred_region
              // Predicated region
              $region105: #{flux_forward.18} parent=92 // pred_check
                _
              $region106: #{flux_forward.18} parent=92 // pred_check_branch
                %523 = sbr.rel (0) target = $region108
              $region107: #{flux_forward.18} parent=92 // pred_region
                loop: start=0, step=1, limit=1
                $region109: #{flux_forward.18} parent=107 // loop_pre_header
                  _
                $region110: #{flux_forward.18} parent=107 // loop_header
                  %s525 = sphi 0, %s529
                  %p526 = scmp.ge.s32.totalorder %s525, 1
                  %s530 = sphi %s494, %s494
                  %s531 = sphi %s502, %s502
                $region111: #{flux_forward.18} parent=107 // loop_header_branch
                  %528 = sbr.rel (%p526) target = $region115
                $region112: #{flux_forward.18} parent=107 // loop_body
                  _
                $region113: #{flux_forward.18} parent=107 // loop_footer
                  %s529 = sadd.s32 1, %s525
                $region114: #{flux_forward.18} parent=107 // loop_footer_branch
                  %524 = sbr.rel target = $region110
                $region115: #{flux_forward.18} parent=107 // loop_exit
                  _
                loop: start=0, step=1, limit=1
                $region116: #{flux_forward.18} parent=107 // loop_pre_header
                  _
                $region117: #{flux_forward.18} parent=107 // loop_header
                  %s534 = sphi 0, %s538
                  %p535 = scmp.ge.s32.totalorder %s534, 1
                  %s539 = sphi %s494, %s494
                  %s540 = sphi %s502, %s502
                $region118: #{flux_forward.18} parent=107 // loop_header_branch
                  %537 = sbr.rel (%p535) target = $region122
                $region119: #{flux_forward.18} parent=107 // loop_body
                  %v541 = vld [vmem:[%s539] sm:$0xf]
                  %542 = vst [vmem:[%s540] sm:$0xf] %v541
                  %v543 = vld [vmem:[%s539 + $0x4] sm:$0xf]
                  %544 = vst [vmem:[%s540 + $0xc] sm:$0xf] %v543
                $region120: #{flux_forward.18} parent=107 // loop_footer
                  %s538 = sadd.s32 1, %s534
                $region121: #{flux_forward.18} parent=107 // loop_footer_branch
                  %533 = sbr.rel target = $region117
                $region122: #{flux_forward.18} parent=107 // loop_exit
                  _
              $region108: #{flux_forward.18} parent=92 // pred_fallthru
                _
            $region93: #{flux_forward.18} parent=88 // pred_fallthru
              _
            // Predicated region
            $region94: #{flux_forward.18} parent=88 // pred_check
              _
            $region95: #{flux_forward.18} parent=88 // pred_check_branch
              %508 = sbr.rel (0) target = $region97
            $region96: #{flux_forward.18} parent=88 // pred_region
              loop: start=0, step=1, limit=1
              $region98: #{flux_forward.18} parent=96 // loop_pre_header
                _
              $region99: #{flux_forward.18} parent=96 // loop_header
                %s511 = sphi 0, %s515
                %p512 = scmp.ge.s32.totalorder %s511, 1
                %s516 = sphi %s494, %s494
                %s517 = sphi %s502, %s502
              $region100: #{flux_forward.18} parent=96 // loop_header_branch
                %514 = sbr.rel (%p512) target = $region104
              $region101: #{flux_forward.18} parent=96 // loop_body
                %v518 = vld [vmem:[%s516] sm:$0xf]
                %519 = vst [vmem:[%s517] sm:$0xf] %v518
                %v520 = vld [vmem:[%s516 + $0x4] sm:$0xf]
                %521 = vst [vmem:[%s517 + $0xc] sm:$0xf] %v520
              $region102: #{flux_forward.18} parent=96 // loop_footer
                %s515 = sadd.s32 1, %s511
              $region103: #{flux_forward.18} parent=96 // loop_footer_branch
                %510 = sbr.rel target = $region99
              $region104: #{flux_forward.18} parent=96 // loop_exit
                _
            $region97: #{flux_forward.18} parent=88 // pred_fallthru
              _
          $region89: #{flux_forward.18} parent=84 // pred_fallthru
            _
          %545 = vnop
        $region85: #{flux_forward.18} parent=68 // pred_fallthru
          _
      $region69: #{flux_forward.18} parent=5 // pred_fallthru
        _
      %p546 = scmp.le.s32.totalorder 2, %s9
      // Predicated region
      $region123: #{flux_forward.18} parent=5 // pred_check
        %p547 = pneg %p546
      $region124: #{flux_forward.18} parent=5 // pred_check_branch
        %549 = sbr.rel (%p547) target = $region126
      $region125: #{flux_forward.18} parent=5 // pred_region
        %s550 = ssub.s32 %s9, 2
        // Predicated region
        $region127: #{flux_forward.18} parent=125 // pred_check
          %p551 = pneg %p141
        $region128: #{flux_forward.18} parent=125 // pred_check_branch
          %553 = sbr.rel (%p551) target = $region130
        $region129: #{flux_forward.18} parent=125 // pred_region
          %s554 = sand.u32 %s126, 1
          %s555 = sand.u32 %s126, 1
          %s556 = smul.addr %s555, 8
          %s557 = scalar_lea.vmem [#allocation4], %s556
        $region130: #{flux_forward.18} parent=125 // pred_fallthru
          _
      $region126: #{flux_forward.18} parent=5 // pred_fallthru
        _
    $region6: #{flux_forward.18} parent=1 // loop_footer
      %s13 = sadd.s32 1, %s9
    $region7: #{flux_forward.18} parent=1 // loop_footer_branch
      %8 = sbr.rel target = $region3
    $region8: #{flux_forward.18} parent=1 // loop_exit
      _

// kernel: flux_forward.19
$region0: #{flux_forward.19}
  #allocation0 [shape = 'u32[]', space=smem, size = 0x4, offset = 0x4, fixed_abs, tag = 'smem constant byte address 0x4 - core index']
  #allocation1 [shape = 'u32[144,128]{1,0:T(1,128)}', space=vmem, size = 0x12000, scoped, tag = 'internal scratch']
  #allocation2 [shape = 'f32[32,1]{1,0:T(8,128)}', space=vmem, size = 0x4000, scoped, tag = 'scratch operand']
  #allocation3 [shape = 'f32[32,1]{1,0:T(8,128)}', space=vmem, size = 0x4000, scoped, tag = 'scratch operand']
  #allocation4 [shape = 'f32[32,128]{1,0:T(8,128)}', space=vmem, size = 0x4000, scoped, tag = 'scratch operand']
  %s0 = inlined_call_operand.vmem [shape: bf16[2,4,32,128], index: 0, kind: input, shape index: {}]
  %s1 = inlined_call_operand.vmem [shape: bf16[2,4,32,128], index: 1, kind: input, shape index: {}]
  %s2 = inlined_call_operand.vmem [shape: bf16[2,4,32,128], index: 2, kind: input, shape index: {}]
  %s3 = inlined_call_operand.vmem [shape: bf16[2,32,512], index: 3, kind: output, shape index: {}]
  %s4 = sld [smem:[#allocation0]]
  $region90: #{flux_forward.19} parent=0
    _
  %s6 = ssub.s32 1, %s4
  %s7 = scalar_select 0, %s6, %s4
  $region1: #{flux_forward.19} parent=0
    #allocation5 [shape = 'u8[16384]{0}', space=vmem, size = 0x4000, scoped, tag = 'output window, operand 0']
    loop: start=0, step=1, limit=10
    $region2: #{flux_forward.19} parent=1 // loop_pre_header
      _
    $region3: #{flux_forward.19} parent=1 // loop_header
      %s9 = sphi 0, %s13
      %p10 = scmp.ge.s32.totalorder %s9, 10
      %s16 = sphi 0, %s42
      %s17 = sphi 0, %s38
      %s18 = sphi 0, %s34
      %s19 = sphi 0, %s30
      %s20 = sphi 0, %s16
      %s21 = sphi 0, %s17
      %s22 = sphi 0, %s18
      %s23 = sphi 0, %s19
      %s24 = sphi 0, %s20
      %s25 = sphi 0, %s21
      %s26 = sphi 0, %s22
      %s27 = sphi 0, %s23
      %s49 = sphi 0, %s51
      %s52 = sphi 0, %s49
      %s53 = sphi 0, %s52
      %s69 = sphi 0, %s53
      %s79 = sphi 0, %s81
      %s82 = sphi 0, %s79
      %s83 = sphi 0, %s82
      %s99 = sphi 0, %s83
      %s109 = sphi 0, %s111
      %s112 = sphi 0, %s109
      %s113 = sphi 0, %s112
      %s129 = sphi 0, %s113
      %s139 = sphi 0, %s141
      %s142 = sphi 0, %s139
      %s143 = sphi 0, %s142
      %s159 = sphi 0, %s143
    $region4: #{flux_forward.19} parent=1 // loop_header_branch
      %12 = sbr.rel (%p10) target = $region8
    $region5: #{flux_forward.19} parent=1 // loop_body
      %s14 = ssub.s32 %s9, 1
      %s15 = ssub.s32 %s9, 2
      %s28 = sadd.s32 1, %s19
      %p29 = scmp.ge.s32.totalorder %s28, 1
      %s30 = scalar_select %p29, 0, %s28
      %s31 = sadd.s32 1, %s18
      %s32 = scalar_select %p29, %s31, %s18
      %p33 = scmp.ge.s32.totalorder %s32, 1
      %s34 = scalar_select %p33, 0, %s32
      %s35 = sadd.s32 1, %s17
      %s36 = scalar_select %p33, %s35, %s17
      %p37 = scmp.ge.s32.totalorder %s36, 4
      %s38 = scalar_select %p37, 0, %s36
      %s39 = sadd.s32 1, %s16
      %s40 = scalar_select %p37, %s39, %s16
      %p41 = scmp.ge.s32.totalorder %s40, 2
      %s42 = scalar_select %p41, 0, %s40
      %s43 = ssub.s32 %s16, %s42
      %s44 = ssub.s32 %s17, %s38
      %s45 = sor.u32 %s43, %s44
      %s46 = ssub.s32 %s18, %s34
      %s47 = sor.u32 %s45, %s46
      %p48 = scmp.eq.s32.totalorder %s47, 0
      %s50 = sadd.s32 %s49, 1
      %s51 = scalar_select %p48, %s49, %s50
      %p54 = pneg %p48
      %p55 = scmp.eq.s32.totalorder %s9, 7
      %p56 = por %p54, %p55
      %p57 = scmp.ne.s32.totalorder %s49, %s52
      %p58 = scmp.eq.s32.totalorder %s9, 0
      %p59 = por %p57, %p58
      %p60 = scmp.ne.s32.totalorder %s49, %s52
      %p61 = scmp.eq.s32.totalorder %s14, 7
      %p62 = por %p60, %p61
      %p63 = scmp.ne.s32.totalorder %s52, %s53
      %p64 = scmp.eq.s32.totalorder %s14, 0
      %p65 = por %p63, %p64
      %p66 = scmp.ne.s32.totalorder %s52, %s53
      %p67 = scmp.eq.s32.totalorder %s15, 7
      %p68 = por %p66, %p67
      %p70 = scmp.ne.s32.totalorder %s53, %s69
      %p71 = scmp.eq.s32.totalorder %s15, 0
      %p72 = por %p70, %p71
      %s73 = ssub.s32 %s16, %s42
      %s74 = ssub.s32 %s17, %s38
      %s75 = sor.u32 %s73, %s74
      %s76 = ssub.s32 %s19, %s30
      %s77 = sor.u32 %s75, %s76
      %p78 = scmp.eq.s32.totalorder %s77, 0
      %s80 = sadd.s32 %s79, 1
      %s81 = scalar_select %p78, %s79, %s80
      %p84 = pneg %p78
      %p85 = scmp.eq.s32.totalorder %s9, 7
      %p86 = por %p84, %p85
      %p87 = scmp.ne.s32.totalorder %s79, %s82
      %p88 = scmp.eq.s32.totalorder %s9, 0
      %p89 = por %p87, %p88
      %p90 = scmp.ne.s32.totalorder %s79, %s82
      %p91 = scmp.eq.s32.totalorder %s14, 7
      %p92 = por %p90, %p91
      %p93 = scmp.ne.s32.totalorder %s82, %s83
      %p94 = scmp.eq.s32.totalorder %s14, 0
      %p95 = por %p93, %p94
      %p96 = scmp.ne.s32.totalorder %s82, %s83
      %p97 = scmp.eq.s32.totalorder %s15, 7
      %p98 = por %p96, %p97
      %p100 = scmp.ne.s32.totalorder %s83, %s99
      %p101 = scmp.eq.s32.totalorder %s15, 0
      %p102 = por %p100, %p101
      %s103 = ssub.s32 %s16, %s42
      %s104 = ssub.s32 %s17, %s38
      %s105 = sor.u32 %s103, %s104
      %s106 = ssub.s32 %s19, %s30
      %s107 = sor.u32 %s105, %s106
      %p108 = scmp.eq.s32.totalorder %s107, 0
      %s110 = sadd.s32 %s109, 1
      %s111 = scalar_select %p108, %s109, %s110
      %p114 = pneg %p108
      %p115 = scmp.eq.s32.totalorder %s9, 7
      %p116 = por %p114, %p115
      %p117 = scmp.ne.s32.totalorder %s109, %s112
      %p118 = scmp.eq.s32.totalorder %s9, 0
      %p119 = por %p117, %p118
      %p120 = scmp.ne.s32.totalorder %s109, %s112
      %p121 = scmp.eq.s32.totalorder %s14, 7
      %p122 = por %p120, %p121
      %p123 = scmp.ne.s32.totalorder %s112, %s113
      %p124 = scmp.eq.s32.totalorder %s14, 0
      %p125 = por %p123, %p124
      %p126 = scmp.ne.s32.totalorder %s112, %s113
      %p127 = scmp.eq.s32.totalorder %s15, 7
      %p128 = por %p126, %p127
      %p130 = scmp.ne.s32.totalorder %s113, %s129
      %p131 = scmp.eq.s32.totalorder %s15, 0
      %p132 = por %p130, %p131
      %s133 = ssub.s32 %s16, %s42
      %s134 = ssub.s32 %s18, %s34
      %s135 = sor.u32 %s133, %s134
      %s136 = ssub.s32 %s17, %s38
      %s137 = sor.u32 %s135, %s136
      %p138 = scmp.eq.s32.totalorder %s137, 0
      %s140 = sadd.s32 %s139, 1
      %s141 = scalar_select %p138, %s139, %s140
      %p144 = pneg %p138
      %p145 = scmp.eq.s32.totalorder %s9, 7
      %p146 = por %p144, %p145
      %p147 = scmp.ne.s32.totalorder %s139, %s142
      %p148 = scmp.eq.s32.totalorder %s9, 0
      %p149 = por %p147, %p148
      %p150 = scmp.ne.s32.totalorder %s139, %s142
      %p151 = scmp.eq.s32.totalorder %s14, 7
      %p152 = por %p150, %p151
      %p153 = scmp.ne.s32.totalorder %s142, %s143
      %p154 = scmp.eq.s32.totalorder %s14, 0
      %p155 = por %p153, %p154
      %p156 = scmp.ne.s32.totalorder %s142, %s143
      %p157 = scmp.eq.s32.totalorder %s15, 7
      %p158 = por %p156, %p157
      %p160 = scmp.ne.s32.totalorder %s143, %s159
      %p161 = scmp.eq.s32.totalorder %s15, 0
      %p162 = por %p160, %p161
      %p163 = scmp.le.s32.totalorder 1, %s9
      %p164 = scmp.lt.s32.totalorder %s9, 9
      %p165 = pnand %p163, %p164
      %p166 = pneg %p165
      // Predicated region
      $region9: #{flux_forward.19} parent=5 // pred_check
        _
      $region10: #{flux_forward.19} parent=5 // pred_check_branch
        %168 = sbr.rel (%p165) target = $region12
      $region11: #{flux_forward.19} parent=5 // pred_region
        %s169 = ssub.s32 %s9, 1
      $region12: #{flux_forward.19} parent=5 // pred_fallthru
        _
      %p170 = scmp.lt.s32.totalorder %s9, 8
      // Predicated region
      $region13: #{flux_forward.19} parent=5 // pred_check
        %p171 = pneg %p170
      $region14: #{flux_forward.19} parent=5 // pred_check_branch
        %173 = sbr.rel (%p171) target = $region16
      $region15: #{flux_forward.19} parent=5 // pred_region
        // Predicated region
        $region17: #{flux_forward.19} parent=15 // pred_check
          %p174 = pneg %p59
        $region18: #{flux_forward.19} parent=15 // pred_check_branch
          %176 = sbr.rel (%p174) target = $region20
        $region19: #{flux_forward.19} parent=15 // pred_region
          %s177 = smul.u32 4, %s18
          %p178 = scmp.lt.s32.totalorder %s16, 1
          %s179 = scalar_select %p178, %s16, 1
          %p180 = scmp.lt.s32.totalorder %s17, 3
          %s181 = scalar_select %p180, %s17, 3
          %p182 = scmp.lt.s32.totalorder %s177, 3
          %s183 = scalar_select %p182, %s177, 3
          %s184 = smul.addr %s181, 4
          %s185 = sadd.s32 %s183, %s184
          %s186 = smul.addr %s179, 16
          %s187 = sadd.s32 %s185, %s186
          %s188 = smul.addr %s187, 4
          %s189 = scalar_lea.vmem %s0, %s188
          %s190 = smul.u32 4, %s18
        $region20: #{flux_forward.19} parent=15 // pred_fallthru
          _
        // Predicated region
        $region21: #{flux_forward.19} parent=15 // pred_check
          %p191 = pneg %p89
        $region22: #{flux_forward.19} parent=15 // pred_check_branch
          %193 = sbr.rel (%p191) target = $region24
        $region23: #{flux_forward.19} parent=15 // pred_region
          %s194 = smul.u32 4, %s19
          %p195 = scmp.lt.s32.totalorder %s16, 1
          %s196 = scalar_select %p195, %s16, 1
          %p197 = scmp.lt.s32.totalorder %s17, 3
          %s198 = scalar_select %p197, %s17, 3
          %p199 = scmp.lt.s32.totalorder %s194, 3
          %s200 = scalar_select %p199, %s194, 3
          %s201 = smul.addr %s198, 4
          %s202 = sadd.s32 %s200, %s201
          %s203 = smul.addr %s196, 16
          %s204 = sadd.s32 %s202, %s203
          %s205 = smul.addr %s204, 4
          %s206 = scalar_lea.vmem %s1, %s205
          %s207 = smul.u32 4, %s19
        $region24: #{flux_forward.19} parent=15 // pred_fallthru
          _
        // Predicated region
        $region25: #{flux_forward.19} parent=15 // pred_check
          %p208 = pneg %p119
        $region26: #{flux_forward.19} parent=15 // pred_check_branch
          %210 = sbr.rel (%p208) target = $region28
        $region27: #{flux_forward.19} parent=15 // pred_region
          %s211 = smul.u32 4, %s19
          %p212 = scmp.lt.s32.totalorder %s16, 1
          %s213 = scalar_select %p212, %s16, 1
          %p214 = scmp.lt.s32.totalorder %s17, 3
          %s215 = scalar_select %p214, %s17, 3
          %p216 = scmp.lt.s32.totalorder %s211, 3
          %s217 = scalar_select %p216, %s211, 3
          %s218 = smul.addr %s215, 4
          %s219 = sadd.s32 %s217, %s218
          %s220 = smul.addr %s213, 16
          %s221 = sadd.s32 %s219, %s220
          %s222 = smul.addr %s221, 4
          %s223 = scalar_lea.vmem %s2, %s222
          %s224 = smul.u32 4, %s19
        $region28: #{flux_forward.19} parent=15 // pred_fallthru
          _
      $region16: #{flux_forward.19} parent=5 // pred_fallthru
        _
      %p225 = scmp.le.s32.totalorder 1, %s9
      %p226 = scmp.lt.s32.totalorder %s9, 9
      %p227 = pnand %p225, %p226
      %p228 = pneg %p227
      // Predicated region
      $region29: #{flux_forward.19} parent=5 // pred_check
        _
      $region30: #{flux_forward.19} parent=5 // pred_check_branch
        %230 = sbr.rel (%p227) target = $region32
      $region31: #{flux_forward.19} parent=5 // pred_region
        %s231 = ssub.s32 %s9, 1
        %s232 = smul.u32 4, %s22
        %p233 = scmp.lt.s32.totalorder %s20, 1
        %s234 = scalar_select %p233, %s20, 1
        %p235 = scmp.lt.s32.totalorder %s21, 3
        %s236 = scalar_select %p235, %s21, 3
        %p237 = scmp.lt.s32.totalorder %s232, 3
        %s238 = scalar_select %p237, %s232, 3
        %s239 = smul.addr %s236, 4
        %s240 = sadd.s32 %s238, %s239
        %s241 = smul.addr %s234, 16
        %s242 = sadd.s32 %s240, %s241
        %s243 = smul.addr %s242, 4
        %s244 = scalar_lea.vmem %s0, %s243
        %p245 = pneg %p65
        %p246 = pneg %p62
        %s247 = smul.u32 4, %s23
        %p248 = scmp.lt.s32.totalorder %s20, 1
        %s249 = scalar_select %p248, %s20, 1
        %p250 = scmp.lt.s32.totalorder %s21, 3
        %s251 = scalar_select %p250, %s21, 3
        %p252 = scmp.lt.s32.totalorder %s247, 3
        %s253 = scalar_select %p252, %s247, 3
        %s254 = smul.addr %s251, 4
        %s255 = sadd.s32 %s253, %s254
        %s256 = smul.addr %s249, 16
        %s257 = sadd.s32 %s255, %s256
        %s258 = smul.addr %s257, 4
        %s259 = scalar_lea.vmem %s1, %s258
        %p260 = pneg %p95
        %p261 = pneg %p92
        %s262 = smul.u32 4, %s23
        %p263 = scmp.lt.s32.totalorder %s20, 1
        %s264 = scalar_select %p263, %s20, 1
        %p265 = scmp.lt.s32.totalorder %s21, 3
        %s266 = scalar_select %p265, %s21, 3
        %p267 = scmp.lt.s32.totalorder %s262, 3
        %s268 = scalar_select %p267, %s262, 3
        %s269 = smul.addr %s266, 4
        %s270 = sadd.s32 %s268, %s269
        %s271 = smul.addr %s264, 16
        %s272 = sadd.s32 %s270, %s271
        %s273 = smul.addr %s272, 4
        %s274 = scalar_lea.vmem %s2, %s273
        %p275 = pneg %p125
        %p276 = pneg %p122
        %p277 = pneg %p155
        %p278 = pneg %p152
        %s279 = sand.u32 %s142, 1
        %s280 = sand.u32 %s142, 1
        %s281 = smul.addr %s280, 16
        %s282 = scalar_lea.vmem [#allocation5], %s281
        %s283 = smul.u32 4, %s22
        %p284 = scmp.lt.s32.totalorder %s20, 1
        %s285 = scalar_select %p284, %s20, 1
        %p286 = scmp.lt.s32.totalorder %s21, 3
        %s287 = scalar_select %p286, %s21, 3
        %p288 = scmp.lt.s32.totalorder %s283, 3
        %s289 = scalar_select %p288, %s283, 3
        %s290 = smul.addr %s287, 4
        %s291 = sadd.s32 %s289, %s290
        %s292 = smul.addr %s285, 16
        %s293 = sadd.s32 %s291, %s292
        %s294 = smul.addr %s293, 4
        %s295 = scalar_lea.vmem %s0, %s294
        %s296 = smul.u32 4, %s22
        %s297 = smul.u32 4, %s23
        %p298 = scmp.lt.s32.totalorder %s20, 1
        %s299 = scalar_select %p298, %s20, 1
        %p300 = scmp.lt.s32.totalorder %s21, 3
        %s301 = scalar_select %p300, %s21, 3
        %p302 = scmp.lt.s32.totalorder %s297, 3
        %s303 = scalar_select %p302, %s297, 3
        %s304 = smul.addr %s301, 4
        %s305 = sadd.s32 %s303, %s304
        %s306 = smul.addr %s299, 16
        %s307 = sadd.s32 %s305, %s306
        %s308 = smul.addr %s307, 4
        %s309 = scalar_lea.vmem %s1, %s308
        %s310 = smul.u32 4, %s23
        %s311 = smul.u32 4, %s23
        %p312 = scmp.lt.s32.totalorder %s20, 1
        %s313 = scalar_select %p312, %s20, 1
        %p314 = scmp.lt.s32.totalorder %s21, 3
        %s315 = scalar_select %p314, %s21, 3
        %p316 = scmp.lt.s32.totalorder %s311, 3
        %s317 = scalar_select %p316, %s311, 3
        %s318 = smul.addr %s315, 4
        %s319 = sadd.s32 %s317, %s318
        %s320 = smul.addr %s313, 16
        %s321 = sadd.s32 %s319, %s320
        %s322 = smul.addr %s321, 4
        %s323 = scalar_lea.vmem %s2, %s322
        %s324 = smul.u32 4, %s23
        %s325 = smul.u32 4, %s22
        %p327 = scmp.eq.s32.totalorder %s23, 0
        // Predicated region
        $region33: #{flux_forward.19} parent=31 // pred_check
          %p328 = pneg %p327
        $region34: #{flux_forward.19} parent=31 // pred_check_branch
          %330 = sbr.rel (%p328) target = $region36
        $region35: #{flux_forward.19} parent=31 // pred_region
          %vm331 = vcmask 7168
          %332 = vst.msk [vmem:[#allocation2] sm:$0xff] %vm331, -1e+30
          %333 = vst.msk [vmem:[#allocation2 + $0x8] sm:$0xff] %vm331, -1e+30
          %334 = vst.msk [vmem:[#allocation2 + $0x10] sm:$0xff] %vm331, -1e+30
          %335 = vst.msk [vmem:[#allocation2 + $0x18] sm:$0xff] %vm331, -1e+30
          %336 = vst.msk [vmem:[#allocation3] sm:$0xff] %vm331, 0.0
          %337 = vst.msk [vmem:[#allocation3 + $0x8] sm:$0xff] %vm331, 0.0
          %338 = vst.msk [vmem:[#allocation3 + $0x10] sm:$0xff] %vm331, 0.0
          %339 = vst.msk [vmem:[#allocation3 + $0x18] sm:$0xff] %vm331, 0.0
          %340 = vst [vmem:[#allocation4] sm:$0xff] 0.0
          %341 = vst [vmem:[#allocation4 + $0x8] sm:$0xff] 0.0
          %342 = vst [vmem:[#allocation4 + $0x10] sm:$0xff] 0.0
          %343 = vst [vmem:[#allocation4 + $0x18] sm:$0xff] 0.0
        $region36: #{flux_forward.19} parent=31 // pred_fallthru
          _
        %v344 = vld [vmem:[%s295] sm:$0xf]
        %v345 = vld [vmem:[%s295 + $0x4] sm:$0xf]
        %v346 = vld [vmem:[%s295 + $0x8] sm:$0xf]
        %v347 = vld [vmem:[%s295 + $0xc] sm:$0xf]
        %v348 = vld [vmem:[%s309] sm:$0xf]
        %v349 = vld [vmem:[%s309 + $0x4] sm:$0xf]
        %v350 = vld [vmem:[%s309 + $0x8] sm:$0xf]
        %v351 = vld [vmem:[%s309 + $0xc] sm:$0xf]
        %v352 = vld [vmem:[%s323] sm:$0xf]
        %v353 = vld [vmem:[%s323 + $0x4] sm:$0xf]
        %v354 = vld [vmem:[%s323 + $0x8] sm:$0xf]
        %v355 = vld [vmem:[%s323 + $0xc] sm:$0xf]
        %v360 = vunpack.c.l.b16 %v344
        %v361 = vunpack.c.l.b16 %v345
        %v362 = vunpack.c.l.b16 %v346
        %v363 = vunpack.c.l.b16 %v347
        %v364 = vpack.c.b16 %v361, %v360
        %v365 = vpack.c.b16 %v363, %v362
        %v372 = vunpack.c.l.b16 %v348
        %v373 = vunpack.c.l.b16 %v349
        %v374 = vunpack.c.l.b16 %v350
        %v375 = vunpack.c.l.b16 %v351
        %v376 = vpack.c.b16 %v373, %v372
        %v377 = vpack.c.b16 %v375, %v374
        %380 = vmatprep.subr.bf16.mxu0 0
        %381 = vmatpush1.bf16.xpose.msra.mxu0 %v376
        %382 = vmatprep.subr.bf16.mxu0 0
        %383 = vmatpush1.bf16.xpose.msra.mxu0 %v377
        %384 = vmatprep.subr.bf16.mxu0 0
        %385 = vmatpush1.bf16.xpose.msra.mxu0 0
        %386 = vmatprep.subr.bf16.mxu0 0
        %387 = vmatpush1.bf16.xpose.msra.mxu0 0
        %388 = vmatprep.subr.bf16.mxu0 0
        %389 = vmatpush1.bf16.xpose.msra.mxu0 0
        %390 = vmatprep.subr.bf16.mxu0 0
        %391 = vmatpush1.bf16.xpose.msra.mxu0 0
        %392 = vmatprep.subr.bf16.mxu0 0
        %393 = vmatpush1.bf16.xpose.msra.mxu0 0
        %394 = vmatprep.subr.bf16.mxu0 0
        %395 = vmatpush1.bf16.xpose.msra.mxu0 0
        %396 = vmatprep.subr.bf16.mxu0 0
        %397 = vmatpush1.bf16.xpose.msra.mxu0 0
        %398 = vmatprep.subr.bf16.mxu0 0
        %399 = vmatpush1.bf16.xpose.msra.mxu0 0
        %400 = vmatprep.subr.bf16.mxu0 0
        %401 = vmatpush1.bf16.xpose.msra.mxu0 0
        %402 = vmatprep.subr.bf16.mxu0 0
        %403 = vmatpush1.bf16.xpose.msra.mxu0 0
        %404 = vmatprep.subr.bf16.mxu0 0
        %405 = vmatpush1.bf16.xpose.msra.mxu0 0
        %406 = vmatprep.subr.bf16.mxu0 0
        %407 = vmatpush1.bf16.xpose.msra.mxu0 0
        %408 = vmatprep.subr.bf16.mxu0 0
        %409 = vmatpush1.bf16.xpose.msra.mxu0 0
        %410 = vmatprep.subr.bf16.mxu0 0
        %411 = vmatpush1.bf16.xpose.msra.mxu0 0
        %412 = vmatprep.mubr.bf16.mxu0 0
        %413 = vmatmul.mubr.bf16.gmra.mrb[0].mxu0 %v364
        %v414 = vpop.f32.mrb[0].mxu0
        %v415 = vadd.f32 0.0, %v414
        %v416 = vpop.f32.mrb[0].mxu0
        %v417 = vpop.f32.mrb[0].mxu0
        %v418 = vadd.f32 0.0, %v417
        %v419 = vpop.f32.mrb[0].mxu0
        %420 = vmatprep.mubr.bf16.mxu0 0
        %421 = vmatmul.mubr.bf16.gmra.mrb[0].mxu0 %v365
        %v422 = vpop.f32.mrb[0].mxu0
        %v423 = vadd.f32 0.0, %v422
        %v424 = vpop.f32.mrb[0].mxu0
        %v425 = vpop.f32.mrb[0].mxu0
        %v426 = vadd.f32 0.0, %v425
        %v427 = vpop.f32.mrb[0].mxu0
        %428 = vdwg.mxu0
        %v429 = vmul.f32 %v415, 0.17677669
        %v430 = vmul.f32 %v418, 0.17677669
        %v431 = vmul.f32 %v423, 0.17677669
        %v432 = vmul.f32 %v426, 0.17677669
        %v433 = vld [vmem:[#allocation2] sm:$0xff]
        %v434 = vld [vmem:[#allocation2 + $0x8] sm:$0xff]
        %v435 = vld [vmem:[#allocation2 + $0x10] sm:$0xff]
        %v436 = vld [vmem:[#allocation2 + $0x18] sm:$0xff]
        %vm437 = vcmask 261120
        %v438 = vsel %vm437, %v429, -inf
        %439 = vmax.xlane.f32.xlu0 %v438
        %v440 = vpop.xlane.xlu0 %439
        %v441 = vsel %vm437, %v430, -inf
        %442 = vmax.xlane.f32.xlu0 %v441
        %v443 = vpop.xlane.xlu0 %442
        %v444 = vsel %vm437, %v431, -inf
        %445 = vmax.xlane.f32.xlu0 %v444
        %v446 = vpop.xlane.xlu0 %445
        %v447 = vsel %vm437, %v432, -inf
        %448 = vmax.xlane.f32.xlu0 %v447
        %v449 = vpop.xlane.xlu0 %448
        %v450 = vmax.f32 %v433, %v440
        %v451 = vmax.f32 %v434, %v443
        %v452 = vmax.f32 %v435, %v446
        %v453 = vmax.f32 %v436, %v449
        %v454 = vsub.f32 %v433, %v450
        %v455 = vsub.f32 %v434, %v451
        %v456 = vsub.f32 %v435, %v452
        %v457 = vsub.f32 %v436, %v453
        %v458 = vmul.f32 %v454, 1.442695
        %v459 = vpow.pop %v458
        %v460 = vmul.f32 %v455, 1.442695
        %v461 = vpow.pop %v460
        %v462 = vmul.f32 %v456, 1.442695
        %v463 = vpow.pop %v462
        %v464 = vmul.f32 %v457, 1.442695
        %v465 = vpow.pop %v464
        %467 = vset.pattern.permute.xlu0 0
        %468 = vperm.xlu0 %467, %v450
        %v469 = vpop.permute.xlu0 %468
        %472 = vset.pattern.permute.xlu0 0
        %473 = vperm.xlu0 %472, %v451
        %v474 = vpop.permute.xlu0 %473
        %477 = vset.pattern.permute.xlu0 0
        %478 = vperm.xlu0 %477, %v452
        %v479 = vpop.permute.xlu0 %478
        %482 = vset.pattern.permute.xlu0 0
        %483 = vperm.xlu0 %482, %v453
        %v484 = vpop.permute.xlu0 %483
        %v486 = vsub.f32 %v429, %v469
        %v487 = vsub.f32 %v430, %v474
        %v488 = vsub.f32 %v431, %v479
        %v489 = vsub.f32 %v432, %v484
        %v490 = vmul.f32 %v486, 1.442695
        %v491 = vpow.pop %v490
        %v492 = vmul.f32 %v487, 1.442695
        %v493 = vpow.pop %v492
        %v494 = vmul.f32 %v488, 1.442695
        %v495 = vpow.pop %v494
        %v496 = vmul.f32 %v489, 1.442695
        %v497 = vpow.pop %v496
        %v498 = vld [vmem:[#allocation3] sm:$0xff]
        %v499 = vld [vmem:[#allocation3 + $0x8] sm:$0xff]
        %v500 = vld [vmem:[#allocation3 + $0x10] sm:$0xff]
        %v501 = vld [vmem:[#allocation3 + $0x18] sm:$0xff]
        %v502 = vmul.f32 %v459, %v498
        %v503 = vmul.f32 %v461, %v499
        %v504 = vmul.f32 %v463, %v500
        %v505 = vmul.f32 %v465, %v501
        %v506 = vsel %vm437, %v491, 0.0
        %507 = vadd.xlane.f32.xlu0 %v506
        %v508 = vpop.xlane.xlu0 %507
        %v509 = vsel %vm437, %v493, 0.0
        %510 = vadd.xlane.f32.xlu0 %v509
        %v511 = vpop.xlane.xlu0 %510
        %v512 = vsel %vm437, %v495, 0.0
        %513 = vadd.xlane.f32.xlu0 %v512
        %v514 = vpop.xlane.xlu0 %513
        %v515 = vsel %vm437, %v497, 0.0
        %516 = vadd.xlane.f32.xlu0 %v515
        %v517 = vpop.xlane.xlu0 %516
        %v518 = vadd.f32 %v502, %v508
        %v519 = vadd.f32 %v503, %v511
        %v520 = vadd.f32 %v504, %v514
        %v521 = vadd.f32 %v505, %v517
        %vm522 = vcmask 7168
        %523 = vst.msk [vmem:[#allocation3] sm:$0xff] %vm522, %v518
        %524 = vst.msk [vmem:[#allocation3 + $0x8] sm:$0xff] %vm522, %v519
        %525 = vst.msk [vmem:[#allocation3 + $0x10] sm:$0xff] %vm522, %v520
        %526 = vst.msk [vmem:[#allocation3 + $0x18] sm:$0xff] %vm522, %v521
        %v527 = vld [vmem:[#allocation4] sm:$0xff]
        %v528 = vld [vmem:[#allocation4 + $0x8] sm:$0xff]
        %v529 = vld [vmem:[#allocation4 + $0x10] sm:$0xff]
        %v530 = vld [vmem:[#allocation4 + $0x18] sm:$0xff]
        %532 = vset.pattern.permute.xlu0 0
        %533 = vperm.xlu0 %532, %v459
        %v534 = vpop.permute.xlu0 %533
        %537 = vset.pattern.permute.xlu0 0
        %538 = vperm.xlu0 %537, %v461
        %v539 = vpop.permute.xlu0 %538
        %542 = vset.pattern.permute.xlu0 0
        %543 = vperm.xlu0 %542, %v463
        %v544 = vpop.permute.xlu0 %543
        %547 = vset.pattern.permute.xlu0 0
        %548 = vperm.xlu0 %547, %v465
        %v549 = vpop.permute.xlu0 %548
        %v551 = vmul.f32 %v534, %v527
        %v552 = vmul.f32 %v539, %v528
        %v553 = vmul.f32 %v544, %v529
        %v554 = vmul.f32 %v549, %v530
        %v555 = vpack.c.bf16 %v493, %v491
        %v556 = vpack.c.bf16 %v497, %v495
        %v561 = vunpack.c.l.b16 %v352
        %v562 = vunpack.c.l.b16 %v353
        %v563 = vunpack.c.l.b16 %v354
        %v564 = vunpack.c.l.b16 %v355
        %v565 = vpack.c.b16 %v562, %v561
        %v566 = vpack.c.b16 %v564, %v563
        %v570 = vsel %vm437, %v555, 0
        %v573 = vsel %vm437, %v556, 0
        %575 = vmatprep.subr.bf16.mxu0 0
        %576 = vmatpush1.bf16.msra.mxu0 %v565
        %577 = vmatprep.subr.bf16.mxu0 0
        %578 = vmatpush1.bf16.msra.mxu0 %v566
        %579 = vmatprep.subr.bf16.mxu0 0
        %580 = vmatpush1.bf16.msra.mxu0 0
        %581 = vmatprep.subr.bf16.mxu0 0
        %582 = vmatpush1.bf16.msra.mxu0 0
        %583 = vmatprep.subr.bf16.mxu0 0
        %584 = vmatpush1.bf16.msra.mxu0 0
        %585 = vmatprep.subr.bf16.mxu0 0
        %586 = vmatpush1.bf16.msra.mxu0 0
        %587 = vmatprep.subr.bf16.mxu0 0
        %588 = vmatpush1.bf16.msra.mxu0 0
        %589 = vmatprep.subr.bf16.mxu0 0
        %590 = vmatpush1.bf16.msra.mxu0 0
        %591 = vmatprep.subr.bf16.mxu0 0
        %592 = vmatpush1.bf16.msra.mxu0 0
        %593 = vmatprep.subr.bf16.mxu0 0
        %594 = vmatpush1.bf16.msra.mxu0 0
        %595 = vmatprep.subr.bf16.mxu0 0
        %596 = vmatpush1.bf16.msra.mxu0 0
        %597 = vmatprep.subr.bf16.mxu0 0
        %598 = vmatpush1.bf16.msra.mxu0 0
        %599 = vmatprep.subr.bf16.mxu0 0
        %600 = vmatpush1.bf16.msra.mxu0 0
        %601 = vmatprep.subr.bf16.mxu0 0
        %602 = vmatpush1.bf16.msra.mxu0 0
        %603 = vmatprep.subr.bf16.mxu0 0
        %604 = vmatpush1.bf16.msra.mxu0 0
        %605 = vmatprep.subr.bf16.mxu0 0
        %606 = vmatpush1.bf16.msra.mxu0 0
        %607 = vmatprep.mubr.bf16.mxu0 0
        %608 = vmatmul.mubr.bf16.gmra.mrb[0].mxu0 %v570
        %v609 = vpop.f32.mrb[0].mxu0
        %v610 = vadd.f32 0.0, %v609
        %v611 = vpop.f32.mrb[0].mxu0
        %v612 = vpop.f32.mrb[0].mxu0
        %v613 = vadd.f32 0.0, %v612
        %v614 = vpop.f32.mrb[0].mxu0
        %615 = vmatprep.mubr.bf16.mxu0 0
        %616 = vmatmul.mubr.bf16.gmra.mrb[0].mxu0 %v573
        %v617 = vpop.f32.mrb[0].mxu0
        %v618 = vadd.f32 0.0, %v617
        %v619 = vpop.f32.mrb[0].mxu0
        %v620 = vpop.f32.mrb[0].mxu0
        %v621 = vadd.f32 0.0, %v620
        %v622 = vpop.f32.mrb[0].mxu0
        %623 = vdwg.mxu0
        %v624 = vadd.f32 %v551, %v610
        %v625 = vadd.f32 %v552, %v613
        %v626 = vadd.f32 %v553, %v618
        %v627 = vadd.f32 %v554, %v621
        %628 = vst [vmem:[#allocation4] sm:$0xff] %v624
        %629 = vst [vmem:[#allocation4 + $0x8] sm:$0xff] %v625
        %630 = vst [vmem:[#allocation4 + $0x10] sm:$0xff] %v626
        %631 = vst [vmem:[#allocation4 + $0x18] sm:$0xff] %v627
        %632 = vst.msk [vmem:[#allocation2] sm:$0xff] %vm522, %v450
        %633 = vst.msk [vmem:[#allocation2 + $0x8] sm:$0xff] %vm522, %v451
        %634 = vst.msk [vmem:[#allocation2 + $0x10] sm:$0xff] %vm522, %v452
        %635 = vst.msk [vmem:[#allocation2 + $0x18] sm:$0xff] %vm522, %v453
        // Predicated region
        $region37: #{flux_forward.19} parent=31 // pred_check
          %p636 = pneg %p327
        $region38: #{flux_forward.19} parent=31 // pred_check_branch
          %638 = sbr.rel (%p636) target = $region40
        $region39: #{flux_forward.19} parent=31 // pred_region
          %v639 = vld [vmem:[#allocation3] sm:$0xff]
          %v640 = vld [vmem:[#allocation3 + $0x8] sm:$0xff]
          %v641 = vld [vmem:[#allocation3 + $0x10] sm:$0xff]
          %v642 = vld [vmem:[#allocation3 + $0x18] sm:$0xff]
          %v643 = vld [vmem:[#allocation4] sm:$0xff]
          %v644 = vld [vmem:[#allocation4 + $0x8] sm:$0xff]
          %v645 = vld [vmem:[#allocation4 + $0x10] sm:$0xff]
          %v646 = vld [vmem:[#allocation4 + $0x18] sm:$0xff]
          %v647 = vrcp.pop %v639
          %v648 = vrcp.pop %v640
          %v649 = vrcp.pop %v641
          %v650 = vrcp.pop %v642
          %652 = vset.pattern.permute.xlu0 0
          %653 = vperm.xlu0 %652, %v647
          %v654 = vpop.permute.xlu0 %653
          %657 = vset.pattern.permute.xlu0 0
          %658 = vperm.xlu0 %657, %v648
          %v659 = vpop.permute.xlu0 %658
          %662 = vset.pattern.permute.xlu0 0
          %663 = vperm.xlu0 %662, %v649
          %v664 = vpop.permute.xlu0 %663
          %667 = vset.pattern.permute.xlu0 0
          %668 = vperm.xlu0 %667, %v650
          %v669 = vpop.permute.xlu0 %668
          %v671 = vmul.f32 %v643, %v654
          %v672 = vmul.f32 %v644, %v659
          %v673 = vmul.f32 %v645, %v664
          %v674 = vmul.f32 %v646, %v669
          %v675 = vpack.c.bf16 %v672, %v671
          %v676 = vpack.c.bf16 %v674, %v673
          %v679 = vunpack.c.l.b16 %v675
          %v680 = vunpack.c.h.b16 %v675
          %v681 = vunpack.c.l.b16 %v676
          %v682 = vunpack.c.h.b16 %v676
          %v683 = vpack.c.b16 %v679, %v679
          %v684 = vpack.c.b16 %v680, %v680
          %v685 = vpack.c.b16 %v681, %v681
          %v686 = vpack.c.b16 %v682, %v682
          %691 = vst [vmem:[%s282] sm:$0xf] %v683
          %692 = vst [vmem:[%s282 + $0x4] sm:$0xf] %v684
          %693 = vst [vmem:[%s282 + $0x8] sm:$0xf] %v685
          %694 = vst [vmem:[%s282 + $0xc] sm:$0xf] %v686
        $region40: #{flux_forward.19} parent=31 // pred_fallthru
          _
        %s695 = sand.u32 %s142, 1
        %s696 = sand.u32 %s142, 1
        %s697 = smul.addr %s696, 16
        %s698 = scalar_lea.vmem [#allocation5], %s697
        // Predicated region
        $region41: #{flux_forward.19} parent=31 // pred_check
          %p699 = pneg %p152
        $region42: #{flux_forward.19} parent=31 // pred_check_branch
          %701 = sbr.rel (%p699) target = $region44
        $region43: #{flux_forward.19} parent=31 // pred_region
          %s702 = smul.u32 4, %s22
          %s703 = smul.addr %s702, 4
          %s704 = sadd.s32 %s21, %s703
          %s705 = smul.addr %s20, 16
          %s706 = sadd.s32 %s704, %s705
          %s707 = smul.addr %s706, 4
          %s708 = scalar_lea.vmem %s3, %s707
          // Predicated region
          $region45: #{flux_forward.19} parent=43 // pred_check
            _
          $region46: #{flux_forward.19} parent=43 // pred_check_branch
            %710 = sbr.rel (0) target = $region48
          $region47: #{flux_forward.19} parent=43 // pred_region
            // Predicated region
            $region49: #{flux_forward.19} parent=47 // pred_check
              _
            $region50: #{flux_forward.19} parent=47 // pred_check_branch
              %712 = sbr.rel target = $region52
            $region51: #{flux_forward.19} parent=47 // pred_region
              // Predicated region
              $region64: #{flux_forward.19} parent=51 // pred_check
                _
              $region65: #{flux_forward.19} parent=51 // pred_check_branch
                %733 = sbr.rel (0) target = $region67
              $region66: #{flux_forward.19} parent=51 // pred_region
                loop: start=0, step=1, limit=1
                $region68: #{flux_forward.19} parent=66 // loop_pre_header
                  _
                $region69: #{flux_forward.19} parent=66 // loop_header
                  %s735 = sphi 0, %s739
                  %p736 = scmp.ge.s32.totalorder %s735, 1
                  %s740 = sphi %s698, %s698
                  %s741 = sphi %s708, %s708
                $region70: #{flux_forward.19} parent=66 // loop_header_branch
                  %738 = sbr.rel (%p736) target = $region74
                $region71: #{flux_forward.19} parent=66 // loop_body
                  _
                $region72: #{flux_forward.19} parent=66 // loop_footer
                  %s739 = sadd.s32 1, %s735
                $region73: #{flux_forward.19} parent=66 // loop_footer_branch
                  %734 = sbr.rel target = $region69
                $region74: #{flux_forward.19} parent=66 // loop_exit
                  _
                loop: start=0, step=1, limit=1
                $region75: #{flux_forward.19} parent=66 // loop_pre_header
                  _
                $region76: #{flux_forward.19} parent=66 // loop_header
                  %s744 = sphi 0, %s748
                  %p745 = scmp.ge.s32.totalorder %s744, 1
                  %s749 = sphi %s698, %s698
                  %s750 = sphi %s708, %s708
                $region77: #{flux_forward.19} parent=66 // loop_header_branch
                  %747 = sbr.rel (%p745) target = $region81
                $region78: #{flux_forward.19} parent=66 // loop_body
                  %v751 = vld [vmem:[%s749] sm:$0xf]
                  %752 = vst [vmem:[%s750] sm:$0xf] %v751
                  %v753 = vld [vmem:[%s749 + $0x4] sm:$0xf]
                  %754 = vst [vmem:[%s750 + $0x10] sm:$0xf] %v753
                  %v755 = vld [vmem:[%s749 + $0x8] sm:$0xf]
                  %756 = vst [vmem:[%s750 + $0x20] sm:$0xf] %v755
                  %v757 = vld [vmem:[%s749 + $0xc] sm:$0xf]
                  %758 = vst [vmem:[%s750 + $0x30] sm:$0xf] %v757
                $region79: #{flux_forward.19} parent=66 // loop_footer
                  %s748 = sadd.s32 1, %s744
                $region80: #{flux_forward.19} parent=66 // loop_footer_branch
                  %743 = sbr.rel target = $region76
                $region81: #{flux_forward.19} parent=66 // loop_exit
                  _
              $region67: #{flux_forward.19} parent=51 // pred_fallthru
                _
            $region52: #{flux_forward.19} parent=47 // pred_fallthru
              _
            // Predicated region
            $region53: #{flux_forward.19} parent=47 // pred_check
              _
            $region54: #{flux_forward.19} parent=47 // pred_check_branch
              %714 = sbr.rel (0) target = $region56
            $region55: #{flux_forward.19} parent=47 // pred_region
              loop: start=0, step=1, limit=1
              $region57: #{flux_forward.19} parent=55 // loop_pre_header
                _
              $region58: #{flux_forward.19} parent=55 // loop_header
                %s717 = sphi 0, %s721
                %p718 = scmp.ge.s32.totalorder %s717, 1
                %s722 = sphi %s698, %s698
                %s723 = sphi %s708, %s708
              $region59: #{flux_forward.19} parent=55 // loop_header_branch
                %720 = sbr.rel (%p718) target = $region63
              $region60: #{flux_forward.19} parent=55 // loop_body
                %v724 = vld [vmem:[%s722] sm:$0xf]
                %725 = vst [vmem:[%s723] sm:$0xf] %v724
                %v726 = vld [vmem:[%s722 + $0x4] sm:$0xf]
                %727 = vst [vmem:[%s723 + $0x10] sm:$0xf] %v726
                %v728 = vld [vmem:[%s722 + $0x8] sm:$0xf]
                %729 = vst [vmem:[%s723 + $0x20] sm:$0xf] %v728
                %v730 = vld [vmem:[%s722 + $0xc] sm:$0xf]
                %731 = vst [vmem:[%s723 + $0x30] sm:$0xf] %v730
              $region61: #{flux_forward.19} parent=55 // loop_footer
                %s721 = sadd.s32 1, %s717
              $region62: #{flux_forward.19} parent=55 // loop_footer_branch
                %716 = sbr.rel target = $region58
              $region63: #{flux_forward.19} parent=55 // loop_exit
                _
            $region56: #{flux_forward.19} parent=47 // pred_fallthru
              _
          $region48: #{flux_forward.19} parent=43 // pred_fallthru
            _
          %759 = vnop
        $region44: #{flux_forward.19} parent=31 // pred_fallthru
          _
      $region32: #{flux_forward.19} parent=5 // pred_fallthru
        _
      %p760 = scmp.le.s32.totalorder 2, %s9
      // Predicated region
      $region82: #{flux_forward.19} parent=5 // pred_check
        %p761 = pneg %p760
      $region83: #{flux_forward.19} parent=5 // pred_check_branch
        %763 = sbr.rel (%p761) target = $region85
      $region84: #{flux_forward.19} parent=5 // pred_region
        %s764 = ssub.s32 %s9, 2
        // Predicated region
        $region86: #{flux_forward.19} parent=84 // pred_check
          %p765 = pneg %p158
        $region87: #{flux_forward.19} parent=84 // pred_check_branch
          %767 = sbr.rel (%p765) target = $region89
        $region88: #{flux_forward.19} parent=84 // pred_region
          %s768 = sand.u32 %s143, 1
          %s769 = sand.u32 %s143, 1
          %s770 = smul.addr %s769, 16
          %s771 = scalar_lea.vmem [#allocation5], %s770
        $region89: #{flux_forward.19} parent=84 // pred_fallthru
          _
      $region85: #{flux_forward.19} parent=5 // pred_fallthru
        _
    $region6: #{flux_forward.19} parent=1 // loop_footer
      %s13 = sadd.s32 1, %s9
    $region7: #{flux_forward.19} parent=1 // loop_footer_branch
      %8 = sbr.rel target = $region3
    $region8: #{flux_forward.19} parent=1 // loop_exit
      _

// kernel: flux_forward.25
$region0: #{flux_forward.25}
  #allocation0 [shape = 'u32[]', space=smem, size = 0x4, offset = 0x4, fixed_abs, tag = 'smem constant byte address 0x4 - core index']
  #allocation1 [shape = 'u32[144,128]{1,0:T(1,128)}', space=vmem, size = 0x12000, scoped, tag = 'internal scratch']
  #allocation2 [shape = 'f32[16,128]{1,0:T(8,128)}', space=vmem, size = 0x2000, scoped, tag = 'scratch operand']
  %s0 = inlined_call_operand.vmem [shape: bf16[16,512], index: 0, kind: input, shape index: {}]
  %s1 = inlined_call_operand.vmem [shape: bf16[512,128], index: 1, kind: input, shape index: {}]
  %s2 = inlined_call_operand.vmem [shape: f32[1,128], index: 2, kind: input, shape index: {}]
  %s3 = inlined_call_operand.vmem [shape: f32[16,128], index: 3, kind: output, shape index: {}]
  %s4 = sld [smem:[#allocation0]]
  $region30: #{flux_forward.25} parent=0
    _
  %s6 = ssub.s32 1, %s4
  %s7 = scalar_select 0, %s6, %s4
  // Predicated region
  $region2: #{flux_forward.25} parent=0 // pred_check
    _
  $region3: #{flux_forward.25} parent=0 // pred_check_branch
    %9 = sbr.rel (0) target = $region5
  $region4: #{flux_forward.25} parent=0 // pred_region
    _
  $region5: #{flux_forward.25} parent=0 // pred_fallthru
    _
  // Predicated region
  $region6: #{flux_forward.25} parent=0 // pred_check
    _
  $region7: #{flux_forward.25} parent=0 // pred_check_branch
    %11 = sbr.rel (0) target = $region9
  $region8: #{flux_forward.25} parent=0 // pred_region
    _
  $region9: #{flux_forward.25} parent=0 // pred_fallthru
    _
  // Predicated region
  $region10: #{flux_forward.25} parent=0 // pred_check
    _
  $region11: #{flux_forward.25} parent=0 // pred_check_branch
    %13 = sbr.rel (0) target = $region13
  $region12: #{flux_forward.25} parent=0 // pred_region
    _
  $region13: #{flux_forward.25} parent=0 // pred_fallthru
    _
  %p15 = scmp.eq.s32.totalorder 0, 0
  // Predicated region
  $region14: #{flux_forward.25} parent=0 // pred_check
    %p16 = pneg %p15
  $region15: #{flux_forward.25} parent=0 // pred_check_branch
    %18 = sbr.rel (%p16) target = $region17
  $region16: #{flux_forward.25} parent=0 // pred_region
    %19 = vst [vmem:[#allocation2] sm:$0xff] 0.0
    %20 = vst [vmem:[#allocation2 + $0x8] sm:$0xff] 0.0
  $region17: #{flux_forward.25} parent=0 // pred_fallthru
    _
  %v21 = vld [vmem:[#allocation2] sm:$0xff]
  %v22 = vld [vmem:[#allocation2 + $0x8] sm:$0xff]
  %v23 = vld [vmem:[%s0] sm:$0xff]
  %v24 = vld [vmem:[%s0 + $0x8] sm:$0xff]
  %v25 = vld [vmem:[%s0 + $0x10] sm:$0xff]
  %v26 = vld [vmem:[%s0 + $0x18] sm:$0xff]
  %v27 = vld [vmem:[%s1] sm:$0xf]
  %v28 = vld [vmem:[%s1 + $0x4] sm:$0xf]
  %v29 = vld [vmem:[%s1 + $0x8] sm:$0xf]
  %v30 = vld [vmem:[%s1 + $0xc] sm:$0xf]
  %v31 = vld [vmem:[%s1 + $0x10] sm:$0xf]
  %v32 = vld [vmem:[%s1 + $0x14] sm:$0xf]
  %v33 = vld [vmem:[%s1 + $0x18] sm:$0xf]
  %v34 = vld [vmem:[%s1 + $0x1c] sm:$0xf]
  %v35 = vld [vmem:[%s1 + $0x20] sm:$0xf]
  %v36 = vld [vmem:[%s1 + $0x24] sm:$0xf]
  %v37 = vld [vmem:[%s1 + $0x28] sm:$0xf]
  %v38 = vld [vmem:[%s1 + $0x2c] sm:$0xf]
  %v39 = vld [vmem:[%s1 + $0x30] sm:$0xf]
  %v40 = vld [vmem:[%s1 + $0x34] sm:$0xf]
  %v41 = vld [vmem:[%s1 + $0x38] sm:$0xf]
  %v42 = vld [vmem:[%s1 + $0x3c] sm:$0xf]
  %v43 = vld [vmem:[%s1 + $0x40] sm:$0xf]
  %v44 = vld [vmem:[%s1 + $0x44] sm:$0xf]
  %v45 = vld [vmem:[%s1 + $0x48] sm:$0xf]
  %v46 = vld [vmem:[%s1 + $0x4c] sm:$0xf]
  %v47 = vld [vmem:[%s1 + $0x50] sm:$0xf]
  %v48 = vld [vmem:[%s1 + $0x54] sm:$0xf]
  %v49 = vld [vmem:[%s1 + $0x58] sm:$0xf]
  %v50 = vld [vmem:[%s1 + $0x5c] sm:$0xf]
  %v51 = vld [vmem:[%s1 + $0x60] sm:$0xf]
  %v52 = vld [vmem:[%s1 + $0x64] sm:$0xf]
  %v53 = vld [vmem:[%s1 + $0x68] sm:$0xf]
  %v54 = vld [vmem:[%s1 + $0x6c] sm:$0xf]
  %v55 = vld [vmem:[%s1 + $0x70] sm:$0xf]
  %v56 = vld [vmem:[%s1 + $0x74] sm:$0xf]
  %v57 = vld [vmem:[%s1 + $0x78] sm:$0xf]
  %v58 = vld [vmem:[%s1 + $0x7c] sm:$0xf]
  %v59 = vld [vmem:[%s1 + $0x80] sm:$0xf]
  %v60 = vld [vmem:[%s1 + $0x84] sm:$0xf]
  %v61 = vld [vmem:[%s1 + $0x88] sm:$0xf]
  %v62 = vld [vmem:[%s1 + $0x8c] sm:$0xf]
  %v63 = vld [vmem:[%s1 + $0x90] sm:$0xf]
  %v64 = vld [vmem:[%s1 + $0x94] sm:$0xf]
  %v65 = vld [vmem:[%s1 + $0x98] sm:$0xf]
  %v66 = vld [vmem:[%s1 + $0x9c] sm:$0xf]
  %v67 = vld [vmem:[%s1 + $0xa0] sm:$0xf]
  %v68 = vld [vmem:[%s1 + $0xa4] sm:$0xf]
  %v69 = vld [vmem:[%s1 + $0xa8] sm:$0xf]
  %v70 = vld [vmem:[%s1 + $0xac] sm:$0xf]
  %v71 = vld [vmem:[%s1 + $0xb0] sm:$0xf]
  %v72 = vld [vmem:[%s1 + $0xb4] sm:$0xf]
  %v73 = vld [vmem:[%s1 + $0xb8] sm:$0xf]
  %v74 = vld [vmem:[%s1 + $0xbc] sm:$0xf]
  %v75 = vld [vmem:[%s1 + $0xc0] sm:$0xf]
  %v76 = vld [vmem:[%s1 + $0xc4] sm:$0xf]
  %v77 = vld [vmem:[%s1 + $0xc8] sm:$0xf]
  %v78 = vld [vmem:[%s1 + $0xcc] sm:$0xf]
  %v79 = vld [vmem:[%s1 + $0xd0] sm:$0xf]
  %v80 = vld [vmem:[%s1 + $0xd4] sm:$0xf]
  %v81 = vld [vmem:[%s1 + $0xd8] sm:$0xf]
  %v82 = vld [vmem:[%s1 + $0xdc] sm:$0xf]
  %v83 = vld [vmem:[%s1 + $0xe0] sm:$0xf]
  %v84 = vld [vmem:[%s1 + $0xe4] sm:$0xf]
  %v85 = vld [vmem:[%s1 + $0xe8] sm:$0xf]
  %v86 = vld [vmem:[%s1 + $0xec] sm:$0xf]
  %v87 = vld [vmem:[%s1 + $0xf0] sm:$0xf]
  %v88 = vld [vmem:[%s1 + $0xf4] sm:$0xf]
  %v89 = vld [vmem:[%s1 + $0xf8] sm:$0xf]
  %v90 = vld [vmem:[%s1 + $0xfc] sm:$0xf]
  %v95 = vunpack.c.l.b16 %v23
  %v96 = vunpack.c.h.b16 %v23
  %v97 = vunpack.c.l.b16 %v24
  %v98 = vunpack.c.h.b16 %v24
  %v99 = vunpack.c.l.b16 %v25
  %v100 = vunpack.c.h.b16 %v25
  %v101 = vunpack.c.l.b16 %v26
  %v102 = vunpack.c.h.b16 %v26
  %v103 = vpack.c.b16 %v99, %v95
  %v104 = vpack.c.b16 %v100, %v96
  %v105 = vpack.c.b16 %v101, %v97
  %v106 = vpack.c.b16 %v102, %v98
  %v175 = vunpack.c.l.b16 %v27
  %v176 = vunpack.c.l.b16 %v28
  %v177 = vunpack.c.l.b16 %v29
  %v178 = vunpack.c.l.b16 %v30
  %v179 = vunpack.c.l.b16 %v31
  %v180 = vunpack.c.l.b16 %v32
  %v181 = vunpack.c.l.b16 %v33
  %v182 = vunpack.c.l.b16 %v34
  %v183 = vunpack.c.l.b16 %v35
  %v184 = vunpack.c.l.b16 %v36
  %v185 = vunpack.c.l.b16 %v37
  %v186 = vunpack.c.l.b16 %v38
  %v187 = vunpack.c.l.b16 %v39
  %v188 = vunpack.c.l.b16 %v40
  %v189 = vunpack.c.l.b16 %v41
  %v190 = vunpack.c.l.b16 %v42
  %v191 = vunpack.c.l.b16 %v43
  %v192 = vunpack.c.l.b16 %v44
  %v193 = vunpack.c.l.b16 %v45
  %v194 = vunpack.c.l.b16 %v46
  %v195 = vunpack.c.l.b16 %v47
  %v196 = vunpack.c.l.b16 %v48
  %v197 = vunpack.c.l.b16 %v49
  %v198 = vunpack.c.l.b16 %v50
  %v199 = vunpack.c.l.b16 %v51
  %v200 = vunpack.c.l.b16 %v52
  %v201 = vunpack.c.l.b16 %v53
  %v202 = vunpack.c.l.b16 %v54
  %v203 = vunpack.c.l.b16 %v55
  %v204 = vunpack.c.l.b16 %v56
  %v205 = vunpack.c.l.b16 %v57
  %v206 = vunpack.c.l.b16 %v58
  %v207 = vunpack.c.l.b16 %v59
  %v208 = vunpack.c.l.b16 %v60
  %v209 = vunpack.c.l.b16 %v61
  %v210 = vunpack.c.l.b16 %v62
  %v211 = vunpack.c.l.b16 %v63
  %v212 = vunpack.c.l.b16 %v64
  %v213 = vunpack.c.l.b16 %v65
  %v214 = vunpack.c.l.b16 %v66
  %v215 = vunpack.c.l.b16 %v67
  %v216 = vunpack.c.l.b16 %v68
  %v217 = vunpack.c.l.b16 %v69
  %v218 = vunpack.c.l.b16 %v70
  %v219 = vunpack.c.l.b16 %v71
  %v220 = vunpack.c.l.b16 %v72
  %v221 = vunpack.c.l.b16 %v73
  %v222 = vunpack.c.l.b16 %v74
  %v223 = vunpack.c.l.b16 %v75
  %v224 = vunpack.c.l.b16 %v76
  %v225 = vunpack.c.l.b16 %v77
  %v226 = vunpack.c.l.b16 %v78
  %v227 = vunpack.c.l.b16 %v79
  %v228 = vunpack.c.l.b16 %v80
  %v229 = vunpack.c.l.b16 %v81
  %v230 = vunpack.c.l.b16 %v82
  %v231 = vunpack.c.l.b16 %v83
  %v232 = vunpack.c.l.b16 %v84
  %v233 = vunpack.c.l.b16 %v85
  %v234 = vunpack.c.l.b16 %v86
  %v235 = vunpack.c.l.b16 %v87
  %v236 = vunpack.c.l.b16 %v88
  %v237 = vunpack.c.l.b16 %v89
  %v238 = vunpack.c.l.b16 %v90
  %v239 = vpack.c.b16 %v176, %v175
  %v240 = vpack.c.b16 %v178, %v177
  %v241 = vpack.c.b16 %v180, %v179
  %v242 = vpack.c.b16 %v182, %v181
  %v243 = vpack.c.b16 %v184, %v183
  %v244 = vpack.c.b16 %v186, %v185
  %v245 = vpack.c.b16 %v188, %v187
  %v246 = vpack.c.b16 %v190, %v189
  %v247 = vpack.c.b16 %v192, %v191
  %v248 = vpack.c.b16 %v194, %v193
  %v249 = vpack.c.b16 %v196, %v195
  %v250 = vpack.c.b16 %v198, %v197
  %v251 = vpack.c.b16 %v200, %v199
  %v252 = vpack.c.b16 %v202, %v201
  %v253 = vpack.c.b16 %v204, %v203
  %v254 = vpack.c.b16 %v206, %v205
  %v255 = vpack.c.b16 %v208, %v207
  %v256 = vpack.c.b16 %v210, %v209
  %v257 = vpack.c.b16 %v212, %v211
  %v258 = vpack.c.b16 %v214, %v213
  %v259 = vpack.c.b16 %v216, %v215
  %v260 = vpack.c.b16 %v218, %v217
  %v261 = vpack.c.b16 %v220, %v219
  %v262 = vpack.c.b16 %v222, %v221
  %v263 = vpack.c.b16 %v224, %v223
  %v264 = vpack.c.b16 %v226, %v225
  %v265 = vpack.c.b16 %v228, %v227
  %v266 = vpack.c.b16 %v230, %v229
  %v267 = vpack.c.b16 %v232, %v231
  %v268 = vpack.c.b16 %v234, %v233
  %v269 = vpack.c.b16 %v236, %v235
  %v270 = vpack.c.b16 %v238, %v237
  %303 = vmatprep.subr.bf16.mxu0 0
  %304 = vmatpush1.bf16.msra.mxu0 %v239
  %305 = vmatprep.subr.bf16.mxu0 0
  %306 = vmatpush1.bf16.msra.mxu0 %v240
  %307 = vmatprep.subr.bf16.mxu0 0
  %308 = vmatpush1.bf16.msra.mxu0 %v241
  %309 = vmatprep.subr.bf16.mxu0 0
  %310 = vmatpush1.bf16.msra.mxu0 %v242
  %311 = vmatprep.subr.bf16.mxu0 0
  %312 = vmatpush1.bf16.msra.mxu0 %v243
  %313 = vmatprep.subr.bf16.mxu0 0
  %314 = vmatpush1.bf16.msra.mxu0 %v244
  %315 = vmatprep.subr.bf16.mxu0 0
  %316 = vmatpush1.bf16.msra.mxu0 %v245
  %317 = vmatprep.subr.bf16.mxu0 0
  %318 = vmatpush1.bf16.msra.mxu0 %v246
  %319 = vmatprep.subr.bf16.mxu0 0
  %320 = vmatpush1.bf16.msra.mxu0 %v247
  %321 = vmatprep.subr.bf16.mxu0 0
  %322 = vmatpush1.bf16.msra.mxu0 %v248
  %323 = vmatprep.subr.bf16.mxu0 0
  %324 = vmatpush1.bf16.msra.mxu0 %v249
  %325 = vmatprep.subr.bf16.mxu0 0
  %326 = vmatpush1.bf16.msra.mxu0 %v250
  %327 = vmatprep.subr.bf16.mxu0 0
  %328 = vmatpush1.bf16.msra.mxu0 %v251
  %329 = vmatprep.subr.bf16.mxu0 0
  %330 = vmatpush1.bf16.msra.mxu0 %v252
  %331 = vmatprep.subr.bf16.mxu0 0
  %332 = vmatpush1.bf16.msra.mxu0 %v253
  %333 = vmatprep.subr.bf16.mxu0 0
  %334 = vmatpush1.bf16.msra.mxu0 %v254
  %335 = vmatprep.mubr.bf16.mxu0 %v104
  %336 = vmatmul.mubr.bf16.gmra.mrb[0].mxu0 %v103
  %v337 = vpop.f32.mrb[0].mxu0
  %v338 = vadd.f32 0.0, %v337
  %v339 = vpop.f32.mrb[0].mxu0
  %v340 = vpop.f32.mrb[0].mxu0
  %v341 = vadd.f32 0.0, %v340
  %v342 = vpop.f32.mrb[0].mxu0
  %343 = vdwg.mxu0
  %344 = vmatprep.subr.bf16.mxu0 0
  %345 = vmatpush1.bf16.msra.mxu0 %v255
  %346 = vmatprep.subr.bf16.mxu0 0
  %347 = vmatpush1.bf16.msra.mxu0 %v256
  %348 = vmatprep.subr.bf16.mxu0 0
  %349 = vmatpush1.bf16.msra.mxu0 %v257
  %350 = vmatprep.subr.bf16.mxu0 0
  %351 = vmatpush1.bf16.msra.mxu0 %v258
  %352 = vmatprep.subr.bf16.mxu0 0
  %353 = vmatpush1.bf16.msra.mxu0 %v259
  %354 = vmatprep.subr.bf16.mxu0 0
  %355 = vmatpush1.bf16.msra.mxu0 %v260
  %356 = vmatprep.subr.bf16.mxu0 0
  %357 = vmatpush1.bf16.msra.mxu0 %v261
  %358 = vmatprep.subr.bf16.mxu0 0
  %359 = vmatpush1.bf16.msra.mxu0 %v262
  %360 = vmatprep.subr.bf16.mxu0 0
  %361 = vmatpush1.bf16.msra.mxu0 %v263
  %362 = vmatprep.subr.bf16.mxu0 0
  %363 = vmatpush1.bf16.msra.mxu0 %v264
  %364 = vmatprep.subr.bf16.mxu0 0
  %365 = vmatpush1.bf16.msra.mxu0 %v265
  %366 = vmatprep.subr.bf16.mxu0 0
  %367 = vmatpush1.bf16.msra.mxu0 %v266
  %368 = vmatprep.subr.bf16.mxu0 0
  %369 = vmatpush1.bf16.msra.mxu0 %v267
  %370 = vmatprep.subr.bf16.mxu0 0
  %371 = vmatpush1.bf16.msra.mxu0 %v268
  %372 = vmatprep.subr.bf16.mxu0 0
  %373 = vmatpush1.bf16.msra.mxu0 %v269
  %374 = vmatprep.subr.bf16.mxu0 0
  %375 = vmatpush1.bf16.msra.mxu0 %v270
  %376 = vmatprep.mubr.bf16.mxu0 %v106
  %377 = vmatmul.mubr.bf16.gmra.mrb[0].mxu0 %v105
  %v378 = vpop.f32.mrb[0].mxu0
  %v379 = vadd.f32 %v338, %v378
  %v380 = vpop.f32.mrb[0].mxu0
  %v381 = vpop.f32.mrb[0].mxu0
  %v382 = vadd.f32 %v341, %v381
  %v383 = vpop.f32.mrb[0].mxu0
  %384 = vdwg.mxu0
  %v385 = vadd.f32 %v21, %v379
  %v386 = vadd.f32 %v22, %v382
  %387 = vst [vmem:[#allocation2] sm:$0xff] %v385
  %388 = vst [vmem:[#allocation2 + $0x8] sm:$0xff] %v386
  // Predicated region
  $region18: #{flux_forward.25} parent=0 // pred_check
    %p389 = pneg %p15
  $region19: #{flux_forward.25} parent=0 // pred_check_branch
    %391 = sbr.rel (%p389) target = $region21
  $region20: #{flux_forward.25} parent=0 // pred_region
    %v392 = vld [vmem:[#allocation2] sm:$0xff]
    %v393 = vld [vmem:[#allocation2 + $0x8] sm:$0xff]
    %v394 = vld [vmem:[%s2] sm:$0x1]
    %v396 = vlaneseq
    %v397 = vshrl.u32 %v396, 7
    %v398 = vsub.s32 0, %v397
    %v399 = vrot.slane %v394, %v398
    %v401 = vadd.f32 %v392, %v399
    %v402 = vadd.f32 %v393, %v399
    %403 = vst [vmem:[%s3] sm:$0xff] %v401
    %404 = vst [vmem:[%s3 + $0x8] sm:$0xff] %v402
  $region21: #{flux_forward.25} parent=0 // pred_fallthru
    _
  // Predicated region
  $region22: #{flux_forward.25} parent=0 // pred_check
    _
  $region23: #{flux_forward.25} parent=0 // pred_check_branch
    %406 = sbr.rel (0) target = $region25
  $region24: #{flux_forward.25} parent=0 // pred_region
    _
  $region25: #{flux_forward.25} parent=0 // pred_fallthru
    _
  // Predicated region
  $region26: #{flux_forward.25} parent=0 // pred_check
    _
  $region27: #{flux_forward.25} parent=0 // pred_check_branch
    %408 = sbr.rel (0) target = $region29
  $region28: #{flux_forward.25} parent=0 // pred_region
    _
  $region29: #{flux_forward.25} parent=0 // pred_fallthru
    _

// kernel: flux_forward.24
$region0: #{flux_forward.24}
  #allocation0 [shape = 'u32[]', space=smem, size = 0x4, offset = 0x4, fixed_abs, tag = 'smem constant byte address 0x4 - core index']
  #allocation1 [shape = 'u32[144,128]{1,0:T(1,128)}', space=vmem, size = 0x12000, scoped, tag = 'internal scratch']
  #allocation2 [shape = 'f32[16,512]{1,0:T(8,128)}', space=vmem, size = 0x8000, scoped, tag = 'scratch operand']
  %s0 = inlined_call_operand.vmem [shape: bf16[16,128], index: 0, kind: input, shape index: {}]
  %s1 = inlined_call_operand.vmem [shape: bf16[128,512], index: 1, kind: input, shape index: {}]
  %s2 = inlined_call_operand.vmem [shape: f32[1,512], index: 2, kind: input, shape index: {}]
  %s3 = inlined_call_operand.vmem [shape: bf16[16,512], index: 3, kind: output, shape index: {}]
  %s4 = sld [smem:[#allocation0]]
  $region30: #{flux_forward.24} parent=0
    _
  %s6 = ssub.s32 1, %s4
  %s7 = scalar_select 0, %s6, %s4
  // Predicated region
  $region2: #{flux_forward.24} parent=0 // pred_check
    _
  $region3: #{flux_forward.24} parent=0 // pred_check_branch
    %9 = sbr.rel (0) target = $region5
  $region4: #{flux_forward.24} parent=0 // pred_region
    _
  $region5: #{flux_forward.24} parent=0 // pred_fallthru
    _
  // Predicated region
  $region6: #{flux_forward.24} parent=0 // pred_check
    _
  $region7: #{flux_forward.24} parent=0 // pred_check_branch
    %11 = sbr.rel (0) target = $region9
  $region8: #{flux_forward.24} parent=0 // pred_region
    _
  $region9: #{flux_forward.24} parent=0 // pred_fallthru
    _
  // Predicated region
  $region10: #{flux_forward.24} parent=0 // pred_check
    _
  $region11: #{flux_forward.24} parent=0 // pred_check_branch
    %13 = sbr.rel (0) target = $region13
  $region12: #{flux_forward.24} parent=0 // pred_region
    _
  $region13: #{flux_forward.24} parent=0 // pred_fallthru
    _
  %p15 = scmp.eq.s32.totalorder 0, 0
  // Predicated region
  $region14: #{flux_forward.24} parent=0 // pred_check
    %p16 = pneg %p15
  $region15: #{flux_forward.24} parent=0 // pred_check_branch
    %18 = sbr.rel (%p16) target = $region17
  $region16: #{flux_forward.24} parent=0 // pred_region
    %19 = vst [vmem:[#allocation2] sm:$0xff] 0.0
    %20 = vst [vmem:[#allocation2 + $0x8] sm:$0xff] 0.0
    %21 = vst [vmem:[#allocation2 + $0x10] sm:$0xff] 0.0
    %22 = vst [vmem:[#allocation2 + $0x18] sm:$0xff] 0.0
    %23 = vst [vmem:[#allocation2 + $0x20] sm:$0xff] 0.0
    %24 = vst [vmem:[#allocation2 + $0x28] sm:$0xff] 0.0
    %25 = vst [vmem:[#allocation2 + $0x30] sm:$0xff] 0.0
    %26 = vst [vmem:[#allocation2 + $0x38] sm:$0xff] 0.0
  $region17: #{flux_forward.24} parent=0 // pred_fallthru
    _
  %v27 = vld [vmem:[#allocation2] sm:$0xff]
  %v28 = vld [vmem:[#allocation2 + $0x8] sm:$0xff]
  %v29 = vld [vmem:[#allocation2 + $0x10] sm:$0xff]
  %v30 = vld [vmem:[#allocation2 + $0x18] sm:$0xff]
  %v31 = vld [vmem:[#allocation2 + $0x20] sm:$0xff]
  %v32 = vld [vmem:[#allocation2 + $0x28] sm:$0xff]
  %v33 = vld [vmem:[#allocation2 + $0x30] sm:$0xff]
  %v34 = vld [vmem:[#allocation2 + $0x38] sm:$0xff]
  %v35 = vld [vmem:[%s0] sm:$0xf]
  %v36 = vld [vmem:[%s0 + $0x4] sm:$0xf]
  %v37 = vld [vmem:[%s1] sm:$0xff]
  %v38 = vld [vmem:[%s1 + $0x8] sm:$0xff]
  %v39 = vld [vmem:[%s1 + $0x10] sm:$0xff]
  %v40 = vld [vmem:[%s1 + $0x18] sm:$0xff]
  %v41 = vld [vmem:[%s1 + $0x20] sm:$0xff]
  %v42 = vld [vmem:[%s1 + $0x28] sm:$0xff]
  %v43 = vld [vmem:[%s1 + $0x30] sm:$0xff]
  %v44 = vld [vmem:[%s1 + $0x38] sm:$0xff]
  %v45 = vld [vmem:[%s1 + $0x40] sm:$0xff]
  %v46 = vld [vmem:[%s1 + $0x48] sm:$0xff]
  %v47 = vld [vmem:[%s1 + $0x50] sm:$0xff]
  %v48 = vld [vmem:[%s1 + $0x58] sm:$0xff]
  %v49 = vld [vmem:[%s1 + $0x60] sm:$0xff]
  %v50 = vld [vmem:[%s1 + $0x68] sm:$0xff]
  %v51 = vld [vmem:[%s1 + $0x70] sm:$0xff]
  %v52 = vld [vmem:[%s1 + $0x78] sm:$0xff]
  %v53 = vld [vmem:[%s1 + $0x80] sm:$0xff]
  %v54 = vld [vmem:[%s1 + $0x88] sm:$0xff]
  %v55 = vld [vmem:[%s1 + $0x90] sm:$0xff]
  %v56 = vld [vmem:[%s1 + $0x98] sm:$0xff]
  %v57 = vld [vmem:[%s1 + $0xa0] sm:$0xff]
  %v58 = vld [vmem:[%s1 + $0xa8] sm:$0xff]
  %v59 = vld [vmem:[%s1 + $0xb0] sm:$0xff]
  %v60 = vld [vmem:[%s1 + $0xb8] sm:$0xff]
  %v61 = vld [vmem:[%s1 + $0xc0] sm:$0xff]
  %v62 = vld [vmem:[%s1 + $0xc8] sm:$0xff]
  %v63 = vld [vmem:[%s1 + $0xd0] sm:$0xff]
  %v64 = vld [vmem:[%s1 + $0xd8] sm:$0xff]
  %v65 = vld [vmem:[%s1 + $0xe0] sm:$0xff]
  %v66 = vld [vmem:[%s1 + $0xe8] sm:$0xff]
  %v67 = vld [vmem:[%s1 + $0xf0] sm:$0xff]
  %v68 = vld [vmem:[%s1 + $0xf8] sm:$0xff]
  %v71 = vunpack.c.l.b16 %v35
  %v72 = vunpack.c.l.b16 %v36
  %v73 = vpack.c.b16 %v72, %v71
  %v107 = vunpack.c.l.b16 %v37
  %v108 = vunpack.c.h.b16 %v37
  %v109 = vunpack.c.l.b16 %v38
  %v110 = vunpack.c.h.b16 %v38
  %v111 = vunpack.c.l.b16 %v39
  %v112 = vunpack.c.h.b16 %v39
  %v113 = vunpack.c.l.b16 %v40
  %v114 = vunpack.c.h.b16 %v40
  %v115 = vunpack.c.l.b16 %v41
  %v116 = vunpack.c.h.b16 %v41
  %v117 = vunpack.c.l.b16 %v42
  %v118 = vunpack.c.h.b16 %v42
  %v119 = vunpack.c.l.b16 %v43
  %v120 = vunpack.c.h.b16 %v43
  %v121 = vunpack.c.l.b16 %v44
  %v122 = vunpack.c.h.b16 %v44
  %v123 = vunpack.c.l.b16 %v45
  %v124 = vunpack.c.h.b16 %v45
  %v125 = vunpack.c.l.b16 %v46
  %v126 = vunpack.c.h.b16 %v46
  %v127 = vunpack.c.l.b16 %v47
  %v128 = vunpack.c.h.b16 %v47
  %v129 = vunpack.c.l.b16 %v48
  %v130 = vunpack.c.h.b16 %v48
  %v131 = vunpack.c.l.b16 %v49
  %v132 = vunpack.c.h.b16 %v49
  %v133 = vunpack.c.l.b16 %v50
  %v134 = vunpack.c.h.b16 %v50
  %v135 = vunpack.c.l.b16 %v51
  %v136 = vunpack.c.h.b16 %v51
  %v137 = vunpack.c.l.b16 %v52
  %v138 = vunpack.c.h.b16 %v52
  %v139 = vunpack.c.l.b16 %v53
  %v140 = vunpack.c.h.b16 %v53
  %v141 = vunpack.c.l.b16 %v54
  %v142 = vunpack.c.h.b16 %v54
  %v143 = vunpack.c.l.b16 %v55
  %v144 = vunpack.c.h.b16 %v55
  %v145 = vunpack.c.l.b16 %v56
  %v146 = vunpack.c.h.b16 %v56
  %v147 = vunpack.c.l.b16 %v57
  %v148 = vunpack.c.h.b16 %v57
  %v149 = vunpack.c.l.b16 %v58
  %v150 = vunpack.c.h.b16 %v58
  %v151 = vunpack.c.l.b16 %v59
  %v152 = vunpack.c.h.b16 %v59
  %v153 = vunpack.c.l.b16 %v60
  %v154 = vunpack.c.h.b16 %v60
  %v155 = vunpack.c.l.b16 %v61
  %v156 = vunpack.c.h.b16 %v61
  %v157 = vunpack.c.l.b16 %v62
  %v158 = vunpack.c.h.b16 %v62
  %v159 = vunpack.c.l.b16 %v63
  %v160 = vunpack.c.h.b16 %v63
  %v161 = vunpack.c.l.b16 %v64
  %v162 = vunpack.c.h.b16 %v64
  %v163 = vunpack.c.l.b16 %v65
  %v164 = vunpack.c.h.b16 %v65
  %v165 = vunpack.c.l.b16 %v66
  %v166 = vunpack.c.h.b16 %v66
  %v167 = vunpack.c.l.b16 %v67
  %v168 = vunpack.c.h.b16 %v67
  %v169 = vunpack.c.l.b16 %v68
  %v170 = vunpack.c.h.b16 %v68
  %v171 = vpack.c.b16 %v111, %v107
  %v172 = vpack.c.b16 %v112, %v108
  %v173 = vpack.c.b16 %v113, %v109
  %v174 = vpack.c.b16 %v114, %v110
  %v175 = vpack.c.b16 %v119, %v115
  %v176 = vpack.c.b16 %v120, %v116
  %v177 = vpack.c.b16 %v121, %v117
  %v178 = vpack.c.b16 %v122, %v118
  %v179 = vpack.c.b16 %v127, %v123
  %v180 = vpack.c.b16 %v128, %v124
  %v181 = vpack.c.b16 %v129, %v125
  %v182 = vpack.c.b16 %v130, %v126
  %v183 = vpack.c.b16 %v135, %v131
  %v184 = vpack.c.b16 %v136, %v132
  %v185 = vpack.c.b16 %v137, %v133
  %v186 = vpack.c.b16 %v138, %v134
  %v187 = vpack.c.b16 %v143, %v139
  %v188 = vpack.c.b16 %v144, %v140
  %v189 = vpack.c.b16 %v145, %v141
  %v190 = vpack.c.b16 %v146, %v142
  %v191 = vpack.c.b16 %v151, %v147
  %v192 = vpack.c.b16 %v152, %v148
  %v193 = vpack.c.b16 %v153, %v149
  %v194 = vpack.c.b16 %v154, %v150
  %v195 = vpack.c.b16 %v159, %v155
  %v196 = vpack.c.b16 %v160, %v156
  %v197 = vpack.c.b16 %v161, %v157
  %v198 = vpack.c.b16 %v162, %v158
  %v199 = vpack.c.b16 %v167, %v163
  %v200 = vpack.c.b16 %v168, %v164
  %v201 = vpack.c.b16 %v169, %v165
  %v202 = vpack.c.b16 %v170, %v166
  %235 = vmatprep.subr.bf16.mxu0 %v172
  %236 = vmatpush1.bf16.msra.mxu0 %v171
  %237 = vmatprep.subr.bf16.mxu0 %v176
  %238 = vmatpush1.bf16.msra.mxu0 %v175
  %239 = vmatprep.subr.bf16.mxu0 %v180
  %240 = vmatpush1.bf16.msra.mxu0 %v179
  %241 = vmatprep.subr.bf16.mxu0 %v184
  %242 = vmatpush1.bf16.msra.mxu0 %v183
  %243 = vmatprep.subr.bf16.mxu0 %v188
  %244 = vmatpush1.bf16.msra.mxu0 %v187
  %245 = vmatprep.subr.bf16.mxu0 %v192
  %246 = vmatpush1.bf16.msra.mxu0 %v191
  %247 = vmatprep.subr.bf16.mxu0 %v196
  %248 = vmatpush1.bf16.msra.mxu0 %v195
  %249 = vmatprep.subr.bf16.mxu0 %v200
  %250 = vmatpush1.bf16.msra.mxu0 %v199
  %251 = vmatprep.subr.bf16.mxu0 0
  %252 = vmatpush1.bf16.msra.mxu0 0
  %253 = vmatprep.subr.bf16.mxu0 0
  %254 = vmatpush1.bf16.msra.mxu0 0
  %255 = vmatprep.subr.bf16.mxu0 0
  %256 = vmatpush1.bf16.msra.mxu0 0
  %257 = vmatprep.subr.bf16.mxu0 0
  %258 = vmatpush1.bf16.msra.mxu0 0
  %259 = vmatprep.subr.bf16.mxu0 0
  %260 = vmatpush1.bf16.msra.mxu0 0
  %261 = vmatprep.subr.bf16.mxu0 0
  %262 = vmatpush1.bf16.msra.mxu0 0
  %263 = vmatprep.subr.bf16.mxu0 0
  %264 = vmatpush1.bf16.msra.mxu0 0
  %265 = vmatprep.subr.bf16.mxu0 0
  %266 = vmatpush1.bf16.msra.mxu0 0
  %267 = vmatprep.mubr.bf16.mxu0 0
  %268 = vmatmul.mubr.bf16.gmra.mrb[0].mxu0 %v73
  %v269 = vpop.f32.mrb[0].mxu0
  %v270 = vadd.f32 0.0, %v269
  %v271 = vpop.f32.mrb[0].mxu0
  %v272 = vadd.f32 0.0, %v271
  %v273 = vpop.f32.mrb[0].mxu0
  %v274 = vadd.f32 0.0, %v273
  %v275 = vpop.f32.mrb[0].mxu0
  %v276 = vadd.f32 0.0, %v275
  %277 = vdwg.mxu0
  %278 = vmatprep.subr.bf16.mxu0 %v174
  %279 = vmatpush1.bf16.msra.mxu0 %v173
  %280 = vmatprep.subr.bf16.mxu0 %v178
  %281 = vmatpush1.bf16.msra.mxu0 %v177
  %282 = vmatprep.subr.bf16.mxu0 %v182
  %283 = vmatpush1.bf16.msra.mxu0 %v181
  %284 = vmatprep.subr.bf16.mxu0 %v186
  %285 = vmatpush1.bf16.msra.mxu0 %v185
  %286 = vmatprep.subr.bf16.mxu0 %v190
  %287 = vmatpush1.bf16.msra.mxu0 %v189
  %288 = vmatprep.subr.bf16.mxu0 %v194
  %289 = vmatpush1.bf16.msra.mxu0 %v193
  %290 = vmatprep.subr.bf16.mxu0 %v198
  %291 = vmatpush1.bf16.msra.mxu0 %v197
  %292 = vmatprep.subr.bf16.mxu0 %v202
  %293 = vmatpush1.bf16.msra.mxu0 %v201
  %294 = vmatprep.subr.bf16.mxu0 0
  %295 = vmatpush1.bf16.msra.mxu0 0
  %296 = vmatprep.subr.bf16.mxu0 0
  %297 = vmatpush1.bf16.msra.mxu0 0
  %298 = vmatprep.subr.bf16.mxu0 0
  %299 = vmatpush1.bf16.msra.mxu0 0
  %300 = vmatprep.subr.bf16.mxu0 0
  %301 = vmatpush1.bf16.msra.mxu0 0
  %302 = vmatprep.subr.bf16.mxu0 0
  %303 = vmatpush1.bf16.msra.mxu0 0
  %304 = vmatprep.subr.bf16.mxu0 0
  %305 = vmatpush1.bf16.msra.mxu0 0
  %306 = vmatprep.subr.bf16.mxu0 0
  %307 = vmatpush1.bf16.msra.mxu0 0
  %308 = vmatprep.subr.bf16.mxu0 0
  %309 = vmatpush1.bf16.msra.mxu0 0
  %310 = vmatprep.mubr.bf16.mxu0 0
  %311 = vmatmul.mubr.bf16.gmra.mrb[0].mxu0 %v73
  %v312 = vpop.f32.mrb[0].mxu0
  %v313 = vadd.f32 0.0, %v312
  %v314 = vpop.f32.mrb[0].mxu0
  %v315 = vadd.f32 0.0, %v314
  %v316 = vpop.f32.mrb[0].mxu0
  %v317 = vadd.f32 0.0, %v316
  %v318 = vpop.f32.mrb[0].mxu0
  %v319 = vadd.f32 0.0, %v318
  %320 = vdwg.mxu0
  %v321 = vadd.f32 %v27, %v270
  %v322 = vadd.f32 %v28, %v272
  %v323 = vadd.f32 %v29, %v313
  %v324 = vadd.f32 %v30, %v315
  %v325 = vadd.f32 %v31, %v274
  %v326 = vadd.f32 %v32, %v276
  %v327 = vadd.f32 %v33, %v317
  %v328 = vadd.f32 %v34, %v319
  %329 = vst [vmem:[#allocation2] sm:$0xff] %v321
  %330 = vst [vmem:[#allocation2 + $0x8] sm:$0xff] %v322
  %331 = vst [vmem:[#allocation2 + $0x10] sm:$0xff] %v323
  %332 = vst [vmem:[#allocation2 + $0x18] sm:$0xff] %v324
  %333 = vst [vmem:[#allocation2 + $0x20] sm:$0xff] %v325
  %334 = vst [vmem:[#allocation2 + $0x28] sm:$0xff] %v326
  %335 = vst [vmem:[#allocation2 + $0x30] sm:$0xff] %v327
  %336 = vst [vmem:[#allocation2 + $0x38] sm:$0xff] %v328
  // Predicated region
  $region18: #{flux_forward.24} parent=0 // pred_check
    %p337 = pneg %p15
  $region19: #{flux_forward.24} parent=0 // pred_check_branch
    %339 = sbr.rel (%p337) target = $region21
  $region20: #{flux_forward.24} parent=0 // pred_region
    %v340 = vld [vmem:[#allocation2] sm:$0xff]
    %v341 = vld [vmem:[#allocation2 + $0x8] sm:$0xff]
    %v342 = vld [vmem:[#allocation2 + $0x10] sm:$0xff]
    %v343 = vld [vmem:[#allocation2 + $0x18] sm:$0xff]
    %v344 = vld [vmem:[#allocation2 + $0x20] sm:$0xff]
    %v345 = vld [vmem:[#allocation2 + $0x28] sm:$0xff]
    %v346 = vld [vmem:[#allocation2 + $0x30] sm:$0xff]
    %v347 = vld [vmem:[#allocation2 + $0x38] sm:$0xff]
    %v348 = vld [vmem:[%s2] sm:$0xf]
    %v350 = vlaneseq
    %v351 = vshrl.u32 %v350, 7
    %v352 = vsub.s32 0, %v351
    %v353 = vrot.slane %v348, %v352
    %v354 = vlaneseq
    %v355 = vshrl.u32 %v354, 7
    %v356 = vsub.s32 1, %v355
    %v357 = vrot.slane %v348, %v356
    %v358 = vlaneseq
    %v359 = vshrl.u32 %v358, 7
    %v360 = vsub.s32 2, %v359
    %v361 = vrot.slane %v348, %v360
    %v362 = vlaneseq
    %v363 = vshrl.u32 %v362, 7
    %v364 = vsub.s32 3, %v363
    %v365 = vrot.slane %v348, %v364
    %v370 = vadd.f32 %v340, %v353
    %v371 = vadd.f32 %v341, %v357
    %v372 = vadd.f32 %v342, %v361
    %v373 = vadd.f32 %v343, %v365
    %v374 = vadd.f32 %v344, %v353
    %v375 = vadd.f32 %v345, %v357
    %v376 = vadd.f32 %v346, %v361
    %v377 = vadd.f32 %v347, %v365
    %v378 = vmul.f32 %v370, %v370
    %v379 = vmul.f32 %v371, %v371
    %v380 = vmul.f32 %v372, %v372
    %v381 = vmul.f32 %v373, %v373
    %v382 = vmul.f32 %v374, %v374
    %v383 = vmul.f32 %v375, %v375
    %v384 = vmul.f32 %v376, %v376
    %v385 = vmul.f32 %v377, %v377
    %v386 = vmul.f32 %v370, %v378
    %v387 = vmul.f32 %v371, %v379
    %v388 = vmul.f32 %v372, %v380
    %v389 = vmul.f32 %v373, %v381
    %v390 = vmul.f32 %v374, %v382
    %v391 = vmul.f32 %v375, %v383
    %v392 = vmul.f32 %v376, %v384
    %v393 = vmul.f32 %v377, %v385
    %v394 = vmul.f32 %v386, 0.044715
    %v395 = vmul.f32 %v387, 0.044715
    %v396 = vmul.f32 %v388, 0.044715
    %v397 = vmul.f32 %v389, 0.044715
    %v398 = vmul.f32 %v390, 0.044715
    %v399 = vmul.f32 %v391, 0.044715
    %v400 = vmul.f32 %v392, 0.044715
    %v401 = vmul.f32 %v393, 0.044715
    %v402 = vadd.f32 %v370, %v394
    %v403 = vadd.f32 %v371, %v395
    %v404 = vadd.f32 %v372, %v396
    %v405 = vadd.f32 %v373, %v397
    %v406 = vadd.f32 %v374, %v398
    %v407 = vadd.f32 %v375, %v399
    %v408 = vadd.f32 %v376, %v400
    %v409 = vadd.f32 %v377, %v401
    %v410 = vmul.f32 %v402, 0.7978846
    %v411 = vmul.f32 %v403, 0.7978846
    %v412 = vmul.f32 %v404, 0.7978846
    %v413 = vmul.f32 %v405, 0.7978846
    %v414 = vmul.f32 %v406, 0.7978846
    %v415 = vmul.f32 %v407, 0.7978846
    %v416 = vmul.f32 %v408, 0.7978846
    %v417 = vmul.f32 %v409, 0.7978846
    %v418 = vtanh.pop %v410
    %v419 = vtanh.pop %v411
    %v420 = vtanh.pop %v412
    %v421 = vtanh.pop %v413
    %v422 = vtanh.pop %v414
    %v423 = vtanh.pop %v415
    %v424 = vtanh.pop %v416
    %v425 = vtanh.pop %v417
    %v426 = vadd.f32 %v418, 1.0
    %v427 = vadd.f32 %v419, 1.0
    %v428 = vadd.f32 %v420, 1.0
    %v429 = vadd.f32 %v421, 1.0
    %v430 = vadd.f32 %v422, 1.0
    %v431 = vadd.f32 %v423, 1.0
    %v432 = vadd.f32 %v424, 1.0
    %v433 = vadd.f32 %v425, 1.0
    %v434 = vmul.f32 %v426, 0.5
    %v435 = vmul.f32 %v427, 0.5
    %v436 = vmul.f32 %v428, 0.5
    %v437 = vmul.f32 %v429, 0.5
    %v438 = vmul.f32 %v430, 0.5
    %v439 = vmul.f32 %v431, 0.5
    %v440 = vmul.f32 %v432, 0.5
    %v441 = vmul.f32 %v433, 0.5
    %v442 = vmul.f32 %v370, %v434
    %v443 = vmul.f32 %v371, %v435
    %v444 = vmul.f32 %v372, %v436
    %v445 = vmul.f32 %v373, %v437
    %v446 = vmul.f32 %v374, %v438
    %v447 = vmul.f32 %v375, %v439
    %v448 = vmul.f32 %v376, %v440
    %v449 = vmul.f32 %v377, %v441
    %v450 = vpack.c.bf16 %v446, %v442
    %v451 = vpack.c.bf16 %v447, %v443
    %v452 = vpack.c.bf16 %v448, %v444
    %v453 = vpack.c.bf16 %v449, %v445
    %v458 = vunpack.c.l.b16 %v450
    %v459 = vunpack.c.l.b16 %v451
    %v460 = vunpack.c.l.b16 %v452
    %v461 = vunpack.c.l.b16 %v453
    %v462 = vunpack.c.h.b16 %v450
    %v463 = vunpack.c.h.b16 %v451
    %v464 = vunpack.c.h.b16 %v452
    %v465 = vunpack.c.h.b16 %v453
    %v466 = vpack.c.b16 %v459, %v458
    %v467 = vpack.c.b16 %v461, %v460
    %v468 = vpack.c.b16 %v463, %v462
    %v469 = vpack.c.b16 %v465, %v464
    %474 = vst [vmem:[%s3] sm:$0xff] %v466
    %475 = vst [vmem:[%s3 + $0x8] sm:$0xff] %v467
    %476 = vst [vmem:[%s3 + $0x10] sm:$0xff] %v468
    %477 = vst [vmem:[%s3 + $0x18] sm:$0xff] %v469
  $region21: #{flux_forward.24} parent=0 // pred_fallthru
    _
  // Predicated region
  $region22: #{flux_forward.24} parent=0 // pred_check
    _
  $region23: #{flux_forward.24} parent=0 // pred_check_branch
    %479 = sbr.rel (0) target = $region25
  $region24: #{flux_forward.24} parent=0 // pred_region
    _
  $region25: #{flux_forward.24} parent=0 // pred_fallthru
    _
  // Predicated region
  $region26: #{flux_forward.24} parent=0 // pred_check
    _
  $region27: #{flux_forward.24} parent=0 // pred_check_branch
    %481 = sbr.rel (0) target = $region29
  $region28: #{flux_forward.24} parent=0 // pred_region
    _
  $region29: #{flux_forward.24} parent=0 // pred_fallthru
    _

// kernel: flux_forward.21
$region0: #{flux_forward.21}
  #allocation0 [shape = 'u32[]', space=smem, size = 0x4, offset = 0x4, fixed_abs, tag = 'smem constant byte address 0x4 - core index']
  #allocation1 [shape = 'u32[144,128]{1,0:T(1,128)}', space=vmem, size = 0x12000, scoped, tag = 'internal scratch']
  #allocation2 [shape = 'f32[48,512]{1,0:T(8,128)}', space=vmem, size = 0x18000, scoped, tag = 'scratch operand']
  %s0 = inlined_call_operand.vmem [shape: bf16[48,128], index: 0, kind: input, shape index: {}]
  %s1 = inlined_call_operand.vmem [shape: bf16[128,512], index: 1, kind: input, shape index: {}]
  %s2 = inlined_call_operand.vmem [shape: f32[1,512], index: 2, kind: input, shape index: {}]
  %s3 = inlined_call_operand.vmem [shape: bf16[48,512], index: 3, kind: output, shape index: {}]
  %s4 = sld [smem:[#allocation0]]
  $region30: #{flux_forward.21} parent=0
    _
  %s6 = ssub.s32 1, %s4
  %s7 = scalar_select 0, %s6, %s4
  // Predicated region
  $region2: #{flux_forward.21} parent=0 // pred_check
    _
  $region3: #{flux_forward.21} parent=0 // pred_check_branch
    %9 = sbr.rel (0) target = $region5
  $region4: #{flux_forward.21} parent=0 // pred_region
    _
  $region5: #{flux_forward.21} parent=0 // pred_fallthru
    _
  // Predicated region
  $region6: #{flux_forward.21} parent=0 // pred_check
    _
  $region7: #{flux_forward.21} parent=0 // pred_check_branch
    %11 = sbr.rel (0) target = $region9
  $region8: #{flux_forward.21} parent=0 // pred_region
    _
  $region9: #{flux_forward.21} parent=0 // pred_fallthru
    _
  // Predicated region
  $region10: #{flux_forward.21} parent=0 // pred_check
    _
  $region11: #{flux_forward.21} parent=0 // pred_check_branch
    %13 = sbr.rel (0) target = $region13
  $region12: #{flux_forward.21} parent=0 // pred_region
    _
  $region13: #{flux_forward.21} parent=0 // pred_fallthru
    _
  %p15 = scmp.eq.s32.totalorder 0, 0
  // Predicated region
  $region14: #{flux_forward.21} parent=0 // pred_check
    %p16 = pneg %p15
  $region15: #{flux_forward.21} parent=0 // pred_check_branch
    %18 = sbr.rel (%p16) target = $region17
  $region16: #{flux_forward.21} parent=0 // pred_region
    %19 = vst [vmem:[#allocation2] sm:$0xff] 0.0
    %20 = vst [vmem:[#allocation2 + $0x8] sm:$0xff] 0.0
    %21 = vst [vmem:[#allocation2 + $0x10] sm:$0xff] 0.0
    %22 = vst [vmem:[#allocation2 + $0x18] sm:$0xff] 0.0
    %23 = vst [vmem:[#allocation2 + $0x20] sm:$0xff] 0.0
    %24 = vst [vmem:[#allocation2 + $0x28] sm:$0xff] 0.0
    %25 = vst [vmem:[#allocation2 + $0x30] sm:$0xff] 0.0
    %26 = vst [vmem:[#allocation2 + $0x38] sm:$0xff] 0.0
    %27 = vst [vmem:[#allocation2 + $0x40] sm:$0xff] 0.0
    %28 = vst [vmem:[#allocation2 + $0x48] sm:$0xff] 0.0
    %29 = vst [vmem:[#allocation2 + $0x50] sm:$0xff] 0.0
    %30 = vst [vmem:[#allocation2 + $0x58] sm:$0xff] 0.0
    %31 = vst [vmem:[#allocation2 + $0x60] sm:$0xff] 0.0
    %32 = vst [vmem:[#allocation2 + $0x68] sm:$0xff] 0.0
    %33 = vst [vmem:[#allocation2 + $0x70] sm:$0xff] 0.0
    %34 = vst [vmem:[#allocation2 + $0x78] sm:$0xff] 0.0
    %35 = vst [vmem:[#allocation2 + $0x80] sm:$0xff] 0.0
    %36 = vst [vmem:[#allocation2 + $0x88] sm:$0xff] 0.0
    %37 = vst [vmem:[#allocation2 + $0x90] sm:$0xff] 0.0
    %38 = vst [vmem:[#allocation2 + $0x98] sm:$0xff] 0.0
    %39 = vst [vmem:[#allocation2 + $0xa0] sm:$0xff] 0.0
    %40 = vst [vmem:[#allocation2 + $0xa8] sm:$0xff] 0.0
    %41 = vst [vmem:[#allocation2 + $0xb0] sm:$0xff] 0.0
    %42 = vst [vmem:[#allocation2 + $0xb8] sm:$0xff] 0.0
  $region17: #{flux_forward.21} parent=0 // pred_fallthru
    _
  %v43 = vld [vmem:[#allocation2] sm:$0xff]
  %v44 = vld [vmem:[#allocation2 + $0x8] sm:$0xff]
  %v45 = vld [vmem:[#allocation2 + $0x10] sm:$0xff]
  %v46 = vld [vmem:[#allocation2 + $0x18] sm:$0xff]
  %v47 = vld [vmem:[#allocation2 + $0x20] sm:$0xff]
  %v48 = vld [vmem:[#allocation2 + $0x28] sm:$0xff]
  %v49 = vld [vmem:[#allocation2 + $0x30] sm:$0xff]
  %v50 = vld [vmem:[#allocation2 + $0x38] sm:$0xff]
  %v51 = vld [vmem:[#allocation2 + $0x40] sm:$0xff]
  %v52 = vld [vmem:[#allocation2 + $0x48] sm:$0xff]
  %v53 = vld [vmem:[#allocation2 + $0x50] sm:$0xff]
  %v54 = vld [vmem:[#allocation2 + $0x58] sm:$0xff]
  %v55 = vld [vmem:[#allocation2 + $0x60] sm:$0xff]
  %v56 = vld [vmem:[#allocation2 + $0x68] sm:$0xff]
  %v57 = vld [vmem:[#allocation2 + $0x70] sm:$0xff]
  %v58 = vld [vmem:[#allocation2 + $0x78] sm:$0xff]
  %v59 = vld [vmem:[#allocation2 + $0x80] sm:$0xff]
  %v60 = vld [vmem:[#allocation2 + $0x88] sm:$0xff]
  %v61 = vld [vmem:[#allocation2 + $0x90] sm:$0xff]
  %v62 = vld [vmem:[#allocation2 + $0x98] sm:$0xff]
  %v63 = vld [vmem:[#allocation2 + $0xa0] sm:$0xff]
  %v64 = vld [vmem:[#allocation2 + $0xa8] sm:$0xff]
  %v65 = vld [vmem:[#allocation2 + $0xb0] sm:$0xff]
  %v66 = vld [vmem:[#allocation2 + $0xb8] sm:$0xff]
  %v67 = vld [vmem:[%s0] sm:$0xf]
  %v68 = vld [vmem:[%s0 + $0x4] sm:$0xf]
  %v69 = vld [vmem:[%s0 + $0x8] sm:$0xf]
  %v70 = vld [vmem:[%s0 + $0xc] sm:$0xf]
  %v71 = vld [vmem:[%s0 + $0x10] sm:$0xf]
  %v72 = vld [vmem:[%s0 + $0x14] sm:$0xf]
  %v73 = vld [vmem:[%s1] sm:$0xff]
  %v74 = vld [vmem:[%s1 + $0x8] sm:$0xff]
  %v75 = vld [vmem:[%s1 + $0x10] sm:$0xff]
  %v76 = vld [vmem:[%s1 + $0x18] sm:$0xff]
  %v77 = vld [vmem:[%s1 + $0x20] sm:$0xff]
  %v78 = vld [vmem:[%s1 + $0x28] sm:$0xff]
  %v79 = vld [vmem:[%s1 + $0x30] sm:$0xff]
  %v80 = vld [vmem:[%s1 + $0x38] sm:$0xff]
  %v81 = vld [vmem:[%s1 + $0x40] sm:$0xff]
  %v82 = vld [vmem:[%s1 + $0x48] sm:$0xff]
  %v83 = vld [vmem:[%s1 + $0x50] sm:$0xff]
  %v84 = vld [vmem:[%s1 + $0x58] sm:$0xff]
  %v85 = vld [vmem:[%s1 + $0x60] sm:$0xff]
  %v86 = vld [vmem:[%s1 + $0x68] sm:$0xff]
  %v87 = vld [vmem:[%s1 + $0x70] sm:$0xff]
  %v88 = vld [vmem:[%s1 + $0x78] sm:$0xff]
  %v89 = vld [vmem:[%s1 + $0x80] sm:$0xff]
  %v90 = vld [vmem:[%s1 + $0x88] sm:$0xff]
  %v91 = vld [vmem:[%s1 + $0x90] sm:$0xff]
  %v92 = vld [vmem:[%s1 + $0x98] sm:$0xff]
  %v93 = vld [vmem:[%s1 + $0xa0] sm:$0xff]
  %v94 = vld [vmem:[%s1 + $0xa8] sm:$0xff]
  %v95 = vld [vmem:[%s1 + $0xb0] sm:$0xff]
  %v96 = vld [vmem:[%s1 + $0xb8] sm:$0xff]
  %v97 = vld [vmem:[%s1 + $0xc0] sm:$0xff]
  %v98 = vld [vmem:[%s1 + $0xc8] sm:$0xff]
  %v99 = vld [vmem:[%s1 + $0xd0] sm:$0xff]
  %v100 = vld [vmem:[%s1 + $0xd8] sm:$0xff]
  %v101 = vld [vmem:[%s1 + $0xe0] sm:$0xff]
  %v102 = vld [vmem:[%s1 + $0xe8] sm:$0xff]
  %v103 = vld [vmem:[%s1 + $0xf0] sm:$0xff]
  %v104 = vld [vmem:[%s1 + $0xf8] sm:$0xff]
  %v111 = vunpack.c.l.b16 %v67
  %v112 = vunpack.c.l.b16 %v68
  %v113 = vunpack.c.l.b16 %v69
  %v114 = vunpack.c.l.b16 %v70
  %v115 = vunpack.c.l.b16 %v71
  %v116 = vunpack.c.l.b16 %v72
  %v117 = vpack.c.b16 %v112, %v111
  %v118 = vpack.c.b16 %v114, %v113
  %v119 = vpack.c.b16 %v116, %v115
  %v155 = vunpack.c.l.b16 %v73
  %v156 = vunpack.c.h.b16 %v73
  %v157 = vunpack.c.l.b16 %v74
  %v158 = vunpack.c.h.b16 %v74
  %v159 = vunpack.c.l.b16 %v75
  %v160 = vunpack.c.h.b16 %v75
  %v161 = vunpack.c.l.b16 %v76
  %v162 = vunpack.c.h.b16 %v76
  %v163 = vunpack.c.l.b16 %v77
  %v164 = vunpack.c.h.b16 %v77
  %v165 = vunpack.c.l.b16 %v78
  %v166 = vunpack.c.h.b16 %v78
  %v167 = vunpack.c.l.b16 %v79
  %v168 = vunpack.c.h.b16 %v79
  %v169 = vunpack.c.l.b16 %v80
  %v170 = vunpack.c.h.b16 %v80
  %v171 = vunpack.c.l.b16 %v81
  %v172 = vunpack.c.h.b16 %v81
  %v173 = vunpack.c.l.b16 %v82
  %v174 = vunpack.c.h.b16 %v82
  %v175 = vunpack.c.l.b16 %v83
  %v176 = vunpack.c.h.b16 %v83
  %v177 = vunpack.c.l.b16 %v84
  %v178 = vunpack.c.h.b16 %v84
  %v179 = vunpack.c.l.b16 %v85
  %v180 = vunpack.c.h.b16 %v85
  %v181 = vunpack.c.l.b16 %v86
  %v182 = vunpack.c.h.b16 %v86
  %v183 = vunpack.c.l.b16 %v87
  %v184 = vunpack.c.h.b16 %v87
  %v185 = vunpack.c.l.b16 %v88
  %v186 = vunpack.c.h.b16 %v88
  %v187 = vunpack.c.l.b16 %v89
  %v188 = vunpack.c.h.b16 %v89
  %v189 = vunpack.c.l.b16 %v90
  %v190 = vunpack.c.h.b16 %v90
  %v191 = vunpack.c.l.b16 %v91
  %v192 = vunpack.c.h.b16 %v91
  %v193 = vunpack.c.l.b16 %v92
  %v194 = vunpack.c.h.b16 %v92
  %v195 = vunpack.c.l.b16 %v93
  %v196 = vunpack.c.h.b16 %v93
  %v197 = vunpack.c.l.b16 %v94
  %v198 = vunpack.c.h.b16 %v94
  %v199 = vunpack.c.l.b16 %v95
  %v200 = vunpack.c.h.b16 %v95
  %v201 = vunpack.c.l.b16 %v96
  %v202 = vunpack.c.h.b16 %v96
  %v203 = vunpack.c.l.b16 %v97
  %v204 = vunpack.c.h.b16 %v97
  %v205 = vunpack.c.l.b16 %v98
  %v206 = vunpack.c.h.b16 %v98
  %v207 = vunpack.c.l.b16 %v99
  %v208 = vunpack.c.h.b16 %v99
  %v209 = vunpack.c.l.b16 %v100
  %v210 = vunpack.c.h.b16 %v100
  %v211 = vunpack.c.l.b16 %v101
  %v212 = vunpack.c.h.b16 %v101
  %v213 = vunpack.c.l.b16 %v102
  %v214 = vunpack.c.h.b16 %v102
  %v215 = vunpack.c.l.b16 %v103
  %v216 = vunpack.c.h.b16 %v103
  %v217 = vunpack.c.l.b16 %v104
  %v218 = vunpack.c.h.b16 %v104
  %v219 = vpack.c.b16 %v159, %v155
  %v220 = vpack.c.b16 %v160, %v156
  %v221 = vpack.c.b16 %v161, %v157
  %v222 = vpack.c.b16 %v162, %v158
  %v223 = vpack.c.b16 %v167, %v163
  %v224 = vpack.c.b16 %v168, %v164
  %v225 = vpack.c.b16 %v169, %v165
  %v226 = vpack.c.b16 %v170, %v166
  %v227 = vpack.c.b16 %v175, %v171
  %v228 = vpack.c.b16 %v176, %v172
  %v229 = vpack.c.b16 %v177, %v173
  %v230 = vpack.c.b16 %v178, %v174
  %v231 = vpack.c.b16 %v183, %v179
  %v232 = vpack.c.b16 %v184, %v180
  %v233 = vpack.c.b16 %v185, %v181
  %v234 = vpack.c.b16 %v186, %v182
  %v235 = vpack.c.b16 %v191, %v187
  %v236 = vpack.c.b16 %v192, %v188
  %v237 = vpack.c.b16 %v193, %v189
  %v238 = vpack.c.b16 %v194, %v190
  %v239 = vpack.c.b16 %v199, %v195
  %v240 = vpack.c.b16 %v200, %v196
  %v241 = vpack.c.b16 %v201, %v197
  %v242 = vpack.c.b16 %v202, %v198
  %v243 = vpack.c.b16 %v207, %v203
  %v244 = vpack.c.b16 %v208, %v204
  %v245 = vpack.c.b16 %v209, %v205
  %v246 = vpack.c.b16 %v210, %v206
  %v247 = vpack.c.b16 %v215, %v211
  %v248 = vpack.c.b16 %v216, %v212
  %v249 = vpack.c.b16 %v217, %v213
  %v250 = vpack.c.b16 %v218, %v214
  %283 = vmatprep.subr.bf16.mxu0 %v220
  %284 = vmatpush1.bf16.msra.mxu0 %v219
  %285 = vmatprep.subr.bf16.mxu0 %v224
  %286 = vmatpush1.bf16.msra.mxu0 %v223
  %287 = vmatprep.subr.bf16.mxu0 %v228
  %288 = vmatpush1.bf16.msra.mxu0 %v227
  %289 = vmatprep.subr.bf16.mxu0 %v232
  %290 = vmatpush1.bf16.msra.mxu0 %v231
  %291 = vmatprep.subr.bf16.mxu0 %v236
  %292 = vmatpush1.bf16.msra.mxu0 %v235
  %293 = vmatprep.subr.bf16.mxu0 %v240
  %294 = vmatpush1.bf16.msra.mxu0 %v239
  %295 = vmatprep.subr.bf16.mxu0 %v244
  %296 = vmatpush1.bf16.msra.mxu0 %v243
  %297 = vmatprep.subr.bf16.mxu0 %v248
  %298 = vmatpush1.bf16.msra.mxu0 %v247
  %299 = vmatprep.subr.bf16.mxu0 0
  %300 = vmatpush1.bf16.msra.mxu0 0
  %301 = vmatprep.subr.bf16.mxu0 0
  %302 = vmatpush1.bf16.msra.mxu0 0
  %303 = vmatprep.subr.bf16.mxu0 0
  %304 = vmatpush1.bf16.msra.mxu0 0
  %305 = vmatprep.subr.bf16.mxu0 0
  %306 = vmatpush1.bf16.msra.mxu0 0
  %307 = vmatprep.subr.bf16.mxu0 0
  %308 = vmatpush1.bf16.msra.mxu0 0
  %309 = vmatprep.subr.bf16.mxu0 0
  %310 = vmatpush1.bf16.msra.mxu0 0
  %311 = vmatprep.subr.bf16.mxu0 0
  %312 = vmatpush1.bf16.msra.mxu0 0
  %313 = vmatprep.subr.bf16.mxu0 0
  %314 = vmatpush1.bf16.msra.mxu0 0
  %315 = vmatprep.mubr.bf16.mxu0 0
  %316 = vmatmul.mubr.bf16.gmra.mrb[0].mxu0 %v117
  %v317 = vpop.f32.mrb[0].mxu0
  %v318 = vadd.f32 0.0, %v317
  %v319 = vpop.f32.mrb[0].mxu0
  %v320 = vadd.f32 0.0, %v319
  %v321 = vpop.f32.mrb[0].mxu0
  %v322 = vadd.f32 0.0, %v321
  %v323 = vpop.f32.mrb[0].mxu0
  %v324 = vadd.f32 0.0, %v323
  %325 = vmatprep.mubr.bf16.mxu0 0
  %326 = vmatmul.mubr.bf16.gmra.mrb[0].mxu0 %v118
  %v327 = vpop.f32.mrb[0].mxu0
  %v328 = vadd.f32 0.0, %v327
  %v329 = vpop.f32.mrb[0].mxu0
  %v330 = vadd.f32 0.0, %v329
  %v331 = vpop.f32.mrb[0].mxu0
  %v332 = vadd.f32 0.0, %v331
  %v333 = vpop.f32.mrb[0].mxu0
  %v334 = vadd.f32 0.0, %v333
  %335 = vmatprep.mubr.bf16.mxu0 0
  %336 = vmatmul.mubr.bf16.gmra.mrb[0].mxu0 %v119
  %v337 = vpop.f32.mrb[0].mxu0
  %v338 = vadd.f32 0.0, %v337
  %v339 = vpop.f32.mrb[0].mxu0
  %v340 = vadd.f32 0.0, %v339
  %v341 = vpop.f32.mrb[0].mxu0
  %v342 = vadd.f32 0.0, %v341
  %v343 = vpop.f32.mrb[0].mxu0
  %v344 = vadd.f32 0.0, %v343
  %345 = vdwg.mxu0
  %346 = vmatprep.subr.bf16.mxu0 %v222
  %347 = vmatpush1.bf16.msra.mxu0 %v221
  %348 = vmatprep.subr.bf16.mxu0 %v226
  %349 = vmatpush1.bf16.msra.mxu0 %v225
  %350 = vmatprep.subr.bf16.mxu0 %v230
  %351 = vmatpush1.bf16.msra.mxu0 %v229
  %352 = vmatprep.subr.bf16.mxu0 %v234
  %353 = vmatpush1.bf16.msra.mxu0 %v233
  %354 = vmatprep.subr.bf16.mxu0 %v238
  %355 = vmatpush1.bf16.msra.mxu0 %v237
  %356 = vmatprep.subr.bf16.mxu0 %v242
  %357 = vmatpush1.bf16.msra.mxu0 %v241
  %358 = vmatprep.subr.bf16.mxu0 %v246
  %359 = vmatpush1.bf16.msra.mxu0 %v245
  %360 = vmatprep.subr.bf16.mxu0 %v250
  %361 = vmatpush1.bf16.msra.mxu0 %v249
  %362 = vmatprep.subr.bf16.mxu0 0
  %363 = vmatpush1.bf16.msra.mxu0 0
  %364 = vmatprep.subr.bf16.mxu0 0
  %365 = vmatpush1.bf16.msra.mxu0 0
  %366 = vmatprep.subr.bf16.mxu0 0
  %367 = vmatpush1.bf16.msra.mxu0 0
  %368 = vmatprep.subr.bf16.mxu0 0
  %369 = vmatpush1.bf16.msra.mxu0 0
  %370 = vmatprep.subr.bf16.mxu0 0
  %371 = vmatpush1.bf16.msra.mxu0 0
  %372 = vmatprep.subr.bf16.mxu0 0
  %373 = vmatpush1.bf16.msra.mxu0 0
  %374 = vmatprep.subr.bf16.mxu0 0
  %375 = vmatpush1.bf16.msra.mxu0 0
  %376 = vmatprep.subr.bf16.mxu0 0
  %377 = vmatpush1.bf16.msra.mxu0 0
  %378 = vmatprep.mubr.bf16.mxu0 0
  %379 = vmatmul.mubr.bf16.gmra.mrb[0].mxu0 %v117
  %v380 = vpop.f32.mrb[0].mxu0
  %v381 = vadd.f32 0.0, %v380
  %v382 = vpop.f32.mrb[0].mxu0
  %v383 = vadd.f32 0.0, %v382
  %v384 = vpop.f32.mrb[0].mxu0
  %v385 = vadd.f32 0.0, %v384
  %v386 = vpop.f32.mrb[0].mxu0
  %v387 = vadd.f32 0.0, %v386
  %388 = vmatprep.mubr.bf16.mxu0 0
  %389 = vmatmul.mubr.bf16.gmra.mrb[0].mxu0 %v118
  %v390 = vpop.f32.mrb[0].mxu0
  %v391 = vadd.f32 0.0, %v390
  %v392 = vpop.f32.mrb[0].mxu0
  %v393 = vadd.f32 0.0, %v392
  %v394 = vpop.f32.mrb[0].mxu0
  %v395 = vadd.f32 0.0, %v394
  %v396 = vpop.f32.mrb[0].mxu0
  %v397 = vadd.f32 0.0, %v396
  %398 = vmatprep.mubr.bf16.mxu0 0
  %399 = vmatmul.mubr.bf16.gmra.mrb[0].mxu0 %v119
  %v400 = vpop.f32.mrb[0].mxu0
  %v401 = vadd.f32 0.0, %v400
  %v402 = vpop.f32.mrb[0].mxu0
  %v403 = vadd.f32 0.0, %v402
  %v404 = vpop.f32.mrb[0].mxu0
  %v405 = vadd.f32 0.0, %v404
  %v406 = vpop.f32.mrb[0].mxu0
  %v407 = vadd.f32 0.0, %v406
  %408 = vdwg.mxu0
  %v409 = vadd.f32 %v43, %v318
  %v410 = vadd.f32 %v44, %v320
  %v411 = vadd.f32 %v45, %v381
  %v412 = vadd.f32 %v46, %v383
  %v413 = vadd.f32 %v47, %v322
  %v414 = vadd.f32 %v48, %v324
  %v415 = vadd.f32 %v49, %v385
  %v416 = vadd.f32 %v50, %v387
  %v417 = vadd.f32 %v51, %v328
  %v418 = vadd.f32 %v52, %v330
  %v419 = vadd.f32 %v53, %v391
  %v420 = vadd.f32 %v54, %v393
  %v421 = vadd.f32 %v55, %v332
  %v422 = vadd.f32 %v56, %v334
  %v423 = vadd.f32 %v57, %v395
  %v424 = vadd.f32 %v58, %v397
  %v425 = vadd.f32 %v59, %v338
  %v426 = vadd.f32 %v60, %v340
  %v427 = vadd.f32 %v61, %v401
  %v428 = vadd.f32 %v62, %v403
  %v429 = vadd.f32 %v63, %v342
  %v430 = vadd.f32 %v64, %v344
  %v431 = vadd.f32 %v65, %v405
  %v432 = vadd.f32 %v66, %v407
  %433 = vst [vmem:[#allocation2] sm:$0xff] %v409
  %434 = vst [vmem:[#allocation2 + $0x8] sm:$0xff] %v410
  %435 = vst [vmem:[#allocation2 + $0x10] sm:$0xff] %v411
  %436 = vst [vmem:[#allocation2 + $0x18] sm:$0xff] %v412
  %437 = vst [vmem:[#allocation2 + $0x20] sm:$0xff] %v413
  %438 = vst [vmem:[#allocation2 + $0x28] sm:$0xff] %v414
  %439 = vst [vmem:[#allocation2 + $0x30] sm:$0xff] %v415
  %440 = vst [vmem:[#allocation2 + $0x38] sm:$0xff] %v416
  %441 = vst [vmem:[#allocation2 + $0x40] sm:$0xff] %v417
  %442 = vst [vmem:[#allocation2 + $0x48] sm:$0xff] %v418
  %443 = vst [vmem:[#allocation2 + $0x50] sm:$0xff] %v419
  %444 = vst [vmem:[#allocation2 + $0x58] sm:$0xff] %v420
  %445 = vst [vmem:[#allocation2 + $0x60] sm:$0xff] %v421
  %446 = vst [vmem:[#allocation2 + $0x68] sm:$0xff] %v422
  %447 = vst [vmem:[#allocation2 + $0x70] sm:$0xff] %v423
  %448 = vst [vmem:[#allocation2 + $0x78] sm:$0xff] %v424
  %449 = vst [vmem:[#allocation2 + $0x80] sm:$0xff] %v425
  %450 = vst [vmem:[#allocation2 + $0x88] sm:$0xff] %v426
  %451 = vst [vmem:[#allocation2 + $0x90] sm:$0xff] %v427
  %452 = vst [vmem:[#allocation2 + $0x98] sm:$0xff] %v428
  %453 = vst [vmem:[#allocation2 + $0xa0] sm:$0xff] %v429
  %454 = vst [vmem:[#allocation2 + $0xa8] sm:$0xff] %v430
  %455 = vst [vmem:[#allocation2 + $0xb0] sm:$0xff] %v431
  %456 = vst [vmem:[#allocation2 + $0xb8] sm:$0xff] %v432
  // Predicated region
  $region18: #{flux_forward.21} parent=0 // pred_check
    %p457 = pneg %p15
  $region19: #{flux_forward.21} parent=0 // pred_check_branch
    %459 = sbr.rel (%p457) target = $region21
  $region20: #{flux_forward.21} parent=0 // pred_region
    %v460 = vld [vmem:[#allocation2] sm:$0xff]
    %v461 = vld [vmem:[#allocation2 + $0x8] sm:$0xff]
    %v462 = vld [vmem:[#allocation2 + $0x10] sm:$0xff]
    %v463 = vld [vmem:[#allocation2 + $0x18] sm:$0xff]
    %v464 = vld [vmem:[#allocation2 + $0x20] sm:$0xff]
    %v465 = vld [vmem:[#allocation2 + $0x28] sm:$0xff]
    %v466 = vld [vmem:[#allocation2 + $0x30] sm:$0xff]
    %v467 = vld [vmem:[#allocation2 + $0x38] sm:$0xff]
    %v468 = vld [vmem:[#allocation2 + $0x40] sm:$0xff]
    %v469 = vld [vmem:[#allocation2 + $0x48] sm:$0xff]
    %v470 = vld [vmem:[#allocation2 + $0x50] sm:$0xff]
    %v471 = vld [vmem:[#allocation2 + $0x58] sm:$0xff]
    %v472 = vld [vmem:[#allocation2 + $0x60] sm:$0xff]
    %v473 = vld [vmem:[#allocation2 + $0x68] sm:$0xff]
    %v474 = vld [vmem:[#allocation2 + $0x70] sm:$0xff]
    %v475 = vld [vmem:[#allocation2 + $0x78] sm:$0xff]
    %v476 = vld [vmem:[#allocation2 + $0x80] sm:$0xff]
    %v477 = vld [vmem:[#allocation2 + $0x88] sm:$0xff]
    %v478 = vld [vmem:[#allocation2 + $0x90] sm:$0xff]
    %v479 = vld [vmem:[#allocation2 + $0x98] sm:$0xff]
    %v480 = vld [vmem:[#allocation2 + $0xa0] sm:$0xff]
    %v481 = vld [vmem:[#allocation2 + $0xa8] sm:$0xff]
    %v482 = vld [vmem:[#allocation2 + $0xb0] sm:$0xff]
    %v483 = vld [vmem:[#allocation2 + $0xb8] sm:$0xff]
    %v484 = vld [vmem:[%s2] sm:$0xf]
    %v486 = vlaneseq
    %v487 = vshrl.u32 %v486, 7
    %v488 = vsub.s32 0, %v487
    %v489 = vrot.slane %v484, %v488
    %v490 = vlaneseq
    %v491 = vshrl.u32 %v490, 7
    %v492 = vsub.s32 1, %v491
    %v493 = vrot.slane %v484, %v492
    %v494 = vlaneseq
    %v495 = vshrl.u32 %v494, 7
    %v496 = vsub.s32 2, %v495
    %v497 = vrot.slane %v484, %v496
    %v498 = vlaneseq
    %v499 = vshrl.u32 %v498, 7
    %v500 = vsub.s32 3, %v499
    %v501 = vrot.slane %v484, %v500
    %v506 = vadd.f32 %v460, %v489
    %v507 = vadd.f32 %v461, %v493
    %v508 = vadd.f32 %v462, %v497
    %v509 = vadd.f32 %v463, %v501
    %v510 = vadd.f32 %v464, %v489
    %v511 = vadd.f32 %v465, %v493
    %v512 = vadd.f32 %v466, %v497
    %v513 = vadd.f32 %v467, %v501
    %v514 = vadd.f32 %v468, %v489
    %v515 = vadd.f32 %v469, %v493
    %v516 = vadd.f32 %v470, %v497
    %v517 = vadd.f32 %v471, %v501
    %v518 = vadd.f32 %v472, %v489
    %v519 = vadd.f32 %v473, %v493
    %v520 = vadd.f32 %v474, %v497
    %v521 = vadd.f32 %v475, %v501
    %v522 = vadd.f32 %v476, %v489
    %v523 = vadd.f32 %v477, %v493
    %v524 = vadd.f32 %v478, %v497
    %v525 = vadd.f32 %v479, %v501
    %v526 = vadd.f32 %v480, %v489
    %v527 = vadd.f32 %v481, %v493
    %v528 = vadd.f32 %v482, %v497
    %v529 = vadd.f32 %v483, %v501
    %v530 = vmul.f32 %v506, %v506
    %v531 = vmul.f32 %v507, %v507
    %v532 = vmul.f32 %v508, %v508
    %v533 = vmul.f32 %v509, %v509
    %v534 = vmul.f32 %v510, %v510
    %v535 = vmul.f32 %v511, %v511
    %v536 = vmul.f32 %v512, %v512
    %v537 = vmul.f32 %v513, %v513
    %v538 = vmul.f32 %v514, %v514
    %v539 = vmul.f32 %v515, %v515
    %v540 = vmul.f32 %v516, %v516
    %v541 = vmul.f32 %v517, %v517
    %v542 = vmul.f32 %v518, %v518
    %v543 = vmul.f32 %v519, %v519
    %v544 = vmul.f32 %v520, %v520
    %v545 = vmul.f32 %v521, %v521
    %v546 = vmul.f32 %v522, %v522
    %v547 = vmul.f32 %v523, %v523
    %v548 = vmul.f32 %v524, %v524
    %v549 = vmul.f32 %v525, %v525
    %v550 = vmul.f32 %v526, %v526
    %v551 = vmul.f32 %v527, %v527
    %v552 = vmul.f32 %v528, %v528
    %v553 = vmul.f32 %v529, %v529
    %v554 = vmul.f32 %v506, %v530
    %v555 = vmul.f32 %v507, %v531
    %v556 = vmul.f32 %v508, %v532
    %v557 = vmul.f32 %v509, %v533
    %v558 = vmul.f32 %v510, %v534
    %v559 = vmul.f32 %v511, %v535
    %v560 = vmul.f32 %v512, %v536
    %v561 = vmul.f32 %v513, %v537
    %v562 = vmul.f32 %v514, %v538
    %v563 = vmul.f32 %v515, %v539
    %v564 = vmul.f32 %v516, %v540
    %v565 = vmul.f32 %v517, %v541
    %v566 = vmul.f32 %v518, %v542
    %v567 = vmul.f32 %v519, %v543
    %v568 = vmul.f32 %v520, %v544
    %v569 = vmul.f32 %v521, %v545
    %v570 = vmul.f32 %v522, %v546
    %v571 = vmul.f32 %v523, %v547
    %v572 = vmul.f32 %v524, %v548
    %v573 = vmul.f32 %v525, %v549
    %v574 = vmul.f32 %v526, %v550
    %v575 = vmul.f32 %v527, %v551
    %v576 = vmul.f32 %v528, %v552
    %v577 = vmul.f32 %v529, %v553
    %v578 = vmul.f32 %v554, 0.044715
    %v579 = vmul.f32 %v555, 0.044715
    %v580 = vmul.f32 %v556, 0.044715
    %v581 = vmul.f32 %v557, 0.044715
    %v582 = vmul.f32 %v558, 0.044715
    %v583 = vmul.f32 %v559, 0.044715
    %v584 = vmul.f32 %v560, 0.044715
    %v585 = vmul.f32 %v561, 0.044715
    %v586 = vmul.f32 %v562, 0.044715
    %v587 = vmul.f32 %v563, 0.044715
    %v588 = vmul.f32 %v564, 0.044715
    %v589 = vmul.f32 %v565, 0.044715
    %v590 = vmul.f32 %v566, 0.044715
    %v591 = vmul.f32 %v567, 0.044715
    %v592 = vmul.f32 %v568, 0.044715
    %v593 = vmul.f32 %v569, 0.044715
    %v594 = vmul.f32 %v570, 0.044715
    %v595 = vmul.f32 %v571, 0.044715
    %v596 = vmul.f32 %v572, 0.044715
    %v597 = vmul.f32 %v573, 0.044715
    %v598 = vmul.f32 %v574, 0.044715
    %v599 = vmul.f32 %v575, 0.044715
    %v600 = vmul.f32 %v576, 0.044715
    %v601 = vmul.f32 %v577, 0.044715
    %v602 = vadd.f32 %v506, %v578
    %v603 = vadd.f32 %v507, %v579
    %v604 = vadd.f32 %v508, %v580
    %v605 = vadd.f32 %v509, %v581
    %v606 = vadd.f32 %v510, %v582
    %v607 = vadd.f32 %v511, %v583
    %v608 = vadd.f32 %v512, %v584
    %v609 = vadd.f32 %v513, %v585
    %v610 = vadd.f32 %v514, %v586
    %v611 = vadd.f32 %v515, %v587
    %v612 = vadd.f32 %v516, %v588
    %v613 = vadd.f32 %v517, %v589
    %v614 = vadd.f32 %v518, %v590
    %v615 = vadd.f32 %v519, %v591
    %v616 = vadd.f32 %v520, %v592
    %v617 = vadd.f32 %v521, %v593
    %v618 = vadd.f32 %v522, %v594
    %v619 = vadd.f32 %v523, %v595
    %v620 = vadd.f32 %v524, %v596
    %v621 = vadd.f32 %v525, %v597
    %v622 = vadd.f32 %v526, %v598
    %v623 = vadd.f32 %v527, %v599
    %v624 = vadd.f32 %v528, %v600
    %v625 = vadd.f32 %v529, %v601
    %v626 = vmul.f32 %v602, 0.7978846
    %v627 = vmul.f32 %v603, 0.7978846
    %v628 = vmul.f32 %v604, 0.7978846
    %v629 = vmul.f32 %v605, 0.7978846
    %v630 = vmul.f32 %v606, 0.7978846
    %v631 = vmul.f32 %v607, 0.7978846
    %v632 = vmul.f32 %v608, 0.7978846
    %v633 = vmul.f32 %v609, 0.7978846
    %v634 = vmul.f32 %v610, 0.7978846
    %v635 = vmul.f32 %v611, 0.7978846
    %v636 = vmul.f32 %v612, 0.7978846
    %v637 = vmul.f32 %v613, 0.7978846
    %v638 = vmul.f32 %v614, 0.7978846
    %v639 = vmul.f32 %v615, 0.7978846
    %v640 = vmul.f32 %v616, 0.7978846
    %v641 = vmul.f32 %v617, 0.7978846
    %v642 = vmul.f32 %v618, 0.7978846
    %v643 = vmul.f32 %v619, 0.7978846
    %v644 = vmul.f32 %v620, 0.7978846
    %v645 = vmul.f32 %v621, 0.7978846
    %v646 = vmul.f32 %v622, 0.7978846
    %v647 = vmul.f32 %v623, 0.7978846
    %v648 = vmul.f32 %v624, 0.7978846
    %v649 = vmul.f32 %v625, 0.7978846
    %v650 = vtanh.pop %v626
    %v651 = vtanh.pop %v627
    %v652 = vtanh.pop %v628
    %v653 = vtanh.pop %v629
    %v654 = vtanh.pop %v630
    %v655 = vtanh.pop %v631
    %v656 = vtanh.pop %v632
    %v657 = vtanh.pop %v633
    %v658 = vtanh.pop %v634
    %v659 = vtanh.pop %v635
    %v660 = vtanh.pop %v636
    %v661 = vtanh.pop %v637
    %v662 = vtanh.pop %v638
    %v663 = vtanh.pop %v639
    %v664 = vtanh.pop %v640
    %v665 = vtanh.pop %v641
    %v666 = vtanh.pop %v642
    %v667 = vtanh.pop %v643
    %v668 = vtanh.pop %v644
    %v669 = vtanh.pop %v645
    %v670 = vtanh.pop %v646
    %v671 = vtanh.pop %v647
    %v672 = vtanh.pop %v648
    %v673 = vtanh.pop %v649
    %v674 = vadd.f32 %v650, 1.0
    %v675 = vadd.f32 %v651, 1.0
    %v676 = vadd.f32 %v652, 1.0
    %v677 = vadd.f32 %v653, 1.0
    %v678 = vadd.f32 %v654, 1.0
    %v679 = vadd.f32 %v655, 1.0
    %v680 = vadd.f32 %v656, 1.0
    %v681 = vadd.f32 %v657, 1.0
    %v682 = vadd.f32 %v658, 1.0
    %v683 = vadd.f32 %v659, 1.0
    %v684 = vadd.f32 %v660, 1.0
    %v685 = vadd.f32 %v661, 1.0
    %v686 = vadd.f32 %v662, 1.0
    %v687 = vadd.f32 %v663, 1.0
    %v688 = vadd.f32 %v664, 1.0
    %v689 = vadd.f32 %v665, 1.0
    %v690 = vadd.f32 %v666, 1.0
    %v691 = vadd.f32 %v667, 1.0
    %v692 = vadd.f32 %v668, 1.0
    %v693 = vadd.f32 %v669, 1.0
    %v694 = vadd.f32 %v670, 1.0
    %v695 = vadd.f32 %v671, 1.0
    %v696 = vadd.f32 %v672, 1.0
    %v697 = vadd.f32 %v673, 1.0
    %v698 = vmul.f32 %v674, 0.5
    %v699 = vmul.f32 %v675, 0.5
    %v700 = vmul.f32 %v676, 0.5
    %v701 = vmul.f32 %v677, 0.5
    %v702 = vmul.f32 %v678, 0.5
    %v703 = vmul.f32 %v679, 0.5
    %v704 = vmul.f32 %v680, 0.5
    %v705 = vmul.f32 %v681, 0.5
    %v706 = vmul.f32 %v682, 0.5
    %v707 = vmul.f32 %v683, 0.5
    %v708 = vmul.f32 %v684, 0.5
    %v709 = vmul.f32 %v685, 0.5
    %v710 = vmul.f32 %v686, 0.5
    %v711 = vmul.f32 %v687, 0.5
    %v712 = vmul.f32 %v688, 0.5
    %v713 = vmul.f32 %v689, 0.5
    %v714 = vmul.f32 %v690, 0.5
    %v715 = vmul.f32 %v691, 0.5
    %v716 = vmul.f32 %v692, 0.5
    %v717 = vmul.f32 %v693, 0.5
    %v718 = vmul.f32 %v694, 0.5
    %v719 = vmul.f32 %v695, 0.5
    %v720 = vmul.f32 %v696, 0.5
    %v721 = vmul.f32 %v697, 0.5
    %v722 = vmul.f32 %v506, %v698
    %v723 = vmul.f32 %v507, %v699
    %v724 = vmul.f32 %v508, %v700
    %v725 = vmul.f32 %v509, %v701
    %v726 = vmul.f32 %v510, %v702
    %v727 = vmul.f32 %v511, %v703
    %v728 = vmul.f32 %v512, %v704
    %v729 = vmul.f32 %v513, %v705
    %v730 = vmul.f32 %v514, %v706
    %v731 = vmul.f32 %v515, %v707
    %v732 = vmul.f32 %v516, %v708
    %v733 = vmul.f32 %v517, %v709
    %v734 = vmul.f32 %v518, %v710
    %v735 = vmul.f32 %v519, %v711
    %v736 = vmul.f32 %v520, %v712
    %v737 = vmul.f32 %v521, %v713
    %v738 = vmul.f32 %v522, %v714
    %v739 = vmul.f32 %v523, %v715
    %v740 = vmul.f32 %v524, %v716
    %v741 = vmul.f32 %v525, %v717
    %v742 = vmul.f32 %v526, %v718
    %v743 = vmul.f32 %v527, %v719
    %v744 = vmul.f32 %v528, %v720
    %v745 = vmul.f32 %v529, %v721
    %v746 = vpack.c.bf16 %v726, %v722
    %v747 = vpack.c.bf16 %v727, %v723
    %v748 = vpack.c.bf16 %v728, %v724
    %v749 = vpack.c.bf16 %v729, %v725
    %v750 = vpack.c.bf16 %v734, %v730
    %v751 = vpack.c.bf16 %v735, %v731
    %v752 = vpack.c.bf16 %v736, %v732
    %v753 = vpack.c.bf16 %v737, %v733
    %v754 = vpack.c.bf16 %v742, %v738
    %v755 = vpack.c.bf16 %v743, %v739
    %v756 = vpack.c.bf16 %v744, %v740
    %v757 = vpack.c.bf16 %v745, %v741
    %v770 = vunpack.c.l.b16 %v746
    %v771 = vunpack.c.l.b16 %v747
    %v772 = vunpack.c.l.b16 %v748
    %v773 = vunpack.c.l.b16 %v749
    %v774 = vunpack.c.h.b16 %v746
    %v775 = vunpack.c.h.b16 %v747
    %v776 = vunpack.c.h.b16 %v748
    %v777 = vunpack.c.h.b16 %v749
    %v778 = vunpack.c.l.b16 %v750
    %v779 = vunpack.c.l.b16 %v751
    %v780 = vunpack.c.l.b16 %v752
    %v781 = vunpack.c.l.b16 %v753
    %v782 = vunpack.c.h.b16 %v750
    %v783 = vunpack.c.h.b16 %v751
    %v784 = vunpack.c.h.b16 %v752
    %v785 = vunpack.c.h.b16 %v753
    %v786 = vunpack.c.l.b16 %v754
    %v787 = vunpack.c.l.b16 %v755
    %v788 = vunpack.c.l.b16 %v756
    %v789 = vunpack.c.l.b16 %v757
    %v790 = vunpack.c.h.b16 %v754
    %v791 = vunpack.c.h.b16 %v755
    %v792 = vunpack.c.h.b16 %v756
    %v793 = vunpack.c.h.b16 %v757
    %v794 = vpack.c.b16 %v771, %v770
    %v795 = vpack.c.b16 %v773, %v772
    %v796 = vpack.c.b16 %v775, %v774
    %v797 = vpack.c.b16 %v777, %v776
    %v798 = vpack.c.b16 %v779, %v778
    %v799 = vpack.c.b16 %v781, %v780
    %v800 = vpack.c.b16 %v783, %v782
    %v801 = vpack.c.b16 %v785, %v784
    %v802 = vpack.c.b16 %v787, %v786
    %v803 = vpack.c.b16 %v789, %v788
    %v804 = vpack.c.b16 %v791, %v790
    %v805 = vpack.c.b16 %v793, %v792
    %818 = vst [vmem:[%s3] sm:$0xff] %v794
    %819 = vst [vmem:[%s3 + $0x8] sm:$0xff] %v795
    %820 = vst [vmem:[%s3 + $0x10] sm:$0xff] %v796
    %821 = vst [vmem:[%s3 + $0x18] sm:$0xff] %v797
    %822 = vst [vmem:[%s3 + $0x20] sm:$0xff] %v798
    %823 = vst [vmem:[%s3 + $0x28] sm:$0xff] %v799
    %824 = vst [vmem:[%s3 + $0x30] sm:$0xff] %v800
    %825 = vst [vmem:[%s3 + $0x38] sm:$0xff] %v801
    %826 = vst [vmem:[%s3 + $0x40] sm:$0xff] %v802
    %827 = vst [vmem:[%s3 + $0x48] sm:$0xff] %v803
    %828 = vst [vmem:[%s3 + $0x50] sm:$0xff] %v804
    %829 = vst [vmem:[%s3 + $0x58] sm:$0xff] %v805
  $region21: #{flux_forward.21} parent=0 // pred_fallthru
    _
  // Predicated region
  $region22: #{flux_forward.21} parent=0 // pred_check
    _
  $region23: #{flux_forward.21} parent=0 // pred_check_branch
    %831 = sbr.rel (0) target = $region25
  $region24: #{flux_forward.21} parent=0 // pred_region
    _
  $region25: #{flux_forward.21} parent=0 // pred_fallthru
    _
  // Predicated region
  $region26: #{flux_forward.21} parent=0 // pred_check
    _
  $region27: #{flux_forward.21} parent=0 // pred_check_branch
    %833 = sbr.rel (0) target = $region29
  $region28: #{flux_forward.21} parent=0 // pred_region
    _
  $region29: #{flux_forward.21} parent=0 // pred_fallthru
    _

// kernel: flux_forward.22
$region0: #{flux_forward.22}
  #allocation0 [shape = 'u32[]', space=smem, size = 0x4, offset = 0x4, fixed_abs, tag = 'smem constant byte address 0x4 - core index']
  #allocation1 [shape = 'u32[144,128]{1,0:T(1,128)}', space=vmem, size = 0x12000, scoped, tag = 'internal scratch']
  #allocation2 [shape = 'f32[48,128]{1,0:T(8,128)}', space=vmem, size = 0x6000, scoped, tag = 'scratch operand']
  %s0 = inlined_call_operand.vmem [shape: bf16[48,512], index: 0, kind: input, shape index: {}]
  %s1 = inlined_call_operand.vmem [shape: bf16[512,128], index: 1, kind: input, shape index: {}]
  %s2 = inlined_call_operand.vmem [shape: f32[1,128], index: 2, kind: input, shape index: {}]
  %s3 = inlined_call_operand.vmem [shape: f32[48,128], index: 3, kind: output, shape index: {}]
  %s4 = sld [smem:[#allocation0]]
  $region30: #{flux_forward.22} parent=0
    _
  %s6 = ssub.s32 1, %s4
  %s7 = scalar_select 0, %s6, %s4
  // Predicated region
  $region2: #{flux_forward.22} parent=0 // pred_check
    _
  $region3: #{flux_forward.22} parent=0 // pred_check_branch
    %9 = sbr.rel (0) target = $region5
  $region4: #{flux_forward.22} parent=0 // pred_region
    _
  $region5: #{flux_forward.22} parent=0 // pred_fallthru
    _
  // Predicated region
  $region6: #{flux_forward.22} parent=0 // pred_check
    _
  $region7: #{flux_forward.22} parent=0 // pred_check_branch
    %11 = sbr.rel (0) target = $region9
  $region8: #{flux_forward.22} parent=0 // pred_region
    _
  $region9: #{flux_forward.22} parent=0 // pred_fallthru
    _
  // Predicated region
  $region10: #{flux_forward.22} parent=0 // pred_check
    _
  $region11: #{flux_forward.22} parent=0 // pred_check_branch
    %13 = sbr.rel (0) target = $region13
  $region12: #{flux_forward.22} parent=0 // pred_region
    _
  $region13: #{flux_forward.22} parent=0 // pred_fallthru
    _
  %p15 = scmp.eq.s32.totalorder 0, 0
  // Predicated region
  $region14: #{flux_forward.22} parent=0 // pred_check
    %p16 = pneg %p15
  $region15: #{flux_forward.22} parent=0 // pred_check_branch
    %18 = sbr.rel (%p16) target = $region17
  $region16: #{flux_forward.22} parent=0 // pred_region
    %19 = vst [vmem:[#allocation2] sm:$0xff] 0.0
    %20 = vst [vmem:[#allocation2 + $0x8] sm:$0xff] 0.0
    %21 = vst [vmem:[#allocation2 + $0x10] sm:$0xff] 0.0
    %22 = vst [vmem:[#allocation2 + $0x18] sm:$0xff] 0.0
    %23 = vst [vmem:[#allocation2 + $0x20] sm:$0xff] 0.0
    %24 = vst [vmem:[#allocation2 + $0x28] sm:$0xff] 0.0
  $region17: #{flux_forward.22} parent=0 // pred_fallthru
    _
  %v25 = vld [vmem:[#allocation2] sm:$0xff]
  %v26 = vld [vmem:[#allocation2 + $0x8] sm:$0xff]
  %v27 = vld [vmem:[#allocation2 + $0x10] sm:$0xff]
  %v28 = vld [vmem:[#allocation2 + $0x18] sm:$0xff]
  %v29 = vld [vmem:[#allocation2 + $0x20] sm:$0xff]
  %v30 = vld [vmem:[#allocation2 + $0x28] sm:$0xff]
  %v31 = vld [vmem:[%s0] sm:$0xff]
  %v32 = vld [vmem:[%s0 + $0x8] sm:$0xff]
  %v33 = vld [vmem:[%s0 + $0x10] sm:$0xff]
  %v34 = vld [vmem:[%s0 + $0x18] sm:$0xff]
  %v35 = vld [vmem:[%s0 + $0x20] sm:$0xff]
  %v36 = vld [vmem:[%s0 + $0x28] sm:$0xff]
  %v37 = vld [vmem:[%s0 + $0x30] sm:$0xff]
  %v38 = vld [vmem:[%s0 + $0x38] sm:$0xff]
  %v39 = vld [vmem:[%s0 + $0x40] sm:$0xff]
  %v40 = vld [vmem:[%s0 + $0x48] sm:$0xff]
  %v41 = vld [vmem:[%s0 + $0x50] sm:$0xff]
  %v42 = vld [vmem:[%s0 + $0x58] sm:$0xff]
  %v43 = vld [vmem:[%s1] sm:$0xf]
  %v44 = vld [vmem:[%s1 + $0x4] sm:$0xf]
  %v45 = vld [vmem:[%s1 + $0x8] sm:$0xf]
  %v46 = vld [vmem:[%s1 + $0xc] sm:$0xf]
  %v47 = vld [vmem:[%s1 + $0x10] sm:$0xf]
  %v48 = vld [vmem:[%s1 + $0x14] sm:$0xf]
  %v49 = vld [vmem:[%s1 + $0x18] sm:$0xf]
  %v50 = vld [vmem:[%s1 + $0x1c] sm:$0xf]
  %v51 = vld [vmem:[%s1 + $0x20] sm:$0xf]
  %v52 = vld [vmem:[%s1 + $0x24] sm:$0xf]
  %v53 = vld [vmem:[%s1 + $0x28] sm:$0xf]
  %v54 = vld [vmem:[%s1 + $0x2c] sm:$0xf]
  %v55 = vld [vmem:[%s1 + $0x30] sm:$0xf]
  %v56 = vld [vmem:[%s1 + $0x34] sm:$0xf]
  %v57 = vld [vmem:[%s1 + $0x38] sm:$0xf]
  %v58 = vld [vmem:[%s1 + $0x3c] sm:$0xf]
  %v59 = vld [vmem:[%s1 + $0x40] sm:$0xf]
  %v60 = vld [vmem:[%s1 + $0x44] sm:$0xf]
  %v61 = vld [vmem:[%s1 + $0x48] sm:$0xf]
  %v62 = vld [vmem:[%s1 + $0x4c] sm:$0xf]
  %v63 = vld [vmem:[%s1 + $0x50] sm:$0xf]
  %v64 = vld [vmem:[%s1 + $0x54] sm:$0xf]
  %v65 = vld [vmem:[%s1 + $0x58] sm:$0xf]
  %v66 = vld [vmem:[%s1 + $0x5c] sm:$0xf]
  %v67 = vld [vmem:[%s1 + $0x60] sm:$0xf]
  %v68 = vld [vmem:[%s1 + $0x64] sm:$0xf]
  %v69 = vld [vmem:[%s1 + $0x68] sm:$0xf]
  %v70 = vld [vmem:[%s1 + $0x6c] sm:$0xf]
  %v71 = vld [vmem:[%s1 + $0x70] sm:$0xf]
  %v72 = vld [vmem:[%s1 + $0x74] sm:$0xf]
  %v73 = vld [vmem:[%s1 + $0x78] sm:$0xf]
  %v74 = vld [vmem:[%s1 + $0x7c] sm:$0xf]
  %v75 = vld [vmem:[%s1 + $0x80] sm:$0xf]
  %v76 = vld [vmem:[%s1 + $0x84] sm:$0xf]
  %v77 = vld [vmem:[%s1 + $0x88] sm:$0xf]
  %v78 = vld [vmem:[%s1 + $0x8c] sm:$0xf]
  %v79 = vld [vmem:[%s1 + $0x90] sm:$0xf]
  %v80 = vld [vmem:[%s1 + $0x94] sm:$0xf]
  %v81 = vld [vmem:[%s1 + $0x98] sm:$0xf]
  %v82 = vld [vmem:[%s1 + $0x9c] sm:$0xf]
  %v83 = vld [vmem:[%s1 + $0xa0] sm:$0xf]
  %v84 = vld [vmem:[%s1 + $0xa4] sm:$0xf]
  %v85 = vld [vmem:[%s1 + $0xa8] sm:$0xf]
  %v86 = vld [vmem:[%s1 + $0xac] sm:$0xf]
  %v87 = vld [vmem:[%s1 + $0xb0] sm:$0xf]
  %v88 = vld [vmem:[%s1 + $0xb4] sm:$0xf]
  %v89 = vld [vmem:[%s1 + $0xb8] sm:$0xf]
  %v90 = vld [vmem:[%s1 + $0xbc] sm:$0xf]
  %v91 = vld [vmem:[%s1 + $0xc0] sm:$0xf]
  %v92 = vld [vmem:[%s1 + $0xc4] sm:$0xf]
  %v93 = vld [vmem:[%s1 + $0xc8] sm:$0xf]
  %v94 = vld [vmem:[%s1 + $0xcc] sm:$0xf]
  %v95 = vld [vmem:[%s1 + $0xd0] sm:$0xf]
  %v96 = vld [vmem:[%s1 + $0xd4] sm:$0xf]
  %v97 = vld [vmem:[%s1 + $0xd8] sm:$0xf]
  %v98 = vld [vmem:[%s1 + $0xdc] sm:$0xf]
  %v99 = vld [vmem:[%s1 + $0xe0] sm:$0xf]
  %v100 = vld [vmem:[%s1 + $0xe4] sm:$0xf]
  %v101 = vld [vmem:[%s1 + $0xe8] sm:$0xf]
  %v102 = vld [vmem:[%s1 + $0xec] sm:$0xf]
  %v103 = vld [vmem:[%s1 + $0xf0] sm:$0xf]
  %v104 = vld [vmem:[%s1 + $0xf4] sm:$0xf]
  %v105 = vld [vmem:[%s1 + $0xf8] sm:$0xf]
  %v106 = vld [vmem:[%s1 + $0xfc] sm:$0xf]
  %v119 = vunpack.c.l.b16 %v31
  %v120 = vunpack.c.h.b16 %v31
  %v121 = vunpack.c.l.b16 %v32
  %v122 = vunpack.c.h.b16 %v32
  %v123 = vunpack.c.l.b16 %v33
  %v124 = vunpack.c.h.b16 %v33
  %v125 = vunpack.c.l.b16 %v34
  %v126 = vunpack.c.h.b16 %v34
  %v127 = vunpack.c.l.b16 %v35
  %v128 = vunpack.c.h.b16 %v35
  %v129 = vunpack.c.l.b16 %v36
  %v130 = vunpack.c.h.b16 %v36
  %v131 = vunpack.c.l.b16 %v37
  %v132 = vunpack.c.h.b16 %v37
  %v133 = vunpack.c.l.b16 %v38
  %v134 = vunpack.c.h.b16 %v38
  %v135 = vunpack.c.l.b16 %v39
  %v136 = vunpack.c.h.b16 %v39
  %v137 = vunpack.c.l.b16 %v40
  %v138 = vunpack.c.h.b16 %v40
  %v139 = vunpack.c.l.b16 %v41
  %v140 = vunpack.c.h.b16 %v41
  %v141 = vunpack.c.l.b16 %v42
  %v142 = vunpack.c.h.b16 %v42
  %v143 = vpack.c.b16 %v123, %v119
  %v144 = vpack.c.b16 %v124, %v120
  %v145 = vpack.c.b16 %v125, %v121
  %v146 = vpack.c.b16 %v126, %v122
  %v147 = vpack.c.b16 %v131, %v127
  %v148 = vpack.c.b16 %v132, %v128
  %v149 = vpack.c.b16 %v133, %v129
  %v150 = vpack.c.b16 %v134, %v130
  %v151 = vpack.c.b16 %v139, %v135
  %v152 = vpack.c.b16 %v140, %v136
  %v153 = vpack.c.b16 %v141, %v137
  %v154 = vpack.c.b16 %v142, %v138
  %v231 = vunpack.c.l.b16 %v43
  %v232 = vunpack.c.l.b16 %v44
  %v233 = vunpack.c.l.b16 %v45
  %v234 = vunpack.c.l.b16 %v46
  %v235 = vunpack.c.l.b16 %v47
  %v236 = vunpack.c.l.b16 %v48
  %v237 = vunpack.c.l.b16 %v49
  %v238 = vunpack.c.l.b16 %v50
  %v239 = vunpack.c.l.b16 %v51
  %v240 = vunpack.c.l.b16 %v52
  %v241 = vunpack.c.l.b16 %v53
  %v242 = vunpack.c.l.b16 %v54
  %v243 = vunpack.c.l.b16 %v55
  %v244 = vunpack.c.l.b16 %v56
  %v245 = vunpack.c.l.b16 %v57
  %v246 = vunpack.c.l.b16 %v58
  %v247 = vunpack.c.l.b16 %v59
  %v248 = vunpack.c.l.b16 %v60
  %v249 = vunpack.c.l.b16 %v61
  %v250 = vunpack.c.l.b16 %v62
  %v251 = vunpack.c.l.b16 %v63
  %v252 = vunpack.c.l.b16 %v64
  %v253 = vunpack.c.l.b16 %v65
  %v254 = vunpack.c.l.b16 %v66
  %v255 = vunpack.c.l.b16 %v67
  %v256 = vunpack.c.l.b16 %v68
  %v257 = vunpack.c.l.b16 %v69
  %v258 = vunpack.c.l.b16 %v70
  %v259 = vunpack.c.l.b16 %v71
  %v260 = vunpack.c.l.b16 %v72
  %v261 = vunpack.c.l.b16 %v73
  %v262 = vunpack.c.l.b16 %v74
  %v263 = vunpack.c.l.b16 %v75
  %v264 = vunpack.c.l.b16 %v76
  %v265 = vunpack.c.l.b16 %v77
  %v266 = vunpack.c.l.b16 %v78
  %v267 = vunpack.c.l.b16 %v79
  %v268 = vunpack.c.l.b16 %v80
  %v269 = vunpack.c.l.b16 %v81
  %v270 = vunpack.c.l.b16 %v82
  %v271 = vunpack.c.l.b16 %v83
  %v272 = vunpack.c.l.b16 %v84
  %v273 = vunpack.c.l.b16 %v85
  %v274 = vunpack.c.l.b16 %v86
  %v275 = vunpack.c.l.b16 %v87
  %v276 = vunpack.c.l.b16 %v88
  %v277 = vunpack.c.l.b16 %v89
  %v278 = vunpack.c.l.b16 %v90
  %v279 = vunpack.c.l.b16 %v91
  %v280 = vunpack.c.l.b16 %v92
  %v281 = vunpack.c.l.b16 %v93
  %v282 = vunpack.c.l.b16 %v94
  %v283 = vunpack.c.l.b16 %v95
  %v284 = vunpack.c.l.b16 %v96
  %v285 = vunpack.c.l.b16 %v97
  %v286 = vunpack.c.l.b16 %v98
  %v287 = vunpack.c.l.b16 %v99
  %v288 = vunpack.c.l.b16 %v100
  %v289 = vunpack.c.l.b16 %v101
  %v290 = vunpack.c.l.b16 %v102
  %v291 = vunpack.c.l.b16 %v103
  %v292 = vunpack.c.l.b16 %v104
  %v293 = vunpack.c.l.b16 %v105
  %v294 = vunpack.c.l.b16 %v106
  %v295 = vpack.c.b16 %v232, %v231
  %v296 = vpack.c.b16 %v234, %v233
  %v297 = vpack.c.b16 %v236, %v235
  %v298 = vpack.c.b16 %v238, %v237
  %v299 = vpack.c.b16 %v240, %v239
  %v300 = vpack.c.b16 %v242, %v241
  %v301 = vpack.c.b16 %v244, %v243
  %v302 = vpack.c.b16 %v246, %v245
  %v303 = vpack.c.b16 %v248, %v247
  %v304 = vpack.c.b16 %v250, %v249
  %v305 = vpack.c.b16 %v252, %v251
  %v306 = vpack.c.b16 %v254, %v253
  %v307 = vpack.c.b16 %v256, %v255
  %v308 = vpack.c.b16 %v258, %v257
  %v309 = vpack.c.b16 %v260, %v259
  %v310 = vpack.c.b16 %v262, %v261
  %v311 = vpack.c.b16 %v264, %v263
  %v312 = vpack.c.b16 %v266, %v265
  %v313 = vpack.c.b16 %v268, %v267
  %v314 = vpack.c.b16 %v270, %v269
  %v315 = vpack.c.b16 %v272, %v271
  %v316 = vpack.c.b16 %v274, %v273
  %v317 = vpack.c.b16 %v276, %v275
  %v318 = vpack.c.b16 %v278, %v277
  %v319 = vpack.c.b16 %v280, %v279
  %v320 = vpack.c.b16 %v282, %v281
  %v321 = vpack.c.b16 %v284, %v283
  %v322 = vpack.c.b16 %v286, %v285
  %v323 = vpack.c.b16 %v288, %v287
  %v324 = vpack.c.b16 %v290, %v289
  %v325 = vpack.c.b16 %v292, %v291
  %v326 = vpack.c.b16 %v294, %v293
  %359 = vmatprep.subr.bf16.mxu0 0
  %360 = vmatpush1.bf16.msra.mxu0 %v295
  %361 = vmatprep.subr.bf16.mxu0 0
  %362 = vmatpush1.bf16.msra.mxu0 %v296
  %363 = vmatprep.subr.bf16.mxu0 0
  %364 = vmatpush1.bf16.msra.mxu0 %v297
  %365 = vmatprep.subr.bf16.mxu0 0
  %366 = vmatpush1.bf16.msra.mxu0 %v298
  %367 = vmatprep.subr.bf16.mxu0 0
  %368 = vmatpush1.bf16.msra.mxu0 %v299
  %369 = vmatprep.subr.bf16.mxu0 0
  %370 = vmatpush1.bf16.msra.mxu0 %v300
  %371 = vmatprep.subr.bf16.mxu0 0
  %372 = vmatpush1.bf16.msra.mxu0 %v301
  %373 = vmatprep.subr.bf16.mxu0 0
  %374 = vmatpush1.bf16.msra.mxu0 %v302
  %375 = vmatprep.subr.bf16.mxu0 0
  %376 = vmatpush1.bf16.msra.mxu0 %v303
  %377 = vmatprep.subr.bf16.mxu0 0
  %378 = vmatpush1.bf16.msra.mxu0 %v304
  %379 = vmatprep.subr.bf16.mxu0 0
  %380 = vmatpush1.bf16.msra.mxu0 %v305
  %381 = vmatprep.subr.bf16.mxu0 0
  %382 = vmatpush1.bf16.msra.mxu0 %v306
  %383 = vmatprep.subr.bf16.mxu0 0
  %384 = vmatpush1.bf16.msra.mxu0 %v307
  %385 = vmatprep.subr.bf16.mxu0 0
  %386 = vmatpush1.bf16.msra.mxu0 %v308
  %387 = vmatprep.subr.bf16.mxu0 0
  %388 = vmatpush1.bf16.msra.mxu0 %v309
  %389 = vmatprep.subr.bf16.mxu0 0
  %390 = vmatpush1.bf16.msra.mxu0 %v310
  %391 = vmatprep.mubr.bf16.mxu0 %v144
  %392 = vmatmul.mubr.bf16.gmra.mrb[0].mxu0 %v143
  %v393 = vpop.f32.mrb[0].mxu0
  %v394 = vadd.f32 0.0, %v393
  %v395 = vpop.f32.mrb[0].mxu0
  %v396 = vpop.f32.mrb[0].mxu0
  %v397 = vadd.f32 0.0, %v396
  %v398 = vpop.f32.mrb[0].mxu0
  %399 = vmatprep.mubr.bf16.mxu0 %v148
  %400 = vmatmul.mubr.bf16.gmra.mrb[0].mxu0 %v147
  %v401 = vpop.f32.mrb[0].mxu0
  %v402 = vadd.f32 0.0, %v401
  %v403 = vpop.f32.mrb[0].mxu0
  %v404 = vpop.f32.mrb[0].mxu0
  %v405 = vadd.f32 0.0, %v404
  %v406 = vpop.f32.mrb[0].mxu0
  %407 = vmatprep.mubr.bf16.mxu0 %v152
  %408 = vmatmul.mubr.bf16.gmra.mrb[0].mxu0 %v151
  %v409 = vpop.f32.mrb[0].mxu0
  %v410 = vadd.f32 0.0, %v409
  %v411 = vpop.f32.mrb[0].mxu0
  %v412 = vpop.f32.mrb[0].mxu0
  %v413 = vadd.f32 0.0, %v412
  %v414 = vpop.f32.mrb[0].mxu0
  %415 = vdwg.mxu0
  %416 = vmatprep.subr.bf16.mxu0 0
  %417 = vmatpush1.bf16.msra.mxu0 %v311
  %418 = vmatprep.subr.bf16.mxu0 0
  %419 = vmatpush1.bf16.msra.mxu0 %v312
  %420 = vmatprep.subr.bf16.mxu0 0
  %421 = vmatpush1.bf16.msra.mxu0 %v313
  %422 = vmatprep.subr.bf16.mxu0 0
  %423 = vmatpush1.bf16.msra.mxu0 %v314
  %424 = vmatprep.subr.bf16.mxu0 0
  %425 = vmatpush1.bf16.msra.mxu0 %v315
  %426 = vmatprep.subr.bf16.mxu0 0
  %427 = vmatpush1.bf16.msra.mxu0 %v316
  %428 = vmatprep.subr.bf16.mxu0 0
  %429 = vmatpush1.bf16.msra.mxu0 %v317
  %430 = vmatprep.subr.bf16.mxu0 0
  %431 = vmatpush1.bf16.msra.mxu0 %v318
  %432 = vmatprep.subr.bf16.mxu0 0
  %433 = vmatpush1.bf16.msra.mxu0 %v319
  %434 = vmatprep.subr.bf16.mxu0 0
  %435 = vmatpush1.bf16.msra.mxu0 %v320
  %436 = vmatprep.subr.bf16.mxu0 0
  %437 = vmatpush1.bf16.msra.mxu0 %v321
  %438 = vmatprep.subr.bf16.mxu0 0
  %439 = vmatpush1.bf16.msra.mxu0 %v322
  %440 = vmatprep.subr.bf16.mxu0 0
  %441 = vmatpush1.bf16.msra.mxu0 %v323
  %442 = vmatprep.subr.bf16.mxu0 0
  %443 = vmatpush1.bf16.msra.mxu0 %v324
  %444 = vmatprep.subr.bf16.mxu0 0
  %445 = vmatpush1.bf16.msra.mxu0 %v325
  %446 = vmatprep.subr.bf16.mxu0 0
  %447 = vmatpush1.bf16.msra.mxu0 %v326
  %448 = vmatprep.mubr.bf16.mxu0 %v146
  %449 = vmatmul.mubr.bf16.gmra.mrb[0].mxu0 %v145
  %v450 = vpop.f32.mrb[0].mxu0
  %v451 = vadd.f32 %v394, %v450
  %v452 = vpop.f32.mrb[0].mxu0
  %v453 = vpop.f32.mrb[0].mxu0
  %v454 = vadd.f32 %v397, %v453
  %v455 = vpop.f32.mrb[0].mxu0
  %456 = vmatprep.mubr.bf16.mxu0 %v150
  %457 = vmatmul.mubr.bf16.gmra.mrb[0].mxu0 %v149
  %v458 = vpop.f32.mrb[0].mxu0
  %v459 = vadd.f32 %v402, %v458
  %v460 = vpop.f32.mrb[0].mxu0
  %v461 = vpop.f32.mrb[0].mxu0
  %v462 = vadd.f32 %v405, %v461
  %v463 = vpop.f32.mrb[0].mxu0
  %464 = vmatprep.mubr.bf16.mxu0 %v154
  %465 = vmatmul.mubr.bf16.gmra.mrb[0].mxu0 %v153
  %v466 = vpop.f32.mrb[0].mxu0
  %v467 = vadd.f32 %v410, %v466
  %v468 = vpop.f32.mrb[0].mxu0
  %v469 = vpop.f32.mrb[0].mxu0
  %v470 = vadd.f32 %v413, %v469
  %v471 = vpop.f32.mrb[0].mxu0
  %472 = vdwg.mxu0
  %v473 = vadd.f32 %v25, %v451
  %v474 = vadd.f32 %v26, %v454
  %v475 = vadd.f32 %v27, %v459
  %v476 = vadd.f32 %v28, %v462
  %v477 = vadd.f32 %v29, %v467
  %v478 = vadd.f32 %v30, %v470
  %479 = vst [vmem:[#allocation2] sm:$0xff] %v473
  %480 = vst [vmem:[#allocation2 + $0x8] sm:$0xff] %v474
  %481 = vst [vmem:[#allocation2 + $0x10] sm:$0xff] %v475
  %482 = vst [vmem:[#allocation2 + $0x18] sm:$0xff] %v476
  %483 = vst [vmem:[#allocation2 + $0x20] sm:$0xff] %v477
  %484 = vst [vmem:[#allocation2 + $0x28] sm:$0xff] %v478
  // Predicated region
  $region18: #{flux_forward.22} parent=0 // pred_check
    %p485 = pneg %p15
  $region19: #{flux_forward.22} parent=0 // pred_check_branch
    %487 = sbr.rel (%p485) target = $region21
  $region20: #{flux_forward.22} parent=0 // pred_region
    %v488 = vld [vmem:[#allocation2] sm:$0xff]
    %v489 = vld [vmem:[#allocation2 + $0x8] sm:$0xff]
    %v490 = vld [vmem:[#allocation2 + $0x10] sm:$0xff]
    %v491 = vld [vmem:[#allocation2 + $0x18] sm:$0xff]
    %v492 = vld [vmem:[#allocation2 + $0x20] sm:$0xff]
    %v493 = vld [vmem:[#allocation2 + $0x28] sm:$0xff]
    %v494 = vld [vmem:[%s2] sm:$0x1]
    %v496 = vlaneseq
    %v497 = vshrl.u32 %v496, 7
    %v498 = vsub.s32 0, %v497
    %v499 = vrot.slane %v494, %v498
    %v501 = vadd.f32 %v488, %v499
    %v502 = vadd.f32 %v489, %v499
    %v503 = vadd.f32 %v490, %v499
    %v504 = vadd.f32 %v491, %v499
    %v505 = vadd.f32 %v492, %v499
    %v506 = vadd.f32 %v493, %v499
    %507 = vst [vmem:[%s3] sm:$0xff] %v501
    %508 = vst [vmem:[%s3 + $0x8] sm:$0xff] %v502
    %509 = vst [vmem:[%s3 + $0x10] sm:$0xff] %v503
    %510 = vst [vmem:[%s3 + $0x18] sm:$0xff] %v504
    %511 = vst [vmem:[%s3 + $0x20] sm:$0xff] %v505
    %512 = vst [vmem:[%s3 + $0x28] sm:$0xff] %v506
  $region21: #{flux_forward.22} parent=0 // pred_fallthru
    _
  // Predicated region
  $region22: #{flux_forward.22} parent=0 // pred_check
    _
  $region23: #{flux_forward.22} parent=0 // pred_check_branch
    %514 = sbr.rel (0) target = $region25
  $region24: #{flux_forward.22} parent=0 // pred_region
    _
  $region25: #{flux_forward.22} parent=0 // pred_fallthru
    _
  // Predicated region
  $region26: #{flux_forward.22} parent=0 // pred_check
    _
  $region27: #{flux_forward.22} parent=0 // pred_check_branch
    %516 = sbr.rel (0) target = $region29
  $region28: #{flux_forward.22} parent=0 // pred_region
    _
  $region29: #{flux_forward.22} parent=0 // pred_fallthru
    _

// kernel: flux_forward.26
$region0: #{flux_forward.26}
  #allocation0 [shape = 'u32[]', space=smem, size = 0x4, offset = 0x4, fixed_abs, tag = 'smem constant byte address 0x4 - core index']
  #allocation1 [shape = 'u32[144,128]{1,0:T(1,128)}', space=vmem, size = 0x12000, scoped, tag = 'internal scratch']
  #allocation2 [shape = 'f32[64,128]{1,0:T(8,128)}', space=vmem, size = 0x8000, scoped, tag = 'scratch operand']
  %s0 = inlined_call_operand.vmem [shape: bf16[64,128], index: 0, kind: input, shape index: {}]
  %s1 = inlined_call_operand.vmem [shape: bf16[128,896], index: 1, kind: input, shape index: {}]
  %s2 = inlined_call_operand.vmem [shape: f32[1,896], index: 2, kind: input, shape index: {}]
  %s3 = inlined_call_operand.vmem [shape: bf16[64,896], index: 3, kind: output, shape index: {}]
  %s4 = sld [smem:[#allocation0]]
  $region131: #{flux_forward.26} parent=0
    _
  %s6 = ssub.s32 1, %s4
  %s7 = scalar_select 0, %s6, %s4
  $region1: #{flux_forward.26} parent=0
    #allocation3 [shape = 'u8[65536]{0}', space=vmem, size = 0x10000, scoped, tag = 'input window, operand 1']
    #allocation4 [shape = 'u8[32768]{0}', space=vmem, size = 0x8000, scoped, tag = 'output window, operand 0']
    loop: start=0, step=1, limit=9
    $region2: #{flux_forward.26} parent=1 // loop_pre_header
      _
    $region3: #{flux_forward.26} parent=1 // loop_header
      %s9 = sphi 0, %s13
      %p10 = scmp.ge.s32.totalorder %s9, 9
      %s16 = sphi 0, %s35
      %s17 = sphi 0, %s31
      %s18 = sphi 0, %s27
      %s19 = sphi 0, %s16
      %s20 = sphi 0, %s17
      %s21 = sphi 0, %s18
      %s22 = sphi 0, %s19
      %s23 = sphi 0, %s20
      %s24 = sphi 0, %s21
      %s40 = sphi 0, %s42
      %s43 = sphi 0, %s40
      %s44 = sphi 0, %s43
      %s60 = sphi 0, %s44
      %s68 = sphi 0, %s70
      %s71 = sphi 0, %s68
      %s72 = sphi 0, %s71
      %s88 = sphi 0, %s72
      %s94 = sphi 0, %s96
      %s97 = sphi 0, %s94
      %s98 = sphi 0, %s97
      %s114 = sphi 0, %s98
      %s122 = sphi 0, %s124
      %s125 = sphi 0, %s122
      %s126 = sphi 0, %s125
      %s142 = sphi 0, %s126
    $region4: #{flux_forward.26} parent=1 // loop_header_branch
      %12 = sbr.rel (%p10) target = $region8
    $region5: #{flux_forward.26} parent=1 // loop_body
      %s14 = ssub.s32 %s9, 1
      %s15 = ssub.s32 %s9, 2
      %s25 = sadd.s32 1, %s18
      %p26 = scmp.ge.s32.totalorder %s25, 1
      %s27 = scalar_select %p26, 0, %s25
      %s28 = sadd.s32 1, %s17
      %s29 = scalar_select %p26, %s28, %s17
      %p30 = scmp.ge.s32.totalorder %s29, 7
      %s31 = scalar_select %p30, 0, %s29
      %s32 = sadd.s32 1, %s16
      %s33 = scalar_select %p30, %s32, %s16
      %p34 = scmp.ge.s32.totalorder %s33, 1
      %s35 = scalar_select %p34, 0, %s33
      %s36 = ssub.s32 %s16, %s35
      %s37 = ssub.s32 %s18, %s27
      %s38 = sor.u32 %s36, %s37
      %p39 = scmp.eq.s32.totalorder %s38, 0
      %s41 = sadd.s32 %s40, 1
      %s42 = scalar_select %p39, %s40, %s41
      %p45 = pneg %p39
      %p46 = scmp.eq.s32.totalorder %s9, 6
      %p47 = por %p45, %p46
      %p48 = scmp.ne.s32.totalorder %s40, %s43
      %p49 = scmp.eq.s32.totalorder %s9, 0
      %p50 = por %p48, %p49
      %p51 = scmp.ne.s32.totalorder %s40, %s43
      %p52 = scmp.eq.s32.totalorder %s14, 6
      %p53 = por %p51, %p52
      %p54 = scmp.ne.s32.totalorder %s43, %s44
      %p55 = scmp.eq.s32.totalorder %s14, 0
      %p56 = por %p54, %p55
      %p57 = scmp.ne.s32.totalorder %s43, %s44
      %p58 = scmp.eq.s32.totalorder %s15, 6
      %p59 = por %p57, %p58
      %p61 = scmp.ne.s32.totalorder %s44, %s60
      %p62 = scmp.eq.s32.totalorder %s15, 0
      %p63 = por %p61, %p62
      %s64 = ssub.s32 %s18, %s27
      %s65 = ssub.s32 %s17, %s31
      %s66 = sor.u32 %s64, %s65
      %p67 = scmp.eq.s32.totalorder %s66, 0
      %s69 = sadd.s32 %s68, 1
      %s70 = scalar_select %p67, %s68, %s69
      %p73 = pneg %p67
      %p74 = scmp.eq.s32.totalorder %s9, 6
      %p75 = por %p73, %p74
      %p76 = scmp.ne.s32.totalorder %s68, %s71
      %p77 = scmp.eq.s32.totalorder %s9, 0
      %p78 = por %p76, %p77
      %p79 = scmp.ne.s32.totalorder %s68, %s71
      %p80 = scmp.eq.s32.totalorder %s14, 6
      %p81 = por %p79, %p80
      %p82 = scmp.ne.s32.totalorder %s71, %s72
      %p83 = scmp.eq.s32.totalorder %s14, 0
      %p84 = por %p82, %p83
      %p85 = scmp.ne.s32.totalorder %s71, %s72
      %p86 = scmp.eq.s32.totalorder %s15, 6
      %p87 = por %p85, %p86
      %p89 = scmp.ne.s32.totalorder %s72, %s88
      %p90 = scmp.eq.s32.totalorder %s15, 0
      %p91 = por %p89, %p90
      %s92 = ssub.s32 %s17, %s31
      %p93 = scmp.eq.s32.totalorder %s92, 0
      %s95 = sadd.s32 %s94, 1
      %s96 = scalar_select %p93, %s94, %s95
      %p99 = pneg %p93
      %p100 = scmp.eq.s32.totalorder %s9, 6
      %p101 = por %p99, %p100
      %p102 = scmp.ne.s32.totalorder %s94, %s97
      %p103 = scmp.eq.s32.totalorder %s9, 0
      %p104 = por %p102, %p103
      %p105 = scmp.ne.s32.totalorder %s94, %s97
      %p106 = scmp.eq.s32.totalorder %s14, 6
      %p107 = por %p105, %p106
      %p108 = scmp.ne.s32.totalorder %s97, %s98
      %p109 = scmp.eq.s32.totalorder %s14, 0
      %p110 = por %p108, %p109
      %p111 = scmp.ne.s32.totalorder %s97, %s98
      %p112 = scmp.eq.s32.totalorder %s15, 6
      %p113 = por %p111, %p112
      %p115 = scmp.ne.s32.totalorder %s98, %s114
      %p116 = scmp.eq.s32.totalorder %s15, 0
      %p117 = por %p115, %p116
      %s118 = ssub.s32 %s16, %s35
      %s119 = ssub.s32 %s17, %s31
      %s120 = sor.u32 %s118, %s119
      %p121 = scmp.eq.s32.totalorder %s120, 0
      %s123 = sadd.s32 %s122, 1
      %s124 = scalar_select %p121, %s122, %s123
      %p127 = pneg %p121
      %p128 = scmp.eq.s32.totalorder %s9, 6
      %p129 = por %p127, %p128
      %p130 = scmp.ne.s32.totalorder %s122, %s125
      %p131 = scmp.eq.s32.totalorder %s9, 0
      %p132 = por %p130, %p131
      %p133 = scmp.ne.s32.totalorder %s122, %s125
      %p134 = scmp.eq.s32.totalorder %s14, 6
      %p135 = por %p133, %p134
      %p136 = scmp.ne.s32.totalorder %s125, %s126
      %p137 = scmp.eq.s32.totalorder %s14, 0
      %p138 = por %p136, %p137
      %p139 = scmp.ne.s32.totalorder %s125, %s126
      %p140 = scmp.eq.s32.totalorder %s15, 6
      %p141 = por %p139, %p140
      %p143 = scmp.ne.s32.totalorder %s126, %s142
      %p144 = scmp.eq.s32.totalorder %s15, 0
      %p145 = por %p143, %p144
      %p146 = scmp.le.s32.totalorder 1, %s9
      %p147 = scmp.lt.s32.totalorder %s9, 8
      %p148 = pnand %p146, %p147
      %p149 = pneg %p148
      // Predicated region
      $region9: #{flux_forward.26} parent=5 // pred_check
        _
      $region10: #{flux_forward.26} parent=5 // pred_check_branch
        %151 = sbr.rel (%p148) target = $region12
      $region11: #{flux_forward.26} parent=5 // pred_region
        %s152 = ssub.s32 %s9, 1
        // Predicated region
        $region13: #{flux_forward.26} parent=11 // pred_check
          %p153 = pneg %p56
        $region14: #{flux_forward.26} parent=11 // pred_check_branch
          %155 = sbr.rel (%p153) target = $region16
        $region15: #{flux_forward.26} parent=11 // pred_region
          %s156 = smul.u32 8, %s19
          %p157 = scmp.lt.s32.totalorder %s156, 7
          %s158 = scalar_select %p157, %s156, 7
          %p159 = scmp.lt.s32.totalorder %s21, 0
          %s160 = scalar_select %p159, %s21, 0
          %s161 = sadd.s32 %s160, %s158
          %s162 = smul.addr %s161, 4
          %s163 = scalar_lea.vmem %s0, %s162
          %s164 = smul.u32 8, %s19
        $region16: #{flux_forward.26} parent=11 // pred_fallthru
          _
      $region12: #{flux_forward.26} parent=5 // pred_fallthru
        _
      %p165 = scmp.lt.s32.totalorder %s9, 7
      // Predicated region
      $region17: #{flux_forward.26} parent=5 // pred_check
        %p166 = pneg %p165
      $region18: #{flux_forward.26} parent=5 // pred_check_branch
        %168 = sbr.rel (%p166) target = $region20
      $region19: #{flux_forward.26} parent=5 // pred_region
        // Predicated region
        $region21: #{flux_forward.26} parent=19 // pred_check
          %p169 = pneg %p78
        $region22: #{flux_forward.26} parent=19 // pred_check_branch
          %171 = sbr.rel (%p169) target = $region24
        $region23: #{flux_forward.26} parent=19 // pred_region
          %s172 = sand.u32 %s68, 1
          %s173 = sand.u32 %s68, 1
          %s174 = smul.addr %s173, 64
          %s175 = scalar_lea.vmem [#allocation3], %s174
          %s176 = smul.u32 16, %s18
          %s177 = smul.addr %s176, 7
          %s178 = sadd.s32 %s17, %s177
          %s179 = smul.addr %s178, 4
          %s180 = scalar_lea.vmem %s1, %s179
          // Predicated region
          $region25: #{flux_forward.26} parent=23 // pred_check
            _
          $region26: #{flux_forward.26} parent=23 // pred_check_branch
            %182 = sbr.rel (0) target = $region28
          $region27: #{flux_forward.26} parent=23 // pred_region
            // Predicated region
            $region29: #{flux_forward.26} parent=27 // pred_check
              _
            $region30: #{flux_forward.26} parent=27 // pred_check_branch
              %184 = sbr.rel target = $region32
            $region31: #{flux_forward.26} parent=27 // pred_region
              // Predicated region
              $region44: #{flux_forward.26} parent=31 // pred_check
                _
              $region45: #{flux_forward.26} parent=31 // pred_check_branch
                %229 = sbr.rel (0) target = $region47
              $region46: #{flux_forward.26} parent=31 // pred_region
                loop: start=0, step=1, limit=1
                $region48: #{flux_forward.26} parent=46 // loop_pre_header
                  _
                $region49: #{flux_forward.26} parent=46 // loop_header
                  %s231 = sphi 0, %s235
                  %p232 = scmp.ge.s32.totalorder %s231, 1
                  %s236 = sphi %s180, %s180
                  %s237 = sphi %s175, %s175
                $region50: #{flux_forward.26} parent=46 // loop_header_branch
                  %234 = sbr.rel (%p232) target = $region54
                $region51: #{flux_forward.26} parent=46 // loop_body
                  _
                $region52: #{flux_forward.26} parent=46 // loop_footer
                  %s235 = sadd.s32 1, %s231
                $region53: #{flux_forward.26} parent=46 // loop_footer_branch
                  %230 = sbr.rel target = $region49
                $region54: #{flux_forward.26} parent=46 // loop_exit
                  _
                loop: start=0, step=1, limit=1
                $region55: #{flux_forward.26} parent=46 // loop_pre_header
                  _
                $region56: #{flux_forward.26} parent=46 // loop_header
                  %s240 = sphi 0, %s244
                  %p241 = scmp.ge.s32.totalorder %s240, 1
                  %s245 = sphi %s180, %s180
                  %s246 = sphi %s175, %s175
                $region57: #{flux_forward.26} parent=46 // loop_header_branch
                  %243 = sbr.rel (%p241) target = $region61
                $region58: #{flux_forward.26} parent=46 // loop_body
                  %v247 = vld [vmem:[%s245] sm:$0xf]
                  %248 = vst [vmem:[%s246] sm:$0xf] %v247
                  %v249 = vld [vmem:[%s245 + $0x1c] sm:$0xf]
                  %250 = vst [vmem:[%s246 + $0x4] sm:$0xf] %v249
                  %v251 = vld [vmem:[%s245 + $0x38] sm:$0xf]
                  %252 = vst [vmem:[%s246 + $0x8] sm:$0xf] %v251
                  %v253 = vld [vmem:[%s245 + $0x54] sm:$0xf]
                  %254 = vst [vmem:[%s246 + $0xc] sm:$0xf] %v253
                  %v255 = vld [vmem:[%s245 + $0x70] sm:$0xf]
                  %256 = vst [vmem:[%s246 + $0x10] sm:$0xf] %v255
                  %v257 = vld [vmem:[%s245 + $0x8c] sm:$0xf]
                  %258 = vst [vmem:[%s246 + $0x14] sm:$0xf] %v257
                  %v259 = vld [vmem:[%s245 + $0xa8] sm:$0xf]
                  %260 = vst [vmem:[%s246 + $0x18] sm:$0xf] %v259
                  %v261 = vld [vmem:[%s245 + $0xc4] sm:$0xf]
                  %262 = vst [vmem:[%s246 + $0x1c] sm:$0xf] %v261
                  %v263 = vld [vmem:[%s245 + $0xe0] sm:$0xf]
                  %264 = vst [vmem:[%s246 + $0x20] sm:$0xf] %v263
                  %v265 = vld [vmem:[%s245 + $0xfc] sm:$0xf]
                  %266 = vst [vmem:[%s246 + $0x24] sm:$0xf] %v265
                  %v267 = vld [vmem:[%s245 + $0x118] sm:$0xf]
                  %268 = vst [vmem:[%s246 + $0x28] sm:$0xf] %v267
                  %v269 = vld [vmem:[%s245 + $0x134] sm:$0xf]
                  %270 = vst [vmem:[%s246 + $0x2c] sm:$0xf] %v269
                  %v271 = vld [vmem:[%s245 + $0x150] sm:$0xf]
                  %272 = vst [vmem:[%s246 + $0x30] sm:$0xf] %v271
                  %v273 = vld [vmem:[%s245 + $0x16c] sm:$0xf]
                  %274 = vst [vmem:[%s246 + $0x34] sm:$0xf] %v273
                  %v275 = vld [vmem:[%s245 + $0x188] sm:$0xf]
                  %276 = vst [vmem:[%s246 + $0x38] sm:$0xf] %v275
                  %v277 = vld [vmem:[%s245 + $0x1a4] sm:$0xf]
                  %278 = vst [vmem:[%s246 + $0x3c] sm:$0xf] %v277
                $region59: #{flux_forward.26} parent=46 // loop_footer
                  %s244 = sadd.s32 1, %s240
                $region60: #{flux_forward.26} parent=46 // loop_footer_branch
                  %239 = sbr.rel target = $region56
                $region61: #{flux_forward.26} parent=46 // loop_exit
                  _
              $region47: #{flux_forward.26} parent=31 // pred_fallthru
                _
            $region32: #{flux_forward.26} parent=27 // pred_fallthru
              _
            // Predicated region
            $region33: #{flux_forward.26} parent=27 // pred_check
              _
            $region34: #{flux_forward.26} parent=27 // pred_check_branch
              %186 = sbr.rel (0) target = $region36
            $region35: #{flux_forward.26} parent=27 // pred_region
              loop: start=0, step=1, limit=1
              $region37: #{flux_forward.26} parent=35 // loop_pre_header
                _
              $region38: #{flux_forward.26} parent=35 // loop_header
                %s189 = sphi 0, %s193
                %p190 = scmp.ge.s32.totalorder %s189, 1
                %s194 = sphi %s180, %s180
                %s195 = sphi %s175, %s175
              $region39: #{flux_forward.26} parent=35 // loop_header_branch
                %192 = sbr.rel (%p190) target = $region43
              $region40: #{flux_forward.26} parent=35 // loop_body
                %v196 = vld [vmem:[%s194] sm:$0xf]
                %197 = vst [vmem:[%s195] sm:$0xf] %v196
                %v198 = vld [vmem:[%s194 + $0x1c] sm:$0xf]
                %199 = vst [vmem:[%s195 + $0x4] sm:$0xf] %v198
                %v200 = vld [vmem:[%s194 + $0x38] sm:$0xf]
                %201 = vst [vmem:[%s195 + $0x8] sm:$0xf] %v200
                %v202 = vld [vmem:[%s194 + $0x54] sm:$0xf]
                %203 = vst [vmem:[%s195 + $0xc] sm:$0xf] %v202
                %v204 = vld [vmem:[%s194 + $0x70] sm:$0xf]
                %205 = vst [vmem:[%s195 + $0x10] sm:$0xf] %v204
                %v206 = vld [vmem:[%s194 + $0x8c] sm:$0xf]
                %207 = vst [vmem:[%s195 + $0x14] sm:$0xf] %v206
                %v208 = vld [vmem:[%s194 + $0xa8] sm:$0xf]
                %209 = vst [vmem:[%s195 + $0x18] sm:$0xf] %v208
                %v210 = vld [vmem:[%s194 + $0xc4] sm:$0xf]
                %211 = vst [vmem:[%s195 + $0x1c] sm:$0xf] %v210
                %v212 = vld [vmem:[%s194 + $0xe0] sm:$0xf]
                %213 = vst [vmem:[%s195 + $0x20] sm:$0xf] %v212
                %v214 = vld [vmem:[%s194 + $0xfc] sm:$0xf]
                %215 = vst [vmem:[%s195 + $0x24] sm:$0xf] %v214
                %v216 = vld [vmem:[%s194 + $0x118] sm:$0xf]
                %217 = vst [vmem:[%s195 + $0x28] sm:$0xf] %v216
                %v218 = vld [vmem:[%s194 + $0x134] sm:$0xf]
                %219 = vst [vmem:[%s195 + $0x2c] sm:$0xf] %v218
                %v220 = vld [vmem:[%s194 + $0x150] sm:$0xf]
                %221 = vst [vmem:[%s195 + $0x30] sm:$0xf] %v220
                %v222 = vld [vmem:[%s194 + $0x16c] sm:$0xf]
                %223 = vst [vmem:[%s195 + $0x34] sm:$0xf] %v222
                %v224 = vld [vmem:[%s194 + $0x188] sm:$0xf]
                %225 = vst [vmem:[%s195 + $0x38] sm:$0xf] %v224
                %v226 = vld [vmem:[%s194 + $0x1a4] sm:$0xf]
                %227 = vst [vmem:[%s195 + $0x3c] sm:$0xf] %v226
              $region41: #{flux_forward.26} parent=35 // loop_footer
                %s193 = sadd.s32 1, %s189
              $region42: #{flux_forward.26} parent=35 // loop_footer_branch
                %188 = sbr.rel target = $region38
              $region43: #{flux_forward.26} parent=35 // loop_exit
                _
            $region36: #{flux_forward.26} parent=27 // pred_fallthru
              _
          $region28: #{flux_forward.26} parent=23 // pred_fallthru
            _
          %279 = vnop
        $region24: #{flux_forward.26} parent=19 // pred_fallthru
          _
        // Predicated region
        $region62: #{flux_forward.26} parent=19 // pred_check
          %p280 = pneg %p104
        $region63: #{flux_forward.26} parent=19 // pred_check_branch
          %282 = sbr.rel (%p280) target = $region65
        $region64: #{flux_forward.26} parent=19 // pred_region
          %p283 = scmp.lt.s32.totalorder %s17, 6
          %s284 = scalar_select %p283, %s17, 6
          %s285 = scalar_lea.vmem %s2, %s284
        $region65: #{flux_forward.26} parent=19 // pred_fallthru
          _
      $region20: #{flux_forward.26} parent=5 // pred_fallthru
        _
      %p286 = scmp.le.s32.totalorder 1, %s9
      %p287 = scmp.lt.s32.totalorder %s9, 8
      %p288 = pnand %p286, %p287
      %p289 = pneg %p288
      // Predicated region
      $region66: #{flux_forward.26} parent=5 // pred_check
        _
      $region67: #{flux_forward.26} parent=5 // pred_check_branch
        %291 = sbr.rel (%p288) target = $region69
      $region68: #{flux_forward.26} parent=5 // pred_region
        %s292 = ssub.s32 %s9, 1
        %s293 = sand.u32 %s71, 1
        %s294 = sand.u32 %s71, 1
        %s295 = smul.addr %s294, 64
        %s296 = scalar_lea.vmem [#allocation3], %s295
        // Predicated region
        $region70: #{flux_forward.26} parent=68 // pred_check
          %p297 = pneg %p84
        $region71: #{flux_forward.26} parent=68 // pred_check_branch
          %299 = sbr.rel (%p297) target = $region73
        $region72: #{flux_forward.26} parent=68 // pred_region
          _
        $region73: #{flux_forward.26} parent=68 // pred_fallthru
          _
        %s300 = smul.u32 8, %s19
        %p301 = scmp.lt.s32.totalorder %s300, 7
        %s302 = scalar_select %p301, %s300, 7
        %p303 = scmp.lt.s32.totalorder %s21, 0
        %s304 = scalar_select %p303, %s21, 0
        %s305 = sadd.s32 %s304, %s302
        %s306 = smul.addr %s305, 4
        %s307 = scalar_lea.vmem %s0, %s306
        %p308 = pneg %p56
        %p309 = pneg %p53
        %s310 = sand.u32 %s71, 1
        %s311 = sand.u32 %s71, 1
        %s312 = smul.addr %s311, 64
        %s313 = scalar_lea.vmem [#allocation3], %s312
        %p314 = pneg %p84
        %p315 = pneg %p81
        %p316 = scmp.lt.s32.totalorder %s20, 6
        %s317 = scalar_select %p316, %s20, 6
        %s318 = scalar_lea.vmem %s2, %s317
        %p319 = pneg %p110
        %p320 = pneg %p107
        %p321 = pneg %p138
        %p322 = pneg %p135
        %s323 = sand.u32 %s125, 1
        %s324 = sand.u32 %s125, 1
        %s325 = smul.addr %s324, 32
        %s326 = scalar_lea.vmem [#allocation4], %s325
        %s327 = smul.u32 8, %s19
        %p328 = scmp.lt.s32.totalorder %s327, 7
        %s329 = scalar_select %p328, %s327, 7
        %p330 = scmp.lt.s32.totalorder %s21, 0
        %s331 = scalar_select %p330, %s21, 0
        %s332 = sadd.s32 %s331, %s329
        %s333 = smul.addr %s332, 4
        %s334 = scalar_lea.vmem %s0, %s333
        %s335 = smul.u32 8, %s19
        %s336 = smul.u32 16, %s21
        %p337 = scmp.lt.s32.totalorder %s20, 6
        %s338 = scalar_select %p337, %s20, 6
        %s339 = scalar_lea.vmem %s2, %s338
        %s340 = smul.u32 8, %s19
        %p342 = scmp.eq.s32.totalorder %s21, 0
        // Predicated region
        $region74: #{flux_forward.26} parent=68 // pred_check
          %p343 = pneg %p342
        $region75: #{flux_forward.26} parent=68 // pred_check_branch
          %345 = sbr.rel (%p343) target = $region77
        $region76: #{flux_forward.26} parent=68 // pred_region
          %346 = vst [vmem:[#allocation2] sm:$0xff] 0.0
          %347 = vst [vmem:[#allocation2 + $0x8] sm:$0xff] 0.0
          %348 = vst [vmem:[#allocation2 + $0x10] sm:$0xff] 0.0
          %349 = vst [vmem:[#allocation2 + $0x18] sm:$0xff] 0.0
          %350 = vst [vmem:[#allocation2 + $0x20] sm:$0xff] 0.0
          %351 = vst [vmem:[#allocation2 + $0x28] sm:$0xff] 0.0
          %352 = vst [vmem:[#allocation2 + $0x30] sm:$0xff] 0.0
          %353 = vst [vmem:[#allocation2 + $0x38] sm:$0xff] 0.0
        $region77: #{flux_forward.26} parent=68 // pred_fallthru
          _
        %v354 = vld [vmem:[#allocation2] sm:$0xff]
        %v355 = vld [vmem:[#allocation2 + $0x8] sm:$0xff]
        %v356 = vld [vmem:[#allocation2 + $0x10] sm:$0xff]
        %v357 = vld [vmem:[#allocation2 + $0x18] sm:$0xff]
        %v358 = vld [vmem:[#allocation2 + $0x20] sm:$0xff]
        %v359 = vld [vmem:[#allocation2 + $0x28] sm:$0xff]
        %v360 = vld [vmem:[#allocation2 + $0x30] sm:$0xff]
        %v361 = vld [vmem:[#allocation2 + $0x38] sm:$0xff]
        %v362 = vld [vmem:[%s334] sm:$0xf]
        %v363 = vld [vmem:[%s334 + $0x4] sm:$0xf]
        %v364 = vld [vmem:[%s334 + $0x8] sm:$0xf]
        %v365 = vld [vmem:[%s334 + $0xc] sm:$0xf]
        %v366 = vld [vmem:[%s334 + $0x10] sm:$0xf]
        %v367 = vld [vmem:[%s334 + $0x14] sm:$0xf]
        %v368 = vld [vmem:[%s334 + $0x18] sm:$0xf]
        %v369 = vld [vmem:[%s334 + $0x1c] sm:$0xf]
        %v370 = vld [vmem:[%s296] sm:$0xf]
        %v371 = vld [vmem:[%s296 + $0x4] sm:$0xf]
        %v372 = vld [vmem:[%s296 + $0x8] sm:$0xf]
        %v373 = vld [vmem:[%s296 + $0xc] sm:$0xf]
        %v374 = vld [vmem:[%s296 + $0x10] sm:$0xf]
        %v375 = vld [vmem:[%s296 + $0x14] sm:$0xf]
        %v376 = vld [vmem:[%s296 + $0x18] sm:$0xf]
        %v377 = vld [vmem:[%s296 + $0x1c] sm:$0xf]
        %v378 = vld [vmem:[%s296 + $0x20] sm:$0xf]
        %v379 = vld [vmem:[%s296 + $0x24] sm:$0xf]
        %v380 = vld [vmem:[%s296 + $0x28] sm:$0xf]
        %v381 = vld [vmem:[%s296 + $0x2c] sm:$0xf]
        %v382 = vld [vmem:[%s296 + $0x30] sm:$0xf]
        %v383 = vld [vmem:[%s296 + $0x34] sm:$0xf]
        %v384 = vld [vmem:[%s296 + $0x38] sm:$0xf]
        %v385 = vld [vmem:[%s296 + $0x3c] sm:$0xf]
        %v394 = vunpack.c.l.b16 %v362
        %v395 = vunpack.c.l.b16 %v363
        %v396 = vunpack.c.l.b16 %v364
        %v397 = vunpack.c.l.b16 %v365
        %v398 = vunpack.c.l.b16 %v366
        %v399 = vunpack.c.l.b16 %v367
        %v400 = vunpack.c.l.b16 %v368
        %v401 = vunpack.c.l.b16 %v369
        %v402 = vpack.c.b16 %v395, %v394
        %v403 = vpack.c.b16 %v397, %v396
        %v404 = vpack.c.b16 %v399, %v398
        %v405 = vpack.c.b16 %v401, %v400
        %v426 = vunpack.c.l.b16 %v370
        %v427 = vunpack.c.l.b16 %v371
        %v428 = vunpack.c.l.b16 %v372
        %v429 = vunpack.c.l.b16 %v373
        %v430 = vunpack.c.l.b16 %v374
        %v431 = vunpack.c.l.b16 %v375
        %v432 = vunpack.c.l.b16 %v376
        %v433 = vunpack.c.l.b16 %v377
        %v434 = vunpack.c.l.b16 %v378
        %v435 = vunpack.c.l.b16 %v379
        %v436 = vunpack.c.l.b16 %v380
        %v437 = vunpack.c.l.b16 %v381
        %v438 = vunpack.c.l.b16 %v382
        %v439 = vunpack.c.l.b16 %v383
        %v440 = vunpack.c.l.b16 %v384
        %v441 = vunpack.c.l.b16 %v385
        %v442 = vpack.c.b16 %v427, %v426
        %v443 = vpack.c.b16 %v429, %v428
        %v444 = vpack.c.b16 %v431, %v430
        %v445 = vpack.c.b16 %v433, %v432
        %v446 = vpack.c.b16 %v435, %v434
        %v447 = vpack.c.b16 %v437, %v436
        %v448 = vpack.c.b16 %v439, %v438
        %v449 = vpack.c.b16 %v441, %v440
        %458 = vmatprep.subr.bf16.mxu0 0
        %459 = vmatpush1.bf16.msra.mxu0 %v442
        %460 = vmatprep.subr.bf16.mxu0 0
        %461 = vmatpush1.bf16.msra.mxu0 %v443
        %462 = vmatprep.subr.bf16.mxu0 0
        %463 = vmatpush1.bf16.msra.mxu0 %v444
        %464 = vmatprep.subr.bf16.mxu0 0
        %465 = vmatpush1.bf16.msra.mxu0 %v445
        %466 = vmatprep.subr.bf16.mxu0 0
        %467 = vmatpush1.bf16.msra.mxu0 %v446
        %468 = vmatprep.subr.bf16.mxu0 0
        %469 = vmatpush1.bf16.msra.mxu0 %v447
        %470 = vmatprep.subr.bf16.mxu0 0
        %471 = vmatpush1.bf16.msra.mxu0 %v448
        %472 = vmatprep.subr.bf16.mxu0 0
        %473 = vmatpush1.bf16.msra.mxu0 %v449
        %474 = vmatprep.subr.bf16.mxu0 0
        %475 = vmatpush1.bf16.msra.mxu0 0
        %476 = vmatprep.subr.bf16.mxu0 0
        %477 = vmatpush1.bf16.msra.mxu0 0
        %478 = vmatprep.subr.bf16.mxu0 0
        %479 = vmatpush1.bf16.msra.mxu0 0
        %480 = vmatprep.subr.bf16.mxu0 0
        %481 = vmatpush1.bf16.msra.mxu0 0
        %482 = vmatprep.subr.bf16.mxu0 0
        %483 = vmatpush1.bf16.msra.mxu0 0
        %484 = vmatprep.subr.bf16.mxu0 0
        %485 = vmatpush1.bf16.msra.mxu0 0
        %486 = vmatprep.subr.bf16.mxu0 0
        %487 = vmatpush1.bf16.msra.mxu0 0
        %488 = vmatprep.subr.bf16.mxu0 0
        %489 = vmatpush1.bf16.msra.mxu0 0
        %490 = vmatprep.mubr.bf16.mxu0 0
        %491 = vmatmul.mubr.bf16.gmra.mrb[0].mxu0 %v402
        %v492 = vpop.f32.mrb[0].mxu0
        %v493 = vadd.f32 0.0, %v492
        %v494 = vpop.f32.mrb[0].mxu0
        %v495 = vpop.f32.mrb[0].mxu0
        %v496 = vadd.f32 0.0, %v495
        %v497 = vpop.f32.mrb[0].mxu0
        %498 = vmatprep.mubr.bf16.mxu0 0
        %499 = vmatmul.mubr.bf16.gmra.mrb[0].mxu0 %v403
        %v500 = vpop.f32.mrb[0].mxu0
        %v501 = vadd.f32 0.0, %v500
        %v502 = vpop.f32.mrb[0].mxu0
        %v503 = vpop.f32.mrb[0].mxu0
        %v504 = vadd.f32 0.0, %v503
        %v505 = vpop.f32.mrb[0].mxu0
        %506 = vmatprep.mubr.bf16.mxu0 0
        %507 = vmatmul.mubr.bf16.gmra.mrb[0].mxu0 %v404
        %v508 = vpop.f32.mrb[0].mxu0
        %v509 = vadd.f32 0.0, %v508
        %v510 = vpop.f32.mrb[0].mxu0
        %v511 = vpop.f32.mrb[0].mxu0
        %v512 = vadd.f32 0.0, %v511
        %v513 = vpop.f32.mrb[0].mxu0
        %514 = vmatprep.mubr.bf16.mxu0 0
        %515 = vmatmul.mubr.bf16.gmra.mrb[0].mxu0 %v405
        %v516 = vpop.f32.mrb[0].mxu0
        %v517 = vadd.f32 0.0, %v516
        %v518 = vpop.f32.mrb[0].mxu0
        %v519 = vpop.f32.mrb[0].mxu0
        %v520 = vadd.f32 0.0, %v519
        %v521 = vpop.f32.mrb[0].mxu0
        %522 = vdwg.mxu0
        %v523 = vadd.f32 %v354, %v493
        %v524 = vadd.f32 %v355, %v496
        %v525 = vadd.f32 %v356, %v501
        %v526 = vadd.f32 %v357, %v504
        %v527 = vadd.f32 %v358, %v509
        %v528 = vadd.f32 %v359, %v512
        %v529 = vadd.f32 %v360, %v517
        %v530 = vadd.f32 %v361, %v520
        %531 = vst [vmem:[#allocation2] sm:$0xff] %v523
        %532 = vst [vmem:[#allocation2 + $0x8] sm:$0xff] %v524
        %533 = vst [vmem:[#allocation2 + $0x10] sm:$0xff] %v525
        %534 = vst [vmem:[#allocation2 + $0x18] sm:$0xff] %v526
        %535 = vst [vmem:[#allocation2 + $0x20] sm:$0xff] %v527
        %536 = vst [vmem:[#allocation2 + $0x28] sm:$0xff] %v528
        %537 = vst [vmem:[#allocation2 + $0x30] sm:$0xff] %v529
        %538 = vst [vmem:[#allocation2 + $0x38] sm:$0xff] %v530
        // Predicated region
        $region78: #{flux_forward.26} parent=68 // pred_check
          %p539 = pneg %p342
        $region79: #{flux_forward.26} parent=68 // pred_check_branch
          %541 = sbr.rel (%p539) target = $region81
        $region80: #{flux_forward.26} parent=68 // pred_region
          %v542 = vld [vmem:[#allocation2] sm:$0xff]
          %v543 = vld [vmem:[#allocation2 + $0x8] sm:$0xff]
          %v544 = vld [vmem:[#allocation2 + $0x10] sm:$0xff]
          %v545 = vld [vmem:[#allocation2 + $0x18] sm:$0xff]
          %v546 = vld [vmem:[#allocation2 + $0x20] sm:$0xff]
          %v547 = vld [vmem:[#allocation2 + $0x28] sm:$0xff]
          %v548 = vld [vmem:[#allocation2 + $0x30] sm:$0xff]
          %v549 = vld [vmem:[#allocation2 + $0x38] sm:$0xff]
          %v550 = vld [vmem:[%s339] sm:$0x1]
          %v552 = vlaneseq
          %v553 = vshrl.u32 %v552, 7
          %v554 = vsub.s32 0, %v553
          %v555 = vrot.slane %v550, %v554
          %v557 = vadd.f32 %v542, %v555
          %v558 = vadd.f32 %v543, %v555
          %v559 = vadd.f32 %v544, %v555
          %v560 = vadd.f32 %v545, %v555
          %v561 = vadd.f32 %v546, %v555
          %v562 = vadd.f32 %v547, %v555
          %v563 = vadd.f32 %v548, %v555
          %v564 = vadd.f32 %v549, %v555
          %v565 = vpack.c.bf16 %v558, %v557
          %v566 = vpack.c.bf16 %v560, %v559
          %v567 = vpack.c.bf16 %v562, %v561
          %v568 = vpack.c.bf16 %v564, %v563
          %v573 = vunpack.c.l.b16 %v565
          %v574 = vunpack.c.h.b16 %v565
          %v575 = vunpack.c.l.b16 %v566
          %v576 = vunpack.c.h.b16 %v566
          %v577 = vunpack.c.l.b16 %v567
          %v578 = vunpack.c.h.b16 %v567
          %v579 = vunpack.c.l.b16 %v568
          %v580 = vunpack.c.h.b16 %v568
          %v581 = vpack.c.b16 %v573, %v573
          %v582 = vpack.c.b16 %v574, %v574
          %v583 = vpack.c.b16 %v575, %v575
          %v584 = vpack.c.b16 %v576, %v576
          %v585 = vpack.c.b16 %v577, %v577
          %v586 = vpack.c.b16 %v578, %v578
          %v587 = vpack.c.b16 %v579, %v579
          %v588 = vpack.c.b16 %v580, %v580
          %597 = vst [vmem:[%s326] sm:$0xf] %v581
          %598 = vst [vmem:[%s326 + $0x4] sm:$0xf] %v582
          %599 = vst [vmem:[%s326 + $0x8] sm:$0xf] %v583
          %600 = vst [vmem:[%s326 + $0xc] sm:$0xf] %v584
          %601 = vst [vmem:[%s326 + $0x10] sm:$0xf] %v585
          %602 = vst [vmem:[%s326 + $0x14] sm:$0xf] %v586
          %603 = vst [vmem:[%s326 + $0x18] sm:$0xf] %v587
          %604 = vst [vmem:[%s326 + $0x1c] sm:$0xf] %v588
        $region81: #{flux_forward.26} parent=68 // pred_fallthru
          _
        %s605 = sand.u32 %s125, 1
        %s606 = sand.u32 %s125, 1
        %s607 = smul.addr %s606, 32
        %s608 = scalar_lea.vmem [#allocation4], %s607
        // Predicated region
        $region82: #{flux_forward.26} parent=68 // pred_check
          %p609 = pneg %p135
        $region83: #{flux_forward.26} parent=68 // pred_check_branch
          %611 = sbr.rel (%p609) target = $region85
        $region84: #{flux_forward.26} parent=68 // pred_region
          %s612 = smul.u32 8, %s19
          %s613 = smul.addr %s612, 7
          %s614 = sadd.s32 %s20, %s613
          %s615 = smul.addr %s614, 4
          %s616 = scalar_lea.vmem %s3, %s615
          // Predicated region
          $region86: #{flux_forward.26} parent=84 // pred_check
            _
          $region87: #{flux_forward.26} parent=84 // pred_check_branch
            %618 = sbr.rel (0) target = $region89
          $region88: #{flux_forward.26} parent=84 // pred_region
            // Predicated region
            $region90: #{flux_forward.26} parent=88 // pred_check
              _
            $region91: #{flux_forward.26} parent=88 // pred_check_branch
              %620 = sbr.rel target = $region93
            $region92: #{flux_forward.26} parent=88 // pred_region
              // Predicated region
              $region105: #{flux_forward.26} parent=92 // pred_check
                _
              $region106: #{flux_forward.26} parent=92 // pred_check_branch
                %649 = sbr.rel (0) target = $region108
              $region107: #{flux_forward.26} parent=92 // pred_region
                loop: start=0, step=1, limit=1
                $region109: #{flux_forward.26} parent=107 // loop_pre_header
                  _
                $region110: #{flux_forward.26} parent=107 // loop_header
                  %s651 = sphi 0, %s655
                  %p652 = scmp.ge.s32.totalorder %s651, 1
                  %s656 = sphi %s608, %s608
                  %s657 = sphi %s616, %s616
                $region111: #{flux_forward.26} parent=107 // loop_header_branch
                  %654 = sbr.rel (%p652) target = $region115
                $region112: #{flux_forward.26} parent=107 // loop_body
                  _
                $region113: #{flux_forward.26} parent=107 // loop_footer
                  %s655 = sadd.s32 1, %s651
                $region114: #{flux_forward.26} parent=107 // loop_footer_branch
                  %650 = sbr.rel target = $region110
                $region115: #{flux_forward.26} parent=107 // loop_exit
                  _
                loop: start=0, step=1, limit=1
                $region116: #{flux_forward.26} parent=107 // loop_pre_header
                  _
                $region117: #{flux_forward.26} parent=107 // loop_header
                  %s660 = sphi 0, %s664
                  %p661 = scmp.ge.s32.totalorder %s660, 1
                  %s665 = sphi %s608, %s608
                  %s666 = sphi %s616, %s616
                $region118: #{flux_forward.26} parent=107 // loop_header_branch
                  %663 = sbr.rel (%p661) target = $region122
                $region119: #{flux_forward.26} parent=107 // loop_body
                  %v667 = vld [vmem:[%s665] sm:$0xf]
                  %668 = vst [vmem:[%s666] sm:$0xf] %v667
                  %v669 = vld [vmem:[%s665 + $0x4] sm:$0xf]
                  %670 = vst [vmem:[%s666 + $0x1c] sm:$0xf] %v669
                  %v671 = vld [vmem:[%s665 + $0x8] sm:$0xf]
                  %672 = vst [vmem:[%s666 + $0x38] sm:$0xf] %v671
                  %v673 = vld [vmem:[%s665 + $0xc] sm:$0xf]
                  %674 = vst [vmem:[%s666 + $0x54] sm:$0xf] %v673
                  %v675 = vld [vmem:[%s665 + $0x10] sm:$0xf]
                  %676 = vst [vmem:[%s666 + $0x70] sm:$0xf] %v675
                  %v677 = vld [vmem:[%s665 + $0x14] sm:$0xf]
                  %678 = vst [vmem:[%s666 + $0x8c] sm:$0xf] %v677
                  %v679 = vld [vmem:[%s665 + $0x18] sm:$0xf]
                  %680 = vst [vmem:[%s666 + $0xa8] sm:$0xf] %v679
                  %v681 = vld [vmem:[%s665 + $0x1c] sm:$0xf]
                  %682 = vst [vmem:[%s666 + $0xc4] sm:$0xf] %v681
                $region120: #{flux_forward.26} parent=107 // loop_footer
                  %s664 = sadd.s32 1, %s660
                $region121: #{flux_forward.26} parent=107 // loop_footer_branch
                  %659 = sbr.rel target = $region117
                $region122: #{flux_forward.26} parent=107 // loop_exit
                  _
              $region108: #{flux_forward.26} parent=92 // pred_fallthru
                _
            $region93: #{flux_forward.26} parent=88 // pred_fallthru
              _
            // Predicated region
            $region94: #{flux_forward.26} parent=88 // pred_check
              _
            $region95: #{flux_forward.26} parent=88 // pred_check_branch
              %622 = sbr.rel (0) target = $region97
            $region96: #{flux_forward.26} parent=88 // pred_region
              loop: start=0, step=1, limit=1
              $region98: #{flux_forward.26} parent=96 // loop_pre_header
                _
              $region99: #{flux_forward.26} parent=96 // loop_header
                %s625 = sphi 0, %s629
                %p626 = scmp.ge.s32.totalorder %s625, 1
                %s630 = sphi %s608, %s608
                %s631 = sphi %s616, %s616
              $region100: #{flux_forward.26} parent=96 // loop_header_branch
                %628 = sbr.rel (%p626) target = $region104
              $region101: #{flux_forward.26} parent=96 // loop_body
                %v632 = vld [vmem:[%s630] sm:$0xf]
                %633 = vst [vmem:[%s631] sm:$0xf] %v632
                %v634 = vld [vmem:[%s630 + $0x4] sm:$0xf]
                %635 = vst [vmem:[%s631 + $0x1c] sm:$0xf] %v634
                %v636 = vld [vmem:[%s630 + $0x8] sm:$0xf]
                %637 = vst [vmem:[%s631 + $0x38] sm:$0xf] %v636
                %v638 = vld [vmem:[%s630 + $0xc] sm:$0xf]
                %639 = vst [vmem:[%s631 + $0x54] sm:$0xf] %v638
                %v640 = vld [vmem:[%s630 + $0x10] sm:$0xf]
                %641 = vst [vmem:[%s631 + $0x70] sm:$0xf] %v640
                %v642 = vld [vmem:[%s630 + $0x14] sm:$0xf]
                %643 = vst [vmem:[%s631 + $0x8c] sm:$0xf] %v642
                %v644 = vld [vmem:[%s630 + $0x18] sm:$0xf]
                %645 = vst [vmem:[%s631 + $0xa8] sm:$0xf] %v644
                %v646 = vld [vmem:[%s630 + $0x1c] sm:$0xf]
                %647 = vst [vmem:[%s631 + $0xc4] sm:$0xf] %v646
              $region102: #{flux_forward.26} parent=96 // loop_footer
                %s629 = sadd.s32 1, %s625
              $region103: #{flux_forward.26} parent=96 // loop_footer_branch
                %624 = sbr.rel target = $region99
              $region104: #{flux_forward.26} parent=96 // loop_exit
                _
            $region97: #{flux_forward.26} parent=88 // pred_fallthru
              _
          $region89: #{flux_forward.26} parent=84 // pred_fallthru
            _
          %683 = vnop
        $region85: #{flux_forward.26} parent=68 // pred_fallthru
          _
      $region69: #{flux_forward.26} parent=5 // pred_fallthru
        _
      %p684 = scmp.le.s32.totalorder 2, %s9
      // Predicated region
      $region123: #{flux_forward.26} parent=5 // pred_check
        %p685 = pneg %p684
      $region124: #{flux_forward.26} parent=5 // pred_check_branch
        %687 = sbr.rel (%p685) target = $region126
      $region125: #{flux_forward.26} parent=5 // pred_region
        %s688 = ssub.s32 %s9, 2
        // Predicated region
        $region127: #{flux_forward.26} parent=125 // pred_check
          %p689 = pneg %p141
        $region128: #{flux_forward.26} parent=125 // pred_check_branch
          %691 = sbr.rel (%p689) target = $region130
        $region129: #{flux_forward.26} parent=125 // pred_region
          %s692 = sand.u32 %s126, 1
          %s693 = sand.u32 %s126, 1
          %s694 = smul.addr %s693, 32
          %s695 = scalar_lea.vmem [#allocation4], %s694
        $region130: #{flux_forward.26} parent=125 // pred_fallthru
          _
      $region126: #{flux_forward.26} parent=5 // pred_fallthru
        _
    $region6: #{flux_forward.26} parent=1 // loop_footer
      %s13 = sadd.s32 1, %s9
    $region7: #{flux_forward.26} parent=1 // loop_footer_branch
      %8 = sbr.rel target = $region3
    $region8: #{flux_forward.26} parent=1 // loop_exit
      _

// kernel: flux_forward.28
$region0: #{flux_forward.28}
  #allocation0 [shape = 'u32[]', space=smem, size = 0x4, offset = 0x4, fixed_abs, tag = 'smem constant byte address 0x4 - core index']
  #allocation1 [shape = 'u32[144,128]{1,0:T(1,128)}', space=vmem, size = 0x12000, scoped, tag = 'internal scratch']
  #allocation2 [shape = 'f32[64,128]{1,0:T(8,128)}', space=vmem, size = 0x8000, scoped, tag = 'scratch operand']
  %s0 = inlined_call_operand.vmem [shape: bf16[64,640], index: 0, kind: input, shape index: {}]
  %s1 = inlined_call_operand.vmem [shape: bf16[640,128], index: 1, kind: input, shape index: {}]
  %s2 = inlined_call_operand.vmem [shape: f32[1,128], index: 2, kind: input, shape index: {}]
  %s3 = inlined_call_operand.vmem [shape: f32[64,128], index: 3, kind: output, shape index: {}]
  %s4 = sld [smem:[#allocation0]]
  $region94: #{flux_forward.28} parent=0
    _
  %s6 = ssub.s32 1, %s4
  %s7 = scalar_select 0, %s6, %s4
  $region1: #{flux_forward.28} parent=0
    #allocation3 [shape = 'u8[32768]{0}', space=vmem, size = 0x8000, scoped, tag = 'input window, operand 0']
    loop: start=0, step=1, limit=7
    $region2: #{flux_forward.28} parent=1 // loop_pre_header
      _
    $region3: #{flux_forward.28} parent=1 // loop_header
      %s9 = sphi 0, %s13
      %p10 = scmp.ge.s32.totalorder %s9, 7
      %s16 = sphi 0, %s35
      %s17 = sphi 0, %s31
      %s18 = sphi 0, %s27
      %s19 = sphi 0, %s16
      %s20 = sphi 0, %s17
      %s21 = sphi 0, %s18
      %s22 = sphi 0, %s19
      %s23 = sphi 0, %s20
      %s24 = sphi 0, %s21
      %s40 = sphi 0, %s42
      %s43 = sphi 0, %s40
      %s44 = sphi 0, %s43
      %s60 = sphi 0, %s44
      %s68 = sphi 0, %s70
      %s71 = sphi 0, %s68
      %s72 = sphi 0, %s71
      %s88 = sphi 0, %s72
      %s94 = sphi 0, %s96
      %s97 = sphi 0, %s94
      %s98 = sphi 0, %s97
      %s114 = sphi 0, %s98
      %s122 = sphi 0, %s124
      %s125 = sphi 0, %s122
      %s126 = sphi 0, %s125
      %s142 = sphi 0, %s126
    $region4: #{flux_forward.28} parent=1 // loop_header_branch
      %12 = sbr.rel (%p10) target = $region8
    $region5: #{flux_forward.28} parent=1 // loop_body
      %s14 = ssub.s32 %s9, 1
      %s15 = ssub.s32 %s9, 2
      %s25 = sadd.s32 1, %s18
      %p26 = scmp.ge.s32.totalorder %s25, 5
      %s27 = scalar_select %p26, 0, %s25
      %s28 = sadd.s32 1, %s17
      %s29 = scalar_select %p26, %s28, %s17
      %p30 = scmp.ge.s32.totalorder %s29, 1
      %s31 = scalar_select %p30, 0, %s29
      %s32 = sadd.s32 1, %s16
      %s33 = scalar_select %p30, %s32, %s16
      %p34 = scmp.ge.s32.totalorder %s33, 1
      %s35 = scalar_select %p34, 0, %s33
      %s36 = ssub.s32 %s16, %s35
      %s37 = ssub.s32 %s18, %s27
      %s38 = sor.u32 %s36, %s37
      %p39 = scmp.eq.s32.totalorder %s38, 0
      %s41 = sadd.s32 %s40, 1
      %s42 = scalar_select %p39, %s40, %s41
      %p45 = pneg %p39
      %p46 = scmp.eq.s32.totalorder %s9, 4
      %p47 = por %p45, %p46
      %p48 = scmp.ne.s32.totalorder %s40, %s43
      %p49 = scmp.eq.s32.totalorder %s9, 0
      %p50 = por %p48, %p49
      %p51 = scmp.ne.s32.totalorder %s40, %s43
      %p52 = scmp.eq.s32.totalorder %s14, 4
      %p53 = por %p51, %p52
      %p54 = scmp.ne.s32.totalorder %s43, %s44
      %p55 = scmp.eq.s32.totalorder %s14, 0
      %p56 = por %p54, %p55
      %p57 = scmp.ne.s32.totalorder %s43, %s44
      %p58 = scmp.eq.s32.totalorder %s15, 4
      %p59 = por %p57, %p58
      %p61 = scmp.ne.s32.totalorder %s44, %s60
      %p62 = scmp.eq.s32.totalorder %s15, 0
      %p63 = por %p61, %p62
      %s64 = ssub.s32 %s18, %s27
      %s65 = ssub.s32 %s17, %s31
      %s66 = sor.u32 %s64, %s65
      %p67 = scmp.eq.s32.totalorder %s66, 0
      %s69 = sadd.s32 %s68, 1
      %s70 = scalar_select %p67, %s68, %s69
      %p73 = pneg %p67
      %p74 = scmp.eq.s32.totalorder %s9, 4
      %p75 = por %p73, %p74
      %p76 = scmp.ne.s32.totalorder %s68, %s71
      %p77 = scmp.eq.s32.totalorder %s9, 0
      %p78 = por %p76, %p77
      %p79 = scmp.ne.s32.totalorder %s68, %s71
      %p80 = scmp.eq.s32.totalorder %s14, 4
      %p81 = por %p79, %p80
      %p82 = scmp.ne.s32.totalorder %s71, %s72
      %p83 = scmp.eq.s32.totalorder %s14, 0
      %p84 = por %p82, %p83
      %p85 = scmp.ne.s32.totalorder %s71, %s72
      %p86 = scmp.eq.s32.totalorder %s15, 4
      %p87 = por %p85, %p86
      %p89 = scmp.ne.s32.totalorder %s72, %s88
      %p90 = scmp.eq.s32.totalorder %s15, 0
      %p91 = por %p89, %p90
      %s92 = ssub.s32 %s17, %s31
      %p93 = scmp.eq.s32.totalorder %s92, 0
      %s95 = sadd.s32 %s94, 1
      %s96 = scalar_select %p93, %s94, %s95
      %p99 = pneg %p93
      %p100 = scmp.eq.s32.totalorder %s9, 4
      %p101 = por %p99, %p100
      %p102 = scmp.ne.s32.totalorder %s94, %s97
      %p103 = scmp.eq.s32.totalorder %s9, 0
      %p104 = por %p102, %p103
      %p105 = scmp.ne.s32.totalorder %s94, %s97
      %p106 = scmp.eq.s32.totalorder %s14, 4
      %p107 = por %p105, %p106
      %p108 = scmp.ne.s32.totalorder %s97, %s98
      %p109 = scmp.eq.s32.totalorder %s14, 0
      %p110 = por %p108, %p109
      %p111 = scmp.ne.s32.totalorder %s97, %s98
      %p112 = scmp.eq.s32.totalorder %s15, 4
      %p113 = por %p111, %p112
      %p115 = scmp.ne.s32.totalorder %s98, %s114
      %p116 = scmp.eq.s32.totalorder %s15, 0
      %p117 = por %p115, %p116
      %s118 = ssub.s32 %s16, %s35
      %s119 = ssub.s32 %s17, %s31
      %s120 = sor.u32 %s118, %s119
      %p121 = scmp.eq.s32.totalorder %s120, 0
      %s123 = sadd.s32 %s122, 1
      %s124 = scalar_select %p121, %s122, %s123
      %p127 = pneg %p121
      %p128 = scmp.eq.s32.totalorder %s9, 4
      %p129 = por %p127, %p128
      %p130 = scmp.ne.s32.totalorder %s122, %s125
      %p131 = scmp.eq.s32.totalorder %s9, 0
      %p132 = por %p130, %p131
      %p133 = scmp.ne.s32.totalorder %s122, %s125
      %p134 = scmp.eq.s32.totalorder %s14, 4
      %p135 = por %p133, %p134
      %p136 = scmp.ne.s32.totalorder %s125, %s126
      %p137 = scmp.eq.s32.totalorder %s14, 0
      %p138 = por %p136, %p137
      %p139 = scmp.ne.s32.totalorder %s125, %s126
      %p140 = scmp.eq.s32.totalorder %s15, 4
      %p141 = por %p139, %p140
      %p143 = scmp.ne.s32.totalorder %s126, %s142
      %p144 = scmp.eq.s32.totalorder %s15, 0
      %p145 = por %p143, %p144
      %p146 = scmp.le.s32.totalorder 1, %s9
      %p147 = scmp.lt.s32.totalorder %s9, 6
      %p148 = pnand %p146, %p147
      %p149 = pneg %p148
      // Predicated region
      $region9: #{flux_forward.28} parent=5 // pred_check
        _
      $region10: #{flux_forward.28} parent=5 // pred_check_branch
        %151 = sbr.rel (%p148) target = $region12
      $region11: #{flux_forward.28} parent=5 // pred_region
        %s152 = ssub.s32 %s9, 1
        // Predicated region
        $region13: #{flux_forward.28} parent=11 // pred_check
          %p153 = pneg %p110
        $region14: #{flux_forward.28} parent=11 // pred_check_branch
          %155 = sbr.rel (%p153) target = $region16
        $region15: #{flux_forward.28} parent=11 // pred_region
          %p156 = scmp.lt.s32.totalorder %s20, 0
          %s157 = scalar_select %p156, %s20, 0
          %s158 = scalar_lea.vmem %s2, %s157
        $region16: #{flux_forward.28} parent=11 // pred_fallthru
          _
      $region12: #{flux_forward.28} parent=5 // pred_fallthru
        _
      %p159 = scmp.lt.s32.totalorder %s9, 5
      // Predicated region
      $region17: #{flux_forward.28} parent=5 // pred_check
        %p160 = pneg %p159
      $region18: #{flux_forward.28} parent=5 // pred_check_branch
        %162 = sbr.rel (%p160) target = $region20
      $region19: #{flux_forward.28} parent=5 // pred_region
        // Predicated region
        $region21: #{flux_forward.28} parent=19 // pred_check
          %p163 = pneg %p50
        $region22: #{flux_forward.28} parent=19 // pred_check_branch
          %165 = sbr.rel (%p163) target = $region24
        $region23: #{flux_forward.28} parent=19 // pred_region
          %s166 = sand.u32 %s40, 1
          %s167 = sand.u32 %s40, 1
          %s168 = smul.addr %s167, 32
          %s169 = scalar_lea.vmem [#allocation3], %s168
          %s170 = smul.u32 8, %s16
          %s171 = smul.addr %s170, 5
          %s172 = sadd.s32 %s18, %s171
          %s173 = smul.addr %s172, 4
          %s174 = scalar_lea.vmem %s0, %s173
          // Predicated region
          $region25: #{flux_forward.28} parent=23 // pred_check
            _
          $region26: #{flux_forward.28} parent=23 // pred_check_branch
            %176 = sbr.rel (0) target = $region28
          $region27: #{flux_forward.28} parent=23 // pred_region
            // Predicated region
            $region29: #{flux_forward.28} parent=27 // pred_check
              _
            $region30: #{flux_forward.28} parent=27 // pred_check_branch
              %178 = sbr.rel target = $region32
            $region31: #{flux_forward.28} parent=27 // pred_region
              // Predicated region
              $region44: #{flux_forward.28} parent=31 // pred_check
                _
              $region45: #{flux_forward.28} parent=31 // pred_check_branch
                %207 = sbr.rel (0) target = $region47
              $region46: #{flux_forward.28} parent=31 // pred_region
                loop: start=0, step=1, limit=1
                $region48: #{flux_forward.28} parent=46 // loop_pre_header
                  _
                $region49: #{flux_forward.28} parent=46 // loop_header
                  %s209 = sphi 0, %s213
                  %p210 = scmp.ge.s32.totalorder %s209, 1
                  %s214 = sphi %s174, %s174
                  %s215 = sphi %s169, %s169
                $region50: #{flux_forward.28} parent=46 // loop_header_branch
                  %212 = sbr.rel (%p210) target = $region54
                $region51: #{flux_forward.28} parent=46 // loop_body
                  _
                $region52: #{flux_forward.28} parent=46 // loop_footer
                  %s213 = sadd.s32 1, %s209
                $region53: #{flux_forward.28} parent=46 // loop_footer_branch
                  %208 = sbr.rel target = $region49
                $region54: #{flux_forward.28} parent=46 // loop_exit
                  _
                loop: start=0, step=1, limit=1
                $region55: #{flux_forward.28} parent=46 // loop_pre_header
                  _
                $region56: #{flux_forward.28} parent=46 // loop_header
                  %s218 = sphi 0, %s222
                  %p219 = scmp.ge.s32.totalorder %s218, 1
                  %s223 = sphi %s174, %s174
                  %s224 = sphi %s169, %s169
                $region57: #{flux_forward.28} parent=46 // loop_header_branch
                  %221 = sbr.rel (%p219) target = $region61
                $region58: #{flux_forward.28} parent=46 // loop_body
                  %v225 = vld [vmem:[%s223] sm:$0xf]
                  %226 = vst [vmem:[%s224] sm:$0xf] %v225
                  %v227 = vld [vmem:[%s223 + $0x14] sm:$0xf]
                  %228 = vst [vmem:[%s224 + $0x4] sm:$0xf] %v227
                  %v229 = vld [vmem:[%s223 + $0x28] sm:$0xf]
                  %230 = vst [vmem:[%s224 + $0x8] sm:$0xf] %v229
                  %v231 = vld [vmem:[%s223 + $0x3c] sm:$0xf]
                  %232 = vst [vmem:[%s224 + $0xc] sm:$0xf] %v231
                  %v233 = vld [vmem:[%s223 + $0x50] sm:$0xf]
                  %234 = vst [vmem:[%s224 + $0x10] sm:$0xf] %v233
                  %v235 = vld [vmem:[%s223 + $0x64] sm:$0xf]
                  %236 = vst [vmem:[%s224 + $0x14] sm:$0xf] %v235
                  %v237 = vld [vmem:[%s223 + $0x78] sm:$0xf]
                  %238 = vst [vmem:[%s224 + $0x18] sm:$0xf] %v237
                  %v239 = vld [vmem:[%s223 + $0x8c] sm:$0xf]
                  %240 = vst [vmem:[%s224 + $0x1c] sm:$0xf] %v239
                $region59: #{flux_forward.28} parent=46 // loop_footer
                  %s222 = sadd.s32 1, %s218
                $region60: #{flux_forward.28} parent=46 // loop_footer_branch
                  %217 = sbr.rel target = $region56
                $region61: #{flux_forward.28} parent=46 // loop_exit
                  _
              $region47: #{flux_forward.28} parent=31 // pred_fallthru
                _
            $region32: #{flux_forward.28} parent=27 // pred_fallthru
              _
            // Predicated region
            $region33: #{flux_forward.28} parent=27 // pred_check
              _
            $region34: #{flux_forward.28} parent=27 // pred_check_branch
              %180 = sbr.rel (0) target = $region36
            $region35: #{flux_forward.28} parent=27 // pred_region
              loop: start=0, step=1, limit=1
              $region37: #{flux_forward.28} parent=35 // loop_pre_header
                _
              $region38: #{flux_forward.28} parent=35 // loop_header
                %s183 = sphi 0, %s187
                %p184 = scmp.ge.s32.totalorder %s183, 1
                %s188 = sphi %s174, %s174
                %s189 = sphi %s169, %s169
              $region39: #{flux_forward.28} parent=35 // loop_header_branch
                %186 = sbr.rel (%p184) target = $region43
              $region40: #{flux_forward.28} parent=35 // loop_body
                %v190 = vld [vmem:[%s188] sm:$0xf]
                %191 = vst [vmem:[%s189] sm:$0xf] %v190
                %v192 = vld [vmem:[%s188 + $0x14] sm:$0xf]
                %193 = vst [vmem:[%s189 + $0x4] sm:$0xf] %v192
                %v194 = vld [vmem:[%s188 + $0x28] sm:$0xf]
                %195 = vst [vmem:[%s189 + $0x8] sm:$0xf] %v194
                %v196 = vld [vmem:[%s188 + $0x3c] sm:$0xf]
                %197 = vst [vmem:[%s189 + $0xc] sm:$0xf] %v196
                %v198 = vld [vmem:[%s188 + $0x50] sm:$0xf]
                %199 = vst [vmem:[%s189 + $0x10] sm:$0xf] %v198
                %v200 = vld [vmem:[%s188 + $0x64] sm:$0xf]
                %201 = vst [vmem:[%s189 + $0x14] sm:$0xf] %v200
                %v202 = vld [vmem:[%s188 + $0x78] sm:$0xf]
                %203 = vst [vmem:[%s189 + $0x18] sm:$0xf] %v202
                %v204 = vld [vmem:[%s188 + $0x8c] sm:$0xf]
                %205 = vst [vmem:[%s189 + $0x1c] sm:$0xf] %v204
              $region41: #{flux_forward.28} parent=35 // loop_footer
                %s187 = sadd.s32 1, %s183
              $region42: #{flux_forward.28} parent=35 // loop_footer_branch
                %182 = sbr.rel target = $region38
              $region43: #{flux_forward.28} parent=35 // loop_exit
                _
            $region36: #{flux_forward.28} parent=27 // pred_fallthru
              _
          $region28: #{flux_forward.28} parent=23 // pred_fallthru
            _
          %241 = vnop
        $region24: #{flux_forward.28} parent=19 // pred_fallthru
          _
        // Predicated region
        $region62: #{flux_forward.28} parent=19 // pred_check
          %p242 = pneg %p78
        $region63: #{flux_forward.28} parent=19 // pred_check_branch
          %244 = sbr.rel (%p242) target = $region65
        $region64: #{flux_forward.28} parent=19 // pred_region
          %s245 = smul.u32 16, %s18
          %p246 = scmp.lt.s32.totalorder %s245, 79
          %s247 = scalar_select %p246, %s245, 79
          %p248 = scmp.lt.s32.totalorder %s17, 0
          %s249 = scalar_select %p248, %s17, 0
          %s250 = sadd.s32 %s249, %s247
          %s251 = smul.addr %s250, 4
          %s252 = scalar_lea.vmem %s1, %s251
          %s253 = smul.u32 16, %s18
        $region65: #{flux_forward.28} parent=19 // pred_fallthru
          _
      $region20: #{flux_forward.28} parent=5 // pred_fallthru
        _
      %p254 = scmp.le.s32.totalorder 1, %s9
      %p255 = scmp.lt.s32.totalorder %s9, 6
      %p256 = pnand %p254, %p255
      %p257 = pneg %p256
      // Predicated region
      $region66: #{flux_forward.28} parent=5 // pred_check
        _
      $region67: #{flux_forward.28} parent=5 // pred_check_branch
        %259 = sbr.rel (%p256) target = $region69
      $region68: #{flux_forward.28} parent=5 // pred_region
        %s260 = ssub.s32 %s9, 1
        %s261 = sand.u32 %s43, 1
        %s262 = sand.u32 %s43, 1
        %s263 = smul.addr %s262, 32
        %s264 = scalar_lea.vmem [#allocation3], %s263
        // Predicated region
        $region70: #{flux_forward.28} parent=68 // pred_check
          %p265 = pneg %p56
        $region71: #{flux_forward.28} parent=68 // pred_check_branch
          %267 = sbr.rel (%p265) target = $region73
        $region72: #{flux_forward.28} parent=68 // pred_region
          _
        $region73: #{flux_forward.28} parent=68 // pred_fallthru
          _
        %s268 = sand.u32 %s43, 1
        %s269 = sand.u32 %s43, 1
        %s270 = smul.addr %s269, 32
        %s271 = scalar_lea.vmem [#allocation3], %s270
        %p272 = pneg %p56
        %p273 = pneg %p53
        %s274 = smul.u32 16, %s21
        %p275 = scmp.lt.s32.totalorder %s274, 79
        %s276 = scalar_select %p275, %s274, 79
        %p277 = scmp.lt.s32.totalorder %s20, 0
        %s278 = scalar_select %p277, %s20, 0
        %s279 = sadd.s32 %s278, %s276
        %s280 = smul.addr %s279, 4
        %s281 = scalar_lea.vmem %s1, %s280
        %p282 = pneg %p84
        %p283 = pneg %p81
        %p284 = scmp.lt.s32.totalorder %s20, 0
        %s285 = scalar_select %p284, %s20, 0
        %s286 = scalar_lea.vmem %s2, %s285
        %p287 = pneg %p110
        %p288 = pneg %p107
        %p289 = pneg %p138
        %p290 = pneg %p135
        %s291 = smul.u32 8, %s19
        %p292 = scmp.lt.s32.totalorder %s291, 7
        %s293 = scalar_select %p292, %s291, 7
        %p294 = scmp.lt.s32.totalorder %s20, 0
        %s295 = scalar_select %p294, %s20, 0
        %s296 = sadd.s32 %s295, %s293
        %s297 = smul.addr %s296, 8
        %s298 = scalar_lea.vmem %s3, %s297
        %s299 = smul.u32 8, %s19
        %s300 = smul.u32 16, %s21
        %p301 = scmp.lt.s32.totalorder %s300, 79
        %s302 = scalar_select %p301, %s300, 79
        %p303 = scmp.lt.s32.totalorder %s20, 0
        %s304 = scalar_select %p303, %s20, 0
        %s305 = sadd.s32 %s304, %s302
        %s306 = smul.addr %s305, 4
        %s307 = scalar_lea.vmem %s1, %s306
        %s308 = smul.u32 16, %s21
        %p309 = scmp.lt.s32.totalorder %s20, 0
        %s310 = scalar_select %p309, %s20, 0
        %s311 = scalar_lea.vmem %s2, %s310
        %s312 = smul.u32 8, %s19
        %p313 = scmp.lt.s32.totalorder %s312, 7
        %s314 = scalar_select %p313, %s312, 7
        %p315 = scmp.lt.s32.totalorder %s20, 0
        %s316 = scalar_select %p315, %s20, 0
        %s317 = sadd.s32 %s316, %s314
        %s318 = smul.addr %s317, 8
        %s319 = scalar_lea.vmem %s3, %s318
        %s320 = smul.u32 8, %s19
        %p322 = scmp.eq.s32.totalorder %s21, 0
        // Predicated region
        $region74: #{flux_forward.28} parent=68 // pred_check
          %p323 = pneg %p322
        $region75: #{flux_forward.28} parent=68 // pred_check_branch
          %325 = sbr.rel (%p323) target = $region77
        $region76: #{flux_forward.28} parent=68 // pred_region
          %326 = vst [vmem:[#allocation2] sm:$0xff] 0.0
          %327 = vst [vmem:[#allocation2 + $0x8] sm:$0xff] 0.0
          %328 = vst [vmem:[#allocation2 + $0x10] sm:$0xff] 0.0
          %329 = vst [vmem:[#allocation2 + $0x18] sm:$0xff] 0.0
          %330 = vst [vmem:[#allocation2 + $0x20] sm:$0xff] 0.0
          %331 = vst [vmem:[#allocation2 + $0x28] sm:$0xff] 0.0
          %332 = vst [vmem:[#allocation2 + $0x30] sm:$0xff] 0.0
          %333 = vst [vmem:[#allocation2 + $0x38] sm:$0xff] 0.0
        $region77: #{flux_forward.28} parent=68 // pred_fallthru
          _
        %v334 = vld [vmem:[#allocation2] sm:$0xff]
        %v335 = vld [vmem:[#allocation2 + $0x8] sm:$0xff]
        %v336 = vld [vmem:[#allocation2 + $0x10] sm:$0xff]
        %v337 = vld [vmem:[#allocation2 + $0x18] sm:$0xff]
        %v338 = vld [vmem:[#allocation2 + $0x20] sm:$0xff]
        %v339 = vld [vmem:[#allocation2 + $0x28] sm:$0xff]
        %v340 = vld [vmem:[#allocation2 + $0x30] sm:$0xff]
        %v341 = vld [vmem:[#allocation2 + $0x38] sm:$0xff]
        %v342 = vld [vmem:[%s264] sm:$0xf]
        %v343 = vld [vmem:[%s264 + $0x4] sm:$0xf]
        %v344 = vld [vmem:[%s264 + $0x8] sm:$0xf]
        %v345 = vld [vmem:[%s264 + $0xc] sm:$0xf]
        %v346 = vld [vmem:[%s264 + $0x10] sm:$0xf]
        %v347 = vld [vmem:[%s264 + $0x14] sm:$0xf]
        %v348 = vld [vmem:[%s264 + $0x18] sm:$0xf]
        %v349 = vld [vmem:[%s264 + $0x1c] sm:$0xf]
        %v350 = vld [vmem:[%s307] sm:$0xf]
        %v351 = vld [vmem:[%s307 + $0x4] sm:$0xf]
        %v352 = vld [vmem:[%s307 + $0x8] sm:$0xf]
        %v353 = vld [vmem:[%s307 + $0xc] sm:$0xf]
        %v354 = vld [vmem:[%s307 + $0x10] sm:$0xf]
        %v355 = vld [vmem:[%s307 + $0x14] sm:$0xf]
        %v356 = vld [vmem:[%s307 + $0x18] sm:$0xf]
        %v357 = vld [vmem:[%s307 + $0x1c] sm:$0xf]
        %v358 = vld [vmem:[%s307 + $0x20] sm:$0xf]
        %v359 = vld [vmem:[%s307 + $0x24] sm:$0xf]
        %v360 = vld [vmem:[%s307 + $0x28] sm:$0xf]
        %v361 = vld [vmem:[%s307 + $0x2c] sm:$0xf]
        %v362 = vld [vmem:[%s307 + $0x30] sm:$0xf]
        %v363 = vld [vmem:[%s307 + $0x34] sm:$0xf]
        %v364 = vld [vmem:[%s307 + $0x38] sm:$0xf]
        %v365 = vld [vmem:[%s307 + $0x3c] sm:$0xf]
        %v374 = vunpack.c.l.b16 %v342
        %v375 = vunpack.c.l.b16 %v343
        %v376 = vunpack.c.l.b16 %v344
        %v377 = vunpack.c.l.b16 %v345
        %v378 = vunpack.c.l.b16 %v346
        %v379 = vunpack.c.l.b16 %v347
        %v380 = vunpack.c.l.b16 %v348
        %v381 = vunpack.c.l.b16 %v349
        %v382 = vpack.c.b16 %v375, %v374
        %v383 = vpack.c.b16 %v377, %v376
        %v384 = vpack.c.b16 %v379, %v378
        %v385 = vpack.c.b16 %v381, %v380
        %v406 = vunpack.c.l.b16 %v350
        %v407 = vunpack.c.l.b16 %v351
        %v408 = vunpack.c.l.b16 %v352
        %v409 = vunpack.c.l.b16 %v353
        %v410 = vunpack.c.l.b16 %v354
        %v411 = vunpack.c.l.b16 %v355
        %v412 = vunpack.c.l.b16 %v356
        %v413 = vunpack.c.l.b16 %v357
        %v414 = vunpack.c.l.b16 %v358
        %v415 = vunpack.c.l.b16 %v359
        %v416 = vunpack.c.l.b16 %v360
        %v417 = vunpack.c.l.b16 %v361
        %v418 = vunpack.c.l.b16 %v362
        %v419 = vunpack.c.l.b16 %v363
        %v420 = vunpack.c.l.b16 %v364
        %v421 = vunpack.c.l.b16 %v365
        %v422 = vpack.c.b16 %v407, %v406
        %v423 = vpack.c.b16 %v409, %v408
        %v424 = vpack.c.b16 %v411, %v410
        %v425 = vpack.c.b16 %v413, %v412
        %v426 = vpack.c.b16 %v415, %v414
        %v427 = vpack.c.b16 %v417, %v416
        %v428 = vpack.c.b16 %v419, %v418
        %v429 = vpack.c.b16 %v421, %v420
        %438 = vmatprep.subr.bf16.mxu0 0
        %439 = vmatpush1.bf16.msra.mxu0 %v422
        %440 = vmatprep.subr.bf16.mxu0 0
        %441 = vmatpush1.bf16.msra.mxu0 %v423
        %442 = vmatprep.subr.bf16.mxu0 0
        %443 = vmatpush1.bf16.msra.mxu0 %v424
        %444 = vmatprep.subr.bf16.mxu0 0
        %445 = vmatpush1.bf16.msra.mxu0 %v425
        %446 = vmatprep.subr.bf16.mxu0 0
        %447 = vmatpush1.bf16.msra.mxu0 %v426
        %448 = vmatprep.subr.bf16.mxu0 0
        %449 = vmatpush1.bf16.msra.mxu0 %v427
        %450 = vmatprep.subr.bf16.mxu0 0
        %451 = vmatpush1.bf16.msra.mxu0 %v428
        %452 = vmatprep.subr.bf16.mxu0 0
        %453 = vmatpush1.bf16.msra.mxu0 %v429
        %454 = vmatprep.subr.bf16.mxu0 0
        %455 = vmatpush1.bf16.msra.mxu0 0
        %456 = vmatprep.subr.bf16.mxu0 0
        %457 = vmatpush1.bf16.msra.mxu0 0
        %458 = vmatprep.subr.bf16.mxu0 0
        %459 = vmatpush1.bf16.msra.mxu0 0
        %460 = vmatprep.subr.bf16.mxu0 0
        %461 = vmatpush1.bf16.msra.mxu0 0
        %462 = vmatprep.subr.bf16.mxu0 0
        %463 = vmatpush1.bf16.msra.mxu0 0
        %464 = vmatprep.subr.bf16.mxu0 0
        %465 = vmatpush1.bf16.msra.mxu0 0
        %466 = vmatprep.subr.bf16.mxu0 0
        %467 = vmatpush1.bf16.msra.mxu0 0
        %468 = vmatprep.subr.bf16.mxu0 0
        %469 = vmatpush1.bf16.msra.mxu0 0
        %470 = vmatprep.mubr.bf16.mxu0 0
        %471 = vmatmul.mubr.bf16.gmra.mrb[0].mxu0 %v382
        %v472 = vpop.f32.mrb[0].mxu0
        %v473 = vadd.f32 0.0, %v472
        %v474 = vpop.f32.mrb[0].mxu0
        %v475 = vpop.f32.mrb[0].mxu0
        %v476 = vadd.f32 0.0, %v475
        %v477 = vpop.f32.mrb[0].mxu0
        %478 = vmatprep.mubr.bf16.mxu0 0
        %479 = vmatmul.mubr.bf16.gmra.mrb[0].mxu0 %v383
        %v480 = vpop.f32.mrb[0].mxu0
        %v481 = vadd.f32 0.0, %v480
        %v482 = vpop.f32.mrb[0].mxu0
        %v483 = vpop.f32.mrb[0].mxu0
        %v484 = vadd.f32 0.0, %v483
        %v485 = vpop.f32.mrb[0].mxu0
        %486 = vmatprep.mubr.bf16.mxu0 0
        %487 = vmatmul.mubr.bf16.gmra.mrb[0].mxu0 %v384
        %v488 = vpop.f32.mrb[0].mxu0
        %v489 = vadd.f32 0.0, %v488
        %v490 = vpop.f32.mrb[0].mxu0
        %v491 = vpop.f32.mrb[0].mxu0
        %v492 = vadd.f32 0.0, %v491
        %v493 = vpop.f32.mrb[0].mxu0
        %494 = vmatprep.mubr.bf16.mxu0 0
        %495 = vmatmul.mubr.bf16.gmra.mrb[0].mxu0 %v385
        %v496 = vpop.f32.mrb[0].mxu0
        %v497 = vadd.f32 0.0, %v496
        %v498 = vpop.f32.mrb[0].mxu0
        %v499 = vpop.f32.mrb[0].mxu0
        %v500 = vadd.f32 0.0, %v499
        %v501 = vpop.f32.mrb[0].mxu0
        %502 = vdwg.mxu0
        %v503 = vadd.f32 %v334, %v473
        %v504 = vadd.f32 %v335, %v476
        %v505 = vadd.f32 %v336, %v481
        %v506 = vadd.f32 %v337, %v484
        %v507 = vadd.f32 %v338, %v489
        %v508 = vadd.f32 %v339, %v492
        %v509 = vadd.f32 %v340, %v497
        %v510 = vadd.f32 %v341, %v500
        %511 = vst [vmem:[#allocation2] sm:$0xff] %v503
        %512 = vst [vmem:[#allocation2 + $0x8] sm:$0xff] %v504
        %513 = vst [vmem:[#allocation2 + $0x10] sm:$0xff] %v505
        %514 = vst [vmem:[#allocation2 + $0x18] sm:$0xff] %v506
        %515 = vst [vmem:[#allocation2 + $0x20] sm:$0xff] %v507
        %516 = vst [vmem:[#allocation2 + $0x28] sm:$0xff] %v508
        %517 = vst [vmem:[#allocation2 + $0x30] sm:$0xff] %v509
        %518 = vst [vmem:[#allocation2 + $0x38] sm:$0xff] %v510
        %p519 = scmp.eq.s32.totalorder %s21, 4
        // Predicated region
        $region78: #{flux_forward.28} parent=68 // pred_check
          %p520 = pneg %p519
        $region79: #{flux_forward.28} parent=68 // pred_check_branch
          %522 = sbr.rel (%p520) target = $region81
        $region80: #{flux_forward.28} parent=68 // pred_region
          %v523 = vld [vmem:[#allocation2] sm:$0xff]
          %v524 = vld [vmem:[#allocation2 + $0x8] sm:$0xff]
          %v525 = vld [vmem:[#allocation2 + $0x10] sm:$0xff]
          %v526 = vld [vmem:[#allocation2 + $0x18] sm:$0xff]
          %v527 = vld [vmem:[#allocation2 + $0x20] sm:$0xff]
          %v528 = vld [vmem:[#allocation2 + $0x28] sm:$0xff]
          %v529 = vld [vmem:[#allocation2 + $0x30] sm:$0xff]
          %v530 = vld [vmem:[#allocation2 + $0x38] sm:$0xff]
          %v531 = vld [vmem:[%s311] sm:$0x1]
          %v533 = vlaneseq
          %v534 = vshrl.u32 %v533, 7
          %v535 = vsub.s32 0, %v534
          %v536 = vrot.slane %v531, %v535
          %v538 = vadd.f32 %v523, %v536
          %v539 = vadd.f32 %v524, %v536
          %v540 = vadd.f32 %v525, %v536
          %v541 = vadd.f32 %v526, %v536
          %v542 = vadd.f32 %v527, %v536
          %v543 = vadd.f32 %v528, %v536
          %v544 = vadd.f32 %v529, %v536
          %v545 = vadd.f32 %v530, %v536
          %546 = vst [vmem:[%s319] sm:$0xff] %v538
          %547 = vst [vmem:[%s319 + $0x8] sm:$0xff] %v539
          %548 = vst [vmem:[%s319 + $0x10] sm:$0xff] %v540
          %549 = vst [vmem:[%s319 + $0x18] sm:$0xff] %v541
          %550 = vst [vmem:[%s319 + $0x20] sm:$0xff] %v542
          %551 = vst [vmem:[%s319 + $0x28] sm:$0xff] %v543
          %552 = vst [vmem:[%s319 + $0x30] sm:$0xff] %v544
          %553 = vst [vmem:[%s319 + $0x38] sm:$0xff] %v545
        $region81: #{flux_forward.28} parent=68 // pred_fallthru
          _
        %s554 = smul.u32 8, %s19
        %p555 = scmp.lt.s32.totalorder %s554, 7
        %s556 = scalar_select %p555, %s554, 7
        %p557 = scmp.lt.s32.totalorder %s20, 0
        %s558 = scalar_select %p557, %s20, 0
        %s559 = sadd.s32 %s558, %s556
        %s560 = smul.addr %s559, 8
        %s561 = scalar_lea.vmem %s3, %s560
        // Predicated region
        $region82: #{flux_forward.28} parent=68 // pred_check
          %p562 = pneg %p135
        $region83: #{flux_forward.28} parent=68 // pred_check_branch
          %564 = sbr.rel (%p562) target = $region85
        $region84: #{flux_forward.28} parent=68 // pred_region
          %s565 = smul.u32 8, %s19
        $region85: #{flux_forward.28} parent=68 // pred_fallthru
          _
        // Predicated region
        $region86: #{flux_forward.28} parent=68 // pred_check
          %p566 = pneg %p135
        $region87: #{flux_forward.28} parent=68 // pred_check_branch
          %568 = sbr.rel (%p566) target = $region89
        $region88: #{flux_forward.28} parent=68 // pred_region
          %s569 = smul.u32 8, %s19
          %p570 = scmp.lt.s32.totalorder %s569, 7
          %s571 = scalar_select %p570, %s569, 7
          %p572 = scmp.lt.s32.totalorder %s20, 0
          %s573 = scalar_select %p572, %s20, 0
          %s574 = sadd.s32 %s573, %s571
          %s575 = smul.addr %s574, 8
          %s576 = scalar_lea.vmem %s3, %s575
        $region89: #{flux_forward.28} parent=68 // pred_fallthru
          _
      $region69: #{flux_forward.28} parent=5 // pred_fallthru
        _
      %p577 = scmp.le.s32.totalorder 2, %s9
      // Predicated region
      $region90: #{flux_forward.28} parent=5 // pred_check
        %p578 = pneg %p577
      $region91: #{flux_forward.28} parent=5 // pred_check_branch
        %580 = sbr.rel (%p578) target = $region93
      $region92: #{flux_forward.28} parent=5 // pred_region
        %s581 = ssub.s32 %s9, 2
      $region93: #{flux_forward.28} parent=5 // pred_fallthru
        _
    $region6: #{flux_forward.28} parent=1 // loop_footer
      %s13 = sadd.s32 1, %s9
    $region7: #{flux_forward.28} parent=1 // loop_footer_branch
      %8 = sbr.rel target = $region3
    $region8: #{flux_forward.28} parent=1 // loop_exit
      _

</llo_original>
